<compile_context>
chip_gen: v7x
topology: tpu7x:2x2x1
jax: 0.10.0
libtpu: 0.0.40
codegen_flags: <defaults>
</compile_context>

<pallas_src>
import functools

import jax
import jax.numpy as jnp
import numpy as np
from jax.experimental import pallas as pl
from jax.experimental.pallas import tpu as pltpu


# ----------------------------- VMEM / tiling helpers ------------------------


def _vmem_limit_bytes():
    try:
        cap = pltpu.get_tpu_info().vmem_capacity_bytes
    except Exception:
        cap = 64 * 1024 * 1024            # conservative (v7x physical)
    return max(32 * 1024 * 1024, min(int(cap * 3 // 4), 112 * 1024 * 1024))


_VMEM_LIMIT = _vmem_limit_bytes()


def _pick_row_tile(total_rows, row_bytes, budget):
    """Largest legal row tile: full dim if it fits, else largest mult-of-8 divisor."""
    if total_rows * row_bytes <= budget:
        return total_rows
    best = 0
    for r in range(8, total_rows, 8):
        if total_rows % r == 0 and r * row_bytes <= budget:
            best = r
    return best if best > 0 else total_rows


# ----------------------------- Pallas kernels ------------------------------


def _conv_core(x, w_ref, y_ref, sum_ref, ssq_ref, pad_ref, col_ref, *, H, W, Cin):
    """Shared conv body: in-VMEM zero pad, im2col into K bands, one MXU matmul."""
    # zero-padded image in VMEM (border stays zero; interior overwritten each step)
    pad_ref[...] = jnp.zeros_like(pad_ref)
    pad_ref[1:H + 1, 1:W + 1, :] = x
    # copy the 9 shifted windows into the K-column bands of the im2col slab
    for dy in range(3):
        for dx in range(3):
            k = dy * 3 + dx
            col_ref[:, :, k * Cin:(k + 1) * Cin] = pad_ref[dy:dy + H, dx:dx + W, :]
    # single (H*W, 9*Cin) x (9*Cin, Cout) matmul, f32 accumulation
    col = col_ref[...].reshape(H * W, 9 * Cin)
    acc = jnp.dot(col, w_ref[...], preferred_element_type=jnp.float32)
    y_ref[0] = acc.astype(y_ref.dtype)
    # partial BN statistics for this image (finalized across the batch in XLA)
    sum_ref[0] = jnp.sum(acc, axis=0, keepdims=True)
    ssq_ref[0] = jnp.sum(acc * acc, axis=0, keepdims=True)


def _conv_stats_kernel(x_ref, w_ref, y_ref, sum_ref, ssq_ref, pad_ref, col_ref,
                       *, H, W, Cin):
    _conv_core(x_ref[0], w_ref, y_ref, sum_ref, ssq_ref, pad_ref, col_ref,
               H=H, W=W, Cin=Cin)


def _act_conv_stats_kernel(x_ref, sc_ref, sh_ref, w_ref, y_ref, sum_ref, ssq_ref,
                           pad_ref, col_ref, *, H, W, Cin):
    """Fused: BN FMA + ReLU on the previous raw conv output, then conv3x3 + stats."""
    a = x_ref[0].astype(jnp.float32)                     # (H, W, Cin)
    sc = sc_ref[...].reshape(1, 1, Cin)
    sh = sh_ref[...].reshape(1, 1, Cin)
    a = jnp.maximum(a * sc + sh, 0.0).astype(jnp.bfloat16)
    _conv_core(a, w_ref, y_ref, sum_ref, ssq_ref, pad_ref, col_ref,
               H=H, W=W, Cin=Cin)


def _bn_relu_kernel(y_ref, sc_ref, sh_ref, o_ref):
    """Fused BN FMA (y*scale + shift) + ReLU on a lane-dense slab."""
    y = y_ref[...].astype(jnp.float32)
    o_ref[...] = jnp.maximum(y * sc_ref[...] + sh_ref[...], 0.0).astype(o_ref.dtype)


def _bn_relu_pool_kernel(y_ref, sc_ref, sh_ref, sel_ref, full_ref, pool_ref,
                         *, WC, WhC):
    """Fused BN FMA + ReLU + 2x2 maxpool; writes full and pooled outputs."""
    y = y_ref[0].astype(jnp.float32)                      # (TH2, 2*WC): lanes = (h_par, w, c)
    y = jnp.maximum(y * sc_ref[...] + sh_ref[...], 0.0)
    full_ref[0] = y.astype(full_ref.dtype)                # lane-dense store
    ph = jnp.maximum(y[:, :WC], y[:, WC:])                # pool over h-pairs (clean halves)
    # pool over w-pairs: one bf16 0/1 selection matmul producing [even | odd] halves
    both = jnp.dot(ph.astype(jnp.bfloat16), sel_ref[...],
                   preferred_element_type=jnp.float32)    # (TH2, 2*WhC)
    pool_ref[0] = jnp.maximum(both[:, :WhC], both[:, WhC:]).astype(pool_ref.dtype)


# --------------------------- kernel wrappers --------------------------------


def conv3x3_stats(x_nhwc, w2d):
    """x_nhwc: (N, H, W, Cin) bf16 (unpadded), w2d: (9*Cin, Cout) bf16.
    Returns y_raw (N, H*W, Cout) bf16, sum (N,1,Cout) f32, sumsq (N,1,Cout) f32."""
    N, H, W, Cin = x_nhwc.shape
    Cout = w2d.shape[-1]
    kernel = functools.partial(_conv_stats_kernel, H=H, W=W, Cin=Cin)
    flops = 2 * N * H * W * 9 * Cin * Cout
    bytes_accessed = (x_nhwc.size * 2 + w2d.size * 2
                      + N * H * W * Cout * 2 + 2 * N * Cout * 4)
    return pl.pallas_call(
        kernel,
        out_shape=(
            jax.ShapeDtypeStruct((N, H * W, Cout), jnp.bfloat16),
            jax.ShapeDtypeStruct((N, 1, Cout), jnp.float32),
            jax.ShapeDtypeStruct((N, 1, Cout), jnp.float32),
        ),
        grid=(N,),
        in_specs=[
            pl.BlockSpec((1, H, W, Cin), lambda n: (n, 0, 0, 0)),
            pl.BlockSpec((9 * Cin, Cout), lambda n: (0, 0)),
        ],
        out_specs=(
            pl.BlockSpec((1, H * W, Cout), lambda n: (n, 0, 0)),
            pl.BlockSpec((1, 1, Cout), lambda n: (n, 0, 0)),
            pl.BlockSpec((1, 1, Cout), lambda n: (n, 0, 0)),
        ),
        scratch_shapes=[
            pltpu.VMEM((H + 2, W + 2, Cin), jnp.bfloat16),   # zero-padded image
            pltpu.VMEM((H, W, 9 * Cin), jnp.bfloat16),       # im2col slab
        ],
        compiler_params=pltpu.CompilerParams(
            dimension_semantics=("parallel",),
            vmem_limit_bytes=_VMEM_LIMIT),
        cost_estimate=pl.CostEstimate(flops=flops, transcendentals=0,
                                      bytes_accessed=bytes_accessed),
    )(x_nhwc, w2d)


def act_conv3x3_stats(y_prev_nhwc, scale, shift, w2d):
    """Fused (BN FMA + ReLU on y_prev) -> conv3x3 -> stats.
    y_prev_nhwc: (N, H, W, Cin) bf16 raw conv output of the previous stage."""
    N, H, W, Cin = y_prev_nhwc.shape
    Cout = w2d.shape[-1]
    sc = scale.astype(jnp.float32).reshape(1, Cin)
    sh = shift.astype(jnp.float32).reshape(1, Cin)
    kernel = functools.partial(_act_conv_stats_kernel, H=H, W=W, Cin=Cin)
    flops = 2 * N * H * W * 9 * Cin * Cout
    bytes_accessed = (y_prev_nhwc.size * 2 + w2d.size * 2
                      + N * H * W * Cout * 2 + 2 * N * Cout * 4)
    return pl.pallas_call(
        kernel,
        out_shape=(
            jax.ShapeDtypeStruct((N, H * W, Cout), jnp.bfloat16),
            jax.ShapeDtypeStruct((N, 1, Cout), jnp.float32),
            jax.ShapeDtypeStruct((N, 1, Cout), jnp.float32),
        ),
        grid=(N,),
        in_specs=[
            pl.BlockSpec((1, H, W, Cin), lambda n: (n, 0, 0, 0)),
            pl.BlockSpec((1, Cin), lambda n: (0, 0)),
            pl.BlockSpec((1, Cin), lambda n: (0, 0)),
            pl.BlockSpec((9 * Cin, Cout), lambda n: (0, 0)),
        ],
        out_specs=(
            pl.BlockSpec((1, H * W, Cout), lambda n: (n, 0, 0)),
            pl.BlockSpec((1, 1, Cout), lambda n: (n, 0, 0)),
            pl.BlockSpec((1, 1, Cout), lambda n: (n, 0, 0)),
        ),
        scratch_shapes=[
            pltpu.VMEM((H + 2, W + 2, Cin), jnp.bfloat16),
            pltpu.VMEM((H, W, 9 * Cin), jnp.bfloat16),
        ],
        compiler_params=pltpu.CompilerParams(
            dimension_semantics=("parallel",),
            vmem_limit_bytes=_VMEM_LIMIT),
        cost_estimate=pl.CostEstimate(flops=flops, transcendentals=0,
                                      bytes_accessed=bytes_accessed),
    )(y_prev_nhwc, sc, sh, w2d)


def bn_relu_slab(y2d, scale, shift, out_dtype):
    """y2d: (M, C) contiguous conv output. Lane-dense fused BN+ReLU (fallback path)."""
    M, C = y2d.shape
    g = 16 if M % 16 == 0 else 1              # pixels packed per lane row
    rows, lanes = M // g, g * C
    TM = _pick_row_tile(rows, lanes * 6, budget=_VMEM_LIMIT // 4)
    y_slab = y2d.reshape(rows, lanes)          # free: contiguous row-major
    sc = jnp.tile(scale.astype(jnp.float32), g).reshape(1, lanes)
    sh = jnp.tile(shift.astype(jnp.float32), g).reshape(1, lanes)
    out = pl.pallas_call(
        _bn_relu_kernel,
        out_shape=jax.ShapeDtypeStruct((rows, lanes), out_dtype),
        grid=(rows // TM,),
        in_specs=[
            pl.BlockSpec((TM, lanes), lambda i: (i, 0)),
            pl.BlockSpec((1, lanes), lambda i: (0, 0)),
            pl.BlockSpec((1, lanes), lambda i: (0, 0)),
        ],
        out_specs=pl.BlockSpec((TM, lanes), lambda i: (i, 0)),
        compiler_params=pltpu.CompilerParams(
            dimension_semantics=("parallel",),
            vmem_limit_bytes=_VMEM_LIMIT),
    )(y_slab, sc, sh)
    return out.reshape(M, C)


@functools.lru_cache(maxsize=None)
def _pool_select_mat_np(W, C):
    """0/1 matrix selecting even/odd w columns: (W*C, 2*(W/2)*C) = [even | odd]."""
    WC, WhC = W * C, (W // 2) * C
    sel = np.zeros((WC, 2 * WhC), np.float32)
    for wp in range(W // 2):
        for c in range(C):
            sel[(2 * wp) * C + c, wp * C + c] = 1.0
            sel[(2 * wp + 1) * C + c, WhC + wp * C + c] = 1.0
    return sel


def bn_relu_pool(y_raw, scale, shift, N, H, W, C):
    """y_raw: (N, H*W, C) bf16. Returns full (N,H,W,C) f32, pooled (N,H/2,W/2,C) f32."""
    assert H % 2 == 0 and W % 2 == 0, "fused 2x2 pool requires even H, W"
    Hh, Wh = H // 2, W // 2
    WC, WhC = W * C, Wh * C
    row_bytes = 2 * WC * (2 + 4) + WhC * 4
    TH2 = _pick_row_tile(Hh, row_bytes, budget=_VMEM_LIMIT // 4)
    y_v = y_raw.reshape(N, Hh, 2 * WC)                    # free view of NHWC
    sc = jnp.tile(scale.astype(jnp.float32), 2 * W).reshape(1, 2 * WC)
    sh = jnp.tile(shift.astype(jnp.float32), 2 * W).reshape(1, 2 * WC)
    sel = jnp.asarray(_pool_select_mat_np(W, C), dtype=jnp.bfloat16)
    # TODO(synk): for large W*C replace the dense selection matmul with a
    #   roll+compaction scheme (matrix scales as (W*C)^2).
    kernel = functools.partial(_bn_relu_pool_kernel, WC=WC, WhC=WhC)
    full_v, pool_v = pl.pallas_call(
        kernel,
        out_shape=(jax.ShapeDtypeStruct((N, Hh, 2 * WC), jnp.float32),
                   jax.ShapeDtypeStruct((N, Hh, WhC), jnp.float32)),
        grid=(N, Hh // TH2),
        in_specs=[
            pl.BlockSpec((1, TH2, 2 * WC), lambda n, j: (n, j, 0)),
            pl.BlockSpec((1, 2 * WC), lambda n, j: (0, 0)),
            pl.BlockSpec((1, 2 * WC), lambda n, j: (0, 0)),
            pl.BlockSpec((WC, 2 * WhC), lambda n, j: (0, 0)),
        ],
        out_specs=(pl.BlockSpec((1, TH2, 2 * WC), lambda n, j: (n, j, 0)),
                   pl.BlockSpec((1, TH2, WhC), lambda n, j: (n, j, 0))),
        compiler_params=pltpu.CompilerParams(
            dimension_semantics=("parallel", "parallel"),
            vmem_limit_bytes=_VMEM_LIMIT),
    )(y_v, sc, sh, sel)
    return full_v.reshape(N, H, W, C), pool_v.reshape(N, Hh, Wh, C)


# ------------------------------ JAX glue ------------------------------------


def _bn_scale_shift(sum_nc, ssq_nc, gamma, beta, count, eps):
    c = sum_nc.shape[-1]
    s = jnp.sum(sum_nc.reshape(-1, c), axis=0)
    ss = jnp.sum(ssq_nc.reshape(-1, c), axis=0)
    mean = s / count
    var = ss / count - mean * mean                      # biased var (BN training mode)
    scale = gamma * jax.lax.rsqrt(var + eps)
    shift = beta - mean * scale
    return scale, shift


def encoder_block_forward(x_nchw, params, eps=1e-5):
    """Matches EncoderBlock.forward (training-mode BN). Returns (pooled, full) NCHW f32."""
    w1, b1, g1, be1, w2, b2, g2, be2 = params
    del b1, b2   # conv bias cancels exactly under training-mode BatchNorm
    N, Cin, H, W = x_nchw.shape
    Cout = w1.shape[-1]
    cnt = N * H * W

    x = jnp.transpose(x_nchw, (0, 2, 3, 1)).astype(jnp.bfloat16)     # NHWC, bf16
    w1_2d = w1.reshape(9 * Cin, Cout).astype(jnp.bfloat16)
    w2_2d = w2.reshape(9 * Cout, Cout).astype(jnp.bfloat16)

    # ---- stage 1: conv1 (+BN partial stats); padding happens in-kernel ----
    y1, s1, ss1 = conv3x3_stats(x, w1_2d)
    sc1, sh1 = _bn_scale_shift(s1, ss1, g1, be1, cnt, eps)

    # ---- stage 2: fused (BN1 FMA + ReLU) -> conv2 (+stats) in one kernel ----
    y2, s2, ss2 = act_conv3x3_stats(y1.reshape(N, H, W, Cout), sc1, sh1, w2_2d)
    sc2, sh2 = _bn_scale_shift(s2, ss2, g2, be2, cnt, eps)

    # ---- stage-2 epilogue: BN2 + ReLU (+ fused 2x2 maxpool) ----
    if W > 1:                                            # mirrors `if x.size(-1) > 1`
        full, pooled = bn_relu_pool(y2, sc2, sh2, N, H, W, Cout)
    else:
        full = bn_relu_slab(y2.reshape(N * H * W, Cout), sc2, sh2, jnp.float32)
        full = full.reshape(N, H, W, Cout)
        pooled = full

    return jnp.transpose(pooled, (0, 3, 1, 2)), jnp.transpose(full, (0, 3, 1, 2))


# --------------------------- pure-JAX reference ------------------------------


def _reference(x_nchw, params, eps=1e-5):
    w1, b1, g1, be1, w2, b2, g2, be2 = params

    def conv(x, w_hwio, b):
        y = jax.lax.conv_general_dilated(
            x, w_hwio, window_strides=(1, 1), padding="SAME",
            dimension_numbers=("NCHW", "HWIO", "NCHW"))
        return y + b[None, :, None, None]

    def bn_relu(x, g, bta):
        mean = jnp.mean(x, axis=(0, 2, 3), keepdims=True)
        var = jnp.mean((x - mean) ** 2, axis=(0, 2, 3), keepdims=True)
        y = (x - mean) * jax.lax.rsqrt(var + eps)
        y = y * g[None, :, None, None] + bta[None, :, None, None]
        return jnp.maximum(y, 0.0)

    x = bn_relu(conv(x_nchw, w1, b1), g1, be1)
    x = bn_relu(conv(x, w2, b2), g2, be2)
    pooled = jax.lax.reduce_window(x, -jnp.inf, jax.lax.max,
                                   (1, 1, 2, 2), (1, 1, 2, 2), "VALID")
    return pooled, x


# --------------------------------- main --------------------------------------

if __name__ == "__main__":
    N, Cin, Cout, H, W = 2, 4, 8, 16, 16

    key = jax.random.PRNGKey(0)
    kx, kw1, kb1, kg1, kbe1, kw2, kb2, kg2, kbe2 = jax.random.split(key, 9)

    x = jax.random.normal(kx, (N, Cin, H, W), jnp.float32)

    # Conv weights in HWIO (3, 3, in, out); BN affine params per channel.
    w1 = 0.1 * jax.random.normal(kw1, (3, 3, Cin, Cout), jnp.float32)
    b1 = 0.1 * jax.random.normal(kb1, (Cout,), jnp.float32)
    g1 = 1.0 + 0.1 * jax.random.normal(kg1, (Cout,), jnp.float32)
    be1 = 0.1 * jax.random.normal(kbe1, (Cout,), jnp.float32)
    w2 = 0.1 * jax.random.normal(kw2, (3, 3, Cout, Cout), jnp.float32)
    b2 = 0.1 * jax.random.normal(kb2, (Cout,), jnp.float32)
    g2 = 1.0 + 0.1 * jax.random.normal(kg2, (Cout,), jnp.float32)
    be2 = 0.1 * jax.random.normal(kbe2, (Cout,), jnp.float32)

    params = (w1, b1, g1, be1, w2, b2, g2, be2)

    fwd = jax.jit(encoder_block_forward)
    pooled, full = fwd(x, params)
    jax.block_until_ready((pooled, full))

    ref_pooled, ref_full = _reference(x, params)
    np.testing.assert_allclose(np.asarray(full), np.asarray(ref_full),
                               rtol=5e-2, atol=5e-2)
    np.testing.assert_allclose(np.asarray(pooled), np.asarray(ref_pooled),
                               rtol=5e-2, atol=5e-2)

    assert pooled.shape == (N, Cout, H // 2, W // 2)
    assert full.shape == (N, Cout, H, W)

    print("KERNEL_OK")
</pallas_src>

<mosaic_0001>
module attributes {stable_mosaic.version = 11 : i64} {
  func.func @_conv_stats_kernel(%arg0: i32, %arg1: memref<1x16x16x4xbf16, #tpu.memory_space<vmem>>, %arg2: memref<36x8xbf16, #tpu.memory_space<vmem>>, %arg3: memref<1x256x8xbf16, #tpu.memory_space<vmem>>, %arg4: memref<1x1x8xf32, #tpu.memory_space<vmem>>, %arg5: memref<1x1x8xf32, #tpu.memory_space<vmem>>, %arg6: memref<18x18x4xbf16, #tpu.memory_space<vmem>>, %arg7: memref<16x16x36xbf16, #tpu.memory_space<vmem>>) attributes {dimension_semantics = [#tpu.dimension_semantics<parallel>], iteration_bounds = array<i64: 2>, scalar_prefetch = 0 : i64, scratch_operands = 2 : i64, tpu.core_type = #tpu.core_type<tc>, window_params = [{transform_indices = @transform_0, window_bounds = array<i64: 1, 16, 16, 4>}, {pipeline_mode = #tpu.pipeline_mode<synchronous>, transform_indices = @transform_1, window_bounds = array<i64: 36, 8>}, {transform_indices = @transform_2, window_bounds = array<i64: 1, 256, 8>}, {transform_indices = @transform_3, window_bounds = array<i64: 1, 1, 8>}, {transform_indices = @transform_4, window_bounds = array<i64: 1, 1, 8>}]} {
    %c0 = arith.constant 0 : index
    %c0_0 = arith.constant 0 : index
    %c0_1 = arith.constant 0 : index
    %c0_2 = arith.constant 0 : index
    %0 = vector.load %arg1[%c0, %c0_0, %c0_1, %c0_2] : memref<1x16x16x4xbf16, #tpu.memory_space<vmem>>, vector<1x16x16x4xbf16>
    %1 = vector.shape_cast %0 : vector<1x16x16x4xbf16> to vector<16x16x4xbf16>
    %cst = arith.constant 0.000000e+00 : bf16
    %2 = vector.broadcast %cst : bf16 to vector<18x18x4xbf16>
    %c0_3 = arith.constant 0 : index
    %c0_4 = arith.constant 0 : index
    %c0_5 = arith.constant 0 : index
    %3 = vector.load %arg6[%c0_3, %c0_4, %c0_5] : memref<18x18x4xbf16, #tpu.memory_space<vmem>>, vector<18x18x4xbf16>
    tpu.vector_store %arg6[%c0_3, %c0_4, %c0_5], %2 {strides = array<i32>} : memref<18x18x4xbf16, #tpu.memory_space<vmem>>, vector<18x18x4xbf16>,
    %c1 = arith.constant 1 : index
    %c1_6 = arith.constant 1 : index
    %c0_7 = arith.constant 0 : index
    %4 = vector.load %arg6[%c1, %c1_6, %c0_7] : memref<18x18x4xbf16, #tpu.memory_space<vmem>>, vector<16x16x4xbf16>
    tpu.vector_store %arg6[%c1, %c1_6, %c0_7], %1 {strides = array<i32>} : memref<18x18x4xbf16, #tpu.memory_space<vmem>>, vector<16x16x4xbf16>,
    %c0_8 = arith.constant 0 : index
    %c0_9 = arith.constant 0 : index
    %c0_10 = arith.constant 0 : index
    %5 = vector.load %arg6[%c0_8, %c0_9, %c0_10] : memref<18x18x4xbf16, #tpu.memory_space<vmem>>, vector<16x16x4xbf16>
    %c0_11 = arith.constant 0 : index
    %c0_12 = arith.constant 0 : index
    %c0_13 = arith.constant 0 : index
    %6 = vector.load %arg7[%c0_11, %c0_12, %c0_13] : memref<16x16x36xbf16, #tpu.memory_space<vmem>>, vector<16x16x4xbf16>
    tpu.vector_store %arg7[%c0_11, %c0_12, %c0_13], %5 {strides = array<i32>} : memref<16x16x36xbf16, #tpu.memory_space<vmem>>, vector<16x16x4xbf16>,
    %c0_14 = arith.constant 0 : index
    %c1_15 = arith.constant 1 : index
    %c0_16 = arith.constant 0 : index
    %7 = vector.load %arg6[%c0_14, %c1_15, %c0_16] : memref<18x18x4xbf16, #tpu.memory_space<vmem>>, vector<16x16x4xbf16>
    %c0_17 = arith.constant 0 : index
    %c0_18 = arith.constant 0 : index
    %c4 = arith.constant 4 : index
    %8 = vector.load %arg7[%c0_17, %c0_18, %c4] : memref<16x16x36xbf16, #tpu.memory_space<vmem>>, vector<16x16x4xbf16>
    tpu.vector_store %arg7[%c0_17, %c0_18, %c4], %7 {strides = array<i32>} : memref<16x16x36xbf16, #tpu.memory_space<vmem>>, vector<16x16x4xbf16>,
    %c0_19 = arith.constant 0 : index
    %c2 = arith.constant 2 : index
    %c0_20 = arith.constant 0 : index
    %9 = vector.load %arg6[%c0_19, %c2, %c0_20] : memref<18x18x4xbf16, #tpu.memory_space<vmem>>, vector<16x16x4xbf16>
    %c0_21 = arith.constant 0 : index
    %c0_22 = arith.constant 0 : index
    %c8 = arith.constant 8 : index
    %10 = vector.load %arg7[%c0_21, %c0_22, %c8] : memref<16x16x36xbf16, #tpu.memory_space<vmem>>, vector<16x16x4xbf16>
    tpu.vector_store %arg7[%c0_21, %c0_22, %c8], %9 {strides = array<i32>} : memref<16x16x36xbf16, #tpu.memory_space<vmem>>, vector<16x16x4xbf16>,
    %c1_23 = arith.constant 1 : index
    %c0_24 = arith.constant 0 : index
    %c0_25 = arith.constant 0 : index
    %11 = vector.load %arg6[%c1_23, %c0_24, %c0_25] : memref<18x18x4xbf16, #tpu.memory_space<vmem>>, vector<16x16x4xbf16>
    %c0_26 = arith.constant 0 : index
    %c0_27 = arith.constant 0 : index
    %c12 = arith.constant 12 : index
    %12 = vector.load %arg7[%c0_26, %c0_27, %c12] : memref<16x16x36xbf16, #tpu.memory_space<vmem>>, vector<16x16x4xbf16>
    tpu.vector_store %arg7[%c0_26, %c0_27, %c12], %11 {strides = array<i32>} : memref<16x16x36xbf16, #tpu.memory_space<vmem>>, vector<16x16x4xbf16>,
    %c1_28 = arith.constant 1 : index
    %c1_29 = arith.constant 1 : index
    %c0_30 = arith.constant 0 : index
    %13 = vector.load %arg6[%c1_28, %c1_29, %c0_30] : memref<18x18x4xbf16, #tpu.memory_space<vmem>>, vector<16x16x4xbf16>
    %c0_31 = arith.constant 0 : index
    %c0_32 = arith.constant 0 : index
    %c16 = arith.constant 16 : index
    %14 = vector.load %arg7[%c0_31, %c0_32, %c16] : memref<16x16x36xbf16, #tpu.memory_space<vmem>>, vector<16x16x4xbf16>
    tpu.vector_store %arg7[%c0_31, %c0_32, %c16], %13 {strides = array<i32>} : memref<16x16x36xbf16, #tpu.memory_space<vmem>>, vector<16x16x4xbf16>,
    %c1_33 = arith.constant 1 : index
    %c2_34 = arith.constant 2 : index
    %c0_35 = arith.constant 0 : index
    %15 = vector.load %arg6[%c1_33, %c2_34, %c0_35] : memref<18x18x4xbf16, #tpu.memory_space<vmem>>, vector<16x16x4xbf16>
    %c0_36 = arith.constant 0 : index
    %c0_37 = arith.constant 0 : index
    %c20 = arith.constant 20 : index
    %16 = vector.load %arg7[%c0_36, %c0_37, %c20] : memref<16x16x36xbf16, #tpu.memory_space<vmem>>, vector<16x16x4xbf16>
    tpu.vector_store %arg7[%c0_36, %c0_37, %c20], %15 {strides = array<i32>} : memref<16x16x36xbf16, #tpu.memory_space<vmem>>, vector<16x16x4xbf16>,
    %c2_38 = arith.constant 2 : index
    %c0_39 = arith.constant 0 : index
    %c0_40 = arith.constant 0 : index
    %17 = vector.load %arg6[%c2_38, %c0_39, %c0_40] : memref<18x18x4xbf16, #tpu.memory_space<vmem>>, vector<16x16x4xbf16>
    %c0_41 = arith.constant 0 : index
    %c0_42 = arith.constant 0 : index
    %c24 = arith.constant 24 : index
    %18 = vector.load %arg7[%c0_41, %c0_42, %c24] : memref<16x16x36xbf16, #tpu.memory_space<vmem>>, vector<16x16x4xbf16>
    tpu.vector_store %arg7[%c0_41, %c0_42, %c24], %17 {strides = array<i32>} : memref<16x16x36xbf16, #tpu.memory_space<vmem>>, vector<16x16x4xbf16>,
    %c2_43 = arith.constant 2 : index
    %c1_44 = arith.constant 1 : index
    %c0_45 = arith.constant 0 : index
    %19 = vector.load %arg6[%c2_43, %c1_44, %c0_45] : memref<18x18x4xbf16, #tpu.memory_space<vmem>>, vector<16x16x4xbf16>
    %c0_46 = arith.constant 0 : index
    %c0_47 = arith.constant 0 : index
    %c28 = arith.constant 28 : index
    %20 = vector.load %arg7[%c0_46, %c0_47, %c28] : memref<16x16x36xbf16, #tpu.memory_space<vmem>>, vector<16x16x4xbf16>
    tpu.vector_store %arg7[%c0_46, %c0_47, %c28], %19 {strides = array<i32>} : memref<16x16x36xbf16, #tpu.memory_space<vmem>>, vector<16x16x4xbf16>,
    %c2_48 = arith.constant 2 : index
    %c2_49 = arith.constant 2 : index
    %c0_50 = arith.constant 0 : index
    %21 = vector.load %arg6[%c2_48, %c2_49, %c0_50] : memref<18x18x4xbf16, #tpu.memory_space<vmem>>, vector<16x16x4xbf16>
    %c0_51 = arith.constant 0 : index
    %c0_52 = arith.constant 0 : index
    %c32 = arith.constant 32 : index
    %22 = vector.load %arg7[%c0_51, %c0_52, %c32] : memref<16x16x36xbf16, #tpu.memory_space<vmem>>, vector<16x16x4xbf16>
    tpu.vector_store %arg7[%c0_51, %c0_52, %c32], %21 {strides = array<i32>} : memref<16x16x36xbf16, #tpu.memory_space<vmem>>, vector<16x16x4xbf16>,
    %c0_53 = arith.constant 0 : index
    %c0_54 = arith.constant 0 : index
    %c0_55 = arith.constant 0 : index
    %23 = vector.load %arg7[%c0_53, %c0_54, %c0_55] : memref<16x16x36xbf16, #tpu.memory_space<vmem>>, vector<16x16x36xbf16>
    %24 = vector.shape_cast %23 : vector<16x16x36xbf16> to vector<256x36xbf16>
    %c0_56 = arith.constant 0 : index
    %c0_57 = arith.constant 0 : index
    %25 = vector.load %arg2[%c0_56, %c0_57] : memref<36x8xbf16, #tpu.memory_space<vmem>>, vector<36x8xbf16>
    %cst_58 = arith.constant dense<0.000000e+00> : vector<256x8xf32>
    %26 = tpu.matmul %24, %25, %cst_58 {dimension_numbers = #tpu.dot_dimension_numbers<[1], [0], [0], [1], [0, 0, 1, 1], [], []>} : vector<256x36xbf16>, vector<36x8xbf16>, vector<256x8xf32> -> vector<256x8xf32>
    %27 = arith.truncf %26 : vector<256x8xf32> to vector<256x8xbf16>
    %c0_59 = arith.constant 0 : index
    %c0_60 = arith.constant 0 : index
    %c0_61 = arith.constant 0 : index
    %28 = vector.load %arg3[%c0_59, %c0_60, %c0_61] : memref<1x256x8xbf16, #tpu.memory_space<vmem>>, vector<1x256x8xbf16>
    %29 = vector.shape_cast %28 : vector<1x256x8xbf16> to vector<256x8xbf16>
    %30 = vector.shape_cast %27 : vector<256x8xbf16> to vector<1x256x8xbf16>
    tpu.vector_store %arg3[%c0_59, %c0_60, %c0_61], %30 {strides = array<i32>} : memref<1x256x8xbf16, #tpu.memory_space<vmem>>, vector<1x256x8xbf16>,
    %cst_62 = arith.constant dense<0.000000e+00> : vector<8xf32>
    %31 = vector.multi_reduction <add>, %26, %cst_62 [0] : vector<256x8xf32> to vector<8xf32>
    %32 = vector.shape_cast %31 : vector<8xf32> to vector<1x8xf32>
    %c0_63 = arith.constant 0 : index
    %c0_64 = arith.constant 0 : index
    %c0_65 = arith.constant 0 : index
    %33 = vector.load %arg4[%c0_63, %c0_64, %c0_65] : memref<1x1x8xf32, #tpu.memory_space<vmem>>, vector<1x1x8xf32>
    %34 = vector.shape_cast %33 : vector<1x1x8xf32> to vector<1x8xf32>
    %35 = vector.shape_cast %32 : vector<1x8xf32> to vector<1x1x8xf32>
    tpu.vector_store %arg4[%c0_63, %c0_64, %c0_65], %35 {strides = array<i32>} : memref<1x1x8xf32, #tpu.memory_space<vmem>>, vector<1x1x8xf32>,
    %36 = arith.mulf %26, %26 : vector<256x8xf32>
    %cst_66 = arith.constant dense<0.000000e+00> : vector<8xf32>
    %37 = vector.multi_reduction <add>, %36, %cst_66 [0] : vector<256x8xf32> to vector<8xf32>
    %38 = vector.shape_cast %37 : vector<8xf32> to vector<1x8xf32>
    %c0_67 = arith.constant 0 : index
    %c0_68 = arith.constant 0 : index
    %c0_69 = arith.constant 0 : index
    %39 = vector.load %arg5[%c0_67, %c0_68, %c0_69] : memref<1x1x8xf32, #tpu.memory_space<vmem>>, vector<1x1x8xf32>
    %40 = vector.shape_cast %39 : vector<1x1x8xf32> to vector<1x8xf32>
    %41 = vector.shape_cast %38 : vector<1x8xf32> to vector<1x1x8xf32>
    tpu.vector_store %arg5[%c0_67, %c0_68, %c0_69], %41 {strides = array<i32>} : memref<1x1x8xf32, #tpu.memory_space<vmem>>, vector<1x1x8xf32>,
    return
  }
  func.func @transform_0(%arg0: i32) -> (i32, i32, i32, i32) {
    %c0_i32 = arith.constant 0 : i32
    %c0_i32_0 = arith.constant 0 : i32
    %c0_i32_1 = arith.constant 0 : i32
    %c0_i32_2 = arith.constant 0 : i32
    return %arg0, %c0_i32, %c0_i32_0, %c0_i32_1 : i32, i32, i32, i32
  }
  func.func @transform_1(%arg0: i32) -> (i32, i32) {
    %c0_i32 = arith.constant 0 : i32
    %c0_i32_0 = arith.constant 0 : i32
    %c0_i32_1 = arith.constant 0 : i32
    return %c0_i32, %c0_i32_0 : i32, i32
  }
  func.func @transform_2(%arg0: i32) -> (i32, i32, i32) {
    %c0_i32 = arith.constant 0 : i32
    %c0_i32_0 = arith.constant 0 : i32
    %c0_i32_1 = arith.constant 0 : i32
    return %arg0, %c0_i32, %c0_i32_0 : i32, i32, i32
  }
  func.func @transform_3(%arg0: i32) -> (i32, i32, i32) {
    %c0_i32 = arith.constant 0 : i32
    %c0_i32_0 = arith.constant 0 : i32
    %c0_i32_1 = arith.constant 0 : i32
    return %arg0, %c0_i32, %c0_i32_0 : i32, i32, i32
  }
  func.func @transform_4(%arg0: i32) -> (i32, i32, i32) {
    %c0_i32 = arith.constant 0 : i32
    %c0_i32_0 = arith.constant 0 : i32
    %c0_i32_1 = arith.constant 0 : i32
    return %arg0, %c0_i32, %c0_i32_0 : i32, i32, i32
  }
}

module attributes {stable_mosaic.version = 11 : i64} {
  func.func @_act_conv_stats_kernel(%arg0: i32, %arg1: memref<1x16x16x8xbf16, #tpu.memory_space<vmem>>, %arg2: memref<1x8xf32, #tpu.memory_space<vmem>>, %arg3: memref<1x8xf32, #tpu.memory_space<vmem>>, %arg4: memref<72x8xbf16, #tpu.memory_space<vmem>>, %arg5: memref<1x256x8xbf16, #tpu.memory_space<vmem>>, %arg6: memref<1x1x8xf32, #tpu.memory_space<vmem>>, %arg7: memref<1x1x8xf32, #tpu.memory_space<vmem>>, %arg8: memref<18x18x8xbf16, #tpu.memory_space<vmem>>, %arg9: memref<16x16x72xbf16, #tpu.memory_space<vmem>>) attributes {dimension_semantics = [#tpu.dimension_semantics<parallel>], iteration_bounds = array<i64: 2>, scalar_prefetch = 0 : i64, scratch_operands = 2 : i64, tpu.core_type = #tpu.core_type<tc>, window_params = [{transform_indices = @transform_0, window_bounds = array<i64: 1, 16, 16, 8>}, {pipeline_mode = #tpu.pipeline_mode<synchronous>, transform_indices = @transform_1, window_bounds = array<i64: 1, 8>}, {pipeline_mode = #tpu.pipeline_mode<synchronous>, transform_indices = @transform_2, window_bounds = array<i64: 1, 8>}, {pipeline_mode = #tpu.pipeline_mode<synchronous>, transform_indices = @transform_3, window_bounds = array<i64: 72, 8>}, {transform_indices = @transform_4, window_bounds = array<i64: 1, 256, 8>}, {transform_indices = @transform_5, window_bounds = array<i64: 1, 1, 8>}, {transform_indices = @transform_6, window_bounds = array<i64: 1, 1, 8>}]} {
    %c0 = arith.constant 0 : index
    %c0_0 = arith.constant 0 : index
    %c0_1 = arith.constant 0 : index
    %c0_2 = arith.constant 0 : index
    %0 = vector.load %arg1[%c0, %c0_0, %c0_1, %c0_2] : memref<1x16x16x8xbf16, #tpu.memory_space<vmem>>, vector<1x16x16x8xbf16>
    %1 = vector.shape_cast %0 : vector<1x16x16x8xbf16> to vector<16x16x8xbf16>
    %2 = arith.extf %1 : vector<16x16x8xbf16> to vector<16x16x8xf32>
    %c0_3 = arith.constant 0 : index
    %c0_4 = arith.constant 0 : index
    %3 = vector.load %arg2[%c0_3, %c0_4] : memref<1x8xf32, #tpu.memory_space<vmem>>, vector<1x8xf32>
    %4 = vector.shape_cast %3 : vector<1x8xf32> to vector<1x1x8xf32>
    %c0_5 = arith.constant 0 : index
    %c0_6 = arith.constant 0 : index
    %5 = vector.load %arg3[%c0_5, %c0_6] : memref<1x8xf32, #tpu.memory_space<vmem>>, vector<1x8xf32>
    %6 = vector.shape_cast %5 : vector<1x8xf32> to vector<1x1x8xf32>
    %7 = vector.broadcast %4 : vector<1x1x8xf32> to vector<16x16x8xf32>
    %8 = arith.mulf %2, %7 : vector<16x16x8xf32>
    %9 = vector.broadcast %6 : vector<1x1x8xf32> to vector<16x16x8xf32>
    %10 = arith.addf %8, %9 : vector<16x16x8xf32>
    %cst = arith.constant 0.000000e+00 : f32
    %11 = vector.broadcast %cst : f32 to vector<16x16x8xf32>
    %12 = arith.maximumf %10, %11 : vector<16x16x8xf32>
    %13 = arith.truncf %12 : vector<16x16x8xf32> to vector<16x16x8xbf16>
    %cst_7 = arith.constant 0.000000e+00 : bf16
    %14 = vector.broadcast %cst_7 : bf16 to vector<18x18x8xbf16>
    %c0_8 = arith.constant 0 : index
    %c0_9 = arith.constant 0 : index
    %c0_10 = arith.constant 0 : index
    %15 = vector.load %arg8[%c0_8, %c0_9, %c0_10] : memref<18x18x8xbf16, #tpu.memory_space<vmem>>, vector<18x18x8xbf16>
    tpu.vector_store %arg8[%c0_8, %c0_9, %c0_10], %14 {strides = array<i32>} : memref<18x18x8xbf16, #tpu.memory_space<vmem>>, vector<18x18x8xbf16>,
    %c1 = arith.constant 1 : index
    %c1_11 = arith.constant 1 : index
    %c0_12 = arith.constant 0 : index
    %16 = vector.load %arg8[%c1, %c1_11, %c0_12] : memref<18x18x8xbf16, #tpu.memory_space<vmem>>, vector<16x16x8xbf16>
    tpu.vector_store %arg8[%c1, %c1_11, %c0_12], %13 {strides = array<i32>} : memref<18x18x8xbf16, #tpu.memory_space<vmem>>, vector<16x16x8xbf16>,
    %c0_13 = arith.constant 0 : index
    %c0_14 = arith.constant 0 : index
    %c0_15 = arith.constant 0 : index
    %17 = vector.load %arg8[%c0_13, %c0_14, %c0_15] : memref<18x18x8xbf16, #tpu.memory_space<vmem>>, vector<16x16x8xbf16>
    %c0_16 = arith.constant 0 : index
    %c0_17 = arith.constant 0 : index
    %c0_18 = arith.constant 0 : index
    %18 = vector.load %arg9[%c0_16, %c0_17, %c0_18] : memref<16x16x72xbf16, #tpu.memory_space<vmem>>, vector<16x16x8xbf16>
    tpu.vector_store %arg9[%c0_16, %c0_17, %c0_18], %17 {strides = array<i32>} : memref<16x16x72xbf16, #tpu.memory_space<vmem>>, vector<16x16x8xbf16>,
    %c0_19 = arith.constant 0 : index
    %c1_20 = arith.constant 1 : index
    %c0_21 = arith.constant 0 : index
    %19 = vector.load %arg8[%c0_19, %c1_20, %c0_21] : memref<18x18x8xbf16, #tpu.memory_space<vmem>>, vector<16x16x8xbf16>
    %c0_22 = arith.constant 0 : index
    %c0_23 = arith.constant 0 : index
    %c8 = arith.constant 8 : index
    %20 = vector.load %arg9[%c0_22, %c0_23, %c8] : memref<16x16x72xbf16, #tpu.memory_space<vmem>>, vector<16x16x8xbf16>
    tpu.vector_store %arg9[%c0_22, %c0_23, %c8], %19 {strides = array<i32>} : memref<16x16x72xbf16, #tpu.memory_space<vmem>>, vector<16x16x8xbf16>,
    %c0_24 = arith.constant 0 : index
    %c2 = arith.constant 2 : index
    %c0_25 = arith.constant 0 : index
    %21 = vector.load %arg8[%c0_24, %c2, %c0_25] : memref<18x18x8xbf16, #tpu.memory_space<vmem>>, vector<16x16x8xbf16>
    %c0_26 = arith.constant 0 : index
    %c0_27 = arith.constant 0 : index
    %c16 = arith.constant 16 : index
    %22 = vector.load %arg9[%c0_26, %c0_27, %c16] : memref<16x16x72xbf16, #tpu.memory_space<vmem>>, vector<16x16x8xbf16>
    tpu.vector_store %arg9[%c0_26, %c0_27, %c16], %21 {strides = array<i32>} : memref<16x16x72xbf16, #tpu.memory_space<vmem>>, vector<16x16x8xbf16>,
    %c1_28 = arith.constant 1 : index
    %c0_29 = arith.constant 0 : index
    %c0_30 = arith.constant 0 : index
    %23 = vector.load %arg8[%c1_28, %c0_29, %c0_30] : memref<18x18x8xbf16, #tpu.memory_space<vmem>>, vector<16x16x8xbf16>
    %c0_31 = arith.constant 0 : index
    %c0_32 = arith.constant 0 : index
    %c24 = arith.constant 24 : index
    %24 = vector.load %arg9[%c0_31, %c0_32, %c24] : memref<16x16x72xbf16, #tpu.memory_space<vmem>>, vector<16x16x8xbf16>
    tpu.vector_store %arg9[%c0_31, %c0_32, %c24], %23 {strides = array<i32>} : memref<16x16x72xbf16, #tpu.memory_space<vmem>>, vector<16x16x8xbf16>,
    %c1_33 = arith.constant 1 : index
    %c1_34 = arith.constant 1 : index
    %c0_35 = arith.constant 0 : index
    %25 = vector.load %arg8[%c1_33, %c1_34, %c0_35] : memref<18x18x8xbf16, #tpu.memory_space<vmem>>, vector<16x16x8xbf16>
    %c0_36 = arith.constant 0 : index
    %c0_37 = arith.constant 0 : index
    %c32 = arith.constant 32 : index
    %26 = vector.load %arg9[%c0_36, %c0_37, %c32] : memref<16x16x72xbf16, #tpu.memory_space<vmem>>, vector<16x16x8xbf16>
    tpu.vector_store %arg9[%c0_36, %c0_37, %c32], %25 {strides = array<i32>} : memref<16x16x72xbf16, #tpu.memory_space<vmem>>, vector<16x16x8xbf16>,
    %c1_38 = arith.constant 1 : index
    %c2_39 = arith.constant 2 : index
    %c0_40 = arith.constant 0 : index
    %27 = vector.load %arg8[%c1_38, %c2_39, %c0_40] : memref<18x18x8xbf16, #tpu.memory_space<vmem>>, vector<16x16x8xbf16>
    %c0_41 = arith.constant 0 : index
    %c0_42 = arith.constant 0 : index
    %c40 = arith.constant 40 : index
    %28 = vector.load %arg9[%c0_41, %c0_42, %c40] : memref<16x16x72xbf16, #tpu.memory_space<vmem>>, vector<16x16x8xbf16>
    tpu.vector_store %arg9[%c0_41, %c0_42, %c40], %27 {strides = array<i32>} : memref<16x16x72xbf16, #tpu.memory_space<vmem>>, vector<16x16x8xbf16>,
    %c2_43 = arith.constant 2 : index
    %c0_44 = arith.constant 0 : index
    %c0_45 = arith.constant 0 : index
    %29 = vector.load %arg8[%c2_43, %c0_44, %c0_45] : memref<18x18x8xbf16, #tpu.memory_space<vmem>>, vector<16x16x8xbf16>
    %c0_46 = arith.constant 0 : index
    %c0_47 = arith.constant 0 : index
    %c48 = arith.constant 48 : index
    %30 = vector.load %arg9[%c0_46, %c0_47, %c48] : memref<16x16x72xbf16, #tpu.memory_space<vmem>>, vector<16x16x8xbf16>
    tpu.vector_store %arg9[%c0_46, %c0_47, %c48], %29 {strides = array<i32>} : memref<16x16x72xbf16, #tpu.memory_space<vmem>>, vector<16x16x8xbf16>,
    %c2_48 = arith.constant 2 : index
    %c1_49 = arith.constant 1 : index
    %c0_50 = arith.constant 0 : index
    %31 = vector.load %arg8[%c2_48, %c1_49, %c0_50] : memref<18x18x8xbf16, #tpu.memory_space<vmem>>, vector<16x16x8xbf16>
    %c0_51 = arith.constant 0 : index
    %c0_52 = arith.constant 0 : index
    %c56 = arith.constant 56 : index
    %32 = vector.load %arg9[%c0_51, %c0_52, %c56] : memref<16x16x72xbf16, #tpu.memory_space<vmem>>, vector<16x16x8xbf16>
    tpu.vector_store %arg9[%c0_51, %c0_52, %c56], %31 {strides = array<i32>} : memref<16x16x72xbf16, #tpu.memory_space<vmem>>, vector<16x16x8xbf16>,
    %c2_53 = arith.constant 2 : index
    %c2_54 = arith.constant 2 : index
    %c0_55 = arith.constant 0 : index
    %33 = vector.load %arg8[%c2_53, %c2_54, %c0_55] : memref<18x18x8xbf16, #tpu.memory_space<vmem>>, vector<16x16x8xbf16>
    %c0_56 = arith.constant 0 : index
    %c0_57 = arith.constant 0 : index
    %c64 = arith.constant 64 : index
    %34 = vector.load %arg9[%c0_56, %c0_57, %c64] : memref<16x16x72xbf16, #tpu.memory_space<vmem>>, vector<16x16x8xbf16>
    tpu.vector_store %arg9[%c0_56, %c0_57, %c64], %33 {strides = array<i32>} : memref<16x16x72xbf16, #tpu.memory_space<vmem>>, vector<16x16x8xbf16>,
    %c0_58 = arith.constant 0 : index
    %c0_59 = arith.constant 0 : index
    %c0_60 = arith.constant 0 : index
    %35 = vector.load %arg9[%c0_58, %c0_59, %c0_60] : memref<16x16x72xbf16, #tpu.memory_space<vmem>>, vector<16x16x72xbf16>
    %36 = vector.shape_cast %35 : vector<16x16x72xbf16> to vector<256x72xbf16>
    %c0_61 = arith.constant 0 : index
    %c0_62 = arith.constant 0 : index
    %37 = vector.load %arg4[%c0_61, %c0_62] : memref<72x8xbf16, #tpu.memory_space<vmem>>, vector<72x8xbf16>
    %cst_63 = arith.constant dense<0.000000e+00> : vector<256x8xf32>
    %38 = tpu.matmul %36, %37, %cst_63 {dimension_numbers = #tpu.dot_dimension_numbers<[1], [0], [0], [1], [0, 0, 1, 1], [], []>} : vector<256x72xbf16>, vector<72x8xbf16>, vector<256x8xf32> -> vector<256x8xf32>
    %39 = arith.truncf %38 : vector<256x8xf32> to vector<256x8xbf16>
    %c0_64 = arith.constant 0 : index
    %c0_65 = arith.constant 0 : index
    %c0_66 = arith.constant 0 : index
    %40 = vector.load %arg5[%c0_64, %c0_65, %c0_66] : memref<1x256x8xbf16, #tpu.memory_space<vmem>>, vector<1x256x8xbf16>
    %41 = vector.shape_cast %40 : vector<1x256x8xbf16> to vector<256x8xbf16>
    %42 = vector.shape_cast %39 : vector<256x8xbf16> to vector<1x256x8xbf16>
    tpu.vector_store %arg5[%c0_64, %c0_65, %c0_66], %42 {strides = array<i32>} : memref<1x256x8xbf16, #tpu.memory_space<vmem>>, vector<1x256x8xbf16>,
    %cst_67 = arith.constant dense<0.000000e+00> : vector<8xf32>
    %43 = vector.multi_reduction <add>, %38, %cst_67 [0] : vector<256x8xf32> to vector<8xf32>
    %44 = vector.shape_cast %43 : vector<8xf32> to vector<1x8xf32>
    %c0_68 = arith.constant 0 : index
    %c0_69 = arith.constant 0 : index
    %c0_70 = arith.constant 0 : index
    %45 = vector.load %arg6[%c0_68, %c0_69, %c0_70] : memref<1x1x8xf32, #tpu.memory_space<vmem>>, vector<1x1x8xf32>
    %46 = vector.shape_cast %45 : vector<1x1x8xf32> to vector<1x8xf32>
    %47 = vector.shape_cast %44 : vector<1x8xf32> to vector<1x1x8xf32>
    tpu.vector_store %arg6[%c0_68, %c0_69, %c0_70], %47 {strides = array<i32>} : memref<1x1x8xf32, #tpu.memory_space<vmem>>, vector<1x1x8xf32>,
    %48 = arith.mulf %38, %38 : vector<256x8xf32>
    %cst_71 = arith.constant dense<0.000000e+00> : vector<8xf32>
    %49 = vector.multi_reduction <add>, %48, %cst_71 [0] : vector<256x8xf32> to vector<8xf32>
    %50 = vector.shape_cast %49 : vector<8xf32> to vector<1x8xf32>
    %c0_72 = arith.constant 0 : index
    %c0_73 = arith.constant 0 : index
    %c0_74 = arith.constant 0 : index
    %51 = vector.load %arg7[%c0_72, %c0_73, %c0_74] : memref<1x1x8xf32, #tpu.memory_space<vmem>>, vector<1x1x8xf32>
    %52 = vector.shape_cast %51 : vector<1x1x8xf32> to vector<1x8xf32>
    %53 = vector.shape_cast %50 : vector<1x8xf32> to vector<1x1x8xf32>
    tpu.vector_store %arg7[%c0_72, %c0_73, %c0_74], %53 {strides = array<i32>} : memref<1x1x8xf32, #tpu.memory_space<vmem>>, vector<1x1x8xf32>,
    return
  }
  func.func @transform_0(%arg0: i32) -> (i32, i32, i32, i32) {
    %c0_i32 = arith.constant 0 : i32
    %c0_i32_0 = arith.constant 0 : i32
    %c0_i32_1 = arith.constant 0 : i32
    %c0_i32_2 = arith.constant 0 : i32
    return %arg0, %c0_i32, %c0_i32_0, %c0_i32_1 : i32, i32, i32, i32
  }
  func.func @transform_1(%arg0: i32) -> (i32, i32) {
    %c0_i32 = arith.constant 0 : i32
    %c0_i32_0 = arith.constant 0 : i32
    %c0_i32_1 = arith.constant 0 : i32
    return %c0_i32, %c0_i32_0 : i32, i32
  }
  func.func @transform_2(%arg0: i32) -> (i32, i32) {
    %c0_i32 = arith.constant 0 : i32
    %c0_i32_0 = arith.constant 0 : i32
    %c0_i32_1 = arith.constant 0 : i32
    return %c0_i32, %c0_i32_0 : i32, i32
  }
  func.func @transform_3(%arg0: i32) -> (i32, i32) {
    %c0_i32 = arith.constant 0 : i32
    %c0_i32_0 = arith.constant 0 : i32
    %c0_i32_1 = arith.constant 0 : i32
    return %c0_i32, %c0_i32_0 : i32, i32
  }
  func.func @transform_4(%arg0: i32) -> (i32, i32, i32) {
    %c0_i32 = arith.constant 0 : i32
    %c0_i32_0 = arith.constant 0 : i32
    %c0_i32_1 = arith.constant 0 : i32
    return %arg0, %c0_i32, %c0_i32_0 : i32, i32, i32
  }
  func.func @transform_5(%arg0: i32) -> (i32, i32, i32) {
    %c0_i32 = arith.constant 0 : i32
    %c0_i32_0 = arith.constant 0 : i32
    %c0_i32_1 = arith.constant 0 : i32
    return %arg0, %c0_i32, %c0_i32_0 : i32, i32, i32
  }
  func.func @transform_6(%arg0: i32) -> (i32, i32, i32) {
    %c0_i32 = arith.constant 0 : i32
    %c0_i32_0 = arith.constant 0 : i32
    %c0_i32_1 = arith.constant 0 : i32
    return %arg0, %c0_i32, %c0_i32_0 : i32, i32, i32
  }
}

module attributes {stable_mosaic.version = 11 : i64} {
  func.func @_bn_relu_pool_kernel(%arg0: i32, %arg1: i32, %arg2: memref<1x8x256xbf16, #tpu.memory_space<vmem>>, %arg3: memref<1x256xf32, #tpu.memory_space<vmem>>, %arg4: memref<1x256xf32, #tpu.memory_space<vmem>>, %arg5: memref<128x128xbf16, #tpu.memory_space<vmem>>, %arg6: memref<1x8x256xf32, #tpu.memory_space<vmem>>, %arg7: memref<1x8x64xf32, #tpu.memory_space<vmem>>) attributes {dimension_semantics = [#tpu.dimension_semantics<parallel>, #tpu.dimension_semantics<parallel>], iteration_bounds = array<i64: 2, 1>, scalar_prefetch = 0 : i64, scratch_operands = 0 : i64, tpu.core_type = #tpu.core_type<tc>, window_params = [{transform_indices = @transform_0, window_bounds = array<i64: 1, 8, 256>}, {pipeline_mode = #tpu.pipeline_mode<synchronous>, transform_indices = @transform_1, window_bounds = array<i64: 1, 256>}, {pipeline_mode = #tpu.pipeline_mode<synchronous>, transform_indices = @transform_2, window_bounds = array<i64: 1, 256>}, {pipeline_mode = #tpu.pipeline_mode<synchronous>, transform_indices = @transform_3, window_bounds = array<i64: 128, 128>}, {transform_indices = @transform_4, window_bounds = array<i64: 1, 8, 256>}, {transform_indices = @transform_5, window_bounds = array<i64: 1, 8, 64>}]} {
    %c0 = arith.constant 0 : index
    %c0_0 = arith.constant 0 : index
    %c0_1 = arith.constant 0 : index
    %0 = vector.load %arg2[%c0, %c0_0, %c0_1] : memref<1x8x256xbf16, #tpu.memory_space<vmem>>, vector<1x8x256xbf16>
    %1 = vector.shape_cast %0 : vector<1x8x256xbf16> to vector<8x256xbf16>
    %2 = arith.extf %1 : vector<8x256xbf16> to vector<8x256xf32>
    %c0_2 = arith.constant 0 : index
    %c0_3 = arith.constant 0 : index
    %3 = vector.load %arg3[%c0_2, %c0_3] : memref<1x256xf32, #tpu.memory_space<vmem>>, vector<1x256xf32>
    %4 = vector.broadcast %3 : vector<1x256xf32> to vector<8x256xf32>
    %5 = arith.mulf %2, %4 : vector<8x256xf32>
    %c0_4 = arith.constant 0 : index
    %c0_5 = arith.constant 0 : index
    %6 = vector.load %arg4[%c0_4, %c0_5] : memref<1x256xf32, #tpu.memory_space<vmem>>, vector<1x256xf32>
    %7 = vector.broadcast %6 : vector<1x256xf32> to vector<8x256xf32>
    %8 = arith.addf %5, %7 : vector<8x256xf32>
    %cst = arith.constant 0.000000e+00 : f32
    %9 = vector.broadcast %cst : f32 to vector<8x256xf32>
    %10 = arith.maximumf %8, %9 : vector<8x256xf32>
    %c0_6 = arith.constant 0 : index
    %c0_7 = arith.constant 0 : index
    %c0_8 = arith.constant 0 : index
    %11 = vector.load %arg6[%c0_6, %c0_7, %c0_8] : memref<1x8x256xf32, #tpu.memory_space<vmem>>, vector<1x8x256xf32>
    %12 = vector.shape_cast %11 : vector<1x8x256xf32> to vector<8x256xf32>
    %13 = vector.shape_cast %10 : vector<8x256xf32> to vector<1x8x256xf32>
    tpu.vector_store %arg6[%c0_6, %c0_7, %c0_8], %13 {strides = array<i32>} : memref<1x8x256xf32, #tpu.memory_space<vmem>>, vector<1x8x256xf32>,
    %14 = vector.extract_strided_slice %10 {offsets = [0, 0], sizes = [8, 128], strides = [1, 1]} : vector<8x256xf32> to vector<8x128xf32>
    %15 = vector.extract_strided_slice %10 {offsets = [0, 128], sizes = [8, 128], strides = [1, 1]} : vector<8x256xf32> to vector<8x128xf32>
    %16 = arith.maximumf %14, %15 : vector<8x128xf32>
    %17 = arith.truncf %16 : vector<8x128xf32> to vector<8x128xbf16>
    %c0_9 = arith.constant 0 : index
    %c0_10 = arith.constant 0 : index
    %18 = vector.load %arg5[%c0_9, %c0_10] : memref<128x128xbf16, #tpu.memory_space<vmem>>, vector<128x128xbf16>
    %cst_11 = arith.constant dense<0.000000e+00> : vector<8x128xf32>
    %19 = tpu.matmul %17, %18, %cst_11 {dimension_numbers = #tpu.dot_dimension_numbers<[1], [0], [0], [1], [0, 0, 1, 1], [], []>} : vector<8x128xbf16>, vector<128x128xbf16>, vector<8x128xf32> -> vector<8x128xf32>
    %20 = vector.extract_strided_slice %19 {offsets = [0, 0], sizes = [8, 64], strides = [1, 1]} : vector<8x128xf32> to vector<8x64xf32>
    %21 = vector.extract_strided_slice %19 {offsets = [0, 64], sizes = [8, 64], strides = [1, 1]} : vector<8x128xf32> to vector<8x64xf32>
    %22 = arith.maximumf %20, %21 : vector<8x64xf32>
    %c0_12 = arith.constant 0 : index
    %c0_13 = arith.constant 0 : index
    %c0_14 = arith.constant 0 : index
    %23 = vector.load %arg7[%c0_12, %c0_13, %c0_14] : memref<1x8x64xf32, #tpu.memory_space<vmem>>, vector<1x8x64xf32>
    %24 = vector.shape_cast %23 : vector<1x8x64xf32> to vector<8x64xf32>
    %25 = vector.shape_cast %22 : vector<8x64xf32> to vector<1x8x64xf32>
    tpu.vector_store %arg7[%c0_12, %c0_13, %c0_14], %25 {strides = array<i32>} : memref<1x8x64xf32, #tpu.memory_space<vmem>>, vector<1x8x64xf32>,
    return
  }
  func.func @transform_0(%arg0: i32, %arg1: i32) -> (i32, i32, i32) {
    %c0_i32 = arith.constant 0 : i32
    %c0_i32_0 = arith.constant 0 : i32
    return %arg0, %arg1, %c0_i32 : i32, i32, i32
  }
  func.func @transform_1(%arg0: i32, %arg1: i32) -> (i32, i32) {
    %c0_i32 = arith.constant 0 : i32
    %c0_i32_0 = arith.constant 0 : i32
    %c0_i32_1 = arith.constant 0 : i32
    return %c0_i32, %c0_i32_0 : i32, i32
  }
  func.func @transform_2(%arg0: i32, %arg1: i32) -> (i32, i32) {
    %c0_i32 = arith.constant 0 : i32
    %c0_i32_0 = arith.constant 0 : i32
    %c0_i32_1 = arith.constant 0 : i32
    return %c0_i32, %c0_i32_0 : i32, i32
  }
  func.func @transform_3(%arg0: i32, %arg1: i32) -> (i32, i32) {
    %c0_i32 = arith.constant 0 : i32
    %c0_i32_0 = arith.constant 0 : i32
    %c0_i32_1 = arith.constant 0 : i32
    return %c0_i32, %c0_i32_0 : i32, i32
  }
  func.func @transform_4(%arg0: i32, %arg1: i32) -> (i32, i32, i32) {
    %c0_i32 = arith.constant 0 : i32
    %c0_i32_0 = arith.constant 0 : i32
    return %arg0, %arg1, %c0_i32 : i32, i32, i32
  }
  func.func @transform_5(%arg0: i32, %arg1: i32) -> (i32, i32, i32) {
    %c0_i32 = arith.constant 0 : i32
    %c0_i32_0 = arith.constant 0 : i32
    return %arg0, %arg1, %c0_i32 : i32, i32, i32
  }
}

</mosaic_0001>

<llo_original>
// kernel: tile.13
$region0: #{tile.13}
  #allocation0 [shape = 's32[1]{0}', space=sflag, size = 0x4, scoped, tag = 'scoped memory for tile.13']
  %s0 = inlined_call_operand.vmem [shape: f32[8], index: 0, kind: input, shape index: {}]
  %s1 = inlined_call_operand.vmem [shape: f32[32,8], index: 1, kind: output, shape index: {}]
  // Predicated region
  $region2: #{tile.13} parent=0 // pred_check
    _
  $region3: #{tile.13} parent=0 // pred_check_branch
    %3 = sbr.rel (0) target = $region5
  $region4: #{tile.13} parent=0 // pred_region
    _
  $region5: #{tile.13} parent=0 // pred_fallthru
    _
  %v4 = vld [vmem:[%s0] ss:$0 sm:$0xff]
  %5 = vst [vmem:[%s1] sm:$0xff] %v4
  %s6 = scalar_lea.vmem %s1, 8
  %7 = vst [vmem:[%s6] sm:$0xff] %v4
  %s8 = scalar_lea.vmem %s1, 16
  %9 = vst [vmem:[%s8] sm:$0xff] %v4
  %s10 = scalar_lea.vmem %s1, 24
  %11 = vst [vmem:[%s10] sm:$0xff] %v4

// kernel: tile.14
$region0: #{tile.14}
  %s0 = inlined_call_operand.vmem [shape: f32[32,8], index: 0, kind: input, shape index: {}]
  %s1 = inlined_call_operand.vmem [shape: f32[1,256], index: 1, kind: output, shape index: {}]
  $region1: #{tile.14} parent=0
    #allocation0 [shape = 'u8[8192]{0}', space=vmem, size = 0x2000, scoped, tag = 'scoped mem for output reshape']
    %s2 = smov 3
    %v3 = vld [vmem:[%s0] ss:$16 sm:%s2]
    %vm4 = vcmask 64512
    %5 = vst.msk [vmem:[#allocation0] ss:$8 sm:$0x3] %vm4, %v3
    %s6 = scalar_lea.vmem %s0, 15
    %s7 = smov 3
    %v8 = vld [vmem:[%s6] ss:$16 sm:%s7]
    %9 = vrot.lane.b32.xlu0 %v8, 120
    %v10 = vpop.permute.xlu0 %9
    %vm11 = vcmask 1048512
    %12 = vst.msk [vmem:[#allocation0] ss:$8 sm:$0x3] %vm11, %v10
    %s13 = scalar_lea.vmem %s0, 14
    %s14 = smov 3
    %v15 = vld [vmem:[%s13] ss:$16 sm:%s14]
    %16 = vrot.lane.b32.xlu0 %v15, 112
    %v17 = vpop.permute.xlu0 %16
    %vm18 = vcmask 982912
    %19 = vst.msk [vmem:[#allocation0] ss:$8 sm:$0x3] %vm18, %v17
    %s20 = scalar_lea.vmem %s0, 13
    %s21 = smov 3
    %v22 = vld [vmem:[%s20] ss:$16 sm:%s21]
    %23 = vrot.lane.b32.xlu0 %v22, 104
    %v24 = vpop.permute.xlu0 %23
    %vm25 = vcmask 917312
    %26 = vst.msk [vmem:[#allocation0] ss:$8 sm:$0x3] %vm25, %v24
    %s27 = scalar_lea.vmem %s0, 12
    %s28 = smov 3
    %v29 = vld [vmem:[%s27] ss:$16 sm:%s28]
    %30 = vrot.lane.b32.xlu0 %v29, 96
    %v31 = vpop.permute.xlu0 %30
    %vm32 = vcmask 851712
    %33 = vst.msk [vmem:[#allocation0] ss:$8 sm:$0x3] %vm32, %v31
    %s34 = scalar_lea.vmem %s0, 11
    %s35 = smov 3
    %v36 = vld [vmem:[%s34] ss:$16 sm:%s35]
    %37 = vrot.lane.b32.xlu0 %v36, 88
    %v38 = vpop.permute.xlu0 %37
    %vm39 = vcmask 786112
    %40 = vst.msk [vmem:[#allocation0] ss:$8 sm:$0x3] %vm39, %v38
    %s41 = scalar_lea.vmem %s0, 10
    %s42 = smov 3
    %v43 = vld [vmem:[%s41] ss:$16 sm:%s42]
    %44 = vrot.lane.b32.xlu0 %v43, 80
    %v45 = vpop.permute.xlu0 %44
    %vm46 = vcmask 720512
    %47 = vst.msk [vmem:[#allocation0] ss:$8 sm:$0x3] %vm46, %v45
    %s48 = scalar_lea.vmem %s0, 9
    %s49 = smov 3
    %v50 = vld [vmem:[%s48] ss:$16 sm:%s49]
    %51 = vrot.lane.b32.xlu0 %v50, 72
    %v52 = vpop.permute.xlu0 %51
    %vm53 = vcmask 654912
    %54 = vst.msk [vmem:[#allocation0] ss:$8 sm:$0x3] %vm53, %v52
    %s55 = scalar_lea.vmem %s0, 8
    %s56 = smov 3
    %v57 = vld [vmem:[%s55] ss:$16 sm:%s56]
    %58 = vrot.lane.b32.xlu0 %v57, 64
    %v59 = vpop.permute.xlu0 %58
    %vm60 = vcmask 589312
    %61 = vst.msk [vmem:[#allocation0] ss:$8 sm:$0x3] %vm60, %v59
    %s62 = scalar_lea.vmem %s0, 7
    %s63 = smov 3
    %v64 = vld [vmem:[%s62] ss:$16 sm:%s63]
    %65 = vrot.lane.b32.xlu0 %v64, 56
    %v66 = vpop.permute.xlu0 %65
    %vm67 = vcmask 523712
    %68 = vst.msk [vmem:[#allocation0] ss:$8 sm:$0x3] %vm67, %v66
    %s69 = scalar_lea.vmem %s0, 6
    %s70 = smov 3
    %v71 = vld [vmem:[%s69] ss:$16 sm:%s70]
    %72 = vrot.lane.b32.xlu0 %v71, 48
    %v73 = vpop.permute.xlu0 %72
    %vm74 = vcmask 458112
    %75 = vst.msk [vmem:[#allocation0] ss:$8 sm:$0x3] %vm74, %v73
    %s76 = scalar_lea.vmem %s0, 5
    %s77 = smov 3
    %v78 = vld [vmem:[%s76] ss:$16 sm:%s77]
    %79 = vrot.lane.b32.xlu0 %v78, 40
    %v80 = vpop.permute.xlu0 %79
    %vm81 = vcmask 392512
    %82 = vst.msk [vmem:[#allocation0] ss:$8 sm:$0x3] %vm81, %v80
    %s83 = scalar_lea.vmem %s0, 4
    %s84 = smov 3
    %v85 = vld [vmem:[%s83] ss:$16 sm:%s84]
    %86 = vrot.lane.b32.xlu0 %v85, 32
    %v87 = vpop.permute.xlu0 %86
    %vm88 = vcmask 326912
    %89 = vst.msk [vmem:[#allocation0] ss:$8 sm:$0x3] %vm88, %v87
    %s90 = scalar_lea.vmem %s0, 3
    %s91 = smov 3
    %v92 = vld [vmem:[%s90] ss:$16 sm:%s91]
    %93 = vrot.lane.b32.xlu0 %v92, 24
    %v94 = vpop.permute.xlu0 %93
    %vm95 = vcmask 261312
    %96 = vst.msk [vmem:[#allocation0] ss:$8 sm:$0x3] %vm95, %v94
    %s97 = scalar_lea.vmem %s0, 2
    %s98 = smov 3
    %v99 = vld [vmem:[%s97] ss:$16 sm:%s98]
    %100 = vrot.lane.b32.xlu0 %v99, 16
    %v101 = vpop.permute.xlu0 %100
    %vm102 = vcmask 195712
    %103 = vst.msk [vmem:[#allocation0] ss:$8 sm:$0x3] %vm102, %v101
    %s104 = scalar_lea.vmem %s0, 1
    %s105 = smov 3
    %v106 = vld [vmem:[%s104] ss:$16 sm:%s105]
    %107 = vrot.lane.b32.xlu0 %v106, 8
    %v108 = vpop.permute.xlu0 %107
    %vm109 = vcmask 130112
    %110 = vst.msk [vmem:[#allocation0] ss:$8 sm:$0x3] %vm109, %v108
    %s112 = sshllo.u32 0, 1
    %v114 = vld [vmem:[#allocation0] sm:%s112]
    %s115 = sshllo.u32 0, 1
    %116 = vst [vmem:[%s1] sm:%s115] %v114
    %s117 = scalar_lea.vmem [#allocation0], 8
    %v118 = vld [vmem:[%s117] sm:%s112]
    %s119 = sshllo.u32 0, 1
    %s120 = scalar_lea.vmem %s1, 1
    %121 = vst [vmem:[%s120] sm:%s119] %v118

// kernel: encoder_block_forward.5
$region0: #{encoder_block_forward.5}
  #allocation0 [shape = 'u32[]', space=smem, size = 0x4, offset = 0x4, fixed_abs, tag = 'smem constant byte address 0x4 - core index']
  #allocation1 [shape = 'u32[144,128]{1,0:T(1,128)}', space=vmem, size = 0x12000, scoped, tag = 'internal scratch']
  %s0 = inlined_call_operand.vmem [shape: bf16[2,8,256], index: 0, kind: input, shape index: {}]
  %s1 = inlined_call_operand.vmem [shape: f32[1,256], index: 1, kind: input, shape index: {}]
  %s2 = inlined_call_operand.vmem [shape: f32[1,256], index: 2, kind: input, shape index: {}]
  %s3 = inlined_call_operand.vmem [shape: bf16[128,128], index: 3, kind: input, shape index: {}]
  %s4 = inlined_call_operand.vmem [shape: f32[2,8,256], index: 4, kind: output, shape index: {0}]
  %s5 = inlined_call_operand.vmem [shape: f32[2,8,64], index: 5, kind: output, shape index: {1}]
  %6 = xla_tuple %s4, %s5
  %s7 = sld [smem:[#allocation0]]
  $region57: #{encoder_block_forward.5} parent=0
    _
  %s9 = ssub.s32 1, %s7
  %s10 = scalar_select 0, %s9, %s7
  loop: start=0, step=1, limit=4
  $region2: #{encoder_block_forward.5} parent=0 // loop_pre_header
    _
  $region3: #{encoder_block_forward.5} parent=0 // loop_header
    %s12 = sphi 0, %s16
    %p13 = scmp.ge.s32.totalorder %s12, 4
    %s19 = sphi 0, %s31
    %s20 = sphi 0, %s27
    %s21 = sphi 0, %s19
    %s22 = sphi 0, %s20
    %s23 = sphi 0, %s21
    %s24 = sphi 0, %s22
    %s36 = sphi 0, %s38
    %s39 = sphi 0, %s36
    %s40 = sphi 0, %s39
    %s56 = sphi 0, %s40
    %s60 = sphi 0, %s60
    %s62 = sphi 0, %s60
    %s63 = sphi 0, %s62
    %s77 = sphi 0, %s63
    %s81 = sphi 0, %s81
    %s83 = sphi 0, %s81
    %s84 = sphi 0, %s83
    %s98 = sphi 0, %s84
    %s102 = sphi 0, %s102
    %s104 = sphi 0, %s102
    %s105 = sphi 0, %s104
    %s119 = sphi 0, %s105
    %s127 = sphi 0, %s129
    %s130 = sphi 0, %s127
    %s131 = sphi 0, %s130
    %s147 = sphi 0, %s131
    %s155 = sphi 0, %s157
    %s158 = sphi 0, %s155
    %s159 = sphi 0, %s158
    %s175 = sphi 0, %s159
  $region4: #{encoder_block_forward.5} parent=0 // loop_header_branch
    %15 = sbr.rel (%p13) target = $region8
  $region5: #{encoder_block_forward.5} parent=0 // loop_body
    %s17 = ssub.s32 %s12, 1
    %s18 = ssub.s32 %s12, 2
    %s25 = sadd.s32 1, %s20
    %p26 = scmp.ge.s32.totalorder %s25, 1
    %s27 = scalar_select %p26, 0, %s25
    %s28 = sadd.s32 1, %s19
    %s29 = scalar_select %p26, %s28, %s19
    %p30 = scmp.ge.s32.totalorder %s29, 2
    %s31 = scalar_select %p30, 0, %s29
    %s32 = ssub.s32 %s19, %s31
    %s33 = ssub.s32 %s20, %s27
    %s34 = sor.u32 %s32, %s33
    %p35 = scmp.eq.s32.totalorder %s34, 0
    %s37 = sadd.s32 %s36, 1
    %s38 = scalar_select %p35, %s36, %s37
    %p41 = pneg %p35
    %p42 = scmp.eq.s32.totalorder %s12, 1
    %p43 = por %p41, %p42
    %p44 = scmp.ne.s32.totalorder %s36, %s39
    %p45 = scmp.eq.s32.totalorder %s12, 0
    %p46 = por %p44, %p45
    %p47 = scmp.ne.s32.totalorder %s36, %s39
    %p48 = scmp.eq.s32.totalorder %s17, 1
    %p49 = por %p47, %p48
    %p50 = scmp.ne.s32.totalorder %s39, %s40
    %p51 = scmp.eq.s32.totalorder %s17, 0
    %p52 = por %p50, %p51
    %p53 = scmp.ne.s32.totalorder %s39, %s40
    %p54 = scmp.eq.s32.totalorder %s18, 1
    %p55 = por %p53, %p54
    %p57 = scmp.ne.s32.totalorder %s40, %s56
    %p58 = scmp.eq.s32.totalorder %s18, 0
    %p59 = por %p57, %p58
    %s61 = sadd.s32 %s60, 1
    %p64 = scmp.eq.s32.totalorder %s12, 1
    %p65 = scmp.ne.s32.totalorder %s60, %s62
    %p66 = scmp.eq.s32.totalorder %s12, 0
    %p67 = por %p65, %p66
    %p68 = scmp.ne.s32.totalorder %s60, %s62
    %p69 = scmp.eq.s32.totalorder %s17, 1
    %p70 = por %p68, %p69
    %p71 = scmp.ne.s32.totalorder %s62, %s63
    %p72 = scmp.eq.s32.totalorder %s17, 0
    %p73 = por %p71, %p72
    %p74 = scmp.ne.s32.totalorder %s62, %s63
    %p75 = scmp.eq.s32.totalorder %s18, 1
    %p76 = por %p74, %p75
    %p78 = scmp.ne.s32.totalorder %s63, %s77
    %p79 = scmp.eq.s32.totalorder %s18, 0
    %p80 = por %p78, %p79
    %s82 = sadd.s32 %s81, 1
    %p85 = scmp.eq.s32.totalorder %s12, 1
    %p86 = scmp.ne.s32.totalorder %s81, %s83
    %p87 = scmp.eq.s32.totalorder %s12, 0
    %p88 = por %p86, %p87
    %p89 = scmp.ne.s32.totalorder %s81, %s83
    %p90 = scmp.eq.s32.totalorder %s17, 1
    %p91 = por %p89, %p90
    %p92 = scmp.ne.s32.totalorder %s83, %s84
    %p93 = scmp.eq.s32.totalorder %s17, 0
    %p94 = por %p92, %p93
    %p95 = scmp.ne.s32.totalorder %s83, %s84
    %p96 = scmp.eq.s32.totalorder %s18, 1
    %p97 = por %p95, %p96
    %p99 = scmp.ne.s32.totalorder %s84, %s98
    %p100 = scmp.eq.s32.totalorder %s18, 0
    %p101 = por %p99, %p100
    %s103 = sadd.s32 %s102, 1
    %p106 = scmp.eq.s32.totalorder %s12, 1
    %p107 = scmp.ne.s32.totalorder %s102, %s104
    %p108 = scmp.eq.s32.totalorder %s12, 0
    %p109 = por %p107, %p108
    %p110 = scmp.ne.s32.totalorder %s102, %s104
    %p111 = scmp.eq.s32.totalorder %s17, 1
    %p112 = por %p110, %p111
    %p113 = scmp.ne.s32.totalorder %s104, %s105
    %p114 = scmp.eq.s32.totalorder %s17, 0
    %p115 = por %p113, %p114
    %p116 = scmp.ne.s32.totalorder %s104, %s105
    %p117 = scmp.eq.s32.totalorder %s18, 1
    %p118 = por %p116, %p117
    %p120 = scmp.ne.s32.totalorder %s105, %s119
    %p121 = scmp.eq.s32.totalorder %s18, 0
    %p122 = por %p120, %p121
    %s123 = ssub.s32 %s19, %s31
    %s124 = ssub.s32 %s20, %s27
    %s125 = sor.u32 %s123, %s124
    %p126 = scmp.eq.s32.totalorder %s125, 0
    %s128 = sadd.s32 %s127, 1
    %s129 = scalar_select %p126, %s127, %s128
    %p132 = pneg %p126
    %p133 = scmp.eq.s32.totalorder %s12, 1
    %p134 = por %p132, %p133
    %p135 = scmp.ne.s32.totalorder %s127, %s130
    %p136 = scmp.eq.s32.totalorder %s12, 0
    %p137 = por %p135, %p136
    %p138 = scmp.ne.s32.totalorder %s127, %s130
    %p139 = scmp.eq.s32.totalorder %s17, 1
    %p140 = por %p138, %p139
    %p141 = scmp.ne.s32.totalorder %s130, %s131
    %p142 = scmp.eq.s32.totalorder %s17, 0
    %p143 = por %p141, %p142
    %p144 = scmp.ne.s32.totalorder %s130, %s131
    %p145 = scmp.eq.s32.totalorder %s18, 1
    %p146 = por %p144, %p145
    %p148 = scmp.ne.s32.totalorder %s131, %s147
    %p149 = scmp.eq.s32.totalorder %s18, 0
    %p150 = por %p148, %p149
    %s151 = ssub.s32 %s19, %s31
    %s152 = ssub.s32 %s20, %s27
    %s153 = sor.u32 %s151, %s152
    %p154 = scmp.eq.s32.totalorder %s153, 0
    %s156 = sadd.s32 %s155, 1
    %s157 = scalar_select %p154, %s155, %s156
    %p160 = pneg %p154
    %p161 = scmp.eq.s32.totalorder %s12, 1
    %p162 = por %p160, %p161
    %p163 = scmp.ne.s32.totalorder %s155, %s158
    %p164 = scmp.eq.s32.totalorder %s12, 0
    %p165 = por %p163, %p164
    %p166 = scmp.ne.s32.totalorder %s155, %s158
    %p167 = scmp.eq.s32.totalorder %s17, 1
    %p168 = por %p166, %p167
    %p169 = scmp.ne.s32.totalorder %s158, %s159
    %p170 = scmp.eq.s32.totalorder %s17, 0
    %p171 = por %p169, %p170
    %p172 = scmp.ne.s32.totalorder %s158, %s159
    %p173 = scmp.eq.s32.totalorder %s18, 1
    %p174 = por %p172, %p173
    %p176 = scmp.ne.s32.totalorder %s159, %s175
    %p177 = scmp.eq.s32.totalorder %s18, 0
    %p178 = por %p176, %p177
    %p179 = scmp.le.s32.totalorder 1, %s12
    %p180 = scmp.lt.s32.totalorder %s12, 3
    %p181 = pnand %p179, %p180
    %p182 = pneg %p181
    // Predicated region
    $region9: #{encoder_block_forward.5} parent=5 // pred_check
      _
    $region10: #{encoder_block_forward.5} parent=5 // pred_check_branch
      %184 = sbr.rel (%p181) target = $region12
    $region11: #{encoder_block_forward.5} parent=5 // pred_region
      %s185 = ssub.s32 %s12, 1
      // Predicated region
      $region13: #{encoder_block_forward.5} parent=11 // pred_check
        %p186 = pneg %p73
      $region14: #{encoder_block_forward.5} parent=11 // pred_check_branch
        %188 = sbr.rel (%p186) target = $region16
      $region15: #{encoder_block_forward.5} parent=11 // pred_region
        _
      $region16: #{encoder_block_forward.5} parent=11 // pred_fallthru
        _
      // Predicated region
      $region17: #{encoder_block_forward.5} parent=11 // pred_check
        %p189 = pneg %p94
      $region18: #{encoder_block_forward.5} parent=11 // pred_check_branch
        %191 = sbr.rel (%p189) target = $region20
      $region19: #{encoder_block_forward.5} parent=11 // pred_region
        _
      $region20: #{encoder_block_forward.5} parent=11 // pred_fallthru
        _
      // Predicated region
      $region21: #{encoder_block_forward.5} parent=11 // pred_check
        %p192 = pneg %p115
      $region22: #{encoder_block_forward.5} parent=11 // pred_check_branch
        %194 = sbr.rel (%p192) target = $region24
      $region23: #{encoder_block_forward.5} parent=11 // pred_region
        _
      $region24: #{encoder_block_forward.5} parent=11 // pred_fallthru
        _
    $region12: #{encoder_block_forward.5} parent=5 // pred_fallthru
      _
    %p195 = scmp.lt.s32.totalorder %s12, 2
    // Predicated region
    $region25: #{encoder_block_forward.5} parent=5 // pred_check
      %p196 = pneg %p195
    $region26: #{encoder_block_forward.5} parent=5 // pred_check_branch
      %198 = sbr.rel (%p196) target = $region28
    $region27: #{encoder_block_forward.5} parent=5 // pred_region
      // Predicated region
      $region29: #{encoder_block_forward.5} parent=27 // pred_check
        %p199 = pneg %p46
      $region30: #{encoder_block_forward.5} parent=27 // pred_check_branch
        %201 = sbr.rel (%p199) target = $region32
      $region31: #{encoder_block_forward.5} parent=27 // pred_region
        %p202 = scmp.lt.s32.totalorder %s19, 1
        %s203 = scalar_select %p202, %s19, 1
        %p204 = scmp.lt.s32.totalorder %s20, 0
        %s205 = scalar_select %p204, %s20, 0
        %s206 = smul.addr %s205, 2
        %s207 = smul.addr %s203, 2
        %s208 = sadd.s32 %s206, %s207
        %s209 = smul.addr %s208, 4
        %s210 = scalar_lea.vmem %s0, %s209
      $region32: #{encoder_block_forward.5} parent=27 // pred_fallthru
        _
    $region28: #{encoder_block_forward.5} parent=5 // pred_fallthru
      _
    %p211 = scmp.le.s32.totalorder 1, %s12
    %p212 = scmp.lt.s32.totalorder %s12, 3
    %p213 = pnand %p211, %p212
    %p214 = pneg %p213
    // Predicated region
    $region33: #{encoder_block_forward.5} parent=5 // pred_check
      _
    $region34: #{encoder_block_forward.5} parent=5 // pred_check_branch
      %216 = sbr.rel (%p213) target = $region36
    $region35: #{encoder_block_forward.5} parent=5 // pred_region
      %s217 = ssub.s32 %s12, 1
      %p218 = scmp.lt.s32.totalorder %s21, 1
      %s219 = scalar_select %p218, %s21, 1
      %p220 = scmp.lt.s32.totalorder %s22, 0
      %s221 = scalar_select %p220, %s22, 0
      %s222 = smul.addr %s221, 2
      %s223 = smul.addr %s219, 2
      %s224 = sadd.s32 %s222, %s223
      %s225 = smul.addr %s224, 4
      %s226 = scalar_lea.vmem %s0, %s225
      %p227 = pneg %p52
      %p228 = pneg %p49
      %p229 = pneg %p73
      %p230 = pneg %p70
      %p231 = pneg %p94
      %p232 = pneg %p91
      %p233 = pneg %p115
      %p234 = pneg %p112
      %p235 = pneg %p143
      %p236 = pneg %p140
      %p237 = scmp.lt.s32.totalorder %s21, 1
      %s238 = scalar_select %p237, %s21, 1
      %p239 = scmp.lt.s32.totalorder %s22, 0
      %s240 = scalar_select %p239, %s22, 0
      %s241 = smul.addr %s240, 2
      %s242 = smul.addr %s238, 2
      %s243 = sadd.s32 %s241, %s242
      %s244 = smul.addr %s243, 8
      %s245 = scalar_lea.vmem %s4, %s244
      %p246 = pneg %p171
      %p247 = pneg %p168
      %p248 = scmp.lt.s32.totalorder %s21, 1
      %s249 = scalar_select %p248, %s21, 1
      %p250 = scmp.lt.s32.totalorder %s22, 0
      %s251 = scalar_select %p250, %s22, 0
      %s252 = sadd.s32 %s251, %s249
      %s253 = smul.addr %s252, 8
      %s254 = scalar_lea.vmem %s5, %s253
      %p255 = scmp.lt.s32.totalorder %s21, 1
      %s256 = scalar_select %p255, %s21, 1
      %p257 = scmp.lt.s32.totalorder %s22, 0
      %s258 = scalar_select %p257, %s22, 0
      %s259 = smul.addr %s258, 2
      %s260 = smul.addr %s256, 2
      %s261 = sadd.s32 %s259, %s260
      %s262 = smul.addr %s261, 4
      %s263 = scalar_lea.vmem %s0, %s262
      %p264 = scmp.lt.s32.totalorder %s21, 1
      %s265 = scalar_select %p264, %s21, 1
      %p266 = scmp.lt.s32.totalorder %s22, 0
      %s267 = scalar_select %p266, %s22, 0
      %s268 = smul.addr %s267, 2
      %s269 = smul.addr %s265, 2
      %s270 = sadd.s32 %s268, %s269
      %s271 = smul.addr %s270, 8
      %s272 = scalar_lea.vmem %s4, %s271
      %p273 = scmp.lt.s32.totalorder %s21, 1
      %s274 = scalar_select %p273, %s21, 1
      %p275 = scmp.lt.s32.totalorder %s22, 0
      %s276 = scalar_select %p275, %s22, 0
      %s277 = sadd.s32 %s276, %s274
      %s278 = smul.addr %s277, 8
      %s279 = scalar_lea.vmem %s5, %s278
      %v281 = vld [vmem:[%s263] sm:$0xff]
      %v282 = vunpack.c.l.bf16 %v281
      %v283 = vunpack.c.h.bf16 %v281
      %v284 = vld [vmem:[%s1] sm:$0x3]
      %v286 = vlaneseq
      %v287 = vshrl.u32 %v286, 7
      %v288 = vsub.s32 0, %v287
      %v289 = vrot.slane %v284, %v288
      %v290 = vlaneseq
      %v291 = vshrl.u32 %v290, 7
      %v292 = vsub.s32 1, %v291
      %v293 = vrot.slane %v284, %v292
      %v296 = vmul.f32 %v282, %v289
      %v297 = vmul.f32 %v283, %v293
      %v298 = vld [vmem:[%s2] sm:$0x3]
      %v300 = vlaneseq
      %v301 = vshrl.u32 %v300, 7
      %v302 = vsub.s32 0, %v301
      %v303 = vrot.slane %v298, %v302
      %v304 = vlaneseq
      %v305 = vshrl.u32 %v304, 7
      %v306 = vsub.s32 1, %v305
      %v307 = vrot.slane %v298, %v306
      %v310 = vadd.f32 %v296, %v303
      %v311 = vadd.f32 %v297, %v307
      %v312 = vmax.f32 %v310, 0.0
      %v313 = vmax.f32 %v311, 0.0
      %314 = vst [vmem:[%s272] sm:$0xff] %v312
      %315 = vst [vmem:[%s272 + $0x8] sm:$0xff] %v313
      %v316 = vmax.f32 %v312, %v313
      %v317 = vpack.c.bf16 %v316, %v316
      %v318 = vld [vmem:[%s3] sm:$0xf]
      %v319 = vld [vmem:[%s3 + $0x4] sm:$0xf]
      %v320 = vld [vmem:[%s3 + $0x8] sm:$0xf]
      %v321 = vld [vmem:[%s3 + $0xc] sm:$0xf]
      %v322 = vld [vmem:[%s3 + $0x10] sm:$0xf]
      %v323 = vld [vmem:[%s3 + $0x14] sm:$0xf]
      %v324 = vld [vmem:[%s3 + $0x18] sm:$0xf]
      %v325 = vld [vmem:[%s3 + $0x1c] sm:$0xf]
      %v326 = vld [vmem:[%s3 + $0x20] sm:$0xf]
      %v327 = vld [vmem:[%s3 + $0x24] sm:$0xf]
      %v328 = vld [vmem:[%s3 + $0x28] sm:$0xf]
      %v329 = vld [vmem:[%s3 + $0x2c] sm:$0xf]
      %v330 = vld [vmem:[%s3 + $0x30] sm:$0xf]
      %v331 = vld [vmem:[%s3 + $0x34] sm:$0xf]
      %v332 = vld [vmem:[%s3 + $0x38] sm:$0xf]
      %v333 = vld [vmem:[%s3 + $0x3c] sm:$0xf]
      %v350 = vunpack.c.l.b16 %v318
      %v351 = vunpack.c.l.b16 %v319
      %v352 = vunpack.c.l.b16 %v320
      %v353 = vunpack.c.l.b16 %v321
      %v354 = vunpack.c.l.b16 %v322
      %v355 = vunpack.c.l.b16 %v323
      %v356 = vunpack.c.l.b16 %v324
      %v357 = vunpack.c.l.b16 %v325
      %v358 = vunpack.c.l.b16 %v326
      %v359 = vunpack.c.l.b16 %v327
      %v360 = vunpack.c.l.b16 %v328
      %v361 = vunpack.c.l.b16 %v329
      %v362 = vunpack.c.l.b16 %v330
      %v363 = vunpack.c.l.b16 %v331
      %v364 = vunpack.c.l.b16 %v332
      %v365 = vunpack.c.l.b16 %v333
      %v366 = vpack.c.b16 %v351, %v350
      %v367 = vpack.c.b16 %v353, %v352
      %v368 = vpack.c.b16 %v355, %v354
      %v369 = vpack.c.b16 %v357, %v356
      %v370 = vpack.c.b16 %v359, %v358
      %v371 = vpack.c.b16 %v361, %v360
      %v372 = vpack.c.b16 %v363, %v362
      %v373 = vpack.c.b16 %v365, %v364
      %382 = vmatprep.subr.bf16.mxu0 0
      %383 = vmatpush1.bf16.msra.mxu0 %v366
      %384 = vmatprep.subr.bf16.mxu0 0
      %385 = vmatpush1.bf16.msra.mxu0 %v367
      %386 = vmatprep.subr.bf16.mxu0 0
      %387 = vmatpush1.bf16.msra.mxu0 %v368
      %388 = vmatprep.subr.bf16.mxu0 0
      %389 = vmatpush1.bf16.msra.mxu0 %v369
      %390 = vmatprep.subr.bf16.mxu0 0
      %391 = vmatpush1.bf16.msra.mxu0 %v370
      %392 = vmatprep.subr.bf16.mxu0 0
      %393 = vmatpush1.bf16.msra.mxu0 %v371
      %394 = vmatprep.subr.bf16.mxu0 0
      %395 = vmatpush1.bf16.msra.mxu0 %v372
      %396 = vmatprep.subr.bf16.mxu0 0
      %397 = vmatpush1.bf16.msra.mxu0 %v373
      %398 = vmatprep.subr.bf16.mxu0 0
      %399 = vmatpush1.bf16.msra.mxu0 0
      %400 = vmatprep.subr.bf16.mxu0 0
      %401 = vmatpush1.bf16.msra.mxu0 0
      %402 = vmatprep.subr.bf16.mxu0 0
      %403 = vmatpush1.bf16.msra.mxu0 0
      %404 = vmatprep.subr.bf16.mxu0 0
      %405 = vmatpush1.bf16.msra.mxu0 0
      %406 = vmatprep.subr.bf16.mxu0 0
      %407 = vmatpush1.bf16.msra.mxu0 0
      %408 = vmatprep.subr.bf16.mxu0 0
      %409 = vmatpush1.bf16.msra.mxu0 0
      %410 = vmatprep.subr.bf16.mxu0 0
      %411 = vmatpush1.bf16.msra.mxu0 0
      %412 = vmatprep.subr.bf16.mxu0 0
      %413 = vmatpush1.bf16.msra.mxu0 0
      %414 = vmatprep.mubr.bf16.mxu0 0
      %415 = vmatmul.mubr.bf16.gmra.mrb[0].mxu0 %v317
      %v416 = vpop.f32.mrb[0].mxu0
      %v417 = vadd.f32 0.0, %v416
      %v418 = vpop.f32.mrb[0].mxu0
      %v419 = vpop.f32.mrb[0].mxu0
      %v420 = vpop.f32.mrb[0].mxu0
      %421 = vdwg.mxu0
      %423 = vrot.lane.b32.xlu0 %v417, 64
      %v424 = vpop.permute.xlu0 %423
      %v426 = vmax.f32 %v417, %v424
      %vm427 = vcmask 523264
      %428 = vst.msk [vmem:[%s279] sm:$0xff] %vm427, %v426
      %p429 = scmp.lt.s32.totalorder %s21, 1
      %s430 = scalar_select %p429, %s21, 1
      %p431 = scmp.lt.s32.totalorder %s22, 0
      %s432 = scalar_select %p431, %s22, 0
      %s433 = smul.addr %s432, 2
      %s434 = smul.addr %s430, 2
      %s435 = sadd.s32 %s433, %s434
      %s436 = smul.addr %s435, 8
      %s437 = scalar_lea.vmem %s4, %s436
      %p438 = scmp.lt.s32.totalorder %s21, 1
      %s439 = scalar_select %p438, %s21, 1
      %p440 = scmp.lt.s32.totalorder %s22, 0
      %s441 = scalar_select %p440, %s22, 0
      %s442 = sadd.s32 %s441, %s439
      %s443 = smul.addr %s442, 8
      %s444 = scalar_lea.vmem %s5, %s443
      // Predicated region
      $region37: #{encoder_block_forward.5} parent=35 // pred_check
        %p445 = pneg %p140
      $region38: #{encoder_block_forward.5} parent=35 // pred_check_branch
        %447 = sbr.rel (%p445) target = $region40
      $region39: #{encoder_block_forward.5} parent=35 // pred_region
        _
      $region40: #{encoder_block_forward.5} parent=35 // pred_fallthru
        _
      // Predicated region
      $region41: #{encoder_block_forward.5} parent=35 // pred_check
        %p448 = pneg %p168
      $region42: #{encoder_block_forward.5} parent=35 // pred_check_branch
        %450 = sbr.rel (%p448) target = $region44
      $region43: #{encoder_block_forward.5} parent=35 // pred_region
        _
      $region44: #{encoder_block_forward.5} parent=35 // pred_fallthru
        _
    $region36: #{encoder_block_forward.5} parent=5 // pred_fallthru
      _
    %p451 = scmp.le.s32.totalorder 2, %s12
    // Predicated region
    $region45: #{encoder_block_forward.5} parent=5 // pred_check
      %p452 = pneg %p451
    $region46: #{encoder_block_forward.5} parent=5 // pred_check_branch
      %454 = sbr.rel (%p452) target = $region48
    $region47: #{encoder_block_forward.5} parent=5 // pred_region
      %s455 = ssub.s32 %s12, 2
      // Predicated region
      $region49: #{encoder_block_forward.5} parent=47 // pred_check
        %p456 = pneg %p146
      $region50: #{encoder_block_forward.5} parent=47 // pred_check_branch
        %458 = sbr.rel (%p456) target = $region52
      $region51: #{encoder_block_forward.5} parent=47 // pred_region
        %p459 = scmp.lt.s32.totalorder %s23, 1
        %s460 = scalar_select %p459, %s23, 1
        %p461 = scmp.lt.s32.totalorder %s24, 0
        %s462 = scalar_select %p461, %s24, 0
        %s463 = smul.addr %s462, 2
        %s464 = smul.addr %s460, 2
        %s465 = sadd.s32 %s463, %s464
        %s466 = smul.addr %s465, 8
        %s467 = scalar_lea.vmem %s4, %s466
      $region52: #{encoder_block_forward.5} parent=47 // pred_fallthru
        _
      // Predicated region
      $region53: #{encoder_block_forward.5} parent=47 // pred_check
        %p468 = pneg %p174
      $region54: #{encoder_block_forward.5} parent=47 // pred_check_branch
        %470 = sbr.rel (%p468) target = $region56
      $region55: #{encoder_block_forward.5} parent=47 // pred_region
        %p471 = scmp.lt.s32.totalorder %s23, 1
        %s472 = scalar_select %p471, %s23, 1
        %p473 = scmp.lt.s32.totalorder %s24, 0
        %s474 = scalar_select %p473, %s24, 0
        %s475 = sadd.s32 %s474, %s472
        %s476 = smul.addr %s475, 8
        %s477 = scalar_lea.vmem %s5, %s476
      $region56: #{encoder_block_forward.5} parent=47 // pred_fallthru
        _
    $region48: #{encoder_block_forward.5} parent=5 // pred_fallthru
      _
  $region6: #{encoder_block_forward.5} parent=0 // loop_footer
    %s16 = sadd.s32 1, %s12
  $region7: #{encoder_block_forward.5} parent=0 // loop_footer_branch
    %11 = sbr.rel target = $region3
  $region8: #{encoder_block_forward.5} parent=0 // loop_exit
    _

// kernel: encoder_block_forward.4
$region0: #{encoder_block_forward.4}
  #allocation0 [shape = 'u32[]', space=smem, size = 0x4, offset = 0x4, fixed_abs, tag = 'smem constant byte address 0x4 - core index']
  #allocation1 [shape = 'u32[144,128]{1,0:T(1,128)}', space=vmem, size = 0x12000, scoped, tag = 'internal scratch']
  #allocation2 [shape = 'bf16[18,18,8]{2,1,0:T(8,128)(2,1)}', space=vmem, size = 0x1b000, scoped, tag = 'scratch operand']
  #allocation3 [shape = 'bf16[16,16,72]{2,1,0:T(16,128)(2,1)}', space=vmem, size = 0x10000, scoped, tag = 'scratch operand']
  %s0 = inlined_call_operand.vmem [shape: bf16[2,16,16,8], index: 0, kind: input, shape index: {}]
  %s1 = inlined_call_operand.vmem [shape: f32[1,8], index: 1, kind: input, shape index: {}]
  %s2 = inlined_call_operand.vmem [shape: f32[1,8], index: 2, kind: input, shape index: {}]
  %s3 = inlined_call_operand.vmem [shape: bf16[72,8], index: 3, kind: input, shape index: {}]
  %s4 = inlined_call_operand.vmem [shape: bf16[2,256,8], index: 4, kind: output, shape index: {0}]
  %s5 = inlined_call_operand.vmem [shape: f32[2,1,8], index: 5, kind: output, shape index: {1}]
  %s6 = inlined_call_operand.vmem [shape: f32[2,1,8], index: 6, kind: output, shape index: {2}]
  %7 = xla_tuple %s4, %s5, %s6
  %s8 = sld [smem:[#allocation0]]
  $region65: #{encoder_block_forward.4} parent=0
    _
  %s10 = ssub.s32 1, %s8
  %s11 = scalar_select 0, %s10, %s8
  loop: start=0, step=1, limit=4
  $region2: #{encoder_block_forward.4} parent=0 // loop_pre_header
    _
  $region3: #{encoder_block_forward.4} parent=0 // loop_header
    %s13 = sphi 0, %s17
    %p14 = scmp.ge.s32.totalorder %s13, 4
    %s23 = sphi 0, %s25
    %s26 = sphi 0, %s23
    %s27 = sphi 0, %s26
    %s43 = sphi 0, %s27
    %s47 = sphi 0, %s47
    %s49 = sphi 0, %s47
    %s50 = sphi 0, %s49
    %s64 = sphi 0, %s50
    %s68 = sphi 0, %s68
    %s70 = sphi 0, %s68
    %s71 = sphi 0, %s70
    %s85 = sphi 0, %s71
    %s89 = sphi 0, %s89
    %s91 = sphi 0, %s89
    %s92 = sphi 0, %s91
    %s106 = sphi 0, %s92
    %s112 = sphi 0, %s114
    %s115 = sphi 0, %s112
    %s116 = sphi 0, %s115
    %s132 = sphi 0, %s116
    %s138 = sphi 0, %s140
    %s141 = sphi 0, %s138
    %s142 = sphi 0, %s141
    %s158 = sphi 0, %s142
    %s164 = sphi 0, %s166
    %s167 = sphi 0, %s164
    %s168 = sphi 0, %s167
    %s184 = sphi 0, %s168
  $region4: #{encoder_block_forward.4} parent=0 // loop_header_branch
    %16 = sbr.rel (%p14) target = $region8
  $region5: #{encoder_block_forward.4} parent=0 // loop_body
    %s18 = ssub.s32 %s13, 1
    %s19 = ssub.s32 %s13, 2
    %s20 = sadd.s32 %s13, 1
    %s21 = ssub.s32 %s13, %s20
    %p22 = scmp.eq.s32.totalorder %s21, 0
    %s24 = sadd.s32 %s23, 1
    %s25 = scalar_select %p22, %s23, %s24
    %p28 = pneg %p22
    %p29 = scmp.eq.s32.totalorder %s13, 1
    %p30 = por %p28, %p29
    %p31 = scmp.ne.s32.totalorder %s23, %s26
    %p32 = scmp.eq.s32.totalorder %s13, 0
    %p33 = por %p31, %p32
    %p34 = scmp.ne.s32.totalorder %s23, %s26
    %p35 = scmp.eq.s32.totalorder %s18, 1
    %p36 = por %p34, %p35
    %p37 = scmp.ne.s32.totalorder %s26, %s27
    %p38 = scmp.eq.s32.totalorder %s18, 0
    %p39 = por %p37, %p38
    %p40 = scmp.ne.s32.totalorder %s26, %s27
    %p41 = scmp.eq.s32.totalorder %s19, 1
    %p42 = por %p40, %p41
    %p44 = scmp.ne.s32.totalorder %s27, %s43
    %p45 = scmp.eq.s32.totalorder %s19, 0
    %p46 = por %p44, %p45
    %s48 = sadd.s32 %s47, 1
    %p51 = scmp.eq.s32.totalorder %s13, 1
    %p52 = scmp.ne.s32.totalorder %s47, %s49
    %p53 = scmp.eq.s32.totalorder %s13, 0
    %p54 = por %p52, %p53
    %p55 = scmp.ne.s32.totalorder %s47, %s49
    %p56 = scmp.eq.s32.totalorder %s18, 1
    %p57 = por %p55, %p56
    %p58 = scmp.ne.s32.totalorder %s49, %s50
    %p59 = scmp.eq.s32.totalorder %s18, 0
    %p60 = por %p58, %p59
    %p61 = scmp.ne.s32.totalorder %s49, %s50
    %p62 = scmp.eq.s32.totalorder %s19, 1
    %p63 = por %p61, %p62
    %p65 = scmp.ne.s32.totalorder %s50, %s64
    %p66 = scmp.eq.s32.totalorder %s19, 0
    %p67 = por %p65, %p66
    %s69 = sadd.s32 %s68, 1
    %p72 = scmp.eq.s32.totalorder %s13, 1
    %p73 = scmp.ne.s32.totalorder %s68, %s70
    %p74 = scmp.eq.s32.totalorder %s13, 0
    %p75 = por %p73, %p74
    %p76 = scmp.ne.s32.totalorder %s68, %s70
    %p77 = scmp.eq.s32.totalorder %s18, 1
    %p78 = por %p76, %p77
    %p79 = scmp.ne.s32.totalorder %s70, %s71
    %p80 = scmp.eq.s32.totalorder %s18, 0
    %p81 = por %p79, %p80
    %p82 = scmp.ne.s32.totalorder %s70, %s71
    %p83 = scmp.eq.s32.totalorder %s19, 1
    %p84 = por %p82, %p83
    %p86 = scmp.ne.s32.totalorder %s71, %s85
    %p87 = scmp.eq.s32.totalorder %s19, 0
    %p88 = por %p86, %p87
    %s90 = sadd.s32 %s89, 1
    %p93 = scmp.eq.s32.totalorder %s13, 1
    %p94 = scmp.ne.s32.totalorder %s89, %s91
    %p95 = scmp.eq.s32.totalorder %s13, 0
    %p96 = por %p94, %p95
    %p97 = scmp.ne.s32.totalorder %s89, %s91
    %p98 = scmp.eq.s32.totalorder %s18, 1
    %p99 = por %p97, %p98
    %p100 = scmp.ne.s32.totalorder %s91, %s92
    %p101 = scmp.eq.s32.totalorder %s18, 0
    %p102 = por %p100, %p101
    %p103 = scmp.ne.s32.totalorder %s91, %s92
    %p104 = scmp.eq.s32.totalorder %s19, 1
    %p105 = por %p103, %p104
    %p107 = scmp.ne.s32.totalorder %s92, %s106
    %p108 = scmp.eq.s32.totalorder %s19, 0
    %p109 = por %p107, %p108
    %s110 = ssub.s32 %s13, %s20
    %p111 = scmp.eq.s32.totalorder %s110, 0
    %s113 = sadd.s32 %s112, 1
    %s114 = scalar_select %p111, %s112, %s113
    %p117 = pneg %p111
    %p118 = scmp.eq.s32.totalorder %s13, 1
    %p119 = por %p117, %p118
    %p120 = scmp.ne.s32.totalorder %s112, %s115
    %p121 = scmp.eq.s32.totalorder %s13, 0
    %p122 = por %p120, %p121
    %p123 = scmp.ne.s32.totalorder %s112, %s115
    %p124 = scmp.eq.s32.totalorder %s18, 1
    %p125 = por %p123, %p124
    %p126 = scmp.ne.s32.totalorder %s115, %s116
    %p127 = scmp.eq.s32.totalorder %s18, 0
    %p128 = por %p126, %p127
    %p129 = scmp.ne.s32.totalorder %s115, %s116
    %p130 = scmp.eq.s32.totalorder %s19, 1
    %p131 = por %p129, %p130
    %p133 = scmp.ne.s32.totalorder %s116, %s132
    %p134 = scmp.eq.s32.totalorder %s19, 0
    %p135 = por %p133, %p134
    %s136 = ssub.s32 %s13, %s20
    %p137 = scmp.eq.s32.totalorder %s136, 0
    %s139 = sadd.s32 %s138, 1
    %s140 = scalar_select %p137, %s138, %s139
    %p143 = pneg %p137
    %p144 = scmp.eq.s32.totalorder %s13, 1
    %p145 = por %p143, %p144
    %p146 = scmp.ne.s32.totalorder %s138, %s141
    %p147 = scmp.eq.s32.totalorder %s13, 0
    %p148 = por %p146, %p147
    %p149 = scmp.ne.s32.totalorder %s138, %s141
    %p150 = scmp.eq.s32.totalorder %s18, 1
    %p151 = por %p149, %p150
    %p152 = scmp.ne.s32.totalorder %s141, %s142
    %p153 = scmp.eq.s32.totalorder %s18, 0
    %p154 = por %p152, %p153
    %p155 = scmp.ne.s32.totalorder %s141, %s142
    %p156 = scmp.eq.s32.totalorder %s19, 1
    %p157 = por %p155, %p156
    %p159 = scmp.ne.s32.totalorder %s142, %s158
    %p160 = scmp.eq.s32.totalorder %s19, 0
    %p161 = por %p159, %p160
    %s162 = ssub.s32 %s13, %s20
    %p163 = scmp.eq.s32.totalorder %s162, 0
    %s165 = sadd.s32 %s164, 1
    %s166 = scalar_select %p163, %s164, %s165
    %p169 = pneg %p163
    %p170 = scmp.eq.s32.totalorder %s13, 1
    %p171 = por %p169, %p170
    %p172 = scmp.ne.s32.totalorder %s164, %s167
    %p173 = scmp.eq.s32.totalorder %s13, 0
    %p174 = por %p172, %p173
    %p175 = scmp.ne.s32.totalorder %s164, %s167
    %p176 = scmp.eq.s32.totalorder %s18, 1
    %p177 = por %p175, %p176
    %p178 = scmp.ne.s32.totalorder %s167, %s168
    %p179 = scmp.eq.s32.totalorder %s18, 0
    %p180 = por %p178, %p179
    %p181 = scmp.ne.s32.totalorder %s167, %s168
    %p182 = scmp.eq.s32.totalorder %s19, 1
    %p183 = por %p181, %p182
    %p185 = scmp.ne.s32.totalorder %s168, %s184
    %p186 = scmp.eq.s32.totalorder %s19, 0
    %p187 = por %p185, %p186
    %p188 = scmp.le.s32.totalorder 1, %s13
    %p189 = scmp.lt.s32.totalorder %s13, 3
    %p190 = pnand %p188, %p189
    %p191 = pneg %p190
    // Predicated region
    $region9: #{encoder_block_forward.4} parent=5 // pred_check
      _
    $region10: #{encoder_block_forward.4} parent=5 // pred_check_branch
      %193 = sbr.rel (%p190) target = $region12
    $region11: #{encoder_block_forward.4} parent=5 // pred_region
      %s194 = ssub.s32 %s13, 1
      // Predicated region
      $region13: #{encoder_block_forward.4} parent=11 // pred_check
        %p195 = pneg %p60
      $region14: #{encoder_block_forward.4} parent=11 // pred_check_branch
        %197 = sbr.rel (%p195) target = $region16
      $region15: #{encoder_block_forward.4} parent=11 // pred_region
        _
      $region16: #{encoder_block_forward.4} parent=11 // pred_fallthru
        _
      // Predicated region
      $region17: #{encoder_block_forward.4} parent=11 // pred_check
        %p198 = pneg %p81
      $region18: #{encoder_block_forward.4} parent=11 // pred_check_branch
        %200 = sbr.rel (%p198) target = $region20
      $region19: #{encoder_block_forward.4} parent=11 // pred_region
        _
      $region20: #{encoder_block_forward.4} parent=11 // pred_fallthru
        _
      // Predicated region
      $region21: #{encoder_block_forward.4} parent=11 // pred_check
        %p201 = pneg %p102
      $region22: #{encoder_block_forward.4} parent=11 // pred_check_branch
        %203 = sbr.rel (%p201) target = $region24
      $region23: #{encoder_block_forward.4} parent=11 // pred_region
        _
      $region24: #{encoder_block_forward.4} parent=11 // pred_fallthru
        _
    $region12: #{encoder_block_forward.4} parent=5 // pred_fallthru
      _
    %p204 = scmp.lt.s32.totalorder %s13, 2
    // Predicated region
    $region25: #{encoder_block_forward.4} parent=5 // pred_check
      %p205 = pneg %p204
    $region26: #{encoder_block_forward.4} parent=5 // pred_check_branch
      %207 = sbr.rel (%p205) target = $region28
    $region27: #{encoder_block_forward.4} parent=5 // pred_region
      // Predicated region
      $region29: #{encoder_block_forward.4} parent=27 // pred_check
        %p208 = pneg %p33
      $region30: #{encoder_block_forward.4} parent=27 // pred_check_branch
        %210 = sbr.rel (%p208) target = $region32
      $region31: #{encoder_block_forward.4} parent=27 // pred_region
        %p211 = scmp.lt.s32.totalorder %s13, 1
        %s212 = scalar_select %p211, %s13, 1
        %s213 = smul.addr %s212, 32
        %s214 = smul.addr %s213, 4
        %s215 = scalar_lea.vmem %s0, %s214
      $region32: #{encoder_block_forward.4} parent=27 // pred_fallthru
        _
    $region28: #{encoder_block_forward.4} parent=5 // pred_fallthru
      _
    %p216 = scmp.le.s32.totalorder 1, %s13
    %p217 = scmp.lt.s32.totalorder %s13, 3
    %p218 = pnand %p216, %p217
    %p219 = pneg %p218
    // Predicated region
    $region33: #{encoder_block_forward.4} parent=5 // pred_check
      _
    $region34: #{encoder_block_forward.4} parent=5 // pred_check_branch
      %221 = sbr.rel (%p218) target = $region36
    $region35: #{encoder_block_forward.4} parent=5 // pred_region
      %s222 = ssub.s32 %s13, 1
      %p223 = scmp.lt.s32.totalorder %s18, 1
      %s224 = scalar_select %p223, %s18, 1
      %s225 = smul.addr %s224, 32
      %s226 = smul.addr %s225, 4
      %s227 = scalar_lea.vmem %s0, %s226
      %p228 = pneg %p39
      %p229 = pneg %p36
      %p230 = pneg %p60
      %p231 = pneg %p57
      %p232 = pneg %p81
      %p233 = pneg %p78
      %p234 = pneg %p102
      %p235 = pneg %p99
      %p236 = pneg %p128
      %p237 = pneg %p125
      %p238 = scmp.lt.s32.totalorder %s18, 1
      %s239 = scalar_select %p238, %s18, 1
      %s240 = smul.addr %s239, 32
      %s241 = smul.addr %s240, 4
      %s242 = scalar_lea.vmem %s4, %s241
      %p243 = pneg %p154
      %p244 = pneg %p151
      %p245 = scmp.lt.s32.totalorder %s18, 1
      %s246 = scalar_select %p245, %s18, 1
      %s247 = scalar_lea.vmem %s5, %s246
      %p248 = pneg %p180
      %p249 = pneg %p177
      %p250 = scmp.lt.s32.totalorder %s18, 1
      %s251 = scalar_select %p250, %s18, 1
      %s252 = scalar_lea.vmem %s6, %s251
      %p253 = scmp.lt.s32.totalorder %s18, 1
      %s254 = scalar_select %p253, %s18, 1
      %s255 = smul.addr %s254, 32
      %s256 = smul.addr %s255, 4
      %s257 = scalar_lea.vmem %s0, %s256
      %p258 = scmp.lt.s32.totalorder %s18, 1
      %s259 = scalar_select %p258, %s18, 1
      %s260 = smul.addr %s259, 32
      %s261 = smul.addr %s260, 4
      %s262 = scalar_lea.vmem %s4, %s261
      %p263 = scmp.lt.s32.totalorder %s18, 1
      %s264 = scalar_select %p263, %s18, 1
      %s265 = scalar_lea.vmem %s5, %s264
      %p266 = scmp.lt.s32.totalorder %s18, 1
      %s267 = scalar_select %p266, %s18, 1
      %s268 = scalar_lea.vmem %s6, %s267
      %v270 = vld [vmem:[%s257] sm:$0xf]
      %v271 = vld [vmem:[%s257 + $0x4] sm:$0xf]
      %v272 = vld [vmem:[%s257 + $0x8] sm:$0xf]
      %v273 = vld [vmem:[%s257 + $0xc] sm:$0xf]
      %v274 = vld [vmem:[%s257 + $0x10] sm:$0xf]
      %v275 = vld [vmem:[%s257 + $0x14] sm:$0xf]
      %v276 = vld [vmem:[%s257 + $0x18] sm:$0xf]
      %v277 = vld [vmem:[%s257 + $0x1c] sm:$0xf]
      %v278 = vld [vmem:[%s257 + $0x20] sm:$0xf]
      %v279 = vld [vmem:[%s257 + $0x24] sm:$0xf]
      %v280 = vld [vmem:[%s257 + $0x28] sm:$0xf]
      %v281 = vld [vmem:[%s257 + $0x2c] sm:$0xf]
      %v282 = vld [vmem:[%s257 + $0x30] sm:$0xf]
      %v283 = vld [vmem:[%s257 + $0x34] sm:$0xf]
      %v284 = vld [vmem:[%s257 + $0x38] sm:$0xf]
      %v285 = vld [vmem:[%s257 + $0x3c] sm:$0xf]
      %v286 = vld [vmem:[%s257 + $0x40] sm:$0xf]
      %v287 = vld [vmem:[%s257 + $0x44] sm:$0xf]
      %v288 = vld [vmem:[%s257 + $0x48] sm:$0xf]
      %v289 = vld [vmem:[%s257 + $0x4c] sm:$0xf]
      %v290 = vld [vmem:[%s257 + $0x50] sm:$0xf]
      %v291 = vld [vmem:[%s257 + $0x54] sm:$0xf]
      %v292 = vld [vmem:[%s257 + $0x58] sm:$0xf]
      %v293 = vld [vmem:[%s257 + $0x5c] sm:$0xf]
      %v294 = vld [vmem:[%s257 + $0x60] sm:$0xf]
      %v295 = vld [vmem:[%s257 + $0x64] sm:$0xf]
      %v296 = vld [vmem:[%s257 + $0x68] sm:$0xf]
      %v297 = vld [vmem:[%s257 + $0x6c] sm:$0xf]
      %v298 = vld [vmem:[%s257 + $0x70] sm:$0xf]
      %v299 = vld [vmem:[%s257 + $0x74] sm:$0xf]
      %v300 = vld [vmem:[%s257 + $0x78] sm:$0xf]
      %v301 = vld [vmem:[%s257 + $0x7c] sm:$0xf]
      %v302 = vunpack.c.l.bf16 %v270
      %v303 = vunpack.c.l.bf16 %v271
      %v304 = vunpack.c.l.bf16 %v272
      %v305 = vunpack.c.l.bf16 %v273
      %v306 = vunpack.c.l.bf16 %v274
      %v307 = vunpack.c.l.bf16 %v275
      %v308 = vunpack.c.l.bf16 %v276
      %v309 = vunpack.c.l.bf16 %v277
      %v310 = vunpack.c.l.bf16 %v278
      %v311 = vunpack.c.l.bf16 %v279
      %v312 = vunpack.c.l.bf16 %v280
      %v313 = vunpack.c.l.bf16 %v281
      %v314 = vunpack.c.l.bf16 %v282
      %v315 = vunpack.c.l.bf16 %v283
      %v316 = vunpack.c.l.bf16 %v284
      %v317 = vunpack.c.l.bf16 %v285
      %v318 = vunpack.c.l.bf16 %v286
      %v319 = vunpack.c.l.bf16 %v287
      %v320 = vunpack.c.l.bf16 %v288
      %v321 = vunpack.c.l.bf16 %v289
      %v322 = vunpack.c.l.bf16 %v290
      %v323 = vunpack.c.l.bf16 %v291
      %v324 = vunpack.c.l.bf16 %v292
      %v325 = vunpack.c.l.bf16 %v293
      %v326 = vunpack.c.l.bf16 %v294
      %v327 = vunpack.c.l.bf16 %v295
      %v328 = vunpack.c.l.bf16 %v296
      %v329 = vunpack.c.l.bf16 %v297
      %v330 = vunpack.c.l.bf16 %v298
      %v331 = vunpack.c.l.bf16 %v299
      %v332 = vunpack.c.l.bf16 %v300
      %v333 = vunpack.c.l.bf16 %v301
      %v334 = vld [vmem:[%s1] sm:$0x1]
      %v335 = vld [vmem:[%s2] sm:$0x1]
      %v337 = vlaneseq
      %v338 = vshrl.u32 %v337, 7
      %v339 = vsub.s32 0, %v338
      %v340 = vrot.slane %v334, %v339
      %v342 = vmul.f32 %v302, %v340
      %v343 = vmul.f32 %v303, %v340
      %v344 = vmul.f32 %v304, %v340
      %v345 = vmul.f32 %v305, %v340
      %v346 = vmul.f32 %v306, %v340
      %v347 = vmul.f32 %v307, %v340
      %v348 = vmul.f32 %v308, %v340
      %v349 = vmul.f32 %v309, %v340
      %v350 = vmul.f32 %v310, %v340
      %v351 = vmul.f32 %v311, %v340
      %v352 = vmul.f32 %v312, %v340
      %v353 = vmul.f32 %v313, %v340
      %v354 = vmul.f32 %v314, %v340
      %v355 = vmul.f32 %v315, %v340
      %v356 = vmul.f32 %v316, %v340
      %v357 = vmul.f32 %v317, %v340
      %v358 = vmul.f32 %v318, %v340
      %v359 = vmul.f32 %v319, %v340
      %v360 = vmul.f32 %v320, %v340
      %v361 = vmul.f32 %v321, %v340
      %v362 = vmul.f32 %v322, %v340
      %v363 = vmul.f32 %v323, %v340
      %v364 = vmul.f32 %v324, %v340
      %v365 = vmul.f32 %v325, %v340
      %v366 = vmul.f32 %v326, %v340
      %v367 = vmul.f32 %v327, %v340
      %v368 = vmul.f32 %v328, %v340
      %v369 = vmul.f32 %v329, %v340
      %v370 = vmul.f32 %v330, %v340
      %v371 = vmul.f32 %v331, %v340
      %v372 = vmul.f32 %v332, %v340
      %v373 = vmul.f32 %v333, %v340
      %v375 = vlaneseq
      %v376 = vshrl.u32 %v375, 7
      %v377 = vsub.s32 0, %v376
      %v378 = vrot.slane %v335, %v377
      %v380 = vadd.f32 %v342, %v378
      %v381 = vadd.f32 %v343, %v378
      %v382 = vadd.f32 %v344, %v378
      %v383 = vadd.f32 %v345, %v378
      %v384 = vadd.f32 %v346, %v378
      %v385 = vadd.f32 %v347, %v378
      %v386 = vadd.f32 %v348, %v378
      %v387 = vadd.f32 %v349, %v378
      %v388 = vadd.f32 %v350, %v378
      %v389 = vadd.f32 %v351, %v378
      %v390 = vadd.f32 %v352, %v378
      %v391 = vadd.f32 %v353, %v378
      %v392 = vadd.f32 %v354, %v378
      %v393 = vadd.f32 %v355, %v378
      %v394 = vadd.f32 %v356, %v378
      %v395 = vadd.f32 %v357, %v378
      %v396 = vadd.f32 %v358, %v378
      %v397 = vadd.f32 %v359, %v378
      %v398 = vadd.f32 %v360, %v378
      %v399 = vadd.f32 %v361, %v378
      %v400 = vadd.f32 %v362, %v378
      %v401 = vadd.f32 %v363, %v378
      %v402 = vadd.f32 %v364, %v378
      %v403 = vadd.f32 %v365, %v378
      %v404 = vadd.f32 %v366, %v378
      %v405 = vadd.f32 %v367, %v378
      %v406 = vadd.f32 %v368, %v378
      %v407 = vadd.f32 %v369, %v378
      %v408 = vadd.f32 %v370, %v378
      %v409 = vadd.f32 %v371, %v378
      %v410 = vadd.f32 %v372, %v378
      %v411 = vadd.f32 %v373, %v378
      %v412 = vmax.f32 %v380, 0.0
      %v413 = vmax.f32 %v381, 0.0
      %v414 = vmax.f32 %v382, 0.0
      %v415 = vmax.f32 %v383, 0.0
      %v416 = vmax.f32 %v384, 0.0
      %v417 = vmax.f32 %v385, 0.0
      %v418 = vmax.f32 %v386, 0.0
      %v419 = vmax.f32 %v387, 0.0
      %v420 = vmax.f32 %v388, 0.0
      %v421 = vmax.f32 %v389, 0.0
      %v422 = vmax.f32 %v390, 0.0
      %v423 = vmax.f32 %v391, 0.0
      %v424 = vmax.f32 %v392, 0.0
      %v425 = vmax.f32 %v393, 0.0
      %v426 = vmax.f32 %v394, 0.0
      %v427 = vmax.f32 %v395, 0.0
      %v428 = vmax.f32 %v396, 0.0
      %v429 = vmax.f32 %v397, 0.0
      %v430 = vmax.f32 %v398, 0.0
      %v431 = vmax.f32 %v399, 0.0
      %v432 = vmax.f32 %v400, 0.0
      %v433 = vmax.f32 %v401, 0.0
      %v434 = vmax.f32 %v402, 0.0
      %v435 = vmax.f32 %v403, 0.0
      %v436 = vmax.f32 %v404, 0.0
      %v437 = vmax.f32 %v405, 0.0
      %v438 = vmax.f32 %v406, 0.0
      %v439 = vmax.f32 %v407, 0.0
      %v440 = vmax.f32 %v408, 0.0
      %v441 = vmax.f32 %v409, 0.0
      %v442 = vmax.f32 %v410, 0.0
      %v443 = vmax.f32 %v411, 0.0
      %v444 = vpack.c.bf16 %v413, %v412
      %v445 = vpack.c.bf16 %v415, %v414
      %v446 = vpack.c.bf16 %v417, %v416
      %v447 = vpack.c.bf16 %v419, %v418
      %v448 = vpack.c.bf16 %v421, %v420
      %v449 = vpack.c.bf16 %v423, %v422
      %v450 = vpack.c.bf16 %v425, %v424
      %v451 = vpack.c.bf16 %v427, %v426
      %v452 = vpack.c.bf16 %v429, %v428
      %v453 = vpack.c.bf16 %v431, %v430
      %v454 = vpack.c.bf16 %v433, %v432
      %v455 = vpack.c.bf16 %v435, %v434
      %v456 = vpack.c.bf16 %v437, %v436
      %v457 = vpack.c.bf16 %v439, %v438
      %v458 = vpack.c.bf16 %v441, %v440
      %v459 = vpack.c.bf16 %v443, %v442
      %vm460 = vcmask 60416
      %461 = vst.msk [vmem:[#allocation2] sm:$0xf] %vm460, 0
      %462 = vst.msk [vmem:[#allocation2 + $0x4] sm:$0xf] %vm460, 0
      %vm463 = vcmask 57344
      %464 = vst.msk [vmem:[#allocation2 + $0x8] sm:$0x1] %vm463, 0
      %465 = vst.msk [vmem:[#allocation2 + $0xc] sm:$0xf] %vm460, 0
      %466 = vst.msk [vmem:[#allocation2 + $0x10] sm:$0xf] %vm460, 0
      %467 = vst.msk [vmem:[#allocation2 + $0x14] sm:$0x1] %vm463, 0
      %468 = vst.msk [vmem:[#allocation2 + $0x18] sm:$0xf] %vm460, 0
      %469 = vst.msk [vmem:[#allocation2 + $0x1c] sm:$0xf] %vm460, 0
      %470 = vst.msk [vmem:[#allocation2 + $0x20] sm:$0x1] %vm463, 0
      %471 = vst.msk [vmem:[#allocation2 + $0x24] sm:$0xf] %vm460, 0
      %472 = vst.msk [vmem:[#allocation2 + $0x28] sm:$0xf] %vm460, 0
      %473 = vst.msk [vmem:[#allocation2 + $0x2c] sm:$0x1] %vm463, 0
      %474 = vst.msk [vmem:[#allocation2 + $0x30] sm:$0xf] %vm460, 0
      %475 = vst.msk [vmem:[#allocation2 + $0x34] sm:$0xf] %vm460, 0
      %476 = vst.msk [vmem:[#allocation2 + $0x38] sm:$0x1] %vm463, 0
      %477 = vst.msk [vmem:[#allocation2 + $0x3c] sm:$0xf] %vm460, 0
      %478 = vst.msk [vmem:[#allocation2 + $0x40] sm:$0xf] %vm460, 0
      %479 = vst.msk [vmem:[#allocation2 + $0x44] sm:$0x1] %vm463, 0
      %480 = vst.msk [vmem:[#allocation2 + $0x48] sm:$0xf] %vm460, 0
      %481 = vst.msk [vmem:[#allocation2 + $0x4c] sm:$0xf] %vm460, 0
      %482 = vst.msk [vmem:[#allocation2 + $0x50] sm:$0x1] %vm463, 0
      %483 = vst.msk [vmem:[#allocation2 + $0x54] sm:$0xf] %vm460, 0
      %484 = vst.msk [vmem:[#allocation2 + $0x58] sm:$0xf] %vm460, 0
      %485 = vst.msk [vmem:[#allocation2 + $0x5c] sm:$0x1] %vm463, 0
      %486 = vst.msk [vmem:[#allocation2 + $0x60] sm:$0xf] %vm460, 0
      %487 = vst.msk [vmem:[#allocation2 + $0x64] sm:$0xf] %vm460, 0
      %488 = vst.msk [vmem:[#allocation2 + $0x68] sm:$0x1] %vm463, 0
      %489 = vst.msk [vmem:[#allocation2 + $0x6c] sm:$0xf] %vm460, 0
      %490 = vst.msk [vmem:[#allocation2 + $0x70] sm:$0xf] %vm460, 0
      %491 = vst.msk [vmem:[#allocation2 + $0x74] sm:$0x1] %vm463, 0
      %492 = vst.msk [vmem:[#allocation2 + $0x78] sm:$0xf] %vm460, 0
      %493 = vst.msk [vmem:[#allocation2 + $0x7c] sm:$0xf] %vm460, 0
      %494 = vst.msk [vmem:[#allocation2 + $0x80] sm:$0x1] %vm463, 0
      %495 = vst.msk [vmem:[#allocation2 + $0x84] sm:$0xf] %vm460, 0
      %496 = vst.msk [vmem:[#allocation2 + $0x88] sm:$0xf] %vm460, 0
      %497 = vst.msk [vmem:[#allocation2 + $0x8c] sm:$0x1] %vm463, 0
      %498 = vst.msk [vmem:[#allocation2 + $0x90] sm:$0xf] %vm460, 0
      %499 = vst.msk [vmem:[#allocation2 + $0x94] sm:$0xf] %vm460, 0
      %500 = vst.msk [vmem:[#allocation2 + $0x98] sm:$0x1] %vm463, 0
      %501 = vst.msk [vmem:[#allocation2 + $0x9c] sm:$0xf] %vm460, 0
      %502 = vst.msk [vmem:[#allocation2 + $0xa0] sm:$0xf] %vm460, 0
      %503 = vst.msk [vmem:[#allocation2 + $0xa4] sm:$0x1] %vm463, 0
      %504 = vst.msk [vmem:[#allocation2 + $0xa8] sm:$0xf] %vm460, 0
      %505 = vst.msk [vmem:[#allocation2 + $0xac] sm:$0xf] %vm460, 0
      %506 = vst.msk [vmem:[#allocation2 + $0xb0] sm:$0x1] %vm463, 0
      %507 = vst.msk [vmem:[#allocation2 + $0xb4] sm:$0xf] %vm460, 0
      %508 = vst.msk [vmem:[#allocation2 + $0xb8] sm:$0xf] %vm460, 0
      %509 = vst.msk [vmem:[#allocation2 + $0xbc] sm:$0x1] %vm463, 0
      %510 = vst.msk [vmem:[#allocation2 + $0xc0] sm:$0xf] %vm460, 0
      %511 = vst.msk [vmem:[#allocation2 + $0xc4] sm:$0xf] %vm460, 0
      %512 = vst.msk [vmem:[#allocation2 + $0xc8] sm:$0x1] %vm463, 0
      %513 = vst.msk [vmem:[#allocation2 + $0xcc] sm:$0xf] %vm460, 0
      %514 = vst.msk [vmem:[#allocation2 + $0xd0] sm:$0xf] %vm460, 0
      %515 = vst.msk [vmem:[#allocation2 + $0xd4] sm:$0x1] %vm463, 0
      %v532 = vunpack.c.l.b16 %v444
      %v533 = vunpack.c.h.b16 %v444
      %v534 = vunpack.c.l.b16 %v445
      %v535 = vunpack.c.h.b16 %v445
      %v536 = vunpack.c.l.b16 %v446
      %v537 = vunpack.c.h.b16 %v446
      %v538 = vunpack.c.l.b16 %v447
      %v539 = vunpack.c.h.b16 %v447
      %v540 = vunpack.c.l.b16 %v448
      %v541 = vunpack.c.h.b16 %v448
      %v542 = vunpack.c.l.b16 %v449
      %v543 = vunpack.c.h.b16 %v449
      %v544 = vunpack.c.l.b16 %v450
      %v545 = vunpack.c.h.b16 %v450
      %v546 = vunpack.c.l.b16 %v451
      %v547 = vunpack.c.h.b16 %v451
      %v548 = vunpack.c.l.b16 %v452
      %v549 = vunpack.c.h.b16 %v452
      %v550 = vunpack.c.l.b16 %v453
      %v551 = vunpack.c.h.b16 %v453
      %v552 = vunpack.c.l.b16 %v454
      %v553 = vunpack.c.h.b16 %v454
      %v554 = vunpack.c.l.b16 %v455
      %v555 = vunpack.c.h.b16 %v455
      %v556 = vunpack.c.l.b16 %v456
      %v557 = vunpack.c.h.b16 %v456
      %v558 = vunpack.c.l.b16 %v457
      %v559 = vunpack.c.h.b16 %v457
      %v560 = vunpack.c.l.b16 %v458
      %v561 = vunpack.c.h.b16 %v458
      %v562 = vunpack.c.l.b16 %v459
      %v563 = vunpack.c.h.b16 %v459
      %v564 = vpack.c.b16 %v532, %v532
      %v565 = vpack.c.b16 %v533, %v533
      %v566 = vpack.c.b16 %v534, %v534
      %v567 = vpack.c.b16 %v535, %v535
      %v568 = vpack.c.b16 %v536, %v536
      %v569 = vpack.c.b16 %v537, %v537
      %v570 = vpack.c.b16 %v538, %v538
      %v571 = vpack.c.b16 %v539, %v539
      %v572 = vpack.c.b16 %v540, %v540
      %v573 = vpack.c.b16 %v541, %v541
      %v574 = vpack.c.b16 %v542, %v542
      %v575 = vpack.c.b16 %v543, %v543
      %v576 = vpack.c.b16 %v544, %v544
      %v577 = vpack.c.b16 %v545, %v545
      %v578 = vpack.c.b16 %v546, %v546
      %v579 = vpack.c.b16 %v547, %v547
      %v580 = vpack.c.b16 %v548, %v548
      %v581 = vpack.c.b16 %v549, %v549
      %v582 = vpack.c.b16 %v550, %v550
      %v583 = vpack.c.b16 %v551, %v551
      %v584 = vpack.c.b16 %v552, %v552
      %v585 = vpack.c.b16 %v553, %v553
      %v586 = vpack.c.b16 %v554, %v554
      %v587 = vpack.c.b16 %v555, %v555
      %v588 = vpack.c.b16 %v556, %v556
      %v589 = vpack.c.b16 %v557, %v557
      %v590 = vpack.c.b16 %v558, %v558
      %v591 = vpack.c.b16 %v559, %v559
      %v592 = vpack.c.b16 %v560, %v560
      %v593 = vpack.c.b16 %v561, %v561
      %v594 = vpack.c.b16 %v562, %v562
      %v595 = vpack.c.b16 %v563, %v563
      %vm596 = vsmask.f32 256
      %vm597 = vsmask.f32 4368
      %vm598 = vmor %vm596, %vm597
      %v600 = vshrl.u32 %v564, 16
      %v602 = vrot.slane %v600, 7
      %v603 = vshll.u32 %v564, 16
      %v605 = vor.u32 %v602, %v603
      %v606 = vrot.slane %v602, 4
      %v608 = vshrl.u32 %v565, 16
      %v610 = vrot.slane %v608, 7
      %v611 = vshll.u32 %v565, 16
      %v613 = vor.u32 %v610, %v611
      %v614 = vsel %vm598, %v606, %v613
      %v615 = vrot.slane %v610, 4
      %v617 = vshrl.u32 %v566, 16
      %v619 = vrot.slane %v617, 7
      %v620 = vshll.u32 %v566, 16
      %v622 = vor.u32 %v619, %v620
      %v623 = vrot.slane %v619, 4
      %v625 = vshrl.u32 %v567, 16
      %v627 = vrot.slane %v625, 7
      %v628 = vshll.u32 %v567, 16
      %v630 = vor.u32 %v627, %v628
      %v631 = vsel %vm598, %v623, %v630
      %v632 = vrot.slane %v627, 4
      %v634 = vshrl.u32 %v568, 16
      %v636 = vrot.slane %v634, 7
      %v637 = vshll.u32 %v568, 16
      %v639 = vor.u32 %v636, %v637
      %v640 = vrot.slane %v636, 4
      %v642 = vshrl.u32 %v569, 16
      %v644 = vrot.slane %v642, 7
      %v645 = vshll.u32 %v569, 16
      %v647 = vor.u32 %v644, %v645
      %v648 = vsel %vm598, %v640, %v647
      %v649 = vrot.slane %v644, 4
      %v651 = vshrl.u32 %v570, 16
      %v653 = vrot.slane %v651, 7
      %v654 = vshll.u32 %v570, 16
      %v656 = vor.u32 %v653, %v654
      %v657 = vrot.slane %v653, 4
      %v659 = vshrl.u32 %v571, 16
      %v661 = vrot.slane %v659, 7
      %v662 = vshll.u32 %v571, 16
      %v664 = vor.u32 %v661, %v662
      %v665 = vsel %vm598, %v657, %v664
      %v666 = vrot.slane %v661, 4
      %v668 = vshrl.u32 %v572, 16
      %v670 = vrot.slane %v668, 7
      %v671 = vshll.u32 %v572, 16
      %v673 = vor.u32 %v670, %v671
      %v674 = vrot.slane %v670, 4
      %v676 = vshrl.u32 %v573, 16
      %v678 = vrot.slane %v676, 7
      %v679 = vshll.u32 %v573, 16
      %v681 = vor.u32 %v678, %v679
      %v682 = vsel %vm598, %v674, %v681
      %v683 = vrot.slane %v678, 4
      %v685 = vshrl.u32 %v574, 16
      %v687 = vrot.slane %v685, 7
      %v688 = vshll.u32 %v574, 16
      %v690 = vor.u32 %v687, %v688
      %v691 = vrot.slane %v687, 4
      %v693 = vshrl.u32 %v575, 16
      %v695 = vrot.slane %v693, 7
      %v696 = vshll.u32 %v575, 16
      %v698 = vor.u32 %v695, %v696
      %v699 = vsel %vm598, %v691, %v698
      %v700 = vrot.slane %v695, 4
      %v702 = vshrl.u32 %v576, 16
      %v704 = vrot.slane %v702, 7
      %v705 = vshll.u32 %v576, 16
      %v707 = vor.u32 %v704, %v705
      %v708 = vrot.slane %v704, 4
      %v710 = vshrl.u32 %v577, 16
      %v712 = vrot.slane %v710, 7
      %v713 = vshll.u32 %v577, 16
      %v715 = vor.u32 %v712, %v713
      %v716 = vsel %vm598, %v708, %v715
      %v717 = vrot.slane %v712, 4
      %v719 = vshrl.u32 %v578, 16
      %v721 = vrot.slane %v719, 7
      %v722 = vshll.u32 %v578, 16
      %v724 = vor.u32 %v721, %v722
      %v725 = vrot.slane %v721, 4
      %v727 = vshrl.u32 %v579, 16
      %v729 = vrot.slane %v727, 7
      %v730 = vshll.u32 %v579, 16
      %v732 = vor.u32 %v729, %v730
      %v733 = vsel %vm598, %v725, %v732
      %v734 = vrot.slane %v729, 4
      %v736 = vshrl.u32 %v580, 16
      %v738 = vrot.slane %v736, 7
      %v739 = vshll.u32 %v580, 16
      %v741 = vor.u32 %v738, %v739
      %v742 = vrot.slane %v738, 4
      %v744 = vshrl.u32 %v581, 16
      %v746 = vrot.slane %v744, 7
      %v747 = vshll.u32 %v581, 16
      %v749 = vor.u32 %v746, %v747
      %v750 = vsel %vm598, %v742, %v749
      %v751 = vrot.slane %v746, 4
      %v753 = vshrl.u32 %v582, 16
      %v755 = vrot.slane %v753, 7
      %v756 = vshll.u32 %v582, 16
      %v758 = vor.u32 %v755, %v756
      %v759 = vrot.slane %v755, 4
      %v761 = vshrl.u32 %v583, 16
      %v763 = vrot.slane %v761, 7
      %v764 = vshll.u32 %v583, 16
      %v766 = vor.u32 %v763, %v764
      %v767 = vsel %vm598, %v759, %v766
      %v768 = vrot.slane %v763, 4
      %v770 = vshrl.u32 %v584, 16
      %v772 = vrot.slane %v770, 7
      %v773 = vshll.u32 %v584, 16
      %v775 = vor.u32 %v772, %v773
      %v776 = vrot.slane %v772, 4
      %v778 = vshrl.u32 %v585, 16
      %v780 = vrot.slane %v778, 7
      %v781 = vshll.u32 %v585, 16
      %v783 = vor.u32 %v780, %v781
      %v784 = vsel %vm598, %v776, %v783
      %v785 = vrot.slane %v780, 4
      %v787 = vshrl.u32 %v586, 16
      %v789 = vrot.slane %v787, 7
      %v790 = vshll.u32 %v586, 16
      %v792 = vor.u32 %v789, %v790
      %v793 = vrot.slane %v789, 4
      %v795 = vshrl.u32 %v587, 16
      %v797 = vrot.slane %v795, 7
      %v798 = vshll.u32 %v587, 16
      %v800 = vor.u32 %v797, %v798
      %v801 = vsel %vm598, %v793, %v800
      %v802 = vrot.slane %v797, 4
      %v804 = vshrl.u32 %v588, 16
      %v806 = vrot.slane %v804, 7
      %v807 = vshll.u32 %v588, 16
      %v809 = vor.u32 %v806, %v807
      %v810 = vrot.slane %v806, 4
      %v812 = vshrl.u32 %v589, 16
      %v814 = vrot.slane %v812, 7
      %v815 = vshll.u32 %v589, 16
      %v817 = vor.u32 %v814, %v815
      %v818 = vsel %vm598, %v810, %v817
      %v819 = vrot.slane %v814, 4
      %v821 = vshrl.u32 %v590, 16
      %v823 = vrot.slane %v821, 7
      %v824 = vshll.u32 %v590, 16
      %v826 = vor.u32 %v823, %v824
      %v827 = vrot.slane %v823, 4
      %v829 = vshrl.u32 %v591, 16
      %v831 = vrot.slane %v829, 7
      %v832 = vshll.u32 %v591, 16
      %v834 = vor.u32 %v831, %v832
      %v835 = vsel %vm598, %v827, %v834
      %v836 = vrot.slane %v831, 4
      %v838 = vshrl.u32 %v592, 16
      %v840 = vrot.slane %v838, 7
      %v841 = vshll.u32 %v592, 16
      %v843 = vor.u32 %v840, %v841
      %v844 = vrot.slane %v840, 4
      %v846 = vshrl.u32 %v593, 16
      %v848 = vrot.slane %v846, 7
      %v849 = vshll.u32 %v593, 16
      %v851 = vor.u32 %v848, %v849
      %v852 = vsel %vm598, %v844, %v851
      %v853 = vrot.slane %v848, 4
      %v855 = vshrl.u32 %v594, 16
      %v857 = vrot.slane %v855, 7
      %v858 = vshll.u32 %v594, 16
      %v860 = vor.u32 %v857, %v858
      %v861 = vrot.slane %v857, 4
      %v863 = vshrl.u32 %v595, 16
      %v865 = vrot.slane %v863, 7
      %v866 = vshll.u32 %v595, 16
      %v868 = vor.u32 %v865, %v866
      %v869 = vsel %vm598, %v861, %v868
      %v870 = vrot.slane %v865, 4
      %s919 = scalar_lea.vmem [#allocation2], 12
      %vm920 = vcmask 60416
      %vm921 = vsmask.f32 7938
      %vm922 = vmand %vm920, %vm921
      %v923 = vld [vmem:[%s919] sm:$0xf]
      %v924 = vsel %vm922, %v605, %v923
      %925 = vst [vmem:[%s919] sm:$0xf] %v924
      %926 = vst.msk [vmem:[%s919 + $0x4] sm:$0xf] %vm460, %v614
      %vm927 = vcmask 57344
      %vm928 = vmand %vm927, %vm596
      %v929 = vld [vmem:[%s919 + $0x8] sm:$0x1]
      %v930 = vsel %vm928, %v615, %v929
      %931 = vst [vmem:[%s919 + $0x8] sm:$0x1] %v930
      %v932 = vld [vmem:[%s919 + $0xc] sm:$0xf]
      %v933 = vsel %vm922, %v622, %v932
      %934 = vst [vmem:[%s919 + $0xc] sm:$0xf] %v933
      %935 = vst.msk [vmem:[%s919 + $0x10] sm:$0xf] %vm460, %v631
      %v936 = vld [vmem:[%s919 + $0x14] sm:$0x1]
      %v937 = vsel %vm928, %v632, %v936
      %938 = vst [vmem:[%s919 + $0x14] sm:$0x1] %v937
      %v939 = vld [vmem:[%s919 + $0x18] sm:$0xf]
      %v940 = vsel %vm922, %v639, %v939
      %941 = vst [vmem:[%s919 + $0x18] sm:$0xf] %v940
      %942 = vst.msk [vmem:[%s919 + $0x1c] sm:$0xf] %vm460, %v648
      %v943 = vld [vmem:[%s919 + $0x20] sm:$0x1]
      %v944 = vsel %vm928, %v649, %v943
      %945 = vst [vmem:[%s919 + $0x20] sm:$0x1] %v944
      %v946 = vld [vmem:[%s919 + $0x24] sm:$0xf]
      %v947 = vsel %vm922, %v656, %v946
      %948 = vst [vmem:[%s919 + $0x24] sm:$0xf] %v947
      %949 = vst.msk [vmem:[%s919 + $0x28] sm:$0xf] %vm460, %v665
      %v950 = vld [vmem:[%s919 + $0x2c] sm:$0x1]
      %v951 = vsel %vm928, %v666, %v950
      %952 = vst [vmem:[%s919 + $0x2c] sm:$0x1] %v951
      %v953 = vld [vmem:[%s919 + $0x30] sm:$0xf]
      %v954 = vsel %vm922, %v673, %v953
      %955 = vst [vmem:[%s919 + $0x30] sm:$0xf] %v954
      %956 = vst.msk [vmem:[%s919 + $0x34] sm:$0xf] %vm460, %v682
      %v957 = vld [vmem:[%s919 + $0x38] sm:$0x1]
      %v958 = vsel %vm928, %v683, %v957
      %959 = vst [vmem:[%s919 + $0x38] sm:$0x1] %v958
      %v960 = vld [vmem:[%s919 + $0x3c] sm:$0xf]
      %v961 = vsel %vm922, %v690, %v960
      %962 = vst [vmem:[%s919 + $0x3c] sm:$0xf] %v961
      %963 = vst.msk [vmem:[%s919 + $0x40] sm:$0xf] %vm460, %v699
      %v964 = vld [vmem:[%s919 + $0x44] sm:$0x1]
      %v965 = vsel %vm928, %v700, %v964
      %966 = vst [vmem:[%s919 + $0x44] sm:$0x1] %v965
      %v967 = vld [vmem:[%s919 + $0x48] sm:$0xf]
      %v968 = vsel %vm922, %v707, %v967
      %969 = vst [vmem:[%s919 + $0x48] sm:$0xf] %v968
      %970 = vst.msk [vmem:[%s919 + $0x4c] sm:$0xf] %vm460, %v716
      %v971 = vld [vmem:[%s919 + $0x50] sm:$0x1]
      %v972 = vsel %vm928, %v717, %v971
      %973 = vst [vmem:[%s919 + $0x50] sm:$0x1] %v972
      %v974 = vld [vmem:[%s919 + $0x54] sm:$0xf]
      %v975 = vsel %vm922, %v724, %v974
      %976 = vst [vmem:[%s919 + $0x54] sm:$0xf] %v975
      %977 = vst.msk [vmem:[%s919 + $0x58] sm:$0xf] %vm460, %v733
      %v978 = vld [vmem:[%s919 + $0x5c] sm:$0x1]
      %v979 = vsel %vm928, %v734, %v978
      %980 = vst [vmem:[%s919 + $0x5c] sm:$0x1] %v979
      %v981 = vld [vmem:[%s919 + $0x60] sm:$0xf]
      %v982 = vsel %vm922, %v741, %v981
      %983 = vst [vmem:[%s919 + $0x60] sm:$0xf] %v982
      %984 = vst.msk [vmem:[%s919 + $0x64] sm:$0xf] %vm460, %v750
      %v985 = vld [vmem:[%s919 + $0x68] sm:$0x1]
      %v986 = vsel %vm928, %v751, %v985
      %987 = vst [vmem:[%s919 + $0x68] sm:$0x1] %v986
      %v988 = vld [vmem:[%s919 + $0x6c] sm:$0xf]
      %v989 = vsel %vm922, %v758, %v988
      %990 = vst [vmem:[%s919 + $0x6c] sm:$0xf] %v989
      %991 = vst.msk [vmem:[%s919 + $0x70] sm:$0xf] %vm460, %v767
      %v992 = vld [vmem:[%s919 + $0x74] sm:$0x1]
      %v993 = vsel %vm928, %v768, %v992
      %994 = vst [vmem:[%s919 + $0x74] sm:$0x1] %v993
      %v995 = vld [vmem:[%s919 + $0x78] sm:$0xf]
      %v996 = vsel %vm922, %v775, %v995
      %997 = vst [vmem:[%s919 + $0x78] sm:$0xf] %v996
      %998 = vst.msk [vmem:[%s919 + $0x7c] sm:$0xf] %vm460, %v784
      %v999 = vld [vmem:[%s919 + $0x80] sm:$0x1]
      %v1000 = vsel %vm928, %v785, %v999
      %1001 = vst [vmem:[%s919 + $0x80] sm:$0x1] %v1000
      %v1002 = vld [vmem:[%s919 + $0x84] sm:$0xf]
      %v1003 = vsel %vm922, %v792, %v1002
      %1004 = vst [vmem:[%s919 + $0x84] sm:$0xf] %v1003
      %1005 = vst.msk [vmem:[%s919 + $0x88] sm:$0xf] %vm460, %v801
      %v1006 = vld [vmem:[%s919 + $0x8c] sm:$0x1]
      %v1007 = vsel %vm928, %v802, %v1006
      %1008 = vst [vmem:[%s919 + $0x8c] sm:$0x1] %v1007
      %v1009 = vld [vmem:[%s919 + $0x90] sm:$0xf]
      %v1010 = vsel %vm922, %v809, %v1009
      %1011 = vst [vmem:[%s919 + $0x90] sm:$0xf] %v1010
      %1012 = vst.msk [vmem:[%s919 + $0x94] sm:$0xf] %vm460, %v818
      %v1013 = vld [vmem:[%s919 + $0x98] sm:$0x1]
      %v1014 = vsel %vm928, %v819, %v1013
      %1015 = vst [vmem:[%s919 + $0x98] sm:$0x1] %v1014
      %v1016 = vld [vmem:[%s919 + $0x9c] sm:$0xf]
      %v1017 = vsel %vm922, %v826, %v1016
      %1018 = vst [vmem:[%s919 + $0x9c] sm:$0xf] %v1017
      %1019 = vst.msk [vmem:[%s919 + $0xa0] sm:$0xf] %vm460, %v835
      %v1020 = vld [vmem:[%s919 + $0xa4] sm:$0x1]
      %v1021 = vsel %vm928, %v836, %v1020
      %1022 = vst [vmem:[%s919 + $0xa4] sm:$0x1] %v1021
      %v1023 = vld [vmem:[%s919 + $0xa8] sm:$0xf]
      %v1024 = vsel %vm922, %v843, %v1023
      %1025 = vst [vmem:[%s919 + $0xa8] sm:$0xf] %v1024
      %1026 = vst.msk [vmem:[%s919 + $0xac] sm:$0xf] %vm460, %v852
      %v1027 = vld [vmem:[%s919 + $0xb0] sm:$0x1]
      %v1028 = vsel %vm928, %v853, %v1027
      %1029 = vst [vmem:[%s919 + $0xb0] sm:$0x1] %v1028
      %v1030 = vld [vmem:[%s919 + $0xb4] sm:$0xf]
      %v1031 = vsel %vm922, %v860, %v1030
      %1032 = vst [vmem:[%s919 + $0xb4] sm:$0xf] %v1031
      %1033 = vst.msk [vmem:[%s919 + $0xb8] sm:$0xf] %vm460, %v869
      %v1034 = vld [vmem:[%s919 + $0xbc] sm:$0x1]
      %v1035 = vsel %vm928, %v870, %v1034
      %1036 = vst [vmem:[%s919 + $0xbc] sm:$0x1] %v1035
      %v1037 = vld [vmem:[#allocation2] sm:$0xf]
      %v1038 = vld [vmem:[#allocation2 + $0x4] sm:$0xf]
      %v1039 = vld [vmem:[#allocation2 + $0xc] sm:$0xf]
      %v1040 = vld [vmem:[#allocation2 + $0x10] sm:$0xf]
      %v1041 = vld [vmem:[#allocation2 + $0x18] sm:$0xf]
      %v1042 = vld [vmem:[#allocation2 + $0x1c] sm:$0xf]
      %v1043 = vld [vmem:[#allocation2 + $0x24] sm:$0xf]
      %v1044 = vld [vmem:[#allocation2 + $0x28] sm:$0xf]
      %v1045 = vld [vmem:[#allocation2 + $0x30] sm:$0xf]
      %v1046 = vld [vmem:[#allocation2 + $0x34] sm:$0xf]
      %v1047 = vld [vmem:[#allocation2 + $0x3c] sm:$0xf]
      %v1048 = vld [vmem:[#allocation2 + $0x40] sm:$0xf]
      %v1049 = vld [vmem:[#allocation2 + $0x48] sm:$0xf]
      %v1050 = vld [vmem:[#allocation2 + $0x4c] sm:$0xf]
      %v1051 = vld [vmem:[#allocation2 + $0x54] sm:$0xf]
      %v1052 = vld [vmem:[#allocation2 + $0x58] sm:$0xf]
      %v1053 = vld [vmem:[#allocation2 + $0x60] sm:$0xf]
      %v1054 = vld [vmem:[#allocation2 + $0x64] sm:$0xf]
      %v1055 = vld [vmem:[#allocation2 + $0x6c] sm:$0xf]
      %v1056 = vld [vmem:[#allocation2 + $0x70] sm:$0xf]
      %v1057 = vld [vmem:[#allocation2 + $0x78] sm:$0xf]
      %v1058 = vld [vmem:[#allocation2 + $0x7c] sm:$0xf]
      %v1059 = vld [vmem:[#allocation2 + $0x84] sm:$0xf]
      %v1060 = vld [vmem:[#allocation2 + $0x88] sm:$0xf]
      %v1061 = vld [vmem:[#allocation2 + $0x90] sm:$0xf]
      %v1062 = vld [vmem:[#allocation2 + $0x94] sm:$0xf]
      %v1063 = vld [vmem:[#allocation2 + $0x9c] sm:$0xf]
      %v1064 = vld [vmem:[#allocation2 + $0xa0] sm:$0xf]
      %v1065 = vld [vmem:[#allocation2 + $0xa8] sm:$0xf]
      %v1066 = vld [vmem:[#allocation2 + $0xac] sm:$0xf]
      %v1067 = vld [vmem:[#allocation2 + $0xb4] sm:$0xf]
      %v1068 = vld [vmem:[#allocation2 + $0xb8] sm:$0xf]
      %v1101 = vunpack.c.l.b16 %v1037
      %v1102 = vunpack.c.l.b16 %v1038
      %v1103 = vunpack.c.l.b16 %v1039
      %v1104 = vunpack.c.l.b16 %v1040
      %v1105 = vunpack.c.l.b16 %v1041
      %v1106 = vunpack.c.l.b16 %v1042
      %v1107 = vunpack.c.l.b16 %v1043
      %v1108 = vunpack.c.l.b16 %v1044
      %v1109 = vunpack.c.l.b16 %v1045
      %v1110 = vunpack.c.l.b16 %v1046
      %v1111 = vunpack.c.l.b16 %v1047
      %v1112 = vunpack.c.l.b16 %v1048
      %v1113 = vunpack.c.l.b16 %v1049
      %v1114 = vunpack.c.l.b16 %v1050
      %v1115 = vunpack.c.l.b16 %v1051
      %v1116 = vunpack.c.l.b16 %v1052
      %v1117 = vunpack.c.l.b16 %v1053
      %v1118 = vunpack.c.l.b16 %v1054
      %v1119 = vunpack.c.l.b16 %v1055
      %v1120 = vunpack.c.l.b16 %v1056
      %v1121 = vunpack.c.l.b16 %v1057
      %v1122 = vunpack.c.l.b16 %v1058
      %v1123 = vunpack.c.l.b16 %v1059
      %v1124 = vunpack.c.l.b16 %v1060
      %v1125 = vunpack.c.l.b16 %v1061
      %v1126 = vunpack.c.l.b16 %v1062
      %v1127 = vunpack.c.l.b16 %v1063
      %v1128 = vunpack.c.l.b16 %v1064
      %v1129 = vunpack.c.l.b16 %v1065
      %v1130 = vunpack.c.l.b16 %v1066
      %v1131 = vunpack.c.l.b16 %v1067
      %v1132 = vunpack.c.l.b16 %v1068
      %v1133 = vpack.c.b16 %v1102, %v1101
      %v1134 = vpack.c.b16 %v1104, %v1103
      %v1135 = vpack.c.b16 %v1106, %v1105
      %v1136 = vpack.c.b16 %v1108, %v1107
      %v1137 = vpack.c.b16 %v1110, %v1109
      %v1138 = vpack.c.b16 %v1112, %v1111
      %v1139 = vpack.c.b16 %v1114, %v1113
      %v1140 = vpack.c.b16 %v1116, %v1115
      %v1141 = vpack.c.b16 %v1118, %v1117
      %v1142 = vpack.c.b16 %v1120, %v1119
      %v1143 = vpack.c.b16 %v1122, %v1121
      %v1144 = vpack.c.b16 %v1124, %v1123
      %v1145 = vpack.c.b16 %v1126, %v1125
      %v1146 = vpack.c.b16 %v1128, %v1127
      %v1147 = vpack.c.b16 %v1130, %v1129
      %v1148 = vpack.c.b16 %v1132, %v1131
      %vm1165 = vcmask 64512
      %1166 = vst.msk [vmem:[#allocation3] sm:$0xff] %vm1165, %v1133
      %1167 = vst.msk [vmem:[#allocation3 + $0x8] sm:$0xff] %vm1165, %v1134
      %1168 = vst.msk [vmem:[#allocation3 + $0x10] sm:$0xff] %vm1165, %v1135
      %1169 = vst.msk [vmem:[#allocation3 + $0x18] sm:$0xff] %vm1165, %v1136
      %1170 = vst.msk [vmem:[#allocation3 + $0x20] sm:$0xff] %vm1165, %v1137
      %1171 = vst.msk [vmem:[#allocation3 + $0x28] sm:$0xff] %vm1165, %v1138
      %1172 = vst.msk [vmem:[#allocation3 + $0x30] sm:$0xff] %vm1165, %v1139
      %1173 = vst.msk [vmem:[#allocation3 + $0x38] sm:$0xff] %vm1165, %v1140
      %1174 = vst.msk [vmem:[#allocation3 + $0x40] sm:$0xff] %vm1165, %v1141
      %1175 = vst.msk [vmem:[#allocation3 + $0x48] sm:$0xff] %vm1165, %v1142
      %1176 = vst.msk [vmem:[#allocation3 + $0x50] sm:$0xff] %vm1165, %v1143
      %1177 = vst.msk [vmem:[#allocation3 + $0x58] sm:$0xff] %vm1165, %v1144
      %1178 = vst.msk [vmem:[#allocation3 + $0x60] sm:$0xff] %vm1165, %v1145
      %1179 = vst.msk [vmem:[#allocation3 + $0x68] sm:$0xff] %vm1165, %v1146
      %1180 = vst.msk [vmem:[#allocation3 + $0x70] sm:$0xff] %vm1165, %v1147
      %1181 = vst.msk [vmem:[#allocation3 + $0x78] sm:$0xff] %vm1165, %v1148
      %v1182 = vld [vmem:[#allocation2] sm:$0xf]
      %v1183 = vld [vmem:[#allocation2 + $0x4] sm:$0xf]
      %v1184 = vld [vmem:[#allocation2 + $0x8] sm:$0x1]
      %v1185 = vld [vmem:[#allocation2 + $0xc] sm:$0xf]
      %v1186 = vld [vmem:[#allocation2 + $0x10] sm:$0xf]
      %v1187 = vld [vmem:[#allocation2 + $0x14] sm:$0x1]
      %v1188 = vld [vmem:[#allocation2 + $0x18] sm:$0xf]
      %v1189 = vld [vmem:[#allocation2 + $0x1c] sm:$0xf]
      %v1190 = vld [vmem:[#allocation2 + $0x20] sm:$0x1]
      %v1191 = vld [vmem:[#allocation2 + $0x24] sm:$0xf]
      %v1192 = vld [vmem:[#allocation2 + $0x28] sm:$0xf]
      %v1193 = vld [vmem:[#allocation2 + $0x2c] sm:$0x1]
      %v1194 = vld [vmem:[#allocation2 + $0x30] sm:$0xf]
      %v1195 = vld [vmem:[#allocation2 + $0x34] sm:$0xf]
      %v1196 = vld [vmem:[#allocation2 + $0x38] sm:$0x1]
      %v1197 = vld [vmem:[#allocation2 + $0x3c] sm:$0xf]
      %v1198 = vld [vmem:[#allocation2 + $0x40] sm:$0xf]
      %v1199 = vld [vmem:[#allocation2 + $0x44] sm:$0x1]
      %v1200 = vld [vmem:[#allocation2 + $0x48] sm:$0xf]
      %v1201 = vld [vmem:[#allocation2 + $0x4c] sm:$0xf]
      %v1202 = vld [vmem:[#allocation2 + $0x50] sm:$0x1]
      %v1203 = vld [vmem:[#allocation2 + $0x54] sm:$0xf]
      %v1204 = vld [vmem:[#allocation2 + $0x58] sm:$0xf]
      %v1205 = vld [vmem:[#allocation2 + $0x5c] sm:$0x1]
      %v1206 = vld [vmem:[#allocation2 + $0x60] sm:$0xf]
      %v1207 = vld [vmem:[#allocation2 + $0x64] sm:$0xf]
      %v1208 = vld [vmem:[#allocation2 + $0x68] sm:$0x1]
      %v1209 = vld [vmem:[#allocation2 + $0x6c] sm:$0xf]
      %v1210 = vld [vmem:[#allocation2 + $0x70] sm:$0xf]
      %v1211 = vld [vmem:[#allocation2 + $0x74] sm:$0x1]
      %v1212 = vld [vmem:[#allocation2 + $0x78] sm:$0xf]
      %v1213 = vld [vmem:[#allocation2 + $0x7c] sm:$0xf]
      %v1214 = vld [vmem:[#allocation2 + $0x80] sm:$0x1]
      %v1215 = vld [vmem:[#allocation2 + $0x84] sm:$0xf]
      %v1216 = vld [vmem:[#allocation2 + $0x88] sm:$0xf]
      %v1217 = vld [vmem:[#allocation2 + $0x8c] sm:$0x1]
      %v1218 = vld [vmem:[#allocation2 + $0x90] sm:$0xf]
      %v1219 = vld [vmem:[#allocation2 + $0x94] sm:$0xf]
      %v1220 = vld [vmem:[#allocation2 + $0x98] sm:$0x1]
      %v1221 = vld [vmem:[#allocation2 + $0x9c] sm:$0xf]
      %v1222 = vld [vmem:[#allocation2 + $0xa0] sm:$0xf]
      %v1223 = vld [vmem:[#allocation2 + $0xa4] sm:$0x1]
      %v1224 = vld [vmem:[#allocation2 + $0xa8] sm:$0xf]
      %v1225 = vld [vmem:[#allocation2 + $0xac] sm:$0xf]
      %v1226 = vld [vmem:[#allocation2 + $0xb0] sm:$0x1]
      %v1227 = vld [vmem:[#allocation2 + $0xb4] sm:$0xf]
      %v1228 = vld [vmem:[#allocation2 + $0xb8] sm:$0xf]
      %v1229 = vld [vmem:[#allocation2 + $0xbc] sm:$0x1]
      %v1278 = vunpack.c.l.b16 %v1182
      %v1279 = vunpack.c.l.b16 %v1183
      %v1280 = vunpack.c.l.b16 %v1184
      %v1281 = vunpack.c.l.b16 %v1185
      %v1282 = vunpack.c.l.b16 %v1186
      %v1283 = vunpack.c.l.b16 %v1187
      %v1284 = vunpack.c.l.b16 %v1188
      %v1285 = vunpack.c.l.b16 %v1189
      %v1286 = vunpack.c.l.b16 %v1190
      %v1287 = vunpack.c.l.b16 %v1191
      %v1288 = vunpack.c.l.b16 %v1192
      %v1289 = vunpack.c.l.b16 %v1193
      %v1290 = vunpack.c.l.b16 %v1194
      %v1291 = vunpack.c.l.b16 %v1195
      %v1292 = vunpack.c.l.b16 %v1196
      %v1293 = vunpack.c.l.b16 %v1197
      %v1294 = vunpack.c.l.b16 %v1198
      %v1295 = vunpack.c.l.b16 %v1199
      %v1296 = vunpack.c.l.b16 %v1200
      %v1297 = vunpack.c.l.b16 %v1201
      %v1298 = vunpack.c.l.b16 %v1202
      %v1299 = vunpack.c.l.b16 %v1203
      %v1300 = vunpack.c.l.b16 %v1204
      %v1301 = vunpack.c.l.b16 %v1205
      %v1302 = vunpack.c.l.b16 %v1206
      %v1303 = vunpack.c.l.b16 %v1207
      %v1304 = vunpack.c.l.b16 %v1208
      %v1305 = vunpack.c.l.b16 %v1209
      %v1306 = vunpack.c.l.b16 %v1210
      %v1307 = vunpack.c.l.b16 %v1211
      %v1308 = vunpack.c.l.b16 %v1212
      %v1309 = vunpack.c.l.b16 %v1213
      %v1310 = vunpack.c.l.b16 %v1214
      %v1311 = vunpack.c.l.b16 %v1215
      %v1312 = vunpack.c.l.b16 %v1216
      %v1313 = vunpack.c.l.b16 %v1217
      %v1314 = vunpack.c.l.b16 %v1218
      %v1315 = vunpack.c.l.b16 %v1219
      %v1316 = vunpack.c.l.b16 %v1220
      %v1317 = vunpack.c.l.b16 %v1221
      %v1318 = vunpack.c.l.b16 %v1222
      %v1319 = vunpack.c.l.b16 %v1223
      %v1320 = vunpack.c.l.b16 %v1224
      %v1321 = vunpack.c.l.b16 %v1225
      %v1322 = vunpack.c.l.b16 %v1226
      %v1323 = vunpack.c.l.b16 %v1227
      %v1324 = vunpack.c.l.b16 %v1228
      %v1325 = vunpack.c.l.b16 %v1229
      %v1326 = vpack.c.b16 %v1279, %v1278
      %v1327 = vpack.c.b16 %v1280, %v1280
      %v1328 = vpack.c.b16 %v1282, %v1281
      %v1329 = vpack.c.b16 %v1283, %v1283
      %v1330 = vpack.c.b16 %v1285, %v1284
      %v1331 = vpack.c.b16 %v1286, %v1286
      %v1332 = vpack.c.b16 %v1288, %v1287
      %v1333 = vpack.c.b16 %v1289, %v1289
      %v1334 = vpack.c.b16 %v1291, %v1290
      %v1335 = vpack.c.b16 %v1292, %v1292
      %v1336 = vpack.c.b16 %v1294, %v1293
      %v1337 = vpack.c.b16 %v1295, %v1295
      %v1338 = vpack.c.b16 %v1297, %v1296
      %v1339 = vpack.c.b16 %v1298, %v1298
      %v1340 = vpack.c.b16 %v1300, %v1299
      %v1341 = vpack.c.b16 %v1301, %v1301
      %v1342 = vpack.c.b16 %v1303, %v1302
      %v1343 = vpack.c.b16 %v1304, %v1304
      %v1344 = vpack.c.b16 %v1306, %v1305
      %v1345 = vpack.c.b16 %v1307, %v1307
      %v1346 = vpack.c.b16 %v1309, %v1308
      %v1347 = vpack.c.b16 %v1310, %v1310
      %v1348 = vpack.c.b16 %v1312, %v1311
      %v1349 = vpack.c.b16 %v1313, %v1313
      %v1350 = vpack.c.b16 %v1315, %v1314
      %v1351 = vpack.c.b16 %v1316, %v1316
      %v1352 = vpack.c.b16 %v1318, %v1317
      %v1353 = vpack.c.b16 %v1319, %v1319
      %v1354 = vpack.c.b16 %v1321, %v1320
      %v1355 = vpack.c.b16 %v1322, %v1322
      %v1356 = vpack.c.b16 %v1324, %v1323
      %v1357 = vpack.c.b16 %v1325, %v1325
      %vm1358 = vsmask.f32 7424
      %v1360 = vshrl.u32 %v1326, 16
      %v1362 = vshll.u32 %v1326, 16
      %v1364 = vrot.slane %v1362, 1
      %v1365 = vor.u32 %v1360, %v1364
      %v1367 = vshll.u32 %v1327, 16
      %v1369 = vrot.slane %v1367, 1
      %v1370 = vsel %vm1358, %v1365, %v1369
      %v1372 = vshrl.u32 %v1328, 16
      %v1374 = vshll.u32 %v1328, 16
      %v1376 = vrot.slane %v1374, 1
      %v1377 = vor.u32 %v1372, %v1376
      %v1379 = vshll.u32 %v1329, 16
      %v1381 = vrot.slane %v1379, 1
      %v1382 = vsel %vm1358, %v1377, %v1381
      %v1384 = vshrl.u32 %v1330, 16
      %v1386 = vshll.u32 %v1330, 16
      %v1388 = vrot.slane %v1386, 1
      %v1389 = vor.u32 %v1384, %v1388
      %v1391 = vshll.u32 %v1331, 16
      %v1393 = vrot.slane %v1391, 1
      %v1394 = vsel %vm1358, %v1389, %v1393
      %v1396 = vshrl.u32 %v1332, 16
      %v1398 = vshll.u32 %v1332, 16
      %v1400 = vrot.slane %v1398, 1
      %v1401 = vor.u32 %v1396, %v1400
      %v1403 = vshll.u32 %v1333, 16
      %v1405 = vrot.slane %v1403, 1
      %v1406 = vsel %vm1358, %v1401, %v1405
      %v1408 = vshrl.u32 %v1334, 16
      %v1410 = vshll.u32 %v1334, 16
      %v1412 = vrot.slane %v1410, 1
      %v1413 = vor.u32 %v1408, %v1412
      %v1415 = vshll.u32 %v1335, 16
      %v1417 = vrot.slane %v1415, 1
      %v1418 = vsel %vm1358, %v1413, %v1417
      %v1420 = vshrl.u32 %v1336, 16
      %v1422 = vshll.u32 %v1336, 16
      %v1424 = vrot.slane %v1422, 1
      %v1425 = vor.u32 %v1420, %v1424
      %v1427 = vshll.u32 %v1337, 16
      %v1429 = vrot.slane %v1427, 1
      %v1430 = vsel %vm1358, %v1425, %v1429
      %v1432 = vshrl.u32 %v1338, 16
      %v1434 = vshll.u32 %v1338, 16
      %v1436 = vrot.slane %v1434, 1
      %v1437 = vor.u32 %v1432, %v1436
      %v1439 = vshll.u32 %v1339, 16
      %v1441 = vrot.slane %v1439, 1
      %v1442 = vsel %vm1358, %v1437, %v1441
      %v1444 = vshrl.u32 %v1340, 16
      %v1446 = vshll.u32 %v1340, 16
      %v1448 = vrot.slane %v1446, 1
      %v1449 = vor.u32 %v1444, %v1448
      %v1451 = vshll.u32 %v1341, 16
      %v1453 = vrot.slane %v1451, 1
      %v1454 = vsel %vm1358, %v1449, %v1453
      %v1456 = vshrl.u32 %v1342, 16
      %v1458 = vshll.u32 %v1342, 16
      %v1460 = vrot.slane %v1458, 1
      %v1461 = vor.u32 %v1456, %v1460
      %v1463 = vshll.u32 %v1343, 16
      %v1465 = vrot.slane %v1463, 1
      %v1466 = vsel %vm1358, %v1461, %v1465
      %v1468 = vshrl.u32 %v1344, 16
      %v1470 = vshll.u32 %v1344, 16
      %v1472 = vrot.slane %v1470, 1
      %v1473 = vor.u32 %v1468, %v1472
      %v1475 = vshll.u32 %v1345, 16
      %v1477 = vrot.slane %v1475, 1
      %v1478 = vsel %vm1358, %v1473, %v1477
      %v1480 = vshrl.u32 %v1346, 16
      %v1482 = vshll.u32 %v1346, 16
      %v1484 = vrot.slane %v1482, 1
      %v1485 = vor.u32 %v1480, %v1484
      %v1487 = vshll.u32 %v1347, 16
      %v1489 = vrot.slane %v1487, 1
      %v1490 = vsel %vm1358, %v1485, %v1489
      %v1492 = vshrl.u32 %v1348, 16
      %v1494 = vshll.u32 %v1348, 16
      %v1496 = vrot.slane %v1494, 1
      %v1497 = vor.u32 %v1492, %v1496
      %v1499 = vshll.u32 %v1349, 16
      %v1501 = vrot.slane %v1499, 1
      %v1502 = vsel %vm1358, %v1497, %v1501
      %v1504 = vshrl.u32 %v1350, 16
      %v1506 = vshll.u32 %v1350, 16
      %v1508 = vrot.slane %v1506, 1
      %v1509 = vor.u32 %v1504, %v1508
      %v1511 = vshll.u32 %v1351, 16
      %v1513 = vrot.slane %v1511, 1
      %v1514 = vsel %vm1358, %v1509, %v1513
      %v1516 = vshrl.u32 %v1352, 16
      %v1518 = vshll.u32 %v1352, 16
      %v1520 = vrot.slane %v1518, 1
      %v1521 = vor.u32 %v1516, %v1520
      %v1523 = vshll.u32 %v1353, 16
      %v1525 = vrot.slane %v1523, 1
      %v1526 = vsel %vm1358, %v1521, %v1525
      %v1528 = vshrl.u32 %v1354, 16
      %v1530 = vshll.u32 %v1354, 16
      %v1532 = vrot.slane %v1530, 1
      %v1533 = vor.u32 %v1528, %v1532
      %v1535 = vshll.u32 %v1355, 16
      %v1537 = vrot.slane %v1535, 1
      %v1538 = vsel %vm1358, %v1533, %v1537
      %v1540 = vshrl.u32 %v1356, 16
      %v1542 = vshll.u32 %v1356, 16
      %v1544 = vrot.slane %v1542, 1
      %v1545 = vor.u32 %v1540, %v1544
      %v1547 = vshll.u32 %v1357, 16
      %v1549 = vrot.slane %v1547, 1
      %v1550 = vsel %vm1358, %v1545, %v1549
      %1551 = vrot.lane.b32.xlu0 %v1370, 8
      %v1552 = vpop.permute.xlu0 %1551
      %1553 = vrot.lane.b32.xlu0 %v1382, 8
      %v1554 = vpop.permute.xlu0 %1553
      %1555 = vrot.lane.b32.xlu0 %v1394, 8
      %v1556 = vpop.permute.xlu0 %1555
      %1557 = vrot.lane.b32.xlu0 %v1406, 8
      %v1558 = vpop.permute.xlu0 %1557
      %1559 = vrot.lane.b32.xlu0 %v1418, 8
      %v1560 = vpop.permute.xlu0 %1559
      %1561 = vrot.lane.b32.xlu0 %v1430, 8
      %v1562 = vpop.permute.xlu0 %1561
      %1563 = vrot.lane.b32.xlu0 %v1442, 8
      %v1564 = vpop.permute.xlu0 %1563
      %1565 = vrot.lane.b32.xlu0 %v1454, 8
      %v1566 = vpop.permute.xlu0 %1565
      %1567 = vrot.lane.b32.xlu0 %v1466, 8
      %v1568 = vpop.permute.xlu0 %1567
      %1569 = vrot.lane.b32.xlu0 %v1478, 8
      %v1570 = vpop.permute.xlu0 %1569
      %1571 = vrot.lane.b32.xlu0 %v1490, 8
      %v1572 = vpop.permute.xlu0 %1571
      %1573 = vrot.lane.b32.xlu0 %v1502, 8
      %v1574 = vpop.permute.xlu0 %1573
      %1575 = vrot.lane.b32.xlu0 %v1514, 8
      %v1576 = vpop.permute.xlu0 %1575
      %1577 = vrot.lane.b32.xlu0 %v1526, 8
      %v1578 = vpop.permute.xlu0 %1577
      %1579 = vrot.lane.b32.xlu0 %v1538, 8
      %v1580 = vpop.permute.xlu0 %1579
      %1581 = vrot.lane.b32.xlu0 %v1550, 8
      %v1582 = vpop.permute.xlu0 %1581
      %vm1599 = vcmask 130112
      %1600 = vst.msk [vmem:[#allocation3] sm:$0xff] %vm1599, %v1552
      %1601 = vst.msk [vmem:[#allocation3 + $0x8] sm:$0xff] %vm1599, %v1554
      %1602 = vst.msk [vmem:[#allocation3 + $0x10] sm:$0xff] %vm1599, %v1556
      %1603 = vst.msk [vmem:[#allocation3 + $0x18] sm:$0xff] %vm1599, %v1558
      %1604 = vst.msk [vmem:[#allocation3 + $0x20] sm:$0xff] %vm1599, %v1560
      %1605 = vst.msk [vmem:[#allocation3 + $0x28] sm:$0xff] %vm1599, %v1562
      %1606 = vst.msk [vmem:[#allocation3 + $0x30] sm:$0xff] %vm1599, %v1564
      %1607 = vst.msk [vmem:[#allocation3 + $0x38] sm:$0xff] %vm1599, %v1566
      %1608 = vst.msk [vmem:[#allocation3 + $0x40] sm:$0xff] %vm1599, %v1568
      %1609 = vst.msk [vmem:[#allocation3 + $0x48] sm:$0xff] %vm1599, %v1570
      %1610 = vst.msk [vmem:[#allocation3 + $0x50] sm:$0xff] %vm1599, %v1572
      %1611 = vst.msk [vmem:[#allocation3 + $0x58] sm:$0xff] %vm1599, %v1574
      %1612 = vst.msk [vmem:[#allocation3 + $0x60] sm:$0xff] %vm1599, %v1576
      %1613 = vst.msk [vmem:[#allocation3 + $0x68] sm:$0xff] %vm1599, %v1578
      %1614 = vst.msk [vmem:[#allocation3 + $0x70] sm:$0xff] %vm1599, %v1580
      %1615 = vst.msk [vmem:[#allocation3 + $0x78] sm:$0xff] %vm1599, %v1582
      %v1616 = vld [vmem:[#allocation2] sm:$0xe]
      %v1617 = vld [vmem:[#allocation2 + $0x4] sm:$0xf]
      %v1618 = vld [vmem:[#allocation2 + $0x8] sm:$0x1]
      %v1619 = vld [vmem:[#allocation2 + $0xc] sm:$0xe]
      %v1620 = vld [vmem:[#allocation2 + $0x10] sm:$0xf]
      %v1621 = vld [vmem:[#allocation2 + $0x14] sm:$0x1]
      %v1622 = vld [vmem:[#allocation2 + $0x18] sm:$0xe]
      %v1623 = vld [vmem:[#allocation2 + $0x1c] sm:$0xf]
      %v1624 = vld [vmem:[#allocation2 + $0x20] sm:$0x1]
      %v1625 = vld [vmem:[#allocation2 + $0x24] sm:$0xe]
      %v1626 = vld [vmem:[#allocation2 + $0x28] sm:$0xf]
      %v1627 = vld [vmem:[#allocation2 + $0x2c] sm:$0x1]
      %v1628 = vld [vmem:[#allocation2 + $0x30] sm:$0xe]
      %v1629 = vld [vmem:[#allocation2 + $0x34] sm:$0xf]
      %v1630 = vld [vmem:[#allocation2 + $0x38] sm:$0x1]
      %v1631 = vld [vmem:[#allocation2 + $0x3c] sm:$0xe]
      %v1632 = vld [vmem:[#allocation2 + $0x40] sm:$0xf]
      %v1633 = vld [vmem:[#allocation2 + $0x44] sm:$0x1]
      %v1634 = vld [vmem:[#allocation2 + $0x48] sm:$0xe]
      %v1635 = vld [vmem:[#allocation2 + $0x4c] sm:$0xf]
      %v1636 = vld [vmem:[#allocation2 + $0x50] sm:$0x1]
      %v1637 = vld [vmem:[#allocation2 + $0x54] sm:$0xe]
      %v1638 = vld [vmem:[#allocation2 + $0x58] sm:$0xf]
      %v1639 = vld [vmem:[#allocation2 + $0x5c] sm:$0x1]
      %v1640 = vld [vmem:[#allocation2 + $0x60] sm:$0xe]
      %v1641 = vld [vmem:[#allocation2 + $0x64] sm:$0xf]
      %v1642 = vld [vmem:[#allocation2 + $0x68] sm:$0x1]
      %v1643 = vld [vmem:[#allocation2 + $0x6c] sm:$0xe]
      %v1644 = vld [vmem:[#allocation2 + $0x70] sm:$0xf]
      %v1645 = vld [vmem:[#allocation2 + $0x74] sm:$0x1]
      %v1646 = vld [vmem:[#allocation2 + $0x78] sm:$0xe]
      %v1647 = vld [vmem:[#allocation2 + $0x7c] sm:$0xf]
      %v1648 = vld [vmem:[#allocation2 + $0x80] sm:$0x1]
      %v1649 = vld [vmem:[#allocation2 + $0x84] sm:$0xe]
      %v1650 = vld [vmem:[#allocation2 + $0x88] sm:$0xf]
      %v1651 = vld [vmem:[#allocation2 + $0x8c] sm:$0x1]
      %v1652 = vld [vmem:[#allocation2 + $0x90] sm:$0xe]
      %v1653 = vld [vmem:[#allocation2 + $0x94] sm:$0xf]
      %v1654 = vld [vmem:[#allocation2 + $0x98] sm:$0x1]
      %v1655 = vld [vmem:[#allocation2 + $0x9c] sm:$0xe]
      %v1656 = vld [vmem:[#allocation2 + $0xa0] sm:$0xf]
      %v1657 = vld [vmem:[#allocation2 + $0xa4] sm:$0x1]
      %v1658 = vld [vmem:[#allocation2 + $0xa8] sm:$0xe]
      %v1659 = vld [vmem:[#allocation2 + $0xac] sm:$0xf]
      %v1660 = vld [vmem:[#allocation2 + $0xb0] sm:$0x1]
      %v1661 = vld [vmem:[#allocation2 + $0xb4] sm:$0xe]
      %v1662 = vld [vmem:[#allocation2 + $0xb8] sm:$0xf]
      %v1663 = vld [vmem:[#allocation2 + $0xbc] sm:$0x1]
      %v1712 = vunpack.c.l.b16 %v1616
      %v1713 = vunpack.c.l.b16 %v1617
      %v1714 = vunpack.c.l.b16 %v1618
      %v1715 = vunpack.c.l.b16 %v1619
      %v1716 = vunpack.c.l.b16 %v1620
      %v1717 = vunpack.c.l.b16 %v1621
      %v1718 = vunpack.c.l.b16 %v1622
      %v1719 = vunpack.c.l.b16 %v1623
      %v1720 = vunpack.c.l.b16 %v1624
      %v1721 = vunpack.c.l.b16 %v1625
      %v1722 = vunpack.c.l.b16 %v1626
      %v1723 = vunpack.c.l.b16 %v1627
      %v1724 = vunpack.c.l.b16 %v1628
      %v1725 = vunpack.c.l.b16 %v1629
      %v1726 = vunpack.c.l.b16 %v1630
      %v1727 = vunpack.c.l.b16 %v1631
      %v1728 = vunpack.c.l.b16 %v1632
      %v1729 = vunpack.c.l.b16 %v1633
      %v1730 = vunpack.c.l.b16 %v1634
      %v1731 = vunpack.c.l.b16 %v1635
      %v1732 = vunpack.c.l.b16 %v1636
      %v1733 = vunpack.c.l.b16 %v1637
      %v1734 = vunpack.c.l.b16 %v1638
      %v1735 = vunpack.c.l.b16 %v1639
      %v1736 = vunpack.c.l.b16 %v1640
      %v1737 = vunpack.c.l.b16 %v1641
      %v1738 = vunpack.c.l.b16 %v1642
      %v1739 = vunpack.c.l.b16 %v1643
      %v1740 = vunpack.c.l.b16 %v1644
      %v1741 = vunpack.c.l.b16 %v1645
      %v1742 = vunpack.c.l.b16 %v1646
      %v1743 = vunpack.c.l.b16 %v1647
      %v1744 = vunpack.c.l.b16 %v1648
      %v1745 = vunpack.c.l.b16 %v1649
      %v1746 = vunpack.c.l.b16 %v1650
      %v1747 = vunpack.c.l.b16 %v1651
      %v1748 = vunpack.c.l.b16 %v1652
      %v1749 = vunpack.c.l.b16 %v1653
      %v1750 = vunpack.c.l.b16 %v1654
      %v1751 = vunpack.c.l.b16 %v1655
      %v1752 = vunpack.c.l.b16 %v1656
      %v1753 = vunpack.c.l.b16 %v1657
      %v1754 = vunpack.c.l.b16 %v1658
      %v1755 = vunpack.c.l.b16 %v1659
      %v1756 = vunpack.c.l.b16 %v1660
      %v1757 = vunpack.c.l.b16 %v1661
      %v1758 = vunpack.c.l.b16 %v1662
      %v1759 = vunpack.c.l.b16 %v1663
      %v1760 = vpack.c.b16 %v1713, %v1712
      %v1761 = vpack.c.b16 %v1714, %v1714
      %v1762 = vpack.c.b16 %v1716, %v1715
      %v1763 = vpack.c.b16 %v1717, %v1717
      %v1764 = vpack.c.b16 %v1719, %v1718
      %v1765 = vpack.c.b16 %v1720, %v1720
      %v1766 = vpack.c.b16 %v1722, %v1721
      %v1767 = vpack.c.b16 %v1723, %v1723
      %v1768 = vpack.c.b16 %v1725, %v1724
      %v1769 = vpack.c.b16 %v1726, %v1726
      %v1770 = vpack.c.b16 %v1728, %v1727
      %v1771 = vpack.c.b16 %v1729, %v1729
      %v1772 = vpack.c.b16 %v1731, %v1730
      %v1773 = vpack.c.b16 %v1732, %v1732
      %v1774 = vpack.c.b16 %v1734, %v1733
      %v1775 = vpack.c.b16 %v1735, %v1735
      %v1776 = vpack.c.b16 %v1737, %v1736
      %v1777 = vpack.c.b16 %v1738, %v1738
      %v1778 = vpack.c.b16 %v1740, %v1739
      %v1779 = vpack.c.b16 %v1741, %v1741
      %v1780 = vpack.c.b16 %v1743, %v1742
      %v1781 = vpack.c.b16 %v1744, %v1744
      %v1782 = vpack.c.b16 %v1746, %v1745
      %v1783 = vpack.c.b16 %v1747, %v1747
      %v1784 = vpack.c.b16 %v1749, %v1748
      %v1785 = vpack.c.b16 %v1750, %v1750
      %v1786 = vpack.c.b16 %v1752, %v1751
      %v1787 = vpack.c.b16 %v1753, %v1753
      %v1788 = vpack.c.b16 %v1755, %v1754
      %v1789 = vpack.c.b16 %v1756, %v1756
      %v1790 = vpack.c.b16 %v1758, %v1757
      %v1791 = vpack.c.b16 %v1759, %v1759
      %vm1792 = vcmask 1046528
      %v1793 = vrot.slane %v1760, 1
      %v1794 = vrot.slane %v1761, 1
      %v1795 = vsel %vm1792, %v1793, %v1794
      %v1796 = vrot.slane %v1762, 1
      %v1797 = vrot.slane %v1763, 1
      %v1798 = vsel %vm1792, %v1796, %v1797
      %v1799 = vrot.slane %v1764, 1
      %v1800 = vrot.slane %v1765, 1
      %v1801 = vsel %vm1792, %v1799, %v1800
      %v1802 = vrot.slane %v1766, 1
      %v1803 = vrot.slane %v1767, 1
      %v1804 = vsel %vm1792, %v1802, %v1803
      %v1805 = vrot.slane %v1768, 1
      %v1806 = vrot.slane %v1769, 1
      %v1807 = vsel %vm1792, %v1805, %v1806
      %v1808 = vrot.slane %v1770, 1
      %v1809 = vrot.slane %v1771, 1
      %v1810 = vsel %vm1792, %v1808, %v1809
      %v1811 = vrot.slane %v1772, 1
      %v1812 = vrot.slane %v1773, 1
      %v1813 = vsel %vm1792, %v1811, %v1812
      %v1814 = vrot.slane %v1774, 1
      %v1815 = vrot.slane %v1775, 1
      %v1816 = vsel %vm1792, %v1814, %v1815
      %v1817 = vrot.slane %v1776, 1
      %v1818 = vrot.slane %v1777, 1
      %v1819 = vsel %vm1792, %v1817, %v1818
      %v1820 = vrot.slane %v1778, 1
      %v1821 = vrot.slane %v1779, 1
      %v1822 = vsel %vm1792, %v1820, %v1821
      %v1823 = vrot.slane %v1780, 1
      %v1824 = vrot.slane %v1781, 1
      %v1825 = vsel %vm1792, %v1823, %v1824
      %v1826 = vrot.slane %v1782, 1
      %v1827 = vrot.slane %v1783, 1
      %v1828 = vsel %vm1792, %v1826, %v1827
      %v1829 = vrot.slane %v1784, 1
      %v1830 = vrot.slane %v1785, 1
      %v1831 = vsel %vm1792, %v1829, %v1830
      %v1832 = vrot.slane %v1786, 1
      %v1833 = vrot.slane %v1787, 1
      %v1834 = vsel %vm1792, %v1832, %v1833
      %v1835 = vrot.slane %v1788, 1
      %v1836 = vrot.slane %v1789, 1
      %v1837 = vsel %vm1792, %v1835, %v1836
      %v1838 = vrot.slane %v1790, 1
      %v1839 = vrot.slane %v1791, 1
      %v1840 = vsel %vm1792, %v1838, %v1839
      %1841 = vrot.lane.b32.xlu0 %v1795, 16
      %v1842 = vpop.permute.xlu0 %1841
      %1843 = vrot.lane.b32.xlu0 %v1798, 16
      %v1844 = vpop.permute.xlu0 %1843
      %1845 = vrot.lane.b32.xlu0 %v1801, 16
      %v1846 = vpop.permute.xlu0 %1845
      %1847 = vrot.lane.b32.xlu0 %v1804, 16
      %v1848 = vpop.permute.xlu0 %1847
      %1849 = vrot.lane.b32.xlu0 %v1807, 16
      %v1850 = vpop.permute.xlu0 %1849
      %1851 = vrot.lane.b32.xlu0 %v1810, 16
      %v1852 = vpop.permute.xlu0 %1851
      %1853 = vrot.lane.b32.xlu0 %v1813, 16
      %v1854 = vpop.permute.xlu0 %1853
      %1855 = vrot.lane.b32.xlu0 %v1816, 16
      %v1856 = vpop.permute.xlu0 %1855
      %1857 = vrot.lane.b32.xlu0 %v1819, 16
      %v1858 = vpop.permute.xlu0 %1857
      %1859 = vrot.lane.b32.xlu0 %v1822, 16
      %v1860 = vpop.permute.xlu0 %1859
      %1861 = vrot.lane.b32.xlu0 %v1825, 16
      %v1862 = vpop.permute.xlu0 %1861
      %1863 = vrot.lane.b32.xlu0 %v1828, 16
      %v1864 = vpop.permute.xlu0 %1863
      %1865 = vrot.lane.b32.xlu0 %v1831, 16
      %v1866 = vpop.permute.xlu0 %1865
      %1867 = vrot.lane.b32.xlu0 %v1834, 16
      %v1868 = vpop.permute.xlu0 %1867
      %1869 = vrot.lane.b32.xlu0 %v1837, 16
      %v1870 = vpop.permute.xlu0 %1869
      %1871 = vrot.lane.b32.xlu0 %v1840, 16
      %v1872 = vpop.permute.xlu0 %1871
      %vm1889 = vcmask 195712
      %1890 = vst.msk [vmem:[#allocation3] sm:$0xff] %vm1889, %v1842
      %1891 = vst.msk [vmem:[#allocation3 + $0x8] sm:$0xff] %vm1889, %v1844
      %1892 = vst.msk [vmem:[#allocation3 + $0x10] sm:$0xff] %vm1889, %v1846
      %1893 = vst.msk [vmem:[#allocation3 + $0x18] sm:$0xff] %vm1889, %v1848
      %1894 = vst.msk [vmem:[#allocation3 + $0x20] sm:$0xff] %vm1889, %v1850
      %1895 = vst.msk [vmem:[#allocation3 + $0x28] sm:$0xff] %vm1889, %v1852
      %1896 = vst.msk [vmem:[#allocation3 + $0x30] sm:$0xff] %vm1889, %v1854
      %1897 = vst.msk [vmem:[#allocation3 + $0x38] sm:$0xff] %vm1889, %v1856
      %1898 = vst.msk [vmem:[#allocation3 + $0x40] sm:$0xff] %vm1889, %v1858
      %1899 = vst.msk [vmem:[#allocation3 + $0x48] sm:$0xff] %vm1889, %v1860
      %1900 = vst.msk [vmem:[#allocation3 + $0x50] sm:$0xff] %vm1889, %v1862
      %1901 = vst.msk [vmem:[#allocation3 + $0x58] sm:$0xff] %vm1889, %v1864
      %1902 = vst.msk [vmem:[#allocation3 + $0x60] sm:$0xff] %vm1889, %v1866
      %1903 = vst.msk [vmem:[#allocation3 + $0x68] sm:$0xff] %vm1889, %v1868
      %1904 = vst.msk [vmem:[#allocation3 + $0x70] sm:$0xff] %vm1889, %v1870
      %1905 = vst.msk [vmem:[#allocation3 + $0x78] sm:$0xff] %vm1889, %v1872
      %v1906 = vld [vmem:[%s919] sm:$0xf]
      %v1907 = vld [vmem:[%s919 + $0x4] sm:$0xf]
      %v1908 = vld [vmem:[%s919 + $0xc] sm:$0xf]
      %v1909 = vld [vmem:[%s919 + $0x10] sm:$0xf]
      %v1910 = vld [vmem:[%s919 + $0x18] sm:$0xf]
      %v1911 = vld [vmem:[%s919 + $0x1c] sm:$0xf]
      %v1912 = vld [vmem:[%s919 + $0x24] sm:$0xf]
      %v1913 = vld [vmem:[%s919 + $0x28] sm:$0xf]
      %v1914 = vld [vmem:[%s919 + $0x30] sm:$0xf]
      %v1915 = vld [vmem:[%s919 + $0x34] sm:$0xf]
      %v1916 = vld [vmem:[%s919 + $0x3c] sm:$0xf]
      %v1917 = vld [vmem:[%s919 + $0x40] sm:$0xf]
      %v1918 = vld [vmem:[%s919 + $0x48] sm:$0xf]
      %v1919 = vld [vmem:[%s919 + $0x4c] sm:$0xf]
      %v1920 = vld [vmem:[%s919 + $0x54] sm:$0xf]
      %v1921 = vld [vmem:[%s919 + $0x58] sm:$0xf]
      %v1922 = vld [vmem:[%s919 + $0x60] sm:$0xf]
      %v1923 = vld [vmem:[%s919 + $0x64] sm:$0xf]
      %v1924 = vld [vmem:[%s919 + $0x6c] sm:$0xf]
      %v1925 = vld [vmem:[%s919 + $0x70] sm:$0xf]
      %v1926 = vld [vmem:[%s919 + $0x78] sm:$0xf]
      %v1927 = vld [vmem:[%s919 + $0x7c] sm:$0xf]
      %v1928 = vld [vmem:[%s919 + $0x84] sm:$0xf]
      %v1929 = vld [vmem:[%s919 + $0x88] sm:$0xf]
      %v1930 = vld [vmem:[%s919 + $0x90] sm:$0xf]
      %v1931 = vld [vmem:[%s919 + $0x94] sm:$0xf]
      %v1932 = vld [vmem:[%s919 + $0x9c] sm:$0xf]
      %v1933 = vld [vmem:[%s919 + $0xa0] sm:$0xf]
      %v1934 = vld [vmem:[%s919 + $0xa8] sm:$0xf]
      %v1935 = vld [vmem:[%s919 + $0xac] sm:$0xf]
      %v1936 = vld [vmem:[%s919 + $0xb4] sm:$0xf]
      %v1937 = vld [vmem:[%s919 + $0xb8] sm:$0xf]
      %v1970 = vunpack.c.l.b16 %v1906
      %v1971 = vunpack.c.l.b16 %v1907
      %v1972 = vunpack.c.l.b16 %v1908
      %v1973 = vunpack.c.l.b16 %v1909
      %v1974 = vunpack.c.l.b16 %v1910
      %v1975 = vunpack.c.l.b16 %v1911
      %v1976 = vunpack.c.l.b16 %v1912
      %v1977 = vunpack.c.l.b16 %v1913
      %v1978 = vunpack.c.l.b16 %v1914
      %v1979 = vunpack.c.l.b16 %v1915
      %v1980 = vunpack.c.l.b16 %v1916
      %v1981 = vunpack.c.l.b16 %v1917
      %v1982 = vunpack.c.l.b16 %v1918
      %v1983 = vunpack.c.l.b16 %v1919
      %v1984 = vunpack.c.l.b16 %v1920
      %v1985 = vunpack.c.l.b16 %v1921
      %v1986 = vunpack.c.l.b16 %v1922
      %v1987 = vunpack.c.l.b16 %v1923
      %v1988 = vunpack.c.l.b16 %v1924
      %v1989 = vunpack.c.l.b16 %v1925
      %v1990 = vunpack.c.l.b16 %v1926
      %v1991 = vunpack.c.l.b16 %v1927
      %v1992 = vunpack.c.l.b16 %v1928
      %v1993 = vunpack.c.l.b16 %v1929
      %v1994 = vunpack.c.l.b16 %v1930
      %v1995 = vunpack.c.l.b16 %v1931
      %v1996 = vunpack.c.l.b16 %v1932
      %v1997 = vunpack.c.l.b16 %v1933
      %v1998 = vunpack.c.l.b16 %v1934
      %v1999 = vunpack.c.l.b16 %v1935
      %v2000 = vunpack.c.l.b16 %v1936
      %v2001 = vunpack.c.l.b16 %v1937
      %v2002 = vpack.c.b16 %v1971, %v1970
      %v2003 = vpack.c.b16 %v1973, %v1972
      %v2004 = vpack.c.b16 %v1975, %v1974
      %v2005 = vpack.c.b16 %v1977, %v1976
      %v2006 = vpack.c.b16 %v1979, %v1978
      %v2007 = vpack.c.b16 %v1981, %v1980
      %v2008 = vpack.c.b16 %v1983, %v1982
      %v2009 = vpack.c.b16 %v1985, %v1984
      %v2010 = vpack.c.b16 %v1987, %v1986
      %v2011 = vpack.c.b16 %v1989, %v1988
      %v2012 = vpack.c.b16 %v1991, %v1990
      %v2013 = vpack.c.b16 %v1993, %v1992
      %v2014 = vpack.c.b16 %v1995, %v1994
      %v2015 = vpack.c.b16 %v1997, %v1996
      %v2016 = vpack.c.b16 %v1999, %v1998
      %v2017 = vpack.c.b16 %v2001, %v2000
      %2018 = vrot.lane.b32.xlu0 %v2002, 24
      %v2019 = vpop.permute.xlu0 %2018
      %2020 = vrot.lane.b32.xlu0 %v2003, 24
      %v2021 = vpop.permute.xlu0 %2020
      %2022 = vrot.lane.b32.xlu0 %v2004, 24
      %v2023 = vpop.permute.xlu0 %2022
      %2024 = vrot.lane.b32.xlu0 %v2005, 24
      %v2025 = vpop.permute.xlu0 %2024
      %2026 = vrot.lane.b32.xlu0 %v2006, 24
      %v2027 = vpop.permute.xlu0 %2026
      %2028 = vrot.lane.b32.xlu0 %v2007, 24
      %v2029 = vpop.permute.xlu0 %2028
      %2030 = vrot.lane.b32.xlu0 %v2008, 24
      %v2031 = vpop.permute.xlu0 %2030
      %2032 = vrot.lane.b32.xlu0 %v2009, 24
      %v2033 = vpop.permute.xlu0 %2032
      %2034 = vrot.lane.b32.xlu0 %v2010, 24
      %v2035 = vpop.permute.xlu0 %2034
      %2036 = vrot.lane.b32.xlu0 %v2011, 24
      %v2037 = vpop.permute.xlu0 %2036
      %2038 = vrot.lane.b32.xlu0 %v2012, 24
      %v2039 = vpop.permute.xlu0 %2038
      %2040 = vrot.lane.b32.xlu0 %v2013, 24
      %v2041 = vpop.permute.xlu0 %2040
      %2042 = vrot.lane.b32.xlu0 %v2014, 24
      %v2043 = vpop.permute.xlu0 %2042
      %2044 = vrot.lane.b32.xlu0 %v2015, 24
      %v2045 = vpop.permute.xlu0 %2044
      %2046 = vrot.lane.b32.xlu0 %v2016, 24
      %v2047 = vpop.permute.xlu0 %2046
      %2048 = vrot.lane.b32.xlu0 %v2017, 24
      %v2049 = vpop.permute.xlu0 %2048
      %vm2066 = vcmask 261312
      %2067 = vst.msk [vmem:[#allocation3] sm:$0xff] %vm2066, %v2019
      %2068 = vst.msk [vmem:[#allocation3 + $0x8] sm:$0xff] %vm2066, %v2021
      %2069 = vst.msk [vmem:[#allocation3 + $0x10] sm:$0xff] %vm2066, %v2023
      %2070 = vst.msk [vmem:[#allocation3 + $0x18] sm:$0xff] %vm2066, %v2025
      %2071 = vst.msk [vmem:[#allocation3 + $0x20] sm:$0xff] %vm2066, %v2027
      %2072 = vst.msk [vmem:[#allocation3 + $0x28] sm:$0xff] %vm2066, %v2029
      %2073 = vst.msk [vmem:[#allocation3 + $0x30] sm:$0xff] %vm2066, %v2031
      %2074 = vst.msk [vmem:[#allocation3 + $0x38] sm:$0xff] %vm2066, %v2033
      %2075 = vst.msk [vmem:[#allocation3 + $0x40] sm:$0xff] %vm2066, %v2035
      %2076 = vst.msk [vmem:[#allocation3 + $0x48] sm:$0xff] %vm2066, %v2037
      %2077 = vst.msk [vmem:[#allocation3 + $0x50] sm:$0xff] %vm2066, %v2039
      %2078 = vst.msk [vmem:[#allocation3 + $0x58] sm:$0xff] %vm2066, %v2041
      %2079 = vst.msk [vmem:[#allocation3 + $0x60] sm:$0xff] %vm2066, %v2043
      %2080 = vst.msk [vmem:[#allocation3 + $0x68] sm:$0xff] %vm2066, %v2045
      %2081 = vst.msk [vmem:[#allocation3 + $0x70] sm:$0xff] %vm2066, %v2047
      %2082 = vst.msk [vmem:[#allocation3 + $0x78] sm:$0xff] %vm2066, %v2049
      %v2083 = vld [vmem:[%s919] sm:$0xf]
      %v2084 = vld [vmem:[%s919 + $0x4] sm:$0xf]
      %v2085 = vld [vmem:[%s919 + $0x8] sm:$0x1]
      %v2086 = vld [vmem:[%s919 + $0xc] sm:$0xf]
      %v2087 = vld [vmem:[%s919 + $0x10] sm:$0xf]
      %v2088 = vld [vmem:[%s919 + $0x14] sm:$0x1]
      %v2089 = vld [vmem:[%s919 + $0x18] sm:$0xf]
      %v2090 = vld [vmem:[%s919 + $0x1c] sm:$0xf]
      %v2091 = vld [vmem:[%s919 + $0x20] sm:$0x1]
      %v2092 = vld [vmem:[%s919 + $0x24] sm:$0xf]
      %v2093 = vld [vmem:[%s919 + $0x28] sm:$0xf]
      %v2094 = vld [vmem:[%s919 + $0x2c] sm:$0x1]
      %v2095 = vld [vmem:[%s919 + $0x30] sm:$0xf]
      %v2096 = vld [vmem:[%s919 + $0x34] sm:$0xf]
      %v2097 = vld [vmem:[%s919 + $0x38] sm:$0x1]
      %v2098 = vld [vmem:[%s919 + $0x3c] sm:$0xf]
      %v2099 = vld [vmem:[%s919 + $0x40] sm:$0xf]
      %v2100 = vld [vmem:[%s919 + $0x44] sm:$0x1]
      %v2101 = vld [vmem:[%s919 + $0x48] sm:$0xf]
      %v2102 = vld [vmem:[%s919 + $0x4c] sm:$0xf]
      %v2103 = vld [vmem:[%s919 + $0x50] sm:$0x1]
      %v2104 = vld [vmem:[%s919 + $0x54] sm:$0xf]
      %v2105 = vld [vmem:[%s919 + $0x58] sm:$0xf]
      %v2106 = vld [vmem:[%s919 + $0x5c] sm:$0x1]
      %v2107 = vld [vmem:[%s919 + $0x60] sm:$0xf]
      %v2108 = vld [vmem:[%s919 + $0x64] sm:$0xf]
      %v2109 = vld [vmem:[%s919 + $0x68] sm:$0x1]
      %v2110 = vld [vmem:[%s919 + $0x6c] sm:$0xf]
      %v2111 = vld [vmem:[%s919 + $0x70] sm:$0xf]
      %v2112 = vld [vmem:[%s919 + $0x74] sm:$0x1]
      %v2113 = vld [vmem:[%s919 + $0x78] sm:$0xf]
      %v2114 = vld [vmem:[%s919 + $0x7c] sm:$0xf]
      %v2115 = vld [vmem:[%s919 + $0x80] sm:$0x1]
      %v2116 = vld [vmem:[%s919 + $0x84] sm:$0xf]
      %v2117 = vld [vmem:[%s919 + $0x88] sm:$0xf]
      %v2118 = vld [vmem:[%s919 + $0x8c] sm:$0x1]
      %v2119 = vld [vmem:[%s919 + $0x90] sm:$0xf]
      %v2120 = vld [vmem:[%s919 + $0x94] sm:$0xf]
      %v2121 = vld [vmem:[%s919 + $0x98] sm:$0x1]
      %v2122 = vld [vmem:[%s919 + $0x9c] sm:$0xf]
      %v2123 = vld [vmem:[%s919 + $0xa0] sm:$0xf]
      %v2124 = vld [vmem:[%s919 + $0xa4] sm:$0x1]
      %v2125 = vld [vmem:[%s919 + $0xa8] sm:$0xf]
      %v2126 = vld [vmem:[%s919 + $0xac] sm:$0xf]
      %v2127 = vld [vmem:[%s919 + $0xb0] sm:$0x1]
      %v2128 = vld [vmem:[%s919 + $0xb4] sm:$0xf]
      %v2129 = vld [vmem:[%s919 + $0xb8] sm:$0xf]
      %v2130 = vld [vmem:[%s919 + $0xbc] sm:$0x1]
      %v2179 = vunpack.c.l.b16 %v2083
      %v2180 = vunpack.c.l.b16 %v2084
      %v2181 = vunpack.c.l.b16 %v2085
      %v2182 = vunpack.c.l.b16 %v2086
      %v2183 = vunpack.c.l.b16 %v2087
      %v2184 = vunpack.c.l.b16 %v2088
      %v2185 = vunpack.c.l.b16 %v2089
      %v2186 = vunpack.c.l.b16 %v2090
      %v2187 = vunpack.c.l.b16 %v2091
      %v2188 = vunpack.c.l.b16 %v2092
      %v2189 = vunpack.c.l.b16 %v2093
      %v2190 = vunpack.c.l.b16 %v2094
      %v2191 = vunpack.c.l.b16 %v2095
      %v2192 = vunpack.c.l.b16 %v2096
      %v2193 = vunpack.c.l.b16 %v2097
      %v2194 = vunpack.c.l.b16 %v2098
      %v2195 = vunpack.c.l.b16 %v2099
      %v2196 = vunpack.c.l.b16 %v2100
      %v2197 = vunpack.c.l.b16 %v2101
      %v2198 = vunpack.c.l.b16 %v2102
      %v2199 = vunpack.c.l.b16 %v2103
      %v2200 = vunpack.c.l.b16 %v2104
      %v2201 = vunpack.c.l.b16 %v2105
      %v2202 = vunpack.c.l.b16 %v2106
      %v2203 = vunpack.c.l.b16 %v2107
      %v2204 = vunpack.c.l.b16 %v2108
      %v2205 = vunpack.c.l.b16 %v2109
      %v2206 = vunpack.c.l.b16 %v2110
      %v2207 = vunpack.c.l.b16 %v2111
      %v2208 = vunpack.c.l.b16 %v2112
      %v2209 = vunpack.c.l.b16 %v2113
      %v2210 = vunpack.c.l.b16 %v2114
      %v2211 = vunpack.c.l.b16 %v2115
      %v2212 = vunpack.c.l.b16 %v2116
      %v2213 = vunpack.c.l.b16 %v2117
      %v2214 = vunpack.c.l.b16 %v2118
      %v2215 = vunpack.c.l.b16 %v2119
      %v2216 = vunpack.c.l.b16 %v2120
      %v2217 = vunpack.c.l.b16 %v2121
      %v2218 = vunpack.c.l.b16 %v2122
      %v2219 = vunpack.c.l.b16 %v2123
      %v2220 = vunpack.c.l.b16 %v2124
      %v2221 = vunpack.c.l.b16 %v2125
      %v2222 = vunpack.c.l.b16 %v2126
      %v2223 = vunpack.c.l.b16 %v2127
      %v2224 = vunpack.c.l.b16 %v2128
      %v2225 = vunpack.c.l.b16 %v2129
      %v2226 = vunpack.c.l.b16 %v2130
      %v2227 = vpack.c.b16 %v2180, %v2179
      %v2228 = vpack.c.b16 %v2181, %v2181
      %v2229 = vpack.c.b16 %v2183, %v2182
      %v2230 = vpack.c.b16 %v2184, %v2184
      %v2231 = vpack.c.b16 %v2186, %v2185
      %v2232 = vpack.c.b16 %v2187, %v2187
      %v2233 = vpack.c.b16 %v2189, %v2188
      %v2234 = vpack.c.b16 %v2190, %v2190
      %v2235 = vpack.c.b16 %v2192, %v2191
      %v2236 = vpack.c.b16 %v2193, %v2193
      %v2237 = vpack.c.b16 %v2195, %v2194
      %v2238 = vpack.c.b16 %v2196, %v2196
      %v2239 = vpack.c.b16 %v2198, %v2197
      %v2240 = vpack.c.b16 %v2199, %v2199
      %v2241 = vpack.c.b16 %v2201, %v2200
      %v2242 = vpack.c.b16 %v2202, %v2202
      %v2243 = vpack.c.b16 %v2204, %v2203
      %v2244 = vpack.c.b16 %v2205, %v2205
      %v2245 = vpack.c.b16 %v2207, %v2206
      %v2246 = vpack.c.b16 %v2208, %v2208
      %v2247 = vpack.c.b16 %v2210, %v2209
      %v2248 = vpack.c.b16 %v2211, %v2211
      %v2249 = vpack.c.b16 %v2213, %v2212
      %v2250 = vpack.c.b16 %v2214, %v2214
      %v2251 = vpack.c.b16 %v2216, %v2215
      %v2252 = vpack.c.b16 %v2217, %v2217
      %v2253 = vpack.c.b16 %v2219, %v2218
      %v2254 = vpack.c.b16 %v2220, %v2220
      %v2255 = vpack.c.b16 %v2222, %v2221
      %v2256 = vpack.c.b16 %v2223, %v2223
      %v2257 = vpack.c.b16 %v2225, %v2224
      %v2258 = vpack.c.b16 %v2226, %v2226
      %v2260 = vshrl.u32 %v2227, 16
      %v2262 = vshll.u32 %v2227, 16
      %v2264 = vrot.slane %v2262, 1
      %v2265 = vor.u32 %v2260, %v2264
      %v2267 = vshll.u32 %v2228, 16
      %v2269 = vrot.slane %v2267, 1
      %v2270 = vsel %vm1358, %v2265, %v2269
      %v2272 = vshrl.u32 %v2229, 16
      %v2274 = vshll.u32 %v2229, 16
      %v2276 = vrot.slane %v2274, 1
      %v2277 = vor.u32 %v2272, %v2276
      %v2279 = vshll.u32 %v2230, 16
      %v2281 = vrot.slane %v2279, 1
      %v2282 = vsel %vm1358, %v2277, %v2281
      %v2284 = vshrl.u32 %v2231, 16
      %v2286 = vshll.u32 %v2231, 16
      %v2288 = vrot.slane %v2286, 1
      %v2289 = vor.u32 %v2284, %v2288
      %v2291 = vshll.u32 %v2232, 16
      %v2293 = vrot.slane %v2291, 1
      %v2294 = vsel %vm1358, %v2289, %v2293
      %v2296 = vshrl.u32 %v2233, 16
      %v2298 = vshll.u32 %v2233, 16
      %v2300 = vrot.slane %v2298, 1
      %v2301 = vor.u32 %v2296, %v2300
      %v2303 = vshll.u32 %v2234, 16
      %v2305 = vrot.slane %v2303, 1
      %v2306 = vsel %vm1358, %v2301, %v2305
      %v2308 = vshrl.u32 %v2235, 16
      %v2310 = vshll.u32 %v2235, 16
      %v2312 = vrot.slane %v2310, 1
      %v2313 = vor.u32 %v2308, %v2312
      %v2315 = vshll.u32 %v2236, 16
      %v2317 = vrot.slane %v2315, 1
      %v2318 = vsel %vm1358, %v2313, %v2317
      %v2320 = vshrl.u32 %v2237, 16
      %v2322 = vshll.u32 %v2237, 16
      %v2324 = vrot.slane %v2322, 1
      %v2325 = vor.u32 %v2320, %v2324
      %v2327 = vshll.u32 %v2238, 16
      %v2329 = vrot.slane %v2327, 1
      %v2330 = vsel %vm1358, %v2325, %v2329
      %v2332 = vshrl.u32 %v2239, 16
      %v2334 = vshll.u32 %v2239, 16
      %v2336 = vrot.slane %v2334, 1
      %v2337 = vor.u32 %v2332, %v2336
      %v2339 = vshll.u32 %v2240, 16
      %v2341 = vrot.slane %v2339, 1
      %v2342 = vsel %vm1358, %v2337, %v2341
      %v2344 = vshrl.u32 %v2241, 16
      %v2346 = vshll.u32 %v2241, 16
      %v2348 = vrot.slane %v2346, 1
      %v2349 = vor.u32 %v2344, %v2348
      %v2351 = vshll.u32 %v2242, 16
      %v2353 = vrot.slane %v2351, 1
      %v2354 = vsel %vm1358, %v2349, %v2353
      %v2356 = vshrl.u32 %v2243, 16
      %v2358 = vshll.u32 %v2243, 16
      %v2360 = vrot.slane %v2358, 1
      %v2361 = vor.u32 %v2356, %v2360
      %v2363 = vshll.u32 %v2244, 16
      %v2365 = vrot.slane %v2363, 1
      %v2366 = vsel %vm1358, %v2361, %v2365
      %v2368 = vshrl.u32 %v2245, 16
      %v2370 = vshll.u32 %v2245, 16
      %v2372 = vrot.slane %v2370, 1
      %v2373 = vor.u32 %v2368, %v2372
      %v2375 = vshll.u32 %v2246, 16
      %v2377 = vrot.slane %v2375, 1
      %v2378 = vsel %vm1358, %v2373, %v2377
      %v2380 = vshrl.u32 %v2247, 16
      %v2382 = vshll.u32 %v2247, 16
      %v2384 = vrot.slane %v2382, 1
      %v2385 = vor.u32 %v2380, %v2384
      %v2387 = vshll.u32 %v2248, 16
      %v2389 = vrot.slane %v2387, 1
      %v2390 = vsel %vm1358, %v2385, %v2389
      %v2392 = vshrl.u32 %v2249, 16
      %v2394 = vshll.u32 %v2249, 16
      %v2396 = vrot.slane %v2394, 1
      %v2397 = vor.u32 %v2392, %v2396
      %v2399 = vshll.u32 %v2250, 16
      %v2401 = vrot.slane %v2399, 1
      %v2402 = vsel %vm1358, %v2397, %v2401
      %v2404 = vshrl.u32 %v2251, 16
      %v2406 = vshll.u32 %v2251, 16
      %v2408 = vrot.slane %v2406, 1
      %v2409 = vor.u32 %v2404, %v2408
      %v2411 = vshll.u32 %v2252, 16
      %v2413 = vrot.slane %v2411, 1
      %v2414 = vsel %vm1358, %v2409, %v2413
      %v2416 = vshrl.u32 %v2253, 16
      %v2418 = vshll.u32 %v2253, 16
      %v2420 = vrot.slane %v2418, 1
      %v2421 = vor.u32 %v2416, %v2420
      %v2423 = vshll.u32 %v2254, 16
      %v2425 = vrot.slane %v2423, 1
      %v2426 = vsel %vm1358, %v2421, %v2425
      %v2428 = vshrl.u32 %v2255, 16
      %v2430 = vshll.u32 %v2255, 16
      %v2432 = vrot.slane %v2430, 1
      %v2433 = vor.u32 %v2428, %v2432
      %v2435 = vshll.u32 %v2256, 16
      %v2437 = vrot.slane %v2435, 1
      %v2438 = vsel %vm1358, %v2433, %v2437
      %v2440 = vshrl.u32 %v2257, 16
      %v2442 = vshll.u32 %v2257, 16
      %v2444 = vrot.slane %v2442, 1
      %v2445 = vor.u32 %v2440, %v2444
      %v2447 = vshll.u32 %v2258, 16
      %v2449 = vrot.slane %v2447, 1
      %v2450 = vsel %vm1358, %v2445, %v2449
      %2451 = vrot.lane.b32.xlu0 %v2270, 32
      %v2452 = vpop.permute.xlu0 %2451
      %2453 = vrot.lane.b32.xlu0 %v2282, 32
      %v2454 = vpop.permute.xlu0 %2453
      %2455 = vrot.lane.b32.xlu0 %v2294, 32
      %v2456 = vpop.permute.xlu0 %2455
      %2457 = vrot.lane.b32.xlu0 %v2306, 32
      %v2458 = vpop.permute.xlu0 %2457
      %2459 = vrot.lane.b32.xlu0 %v2318, 32
      %v2460 = vpop.permute.xlu0 %2459
      %2461 = vrot.lane.b32.xlu0 %v2330, 32
      %v2462 = vpop.permute.xlu0 %2461
      %2463 = vrot.lane.b32.xlu0 %v2342, 32
      %v2464 = vpop.permute.xlu0 %2463
      %2465 = vrot.lane.b32.xlu0 %v2354, 32
      %v2466 = vpop.permute.xlu0 %2465
      %2467 = vrot.lane.b32.xlu0 %v2366, 32
      %v2468 = vpop.permute.xlu0 %2467
      %2469 = vrot.lane.b32.xlu0 %v2378, 32
      %v2470 = vpop.permute.xlu0 %2469
      %2471 = vrot.lane.b32.xlu0 %v2390, 32
      %v2472 = vpop.permute.xlu0 %2471
      %2473 = vrot.lane.b32.xlu0 %v2402, 32
      %v2474 = vpop.permute.xlu0 %2473
      %2475 = vrot.lane.b32.xlu0 %v2414, 32
      %v2476 = vpop.permute.xlu0 %2475
      %2477 = vrot.lane.b32.xlu0 %v2426, 32
      %v2478 = vpop.permute.xlu0 %2477
      %2479 = vrot.lane.b32.xlu0 %v2438, 32
      %v2480 = vpop.permute.xlu0 %2479
      %2481 = vrot.lane.b32.xlu0 %v2450, 32
      %v2482 = vpop.permute.xlu0 %2481
      %vm2499 = vcmask 326912
      %2500 = vst.msk [vmem:[#allocation3] sm:$0xff] %vm2499, %v2452
      %2501 = vst.msk [vmem:[#allocation3 + $0x8] sm:$0xff] %vm2499, %v2454
      %2502 = vst.msk [vmem:[#allocation3 + $0x10] sm:$0xff] %vm2499, %v2456
      %2503 = vst.msk [vmem:[#allocation3 + $0x18] sm:$0xff] %vm2499, %v2458
      %2504 = vst.msk [vmem:[#allocation3 + $0x20] sm:$0xff] %vm2499, %v2460
      %2505 = vst.msk [vmem:[#allocation3 + $0x28] sm:$0xff] %vm2499, %v2462
      %2506 = vst.msk [vmem:[#allocation3 + $0x30] sm:$0xff] %vm2499, %v2464
      %2507 = vst.msk [vmem:[#allocation3 + $0x38] sm:$0xff] %vm2499, %v2466
      %2508 = vst.msk [vmem:[#allocation3 + $0x40] sm:$0xff] %vm2499, %v2468
      %2509 = vst.msk [vmem:[#allocation3 + $0x48] sm:$0xff] %vm2499, %v2470
      %2510 = vst.msk [vmem:[#allocation3 + $0x50] sm:$0xff] %vm2499, %v2472
      %2511 = vst.msk [vmem:[#allocation3 + $0x58] sm:$0xff] %vm2499, %v2474
      %2512 = vst.msk [vmem:[#allocation3 + $0x60] sm:$0xff] %vm2499, %v2476
      %2513 = vst.msk [vmem:[#allocation3 + $0x68] sm:$0xff] %vm2499, %v2478
      %2514 = vst.msk [vmem:[#allocation3 + $0x70] sm:$0xff] %vm2499, %v2480
      %2515 = vst.msk [vmem:[#allocation3 + $0x78] sm:$0xff] %vm2499, %v2482
      %v2516 = vld [vmem:[%s919] sm:$0xe]
      %v2517 = vld [vmem:[%s919 + $0x4] sm:$0xf]
      %v2518 = vld [vmem:[%s919 + $0x8] sm:$0x1]
      %v2519 = vld [vmem:[%s919 + $0xc] sm:$0xe]
      %v2520 = vld [vmem:[%s919 + $0x10] sm:$0xf]
      %v2521 = vld [vmem:[%s919 + $0x14] sm:$0x1]
      %v2522 = vld [vmem:[%s919 + $0x18] sm:$0xe]
      %v2523 = vld [vmem:[%s919 + $0x1c] sm:$0xf]
      %v2524 = vld [vmem:[%s919 + $0x20] sm:$0x1]
      %v2525 = vld [vmem:[%s919 + $0x24] sm:$0xe]
      %v2526 = vld [vmem:[%s919 + $0x28] sm:$0xf]
      %v2527 = vld [vmem:[%s919 + $0x2c] sm:$0x1]
      %v2528 = vld [vmem:[%s919 + $0x30] sm:$0xe]
      %v2529 = vld [vmem:[%s919 + $0x34] sm:$0xf]
      %v2530 = vld [vmem:[%s919 + $0x38] sm:$0x1]
      %v2531 = vld [vmem:[%s919 + $0x3c] sm:$0xe]
      %v2532 = vld [vmem:[%s919 + $0x40] sm:$0xf]
      %v2533 = vld [vmem:[%s919 + $0x44] sm:$0x1]
      %v2534 = vld [vmem:[%s919 + $0x48] sm:$0xe]
      %v2535 = vld [vmem:[%s919 + $0x4c] sm:$0xf]
      %v2536 = vld [vmem:[%s919 + $0x50] sm:$0x1]
      %v2537 = vld [vmem:[%s919 + $0x54] sm:$0xe]
      %v2538 = vld [vmem:[%s919 + $0x58] sm:$0xf]
      %v2539 = vld [vmem:[%s919 + $0x5c] sm:$0x1]
      %v2540 = vld [vmem:[%s919 + $0x60] sm:$0xe]
      %v2541 = vld [vmem:[%s919 + $0x64] sm:$0xf]
      %v2542 = vld [vmem:[%s919 + $0x68] sm:$0x1]
      %v2543 = vld [vmem:[%s919 + $0x6c] sm:$0xe]
      %v2544 = vld [vmem:[%s919 + $0x70] sm:$0xf]
      %v2545 = vld [vmem:[%s919 + $0x74] sm:$0x1]
      %v2546 = vld [vmem:[%s919 + $0x78] sm:$0xe]
      %v2547 = vld [vmem:[%s919 + $0x7c] sm:$0xf]
      %v2548 = vld [vmem:[%s919 + $0x80] sm:$0x1]
      %v2549 = vld [vmem:[%s919 + $0x84] sm:$0xe]
      %v2550 = vld [vmem:[%s919 + $0x88] sm:$0xf]
      %v2551 = vld [vmem:[%s919 + $0x8c] sm:$0x1]
      %v2552 = vld [vmem:[%s919 + $0x90] sm:$0xe]
      %v2553 = vld [vmem:[%s919 + $0x94] sm:$0xf]
      %v2554 = vld [vmem:[%s919 + $0x98] sm:$0x1]
      %v2555 = vld [vmem:[%s919 + $0x9c] sm:$0xe]
      %v2556 = vld [vmem:[%s919 + $0xa0] sm:$0xf]
      %v2557 = vld [vmem:[%s919 + $0xa4] sm:$0x1]
      %v2558 = vld [vmem:[%s919 + $0xa8] sm:$0xe]
      %v2559 = vld [vmem:[%s919 + $0xac] sm:$0xf]
      %v2560 = vld [vmem:[%s919 + $0xb0] sm:$0x1]
      %v2561 = vld [vmem:[%s919 + $0xb4] sm:$0xe]
      %v2562 = vld [vmem:[%s919 + $0xb8] sm:$0xf]
      %v2563 = vld [vmem:[%s919 + $0xbc] sm:$0x1]
      %v2612 = vunpack.c.l.b16 %v2516
      %v2613 = vunpack.c.l.b16 %v2517
      %v2614 = vunpack.c.l.b16 %v2518
      %v2615 = vunpack.c.l.b16 %v2519
      %v2616 = vunpack.c.l.b16 %v2520
      %v2617 = vunpack.c.l.b16 %v2521
      %v2618 = vunpack.c.l.b16 %v2522
      %v2619 = vunpack.c.l.b16 %v2523
      %v2620 = vunpack.c.l.b16 %v2524
      %v2621 = vunpack.c.l.b16 %v2525
      %v2622 = vunpack.c.l.b16 %v2526
      %v2623 = vunpack.c.l.b16 %v2527
      %v2624 = vunpack.c.l.b16 %v2528
      %v2625 = vunpack.c.l.b16 %v2529
      %v2626 = vunpack.c.l.b16 %v2530
      %v2627 = vunpack.c.l.b16 %v2531
      %v2628 = vunpack.c.l.b16 %v2532
      %v2629 = vunpack.c.l.b16 %v2533
      %v2630 = vunpack.c.l.b16 %v2534
      %v2631 = vunpack.c.l.b16 %v2535
      %v2632 = vunpack.c.l.b16 %v2536
      %v2633 = vunpack.c.l.b16 %v2537
      %v2634 = vunpack.c.l.b16 %v2538
      %v2635 = vunpack.c.l.b16 %v2539
      %v2636 = vunpack.c.l.b16 %v2540
      %v2637 = vunpack.c.l.b16 %v2541
      %v2638 = vunpack.c.l.b16 %v2542
      %v2639 = vunpack.c.l.b16 %v2543
      %v2640 = vunpack.c.l.b16 %v2544
      %v2641 = vunpack.c.l.b16 %v2545
      %v2642 = vunpack.c.l.b16 %v2546
      %v2643 = vunpack.c.l.b16 %v2547
      %v2644 = vunpack.c.l.b16 %v2548
      %v2645 = vunpack.c.l.b16 %v2549
      %v2646 = vunpack.c.l.b16 %v2550
      %v2647 = vunpack.c.l.b16 %v2551
      %v2648 = vunpack.c.l.b16 %v2552
      %v2649 = vunpack.c.l.b16 %v2553
      %v2650 = vunpack.c.l.b16 %v2554
      %v2651 = vunpack.c.l.b16 %v2555
      %v2652 = vunpack.c.l.b16 %v2556
      %v2653 = vunpack.c.l.b16 %v2557
      %v2654 = vunpack.c.l.b16 %v2558
      %v2655 = vunpack.c.l.b16 %v2559
      %v2656 = vunpack.c.l.b16 %v2560
      %v2657 = vunpack.c.l.b16 %v2561
      %v2658 = vunpack.c.l.b16 %v2562
      %v2659 = vunpack.c.l.b16 %v2563
      %v2660 = vpack.c.b16 %v2613, %v2612
      %v2661 = vpack.c.b16 %v2614, %v2614
      %v2662 = vpack.c.b16 %v2616, %v2615
      %v2663 = vpack.c.b16 %v2617, %v2617
      %v2664 = vpack.c.b16 %v2619, %v2618
      %v2665 = vpack.c.b16 %v2620, %v2620
      %v2666 = vpack.c.b16 %v2622, %v2621
      %v2667 = vpack.c.b16 %v2623, %v2623
      %v2668 = vpack.c.b16 %v2625, %v2624
      %v2669 = vpack.c.b16 %v2626, %v2626
      %v2670 = vpack.c.b16 %v2628, %v2627
      %v2671 = vpack.c.b16 %v2629, %v2629
      %v2672 = vpack.c.b16 %v2631, %v2630
      %v2673 = vpack.c.b16 %v2632, %v2632
      %v2674 = vpack.c.b16 %v2634, %v2633
      %v2675 = vpack.c.b16 %v2635, %v2635
      %v2676 = vpack.c.b16 %v2637, %v2636
      %v2677 = vpack.c.b16 %v2638, %v2638
      %v2678 = vpack.c.b16 %v2640, %v2639
      %v2679 = vpack.c.b16 %v2641, %v2641
      %v2680 = vpack.c.b16 %v2643, %v2642
      %v2681 = vpack.c.b16 %v2644, %v2644
      %v2682 = vpack.c.b16 %v2646, %v2645
      %v2683 = vpack.c.b16 %v2647, %v2647
      %v2684 = vpack.c.b16 %v2649, %v2648
      %v2685 = vpack.c.b16 %v2650, %v2650
      %v2686 = vpack.c.b16 %v2652, %v2651
      %v2687 = vpack.c.b16 %v2653, %v2653
      %v2688 = vpack.c.b16 %v2655, %v2654
      %v2689 = vpack.c.b16 %v2656, %v2656
      %v2690 = vpack.c.b16 %v2658, %v2657
      %v2691 = vpack.c.b16 %v2659, %v2659
      %v2692 = vrot.slane %v2660, 1
      %v2693 = vrot.slane %v2661, 1
      %v2694 = vsel %vm1792, %v2692, %v2693
      %v2695 = vrot.slane %v2662, 1
      %v2696 = vrot.slane %v2663, 1
      %v2697 = vsel %vm1792, %v2695, %v2696
      %v2698 = vrot.slane %v2664, 1
      %v2699 = vrot.slane %v2665, 1
      %v2700 = vsel %vm1792, %v2698, %v2699
      %v2701 = vrot.slane %v2666, 1
      %v2702 = vrot.slane %v2667, 1
      %v2703 = vsel %vm1792, %v2701, %v2702
      %v2704 = vrot.slane %v2668, 1
      %v2705 = vrot.slane %v2669, 1
      %v2706 = vsel %vm1792, %v2704, %v2705
      %v2707 = vrot.slane %v2670, 1
      %v2708 = vrot.slane %v2671, 1
      %v2709 = vsel %vm1792, %v2707, %v2708
      %v2710 = vrot.slane %v2672, 1
      %v2711 = vrot.slane %v2673, 1
      %v2712 = vsel %vm1792, %v2710, %v2711
      %v2713 = vrot.slane %v2674, 1
      %v2714 = vrot.slane %v2675, 1
      %v2715 = vsel %vm1792, %v2713, %v2714
      %v2716 = vrot.slane %v2676, 1
      %v2717 = vrot.slane %v2677, 1
      %v2718 = vsel %vm1792, %v2716, %v2717
      %v2719 = vrot.slane %v2678, 1
      %v2720 = vrot.slane %v2679, 1
      %v2721 = vsel %vm1792, %v2719, %v2720
      %v2722 = vrot.slane %v2680, 1
      %v2723 = vrot.slane %v2681, 1
      %v2724 = vsel %vm1792, %v2722, %v2723
      %v2725 = vrot.slane %v2682, 1
      %v2726 = vrot.slane %v2683, 1
      %v2727 = vsel %vm1792, %v2725, %v2726
      %v2728 = vrot.slane %v2684, 1
      %v2729 = vrot.slane %v2685, 1
      %v2730 = vsel %vm1792, %v2728, %v2729
      %v2731 = vrot.slane %v2686, 1
      %v2732 = vrot.slane %v2687, 1
      %v2733 = vsel %vm1792, %v2731, %v2732
      %v2734 = vrot.slane %v2688, 1
      %v2735 = vrot.slane %v2689, 1
      %v2736 = vsel %vm1792, %v2734, %v2735
      %v2737 = vrot.slane %v2690, 1
      %v2738 = vrot.slane %v2691, 1
      %v2739 = vsel %vm1792, %v2737, %v2738
      %2740 = vrot.lane.b32.xlu0 %v2694, 40
      %v2741 = vpop.permute.xlu0 %2740
      %2742 = vrot.lane.b32.xlu0 %v2697, 40
      %v2743 = vpop.permute.xlu0 %2742
      %2744 = vrot.lane.b32.xlu0 %v2700, 40
      %v2745 = vpop.permute.xlu0 %2744
      %2746 = vrot.lane.b32.xlu0 %v2703, 40
      %v2747 = vpop.permute.xlu0 %2746
      %2748 = vrot.lane.b32.xlu0 %v2706, 40
      %v2749 = vpop.permute.xlu0 %2748
      %2750 = vrot.lane.b32.xlu0 %v2709, 40
      %v2751 = vpop.permute.xlu0 %2750
      %2752 = vrot.lane.b32.xlu0 %v2712, 40
      %v2753 = vpop.permute.xlu0 %2752
      %2754 = vrot.lane.b32.xlu0 %v2715, 40
      %v2755 = vpop.permute.xlu0 %2754
      %2756 = vrot.lane.b32.xlu0 %v2718, 40
      %v2757 = vpop.permute.xlu0 %2756
      %2758 = vrot.lane.b32.xlu0 %v2721, 40
      %v2759 = vpop.permute.xlu0 %2758
      %2760 = vrot.lane.b32.xlu0 %v2724, 40
      %v2761 = vpop.permute.xlu0 %2760
      %2762 = vrot.lane.b32.xlu0 %v2727, 40
      %v2763 = vpop.permute.xlu0 %2762
      %2764 = vrot.lane.b32.xlu0 %v2730, 40
      %v2765 = vpop.permute.xlu0 %2764
      %2766 = vrot.lane.b32.xlu0 %v2733, 40
      %v2767 = vpop.permute.xlu0 %2766
      %2768 = vrot.lane.b32.xlu0 %v2736, 40
      %v2769 = vpop.permute.xlu0 %2768
      %2770 = vrot.lane.b32.xlu0 %v2739, 40
      %v2771 = vpop.permute.xlu0 %2770
      %vm2788 = vcmask 392512
      %2789 = vst.msk [vmem:[#allocation3] sm:$0xff] %vm2788, %v2741
      %2790 = vst.msk [vmem:[#allocation3 + $0x8] sm:$0xff] %vm2788, %v2743
      %2791 = vst.msk [vmem:[#allocation3 + $0x10] sm:$0xff] %vm2788, %v2745
      %2792 = vst.msk [vmem:[#allocation3 + $0x18] sm:$0xff] %vm2788, %v2747
      %2793 = vst.msk [vmem:[#allocation3 + $0x20] sm:$0xff] %vm2788, %v2749
      %2794 = vst.msk [vmem:[#allocation3 + $0x28] sm:$0xff] %vm2788, %v2751
      %2795 = vst.msk [vmem:[#allocation3 + $0x30] sm:$0xff] %vm2788, %v2753
      %2796 = vst.msk [vmem:[#allocation3 + $0x38] sm:$0xff] %vm2788, %v2755
      %2797 = vst.msk [vmem:[#allocation3 + $0x40] sm:$0xff] %vm2788, %v2757
      %2798 = vst.msk [vmem:[#allocation3 + $0x48] sm:$0xff] %vm2788, %v2759
      %2799 = vst.msk [vmem:[#allocation3 + $0x50] sm:$0xff] %vm2788, %v2761
      %2800 = vst.msk [vmem:[#allocation3 + $0x58] sm:$0xff] %vm2788, %v2763
      %2801 = vst.msk [vmem:[#allocation3 + $0x60] sm:$0xff] %vm2788, %v2765
      %2802 = vst.msk [vmem:[#allocation3 + $0x68] sm:$0xff] %vm2788, %v2767
      %2803 = vst.msk [vmem:[#allocation3 + $0x70] sm:$0xff] %vm2788, %v2769
      %2804 = vst.msk [vmem:[#allocation3 + $0x78] sm:$0xff] %vm2788, %v2771
      %s2805 = scalar_lea.vmem [#allocation2], 24
      %v2806 = vld [vmem:[%s2805] sm:$0xf]
      %v2807 = vld [vmem:[%s2805 + $0x4] sm:$0xf]
      %v2808 = vld [vmem:[%s2805 + $0xc] sm:$0xf]
      %v2809 = vld [vmem:[%s2805 + $0x10] sm:$0xf]
      %v2810 = vld [vmem:[%s2805 + $0x18] sm:$0xf]
      %v2811 = vld [vmem:[%s2805 + $0x1c] sm:$0xf]
      %v2812 = vld [vmem:[%s2805 + $0x24] sm:$0xf]
      %v2813 = vld [vmem:[%s2805 + $0x28] sm:$0xf]
      %v2814 = vld [vmem:[%s2805 + $0x30] sm:$0xf]
      %v2815 = vld [vmem:[%s2805 + $0x34] sm:$0xf]
      %v2816 = vld [vmem:[%s2805 + $0x3c] sm:$0xf]
      %v2817 = vld [vmem:[%s2805 + $0x40] sm:$0xf]
      %v2818 = vld [vmem:[%s2805 + $0x48] sm:$0xf]
      %v2819 = vld [vmem:[%s2805 + $0x4c] sm:$0xf]
      %v2820 = vld [vmem:[%s2805 + $0x54] sm:$0xf]
      %v2821 = vld [vmem:[%s2805 + $0x58] sm:$0xf]
      %v2822 = vld [vmem:[%s2805 + $0x60] sm:$0xf]
      %v2823 = vld [vmem:[%s2805 + $0x64] sm:$0xf]
      %v2824 = vld [vmem:[%s2805 + $0x6c] sm:$0xf]
      %v2825 = vld [vmem:[%s2805 + $0x70] sm:$0xf]
      %v2826 = vld [vmem:[%s2805 + $0x78] sm:$0xf]
      %v2827 = vld [vmem:[%s2805 + $0x7c] sm:$0xf]
      %v2828 = vld [vmem:[%s2805 + $0x84] sm:$0xf]
      %v2829 = vld [vmem:[%s2805 + $0x88] sm:$0xf]
      %v2830 = vld [vmem:[%s2805 + $0x90] sm:$0xf]
      %v2831 = vld [vmem:[%s2805 + $0x94] sm:$0xf]
      %v2832 = vld [vmem:[%s2805 + $0x9c] sm:$0xf]
      %v2833 = vld [vmem:[%s2805 + $0xa0] sm:$0xf]
      %v2834 = vld [vmem:[%s2805 + $0xa8] sm:$0xf]
      %v2835 = vld [vmem:[%s2805 + $0xac] sm:$0xf]
      %v2836 = vld [vmem:[%s2805 + $0xb4] sm:$0xf]
      %v2837 = vld [vmem:[%s2805 + $0xb8] sm:$0xf]
      %v2870 = vunpack.c.l.b16 %v2806
      %v2871 = vunpack.c.l.b16 %v2807
      %v2872 = vunpack.c.l.b16 %v2808
      %v2873 = vunpack.c.l.b16 %v2809
      %v2874 = vunpack.c.l.b16 %v2810
      %v2875 = vunpack.c.l.b16 %v2811
      %v2876 = vunpack.c.l.b16 %v2812
      %v2877 = vunpack.c.l.b16 %v2813
      %v2878 = vunpack.c.l.b16 %v2814
      %v2879 = vunpack.c.l.b16 %v2815
      %v2880 = vunpack.c.l.b16 %v2816
      %v2881 = vunpack.c.l.b16 %v2817
      %v2882 = vunpack.c.l.b16 %v2818
      %v2883 = vunpack.c.l.b16 %v2819
      %v2884 = vunpack.c.l.b16 %v2820
      %v2885 = vunpack.c.l.b16 %v2821
      %v2886 = vunpack.c.l.b16 %v2822
      %v2887 = vunpack.c.l.b16 %v2823
      %v2888 = vunpack.c.l.b16 %v2824
      %v2889 = vunpack.c.l.b16 %v2825
      %v2890 = vunpack.c.l.b16 %v2826
      %v2891 = vunpack.c.l.b16 %v2827
      %v2892 = vunpack.c.l.b16 %v2828
      %v2893 = vunpack.c.l.b16 %v2829
      %v2894 = vunpack.c.l.b16 %v2830
      %v2895 = vunpack.c.l.b16 %v2831
      %v2896 = vunpack.c.l.b16 %v2832
      %v2897 = vunpack.c.l.b16 %v2833
      %v2898 = vunpack.c.l.b16 %v2834
      %v2899 = vunpack.c.l.b16 %v2835
      %v2900 = vunpack.c.l.b16 %v2836
      %v2901 = vunpack.c.l.b16 %v2837
      %v2902 = vpack.c.b16 %v2871, %v2870
      %v2903 = vpack.c.b16 %v2873, %v2872
      %v2904 = vpack.c.b16 %v2875, %v2874
      %v2905 = vpack.c.b16 %v2877, %v2876
      %v2906 = vpack.c.b16 %v2879, %v2878
      %v2907 = vpack.c.b16 %v2881, %v2880
      %v2908 = vpack.c.b16 %v2883, %v2882
      %v2909 = vpack.c.b16 %v2885, %v2884
      %v2910 = vpack.c.b16 %v2887, %v2886
      %v2911 = vpack.c.b16 %v2889, %v2888
      %v2912 = vpack.c.b16 %v2891, %v2890
      %v2913 = vpack.c.b16 %v2893, %v2892
      %v2914 = vpack.c.b16 %v2895, %v2894
      %v2915 = vpack.c.b16 %v2897, %v2896
      %v2916 = vpack.c.b16 %v2899, %v2898
      %v2917 = vpack.c.b16 %v2901, %v2900
      %2918 = vrot.lane.b32.xlu0 %v2902, 48
      %v2919 = vpop.permute.xlu0 %2918
      %2920 = vrot.lane.b32.xlu0 %v2903, 48
      %v2921 = vpop.permute.xlu0 %2920
      %2922 = vrot.lane.b32.xlu0 %v2904, 48
      %v2923 = vpop.permute.xlu0 %2922
      %2924 = vrot.lane.b32.xlu0 %v2905, 48
      %v2925 = vpop.permute.xlu0 %2924
      %2926 = vrot.lane.b32.xlu0 %v2906, 48
      %v2927 = vpop.permute.xlu0 %2926
      %2928 = vrot.lane.b32.xlu0 %v2907, 48
      %v2929 = vpop.permute.xlu0 %2928
      %2930 = vrot.lane.b32.xlu0 %v2908, 48
      %v2931 = vpop.permute.xlu0 %2930
      %2932 = vrot.lane.b32.xlu0 %v2909, 48
      %v2933 = vpop.permute.xlu0 %2932
      %2934 = vrot.lane.b32.xlu0 %v2910, 48
      %v2935 = vpop.permute.xlu0 %2934
      %2936 = vrot.lane.b32.xlu0 %v2911, 48
      %v2937 = vpop.permute.xlu0 %2936
      %2938 = vrot.lane.b32.xlu0 %v2912, 48
      %v2939 = vpop.permute.xlu0 %2938
      %2940 = vrot.lane.b32.xlu0 %v2913, 48
      %v2941 = vpop.permute.xlu0 %2940
      %2942 = vrot.lane.b32.xlu0 %v2914, 48
      %v2943 = vpop.permute.xlu0 %2942
      %2944 = vrot.lane.b32.xlu0 %v2915, 48
      %v2945 = vpop.permute.xlu0 %2944
      %2946 = vrot.lane.b32.xlu0 %v2916, 48
      %v2947 = vpop.permute.xlu0 %2946
      %2948 = vrot.lane.b32.xlu0 %v2917, 48
      %v2949 = vpop.permute.xlu0 %2948
      %vm2966 = vcmask 458112
      %2967 = vst.msk [vmem:[#allocation3] sm:$0xff] %vm2966, %v2919
      %2968 = vst.msk [vmem:[#allocation3 + $0x8] sm:$0xff] %vm2966, %v2921
      %2969 = vst.msk [vmem:[#allocation3 + $0x10] sm:$0xff] %vm2966, %v2923
      %2970 = vst.msk [vmem:[#allocation3 + $0x18] sm:$0xff] %vm2966, %v2925
      %2971 = vst.msk [vmem:[#allocation3 + $0x20] sm:$0xff] %vm2966, %v2927
      %2972 = vst.msk [vmem:[#allocation3 + $0x28] sm:$0xff] %vm2966, %v2929
      %2973 = vst.msk [vmem:[#allocation3 + $0x30] sm:$0xff] %vm2966, %v2931
      %2974 = vst.msk [vmem:[#allocation3 + $0x38] sm:$0xff] %vm2966, %v2933
      %2975 = vst.msk [vmem:[#allocation3 + $0x40] sm:$0xff] %vm2966, %v2935
      %2976 = vst.msk [vmem:[#allocation3 + $0x48] sm:$0xff] %vm2966, %v2937
      %2977 = vst.msk [vmem:[#allocation3 + $0x50] sm:$0xff] %vm2966, %v2939
      %2978 = vst.msk [vmem:[#allocation3 + $0x58] sm:$0xff] %vm2966, %v2941
      %2979 = vst.msk [vmem:[#allocation3 + $0x60] sm:$0xff] %vm2966, %v2943
      %2980 = vst.msk [vmem:[#allocation3 + $0x68] sm:$0xff] %vm2966, %v2945
      %2981 = vst.msk [vmem:[#allocation3 + $0x70] sm:$0xff] %vm2966, %v2947
      %2982 = vst.msk [vmem:[#allocation3 + $0x78] sm:$0xff] %vm2966, %v2949
      %v2983 = vld [vmem:[%s2805] sm:$0xf]
      %v2984 = vld [vmem:[%s2805 + $0x4] sm:$0xf]
      %v2985 = vld [vmem:[%s2805 + $0x8] sm:$0x1]
      %v2986 = vld [vmem:[%s2805 + $0xc] sm:$0xf]
      %v2987 = vld [vmem:[%s2805 + $0x10] sm:$0xf]
      %v2988 = vld [vmem:[%s2805 + $0x14] sm:$0x1]
      %v2989 = vld [vmem:[%s2805 + $0x18] sm:$0xf]
      %v2990 = vld [vmem:[%s2805 + $0x1c] sm:$0xf]
      %v2991 = vld [vmem:[%s2805 + $0x20] sm:$0x1]
      %v2992 = vld [vmem:[%s2805 + $0x24] sm:$0xf]
      %v2993 = vld [vmem:[%s2805 + $0x28] sm:$0xf]
      %v2994 = vld [vmem:[%s2805 + $0x2c] sm:$0x1]
      %v2995 = vld [vmem:[%s2805 + $0x30] sm:$0xf]
      %v2996 = vld [vmem:[%s2805 + $0x34] sm:$0xf]
      %v2997 = vld [vmem:[%s2805 + $0x38] sm:$0x1]
      %v2998 = vld [vmem:[%s2805 + $0x3c] sm:$0xf]
      %v2999 = vld [vmem:[%s2805 + $0x40] sm:$0xf]
      %v3000 = vld [vmem:[%s2805 + $0x44] sm:$0x1]
      %v3001 = vld [vmem:[%s2805 + $0x48] sm:$0xf]
      %v3002 = vld [vmem:[%s2805 + $0x4c] sm:$0xf]
      %v3003 = vld [vmem:[%s2805 + $0x50] sm:$0x1]
      %v3004 = vld [vmem:[%s2805 + $0x54] sm:$0xf]
      %v3005 = vld [vmem:[%s2805 + $0x58] sm:$0xf]
      %v3006 = vld [vmem:[%s2805 + $0x5c] sm:$0x1]
      %v3007 = vld [vmem:[%s2805 + $0x60] sm:$0xf]
      %v3008 = vld [vmem:[%s2805 + $0x64] sm:$0xf]
      %v3009 = vld [vmem:[%s2805 + $0x68] sm:$0x1]
      %v3010 = vld [vmem:[%s2805 + $0x6c] sm:$0xf]
      %v3011 = vld [vmem:[%s2805 + $0x70] sm:$0xf]
      %v3012 = vld [vmem:[%s2805 + $0x74] sm:$0x1]
      %v3013 = vld [vmem:[%s2805 + $0x78] sm:$0xf]
      %v3014 = vld [vmem:[%s2805 + $0x7c] sm:$0xf]
      %v3015 = vld [vmem:[%s2805 + $0x80] sm:$0x1]
      %v3016 = vld [vmem:[%s2805 + $0x84] sm:$0xf]
      %v3017 = vld [vmem:[%s2805 + $0x88] sm:$0xf]
      %v3018 = vld [vmem:[%s2805 + $0x8c] sm:$0x1]
      %v3019 = vld [vmem:[%s2805 + $0x90] sm:$0xf]
      %v3020 = vld [vmem:[%s2805 + $0x94] sm:$0xf]
      %v3021 = vld [vmem:[%s2805 + $0x98] sm:$0x1]
      %v3022 = vld [vmem:[%s2805 + $0x9c] sm:$0xf]
      %v3023 = vld [vmem:[%s2805 + $0xa0] sm:$0xf]
      %v3024 = vld [vmem:[%s2805 + $0xa4] sm:$0x1]
      %v3025 = vld [vmem:[%s2805 + $0xa8] sm:$0xf]
      %v3026 = vld [vmem:[%s2805 + $0xac] sm:$0xf]
      %v3027 = vld [vmem:[%s2805 + $0xb0] sm:$0x1]
      %v3028 = vld [vmem:[%s2805 + $0xb4] sm:$0xf]
      %v3029 = vld [vmem:[%s2805 + $0xb8] sm:$0xf]
      %v3030 = vld [vmem:[%s2805 + $0xbc] sm:$0x1]
      %v3079 = vunpack.c.l.b16 %v2983
      %v3080 = vunpack.c.l.b16 %v2984
      %v3081 = vunpack.c.l.b16 %v2985
      %v3082 = vunpack.c.l.b16 %v2986
      %v3083 = vunpack.c.l.b16 %v2987
      %v3084 = vunpack.c.l.b16 %v2988
      %v3085 = vunpack.c.l.b16 %v2989
      %v3086 = vunpack.c.l.b16 %v2990
      %v3087 = vunpack.c.l.b16 %v2991
      %v3088 = vunpack.c.l.b16 %v2992
      %v3089 = vunpack.c.l.b16 %v2993
      %v3090 = vunpack.c.l.b16 %v2994
      %v3091 = vunpack.c.l.b16 %v2995
      %v3092 = vunpack.c.l.b16 %v2996
      %v3093 = vunpack.c.l.b16 %v2997
      %v3094 = vunpack.c.l.b16 %v2998
      %v3095 = vunpack.c.l.b16 %v2999
      %v3096 = vunpack.c.l.b16 %v3000
      %v3097 = vunpack.c.l.b16 %v3001
      %v3098 = vunpack.c.l.b16 %v3002
      %v3099 = vunpack.c.l.b16 %v3003
      %v3100 = vunpack.c.l.b16 %v3004
      %v3101 = vunpack.c.l.b16 %v3005
      %v3102 = vunpack.c.l.b16 %v3006
      %v3103 = vunpack.c.l.b16 %v3007
      %v3104 = vunpack.c.l.b16 %v3008
      %v3105 = vunpack.c.l.b16 %v3009
      %v3106 = vunpack.c.l.b16 %v3010
      %v3107 = vunpack.c.l.b16 %v3011
      %v3108 = vunpack.c.l.b16 %v3012
      %v3109 = vunpack.c.l.b16 %v3013
      %v3110 = vunpack.c.l.b16 %v3014
      %v3111 = vunpack.c.l.b16 %v3015
      %v3112 = vunpack.c.l.b16 %v3016
      %v3113 = vunpack.c.l.b16 %v3017
      %v3114 = vunpack.c.l.b16 %v3018
      %v3115 = vunpack.c.l.b16 %v3019
      %v3116 = vunpack.c.l.b16 %v3020
      %v3117 = vunpack.c.l.b16 %v3021
      %v3118 = vunpack.c.l.b16 %v3022
      %v3119 = vunpack.c.l.b16 %v3023
      %v3120 = vunpack.c.l.b16 %v3024
      %v3121 = vunpack.c.l.b16 %v3025
      %v3122 = vunpack.c.l.b16 %v3026
      %v3123 = vunpack.c.l.b16 %v3027
      %v3124 = vunpack.c.l.b16 %v3028
      %v3125 = vunpack.c.l.b16 %v3029
      %v3126 = vunpack.c.l.b16 %v3030
      %v3127 = vpack.c.b16 %v3080, %v3079
      %v3128 = vpack.c.b16 %v3081, %v3081
      %v3129 = vpack.c.b16 %v3083, %v3082
      %v3130 = vpack.c.b16 %v3084, %v3084
      %v3131 = vpack.c.b16 %v3086, %v3085
      %v3132 = vpack.c.b16 %v3087, %v3087
      %v3133 = vpack.c.b16 %v3089, %v3088
      %v3134 = vpack.c.b16 %v3090, %v3090
      %v3135 = vpack.c.b16 %v3092, %v3091
      %v3136 = vpack.c.b16 %v3093, %v3093
      %v3137 = vpack.c.b16 %v3095, %v3094
      %v3138 = vpack.c.b16 %v3096, %v3096
      %v3139 = vpack.c.b16 %v3098, %v3097
      %v3140 = vpack.c.b16 %v3099, %v3099
      %v3141 = vpack.c.b16 %v3101, %v3100
      %v3142 = vpack.c.b16 %v3102, %v3102
      %v3143 = vpack.c.b16 %v3104, %v3103
      %v3144 = vpack.c.b16 %v3105, %v3105
      %v3145 = vpack.c.b16 %v3107, %v3106
      %v3146 = vpack.c.b16 %v3108, %v3108
      %v3147 = vpack.c.b16 %v3110, %v3109
      %v3148 = vpack.c.b16 %v3111, %v3111
      %v3149 = vpack.c.b16 %v3113, %v3112
      %v3150 = vpack.c.b16 %v3114, %v3114
      %v3151 = vpack.c.b16 %v3116, %v3115
      %v3152 = vpack.c.b16 %v3117, %v3117
      %v3153 = vpack.c.b16 %v3119, %v3118
      %v3154 = vpack.c.b16 %v3120, %v3120
      %v3155 = vpack.c.b16 %v3122, %v3121
      %v3156 = vpack.c.b16 %v3123, %v3123
      %v3157 = vpack.c.b16 %v3125, %v3124
      %v3158 = vpack.c.b16 %v3126, %v3126
      %v3160 = vshrl.u32 %v3127, 16
      %v3162 = vshll.u32 %v3127, 16
      %v3164 = vrot.slane %v3162, 1
      %v3165 = vor.u32 %v3160, %v3164
      %v3167 = vshll.u32 %v3128, 16
      %v3169 = vrot.slane %v3167, 1
      %v3170 = vsel %vm1358, %v3165, %v3169
      %v3172 = vshrl.u32 %v3129, 16
      %v3174 = vshll.u32 %v3129, 16
      %v3176 = vrot.slane %v3174, 1
      %v3177 = vor.u32 %v3172, %v3176
      %v3179 = vshll.u32 %v3130, 16
      %v3181 = vrot.slane %v3179, 1
      %v3182 = vsel %vm1358, %v3177, %v3181
      %v3184 = vshrl.u32 %v3131, 16
      %v3186 = vshll.u32 %v3131, 16
      %v3188 = vrot.slane %v3186, 1
      %v3189 = vor.u32 %v3184, %v3188
      %v3191 = vshll.u32 %v3132, 16
      %v3193 = vrot.slane %v3191, 1
      %v3194 = vsel %vm1358, %v3189, %v3193
      %v3196 = vshrl.u32 %v3133, 16
      %v3198 = vshll.u32 %v3133, 16
      %v3200 = vrot.slane %v3198, 1
      %v3201 = vor.u32 %v3196, %v3200
      %v3203 = vshll.u32 %v3134, 16
      %v3205 = vrot.slane %v3203, 1
      %v3206 = vsel %vm1358, %v3201, %v3205
      %v3208 = vshrl.u32 %v3135, 16
      %v3210 = vshll.u32 %v3135, 16
      %v3212 = vrot.slane %v3210, 1
      %v3213 = vor.u32 %v3208, %v3212
      %v3215 = vshll.u32 %v3136, 16
      %v3217 = vrot.slane %v3215, 1
      %v3218 = vsel %vm1358, %v3213, %v3217
      %v3220 = vshrl.u32 %v3137, 16
      %v3222 = vshll.u32 %v3137, 16
      %v3224 = vrot.slane %v3222, 1
      %v3225 = vor.u32 %v3220, %v3224
      %v3227 = vshll.u32 %v3138, 16
      %v3229 = vrot.slane %v3227, 1
      %v3230 = vsel %vm1358, %v3225, %v3229
      %v3232 = vshrl.u32 %v3139, 16
      %v3234 = vshll.u32 %v3139, 16
      %v3236 = vrot.slane %v3234, 1
      %v3237 = vor.u32 %v3232, %v3236
      %v3239 = vshll.u32 %v3140, 16
      %v3241 = vrot.slane %v3239, 1
      %v3242 = vsel %vm1358, %v3237, %v3241
      %v3244 = vshrl.u32 %v3141, 16
      %v3246 = vshll.u32 %v3141, 16
      %v3248 = vrot.slane %v3246, 1
      %v3249 = vor.u32 %v3244, %v3248
      %v3251 = vshll.u32 %v3142, 16
      %v3253 = vrot.slane %v3251, 1
      %v3254 = vsel %vm1358, %v3249, %v3253
      %v3256 = vshrl.u32 %v3143, 16
      %v3258 = vshll.u32 %v3143, 16
      %v3260 = vrot.slane %v3258, 1
      %v3261 = vor.u32 %v3256, %v3260
      %v3263 = vshll.u32 %v3144, 16
      %v3265 = vrot.slane %v3263, 1
      %v3266 = vsel %vm1358, %v3261, %v3265
      %v3268 = vshrl.u32 %v3145, 16
      %v3270 = vshll.u32 %v3145, 16
      %v3272 = vrot.slane %v3270, 1
      %v3273 = vor.u32 %v3268, %v3272
      %v3275 = vshll.u32 %v3146, 16
      %v3277 = vrot.slane %v3275, 1
      %v3278 = vsel %vm1358, %v3273, %v3277
      %v3280 = vshrl.u32 %v3147, 16
      %v3282 = vshll.u32 %v3147, 16
      %v3284 = vrot.slane %v3282, 1
      %v3285 = vor.u32 %v3280, %v3284
      %v3287 = vshll.u32 %v3148, 16
      %v3289 = vrot.slane %v3287, 1
      %v3290 = vsel %vm1358, %v3285, %v3289
      %v3292 = vshrl.u32 %v3149, 16
      %v3294 = vshll.u32 %v3149, 16
      %v3296 = vrot.slane %v3294, 1
      %v3297 = vor.u32 %v3292, %v3296
      %v3299 = vshll.u32 %v3150, 16
      %v3301 = vrot.slane %v3299, 1
      %v3302 = vsel %vm1358, %v3297, %v3301
      %v3304 = vshrl.u32 %v3151, 16
      %v3306 = vshll.u32 %v3151, 16
      %v3308 = vrot.slane %v3306, 1
      %v3309 = vor.u32 %v3304, %v3308
      %v3311 = vshll.u32 %v3152, 16
      %v3313 = vrot.slane %v3311, 1
      %v3314 = vsel %vm1358, %v3309, %v3313
      %v3316 = vshrl.u32 %v3153, 16
      %v3318 = vshll.u32 %v3153, 16
      %v3320 = vrot.slane %v3318, 1
      %v3321 = vor.u32 %v3316, %v3320
      %v3323 = vshll.u32 %v3154, 16
      %v3325 = vrot.slane %v3323, 1
      %v3326 = vsel %vm1358, %v3321, %v3325
      %v3328 = vshrl.u32 %v3155, 16
      %v3330 = vshll.u32 %v3155, 16
      %v3332 = vrot.slane %v3330, 1
      %v3333 = vor.u32 %v3328, %v3332
      %v3335 = vshll.u32 %v3156, 16
      %v3337 = vrot.slane %v3335, 1
      %v3338 = vsel %vm1358, %v3333, %v3337
      %v3340 = vshrl.u32 %v3157, 16
      %v3342 = vshll.u32 %v3157, 16
      %v3344 = vrot.slane %v3342, 1
      %v3345 = vor.u32 %v3340, %v3344
      %v3347 = vshll.u32 %v3158, 16
      %v3349 = vrot.slane %v3347, 1
      %v3350 = vsel %vm1358, %v3345, %v3349
      %3351 = vrot.lane.b32.xlu0 %v3170, 56
      %v3352 = vpop.permute.xlu0 %3351
      %3353 = vrot.lane.b32.xlu0 %v3182, 56
      %v3354 = vpop.permute.xlu0 %3353
      %3355 = vrot.lane.b32.xlu0 %v3194, 56
      %v3356 = vpop.permute.xlu0 %3355
      %3357 = vrot.lane.b32.xlu0 %v3206, 56
      %v3358 = vpop.permute.xlu0 %3357
      %3359 = vrot.lane.b32.xlu0 %v3218, 56
      %v3360 = vpop.permute.xlu0 %3359
      %3361 = vrot.lane.b32.xlu0 %v3230, 56
      %v3362 = vpop.permute.xlu0 %3361
      %3363 = vrot.lane.b32.xlu0 %v3242, 56
      %v3364 = vpop.permute.xlu0 %3363
      %3365 = vrot.lane.b32.xlu0 %v3254, 56
      %v3366 = vpop.permute.xlu0 %3365
      %3367 = vrot.lane.b32.xlu0 %v3266, 56
      %v3368 = vpop.permute.xlu0 %3367
      %3369 = vrot.lane.b32.xlu0 %v3278, 56
      %v3370 = vpop.permute.xlu0 %3369
      %3371 = vrot.lane.b32.xlu0 %v3290, 56
      %v3372 = vpop.permute.xlu0 %3371
      %3373 = vrot.lane.b32.xlu0 %v3302, 56
      %v3374 = vpop.permute.xlu0 %3373
      %3375 = vrot.lane.b32.xlu0 %v3314, 56
      %v3376 = vpop.permute.xlu0 %3375
      %3377 = vrot.lane.b32.xlu0 %v3326, 56
      %v3378 = vpop.permute.xlu0 %3377
      %3379 = vrot.lane.b32.xlu0 %v3338, 56
      %v3380 = vpop.permute.xlu0 %3379
      %3381 = vrot.lane.b32.xlu0 %v3350, 56
      %v3382 = vpop.permute.xlu0 %3381
      %vm3399 = vcmask 523712
      %3400 = vst.msk [vmem:[#allocation3] sm:$0xff] %vm3399, %v3352
      %3401 = vst.msk [vmem:[#allocation3 + $0x8] sm:$0xff] %vm3399, %v3354
      %3402 = vst.msk [vmem:[#allocation3 + $0x10] sm:$0xff] %vm3399, %v3356
      %3403 = vst.msk [vmem:[#allocation3 + $0x18] sm:$0xff] %vm3399, %v3358
      %3404 = vst.msk [vmem:[#allocation3 + $0x20] sm:$0xff] %vm3399, %v3360
      %3405 = vst.msk [vmem:[#allocation3 + $0x28] sm:$0xff] %vm3399, %v3362
      %3406 = vst.msk [vmem:[#allocation3 + $0x30] sm:$0xff] %vm3399, %v3364
      %3407 = vst.msk [vmem:[#allocation3 + $0x38] sm:$0xff] %vm3399, %v3366
      %3408 = vst.msk [vmem:[#allocation3 + $0x40] sm:$0xff] %vm3399, %v3368
      %3409 = vst.msk [vmem:[#allocation3 + $0x48] sm:$0xff] %vm3399, %v3370
      %3410 = vst.msk [vmem:[#allocation3 + $0x50] sm:$0xff] %vm3399, %v3372
      %3411 = vst.msk [vmem:[#allocation3 + $0x58] sm:$0xff] %vm3399, %v3374
      %3412 = vst.msk [vmem:[#allocation3 + $0x60] sm:$0xff] %vm3399, %v3376
      %3413 = vst.msk [vmem:[#allocation3 + $0x68] sm:$0xff] %vm3399, %v3378
      %3414 = vst.msk [vmem:[#allocation3 + $0x70] sm:$0xff] %vm3399, %v3380
      %3415 = vst.msk [vmem:[#allocation3 + $0x78] sm:$0xff] %vm3399, %v3382
      %v3416 = vld [vmem:[%s2805] sm:$0xe]
      %v3417 = vld [vmem:[%s2805 + $0x4] sm:$0xf]
      %v3418 = vld [vmem:[%s2805 + $0x8] sm:$0x1]
      %v3419 = vld [vmem:[%s2805 + $0xc] sm:$0xe]
      %v3420 = vld [vmem:[%s2805 + $0x10] sm:$0xf]
      %v3421 = vld [vmem:[%s2805 + $0x14] sm:$0x1]
      %v3422 = vld [vmem:[%s2805 + $0x18] sm:$0xe]
      %v3423 = vld [vmem:[%s2805 + $0x1c] sm:$0xf]
      %v3424 = vld [vmem:[%s2805 + $0x20] sm:$0x1]
      %v3425 = vld [vmem:[%s2805 + $0x24] sm:$0xe]
      %v3426 = vld [vmem:[%s2805 + $0x28] sm:$0xf]
      %v3427 = vld [vmem:[%s2805 + $0x2c] sm:$0x1]
      %v3428 = vld [vmem:[%s2805 + $0x30] sm:$0xe]
      %v3429 = vld [vmem:[%s2805 + $0x34] sm:$0xf]
      %v3430 = vld [vmem:[%s2805 + $0x38] sm:$0x1]
      %v3431 = vld [vmem:[%s2805 + $0x3c] sm:$0xe]
      %v3432 = vld [vmem:[%s2805 + $0x40] sm:$0xf]
      %v3433 = vld [vmem:[%s2805 + $0x44] sm:$0x1]
      %v3434 = vld [vmem:[%s2805 + $0x48] sm:$0xe]
      %v3435 = vld [vmem:[%s2805 + $0x4c] sm:$0xf]
      %v3436 = vld [vmem:[%s2805 + $0x50] sm:$0x1]
      %v3437 = vld [vmem:[%s2805 + $0x54] sm:$0xe]
      %v3438 = vld [vmem:[%s2805 + $0x58] sm:$0xf]
      %v3439 = vld [vmem:[%s2805 + $0x5c] sm:$0x1]
      %v3440 = vld [vmem:[%s2805 + $0x60] sm:$0xe]
      %v3441 = vld [vmem:[%s2805 + $0x64] sm:$0xf]
      %v3442 = vld [vmem:[%s2805 + $0x68] sm:$0x1]
      %v3443 = vld [vmem:[%s2805 + $0x6c] sm:$0xe]
      %v3444 = vld [vmem:[%s2805 + $0x70] sm:$0xf]
      %v3445 = vld [vmem:[%s2805 + $0x74] sm:$0x1]
      %v3446 = vld [vmem:[%s2805 + $0x78] sm:$0xe]
      %v3447 = vld [vmem:[%s2805 + $0x7c] sm:$0xf]
      %v3448 = vld [vmem:[%s2805 + $0x80] sm:$0x1]
      %v3449 = vld [vmem:[%s2805 + $0x84] sm:$0xe]
      %v3450 = vld [vmem:[%s2805 + $0x88] sm:$0xf]
      %v3451 = vld [vmem:[%s2805 + $0x8c] sm:$0x1]
      %v3452 = vld [vmem:[%s2805 + $0x90] sm:$0xe]
      %v3453 = vld [vmem:[%s2805 + $0x94] sm:$0xf]
      %v3454 = vld [vmem:[%s2805 + $0x98] sm:$0x1]
      %v3455 = vld [vmem:[%s2805 + $0x9c] sm:$0xe]
      %v3456 = vld [vmem:[%s2805 + $0xa0] sm:$0xf]
      %v3457 = vld [vmem:[%s2805 + $0xa4] sm:$0x1]
      %v3458 = vld [vmem:[%s2805 + $0xa8] sm:$0xe]
      %v3459 = vld [vmem:[%s2805 + $0xac] sm:$0xf]
      %v3460 = vld [vmem:[%s2805 + $0xb0] sm:$0x1]
      %v3461 = vld [vmem:[%s2805 + $0xb4] sm:$0xe]
      %v3462 = vld [vmem:[%s2805 + $0xb8] sm:$0xf]
      %v3463 = vld [vmem:[%s2805 + $0xbc] sm:$0x1]
      %v3512 = vunpack.c.l.b16 %v3416
      %v3513 = vunpack.c.l.b16 %v3417
      %v3514 = vunpack.c.l.b16 %v3418
      %v3515 = vunpack.c.l.b16 %v3419
      %v3516 = vunpack.c.l.b16 %v3420
      %v3517 = vunpack.c.l.b16 %v3421
      %v3518 = vunpack.c.l.b16 %v3422
      %v3519 = vunpack.c.l.b16 %v3423
      %v3520 = vunpack.c.l.b16 %v3424
      %v3521 = vunpack.c.l.b16 %v3425
      %v3522 = vunpack.c.l.b16 %v3426
      %v3523 = vunpack.c.l.b16 %v3427
      %v3524 = vunpack.c.l.b16 %v3428
      %v3525 = vunpack.c.l.b16 %v3429
      %v3526 = vunpack.c.l.b16 %v3430
      %v3527 = vunpack.c.l.b16 %v3431
      %v3528 = vunpack.c.l.b16 %v3432
      %v3529 = vunpack.c.l.b16 %v3433
      %v3530 = vunpack.c.l.b16 %v3434
      %v3531 = vunpack.c.l.b16 %v3435
      %v3532 = vunpack.c.l.b16 %v3436
      %v3533 = vunpack.c.l.b16 %v3437
      %v3534 = vunpack.c.l.b16 %v3438
      %v3535 = vunpack.c.l.b16 %v3439
      %v3536 = vunpack.c.l.b16 %v3440
      %v3537 = vunpack.c.l.b16 %v3441
      %v3538 = vunpack.c.l.b16 %v3442
      %v3539 = vunpack.c.l.b16 %v3443
      %v3540 = vunpack.c.l.b16 %v3444
      %v3541 = vunpack.c.l.b16 %v3445
      %v3542 = vunpack.c.l.b16 %v3446
      %v3543 = vunpack.c.l.b16 %v3447
      %v3544 = vunpack.c.l.b16 %v3448
      %v3545 = vunpack.c.l.b16 %v3449
      %v3546 = vunpack.c.l.b16 %v3450
      %v3547 = vunpack.c.l.b16 %v3451
      %v3548 = vunpack.c.l.b16 %v3452
      %v3549 = vunpack.c.l.b16 %v3453
      %v3550 = vunpack.c.l.b16 %v3454
      %v3551 = vunpack.c.l.b16 %v3455
      %v3552 = vunpack.c.l.b16 %v3456
      %v3553 = vunpack.c.l.b16 %v3457
      %v3554 = vunpack.c.l.b16 %v3458
      %v3555 = vunpack.c.l.b16 %v3459
      %v3556 = vunpack.c.l.b16 %v3460
      %v3557 = vunpack.c.l.b16 %v3461
      %v3558 = vunpack.c.l.b16 %v3462
      %v3559 = vunpack.c.l.b16 %v3463
      %v3560 = vpack.c.b16 %v3513, %v3512
      %v3561 = vpack.c.b16 %v3514, %v3514
      %v3562 = vpack.c.b16 %v3516, %v3515
      %v3563 = vpack.c.b16 %v3517, %v3517
      %v3564 = vpack.c.b16 %v3519, %v3518
      %v3565 = vpack.c.b16 %v3520, %v3520
      %v3566 = vpack.c.b16 %v3522, %v3521
      %v3567 = vpack.c.b16 %v3523, %v3523
      %v3568 = vpack.c.b16 %v3525, %v3524
      %v3569 = vpack.c.b16 %v3526, %v3526
      %v3570 = vpack.c.b16 %v3528, %v3527
      %v3571 = vpack.c.b16 %v3529, %v3529
      %v3572 = vpack.c.b16 %v3531, %v3530
      %v3573 = vpack.c.b16 %v3532, %v3532
      %v3574 = vpack.c.b16 %v3534, %v3533
      %v3575 = vpack.c.b16 %v3535, %v3535
      %v3576 = vpack.c.b16 %v3537, %v3536
      %v3577 = vpack.c.b16 %v3538, %v3538
      %v3578 = vpack.c.b16 %v3540, %v3539
      %v3579 = vpack.c.b16 %v3541, %v3541
      %v3580 = vpack.c.b16 %v3543, %v3542
      %v3581 = vpack.c.b16 %v3544, %v3544
      %v3582 = vpack.c.b16 %v3546, %v3545
      %v3583 = vpack.c.b16 %v3547, %v3547
      %v3584 = vpack.c.b16 %v3549, %v3548
      %v3585 = vpack.c.b16 %v3550, %v3550
      %v3586 = vpack.c.b16 %v3552, %v3551
      %v3587 = vpack.c.b16 %v3553, %v3553
      %v3588 = vpack.c.b16 %v3555, %v3554
      %v3589 = vpack.c.b16 %v3556, %v3556
      %v3590 = vpack.c.b16 %v3558, %v3557
      %v3591 = vpack.c.b16 %v3559, %v3559
      %v3592 = vrot.slane %v3560, 1
      %v3593 = vrot.slane %v3561, 1
      %v3594 = vsel %vm1792, %v3592, %v3593
      %v3595 = vrot.slane %v3562, 1
      %v3596 = vrot.slane %v3563, 1
      %v3597 = vsel %vm1792, %v3595, %v3596
      %v3598 = vrot.slane %v3564, 1
      %v3599 = vrot.slane %v3565, 1
      %v3600 = vsel %vm1792, %v3598, %v3599
      %v3601 = vrot.slane %v3566, 1
      %v3602 = vrot.slane %v3567, 1
      %v3603 = vsel %vm1792, %v3601, %v3602
      %v3604 = vrot.slane %v3568, 1
      %v3605 = vrot.slane %v3569, 1
      %v3606 = vsel %vm1792, %v3604, %v3605
      %v3607 = vrot.slane %v3570, 1
      %v3608 = vrot.slane %v3571, 1
      %v3609 = vsel %vm1792, %v3607, %v3608
      %v3610 = vrot.slane %v3572, 1
      %v3611 = vrot.slane %v3573, 1
      %v3612 = vsel %vm1792, %v3610, %v3611
      %v3613 = vrot.slane %v3574, 1
      %v3614 = vrot.slane %v3575, 1
      %v3615 = vsel %vm1792, %v3613, %v3614
      %v3616 = vrot.slane %v3576, 1
      %v3617 = vrot.slane %v3577, 1
      %v3618 = vsel %vm1792, %v3616, %v3617
      %v3619 = vrot.slane %v3578, 1
      %v3620 = vrot.slane %v3579, 1
      %v3621 = vsel %vm1792, %v3619, %v3620
      %v3622 = vrot.slane %v3580, 1
      %v3623 = vrot.slane %v3581, 1
      %v3624 = vsel %vm1792, %v3622, %v3623
      %v3625 = vrot.slane %v3582, 1
      %v3626 = vrot.slane %v3583, 1
      %v3627 = vsel %vm1792, %v3625, %v3626
      %v3628 = vrot.slane %v3584, 1
      %v3629 = vrot.slane %v3585, 1
      %v3630 = vsel %vm1792, %v3628, %v3629
      %v3631 = vrot.slane %v3586, 1
      %v3632 = vrot.slane %v3587, 1
      %v3633 = vsel %vm1792, %v3631, %v3632
      %v3634 = vrot.slane %v3588, 1
      %v3635 = vrot.slane %v3589, 1
      %v3636 = vsel %vm1792, %v3634, %v3635
      %v3637 = vrot.slane %v3590, 1
      %v3638 = vrot.slane %v3591, 1
      %v3639 = vsel %vm1792, %v3637, %v3638
      %3640 = vrot.lane.b32.xlu0 %v3594, 64
      %v3641 = vpop.permute.xlu0 %3640
      %3642 = vrot.lane.b32.xlu0 %v3597, 64
      %v3643 = vpop.permute.xlu0 %3642
      %3644 = vrot.lane.b32.xlu0 %v3600, 64
      %v3645 = vpop.permute.xlu0 %3644
      %3646 = vrot.lane.b32.xlu0 %v3603, 64
      %v3647 = vpop.permute.xlu0 %3646
      %3648 = vrot.lane.b32.xlu0 %v3606, 64
      %v3649 = vpop.permute.xlu0 %3648
      %3650 = vrot.lane.b32.xlu0 %v3609, 64
      %v3651 = vpop.permute.xlu0 %3650
      %3652 = vrot.lane.b32.xlu0 %v3612, 64
      %v3653 = vpop.permute.xlu0 %3652
      %3654 = vrot.lane.b32.xlu0 %v3615, 64
      %v3655 = vpop.permute.xlu0 %3654
      %3656 = vrot.lane.b32.xlu0 %v3618, 64
      %v3657 = vpop.permute.xlu0 %3656
      %3658 = vrot.lane.b32.xlu0 %v3621, 64
      %v3659 = vpop.permute.xlu0 %3658
      %3660 = vrot.lane.b32.xlu0 %v3624, 64
      %v3661 = vpop.permute.xlu0 %3660
      %3662 = vrot.lane.b32.xlu0 %v3627, 64
      %v3663 = vpop.permute.xlu0 %3662
      %3664 = vrot.lane.b32.xlu0 %v3630, 64
      %v3665 = vpop.permute.xlu0 %3664
      %3666 = vrot.lane.b32.xlu0 %v3633, 64
      %v3667 = vpop.permute.xlu0 %3666
      %3668 = vrot.lane.b32.xlu0 %v3636, 64
      %v3669 = vpop.permute.xlu0 %3668
      %3670 = vrot.lane.b32.xlu0 %v3639, 64
      %v3671 = vpop.permute.xlu0 %3670
      %vm3688 = vcmask 589312
      %3689 = vst.msk [vmem:[#allocation3] sm:$0xff] %vm3688, %v3641
      %3690 = vst.msk [vmem:[#allocation3 + $0x8] sm:$0xff] %vm3688, %v3643
      %3691 = vst.msk [vmem:[#allocation3 + $0x10] sm:$0xff] %vm3688, %v3645
      %3692 = vst.msk [vmem:[#allocation3 + $0x18] sm:$0xff] %vm3688, %v3647
      %3693 = vst.msk [vmem:[#allocation3 + $0x20] sm:$0xff] %vm3688, %v3649
      %3694 = vst.msk [vmem:[#allocation3 + $0x28] sm:$0xff] %vm3688, %v3651
      %3695 = vst.msk [vmem:[#allocation3 + $0x30] sm:$0xff] %vm3688, %v3653
      %3696 = vst.msk [vmem:[#allocation3 + $0x38] sm:$0xff] %vm3688, %v3655
      %3697 = vst.msk [vmem:[#allocation3 + $0x40] sm:$0xff] %vm3688, %v3657
      %3698 = vst.msk [vmem:[#allocation3 + $0x48] sm:$0xff] %vm3688, %v3659
      %3699 = vst.msk [vmem:[#allocation3 + $0x50] sm:$0xff] %vm3688, %v3661
      %3700 = vst.msk [vmem:[#allocation3 + $0x58] sm:$0xff] %vm3688, %v3663
      %3701 = vst.msk [vmem:[#allocation3 + $0x60] sm:$0xff] %vm3688, %v3665
      %3702 = vst.msk [vmem:[#allocation3 + $0x68] sm:$0xff] %vm3688, %v3667
      %3703 = vst.msk [vmem:[#allocation3 + $0x70] sm:$0xff] %vm3688, %v3669
      %3704 = vst.msk [vmem:[#allocation3 + $0x78] sm:$0xff] %vm3688, %v3671
      %v3705 = vld [vmem:[#allocation3] sm:$0xff]
      %v3706 = vld [vmem:[#allocation3 + $0x8] sm:$0xff]
      %v3707 = vld [vmem:[#allocation3 + $0x10] sm:$0xff]
      %v3708 = vld [vmem:[#allocation3 + $0x18] sm:$0xff]
      %v3709 = vld [vmem:[#allocation3 + $0x20] sm:$0xff]
      %v3710 = vld [vmem:[#allocation3 + $0x28] sm:$0xff]
      %v3711 = vld [vmem:[#allocation3 + $0x30] sm:$0xff]
      %v3712 = vld [vmem:[#allocation3 + $0x38] sm:$0xff]
      %v3713 = vld [vmem:[#allocation3 + $0x40] sm:$0xff]
      %v3714 = vld [vmem:[#allocation3 + $0x48] sm:$0xff]
      %v3715 = vld [vmem:[#allocation3 + $0x50] sm:$0xff]
      %v3716 = vld [vmem:[#allocation3 + $0x58] sm:$0xff]
      %v3717 = vld [vmem:[#allocation3 + $0x60] sm:$0xff]
      %v3718 = vld [vmem:[#allocation3 + $0x68] sm:$0xff]
      %v3719 = vld [vmem:[#allocation3 + $0x70] sm:$0xff]
      %v3720 = vld [vmem:[#allocation3 + $0x78] sm:$0xff]
      %v3721 = vld [vmem:[%s3] sm:$0xf]
      %v3722 = vld [vmem:[%s3 + $0x4] sm:$0xf]
      %v3723 = vld [vmem:[%s3 + $0x8] sm:$0xf]
      %v3724 = vld [vmem:[%s3 + $0xc] sm:$0xf]
      %v3725 = vld [vmem:[%s3 + $0x10] sm:$0xf]
      %v3726 = vld [vmem:[%s3 + $0x14] sm:$0xf]
      %v3727 = vld [vmem:[%s3 + $0x18] sm:$0xf]
      %v3728 = vld [vmem:[%s3 + $0x1c] sm:$0xf]
      %v3729 = vld [vmem:[%s3 + $0x20] sm:$0xf]
      %v3739 = vunpack.c.l.b16 %v3721
      %v3740 = vunpack.c.l.b16 %v3722
      %v3741 = vunpack.c.l.b16 %v3723
      %v3742 = vunpack.c.l.b16 %v3724
      %v3743 = vunpack.c.l.b16 %v3725
      %v3744 = vunpack.c.l.b16 %v3726
      %v3745 = vunpack.c.l.b16 %v3727
      %v3746 = vunpack.c.l.b16 %v3728
      %v3747 = vunpack.c.l.b16 %v3729
      %v3748 = vpack.c.b16 %v3740, %v3739
      %v3749 = vpack.c.b16 %v3742, %v3741
      %v3750 = vpack.c.b16 %v3744, %v3743
      %v3751 = vpack.c.b16 %v3746, %v3745
      %v3752 = vpack.c.b16 %v3747, %v3747
      %vm3757 = vcmask 588800
      %v3759 = vsel %vm3757, %v3705, 0
      %v3762 = vsel %vm3757, %v3706, 0
      %v3765 = vsel %vm3757, %v3707, 0
      %v3768 = vsel %vm3757, %v3708, 0
      %v3771 = vsel %vm3757, %v3709, 0
      %v3774 = vsel %vm3757, %v3710, 0
      %v3777 = vsel %vm3757, %v3711, 0
      %v3780 = vsel %vm3757, %v3712, 0
      %v3783 = vsel %vm3757, %v3713, 0
      %v3786 = vsel %vm3757, %v3714, 0
      %v3789 = vsel %vm3757, %v3715, 0
      %v3792 = vsel %vm3757, %v3716, 0
      %v3795 = vsel %vm3757, %v3717, 0
      %v3798 = vsel %vm3757, %v3718, 0
      %v3801 = vsel %vm3757, %v3719, 0
      %v3804 = vsel %vm3757, %v3720, 0
      %vm3806 = vcmask 1043456
      %v3808 = vsel %vm3806, %v3752, 0
      %3810 = vmatprep.subr.bf16.mxu0 0
      %3811 = vmatpush1.bf16.msra.mxu0 %v3748
      %3812 = vmatprep.subr.bf16.mxu0 0
      %3813 = vmatpush1.bf16.msra.mxu0 %v3749
      %3814 = vmatprep.subr.bf16.mxu0 0
      %3815 = vmatpush1.bf16.msra.mxu0 %v3750
      %3816 = vmatprep.subr.bf16.mxu0 0
      %3817 = vmatpush1.bf16.msra.mxu0 %v3751
      %3818 = vmatprep.subr.bf16.mxu0 0
      %3819 = vmatpush1.bf16.msra.mxu0 %v3808
      %3820 = vmatprep.subr.bf16.mxu0 0
      %3821 = vmatpush1.bf16.msra.mxu0 0
      %3822 = vmatprep.subr.bf16.mxu0 0
      %3823 = vmatpush1.bf16.msra.mxu0 0
      %3824 = vmatprep.subr.bf16.mxu0 0
      %3825 = vmatpush1.bf16.msra.mxu0 0
      %3826 = vmatprep.subr.bf16.mxu0 0
      %3827 = vmatpush1.bf16.msra.mxu0 0
      %3828 = vmatprep.subr.bf16.mxu0 0
      %3829 = vmatpush1.bf16.msra.mxu0 0
      %3830 = vmatprep.subr.bf16.mxu0 0
      %3831 = vmatpush1.bf16.msra.mxu0 0
      %3832 = vmatprep.subr.bf16.mxu0 0
      %3833 = vmatpush1.bf16.msra.mxu0 0
      %3834 = vmatprep.subr.bf16.mxu0 0
      %3835 = vmatpush1.bf16.msra.mxu0 0
      %3836 = vmatprep.subr.bf16.mxu0 0
      %3837 = vmatpush1.bf16.msra.mxu0 0
      %3838 = vmatprep.subr.bf16.mxu0 0
      %3839 = vmatpush1.bf16.msra.mxu0 0
      %3840 = vmatprep.subr.bf16.mxu0 0
      %3841 = vmatpush1.bf16.msra.mxu0 0
      %3842 = vmatprep.mubr.bf16.mxu0 0
      %3843 = vmatmul.mubr.bf16.gmra.mrb[0].mxu0 %v3759
      %v3844 = vpop.f32.mrb[0].mxu0
      %v3845 = vadd.f32 0.0, %v3844
      %v3846 = vpop.f32.mrb[0].mxu0
      %v3847 = vpop.f32.mrb[0].mxu0
      %v3848 = vadd.f32 0.0, %v3847
      %v3849 = vpop.f32.mrb[0].mxu0
      %3850 = vmatprep.mubr.bf16.mxu0 0
      %3851 = vmatmul.mubr.bf16.gmra.mrb[0].mxu0 %v3762
      %v3852 = vpop.f32.mrb[0].mxu0
      %v3853 = vadd.f32 0.0, %v3852
      %v3854 = vpop.f32.mrb[0].mxu0
      %v3855 = vpop.f32.mrb[0].mxu0
      %v3856 = vadd.f32 0.0, %v3855
      %v3857 = vpop.f32.mrb[0].mxu0
      %3858 = vmatprep.mubr.bf16.mxu0 0
      %3859 = vmatmul.mubr.bf16.gmra.mrb[0].mxu0 %v3765
      %v3860 = vpop.f32.mrb[0].mxu0
      %v3861 = vadd.f32 0.0, %v3860
      %v3862 = vpop.f32.mrb[0].mxu0
      %v3863 = vpop.f32.mrb[0].mxu0
      %v3864 = vadd.f32 0.0, %v3863
      %v3865 = vpop.f32.mrb[0].mxu0
      %3866 = vmatprep.mubr.bf16.mxu0 0
      %3867 = vmatmul.mubr.bf16.gmra.mrb[0].mxu0 %v3768
      %v3868 = vpop.f32.mrb[0].mxu0
      %v3869 = vadd.f32 0.0, %v3868
      %v3870 = vpop.f32.mrb[0].mxu0
      %v3871 = vpop.f32.mrb[0].mxu0
      %v3872 = vadd.f32 0.0, %v3871
      %v3873 = vpop.f32.mrb[0].mxu0
      %3874 = vmatprep.mubr.bf16.mxu0 0
      %3875 = vmatmul.mubr.bf16.gmra.mrb[0].mxu0 %v3771
      %v3876 = vpop.f32.mrb[0].mxu0
      %v3877 = vadd.f32 0.0, %v3876
      %v3878 = vpop.f32.mrb[0].mxu0
      %v3879 = vpop.f32.mrb[0].mxu0
      %v3880 = vadd.f32 0.0, %v3879
      %v3881 = vpop.f32.mrb[0].mxu0
      %3882 = vmatprep.mubr.bf16.mxu0 0
      %3883 = vmatmul.mubr.bf16.gmra.mrb[0].mxu0 %v3774
      %v3884 = vpop.f32.mrb[0].mxu0
      %v3885 = vadd.f32 0.0, %v3884
      %v3886 = vpop.f32.mrb[0].mxu0
      %v3887 = vpop.f32.mrb[0].mxu0
      %v3888 = vadd.f32 0.0, %v3887
      %v3889 = vpop.f32.mrb[0].mxu0
      %3890 = vmatprep.mubr.bf16.mxu0 0
      %3891 = vmatmul.mubr.bf16.gmra.mrb[0].mxu0 %v3777
      %v3892 = vpop.f32.mrb[0].mxu0
      %v3893 = vadd.f32 0.0, %v3892
      %v3894 = vpop.f32.mrb[0].mxu0
      %v3895 = vpop.f32.mrb[0].mxu0
      %v3896 = vadd.f32 0.0, %v3895
      %v3897 = vpop.f32.mrb[0].mxu0
      %3898 = vmatprep.mubr.bf16.mxu0 0
      %3899 = vmatmul.mubr.bf16.gmra.mrb[0].mxu0 %v3780
      %v3900 = vpop.f32.mrb[0].mxu0
      %v3901 = vadd.f32 0.0, %v3900
      %v3902 = vpop.f32.mrb[0].mxu0
      %v3903 = vpop.f32.mrb[0].mxu0
      %v3904 = vadd.f32 0.0, %v3903
      %v3905 = vpop.f32.mrb[0].mxu0
      %3906 = vmatprep.mubr.bf16.mxu0 0
      %3907 = vmatmul.mubr.bf16.gmra.mrb[0].mxu0 %v3783
      %v3908 = vpop.f32.mrb[0].mxu0
      %v3909 = vadd.f32 0.0, %v3908
      %v3910 = vpop.f32.mrb[0].mxu0
      %v3911 = vpop.f32.mrb[0].mxu0
      %v3912 = vadd.f32 0.0, %v3911
      %v3913 = vpop.f32.mrb[0].mxu0
      %3914 = vmatprep.mubr.bf16.mxu0 0
      %3915 = vmatmul.mubr.bf16.gmra.mrb[0].mxu0 %v3786
      %v3916 = vpop.f32.mrb[0].mxu0
      %v3917 = vadd.f32 0.0, %v3916
      %v3918 = vpop.f32.mrb[0].mxu0
      %v3919 = vpop.f32.mrb[0].mxu0
      %v3920 = vadd.f32 0.0, %v3919
      %v3921 = vpop.f32.mrb[0].mxu0
      %3922 = vmatprep.mubr.bf16.mxu0 0
      %3923 = vmatmul.mubr.bf16.gmra.mrb[0].mxu0 %v3789
      %v3924 = vpop.f32.mrb[0].mxu0
      %v3925 = vadd.f32 0.0, %v3924
      %v3926 = vpop.f32.mrb[0].mxu0
      %v3927 = vpop.f32.mrb[0].mxu0
      %v3928 = vadd.f32 0.0, %v3927
      %v3929 = vpop.f32.mrb[0].mxu0
      %3930 = vmatprep.mubr.bf16.mxu0 0
      %3931 = vmatmul.mubr.bf16.gmra.mrb[0].mxu0 %v3792
      %v3932 = vpop.f32.mrb[0].mxu0
      %v3933 = vadd.f32 0.0, %v3932
      %v3934 = vpop.f32.mrb[0].mxu0
      %v3935 = vpop.f32.mrb[0].mxu0
      %v3936 = vadd.f32 0.0, %v3935
      %v3937 = vpop.f32.mrb[0].mxu0
      %3938 = vmatprep.mubr.bf16.mxu0 0
      %3939 = vmatmul.mubr.bf16.gmra.mrb[0].mxu0 %v3795
      %v3940 = vpop.f32.mrb[0].mxu0
      %v3941 = vadd.f32 0.0, %v3940
      %v3942 = vpop.f32.mrb[0].mxu0
      %v3943 = vpop.f32.mrb[0].mxu0
      %v3944 = vadd.f32 0.0, %v3943
      %v3945 = vpop.f32.mrb[0].mxu0
      %3946 = vmatprep.mubr.bf16.mxu0 0
      %3947 = vmatmul.mubr.bf16.gmra.mrb[0].mxu0 %v3798
      %v3948 = vpop.f32.mrb[0].mxu0
      %v3949 = vadd.f32 0.0, %v3948
      %v3950 = vpop.f32.mrb[0].mxu0
      %v3951 = vpop.f32.mrb[0].mxu0
      %v3952 = vadd.f32 0.0, %v3951
      %v3953 = vpop.f32.mrb[0].mxu0
      %3954 = vmatprep.mubr.bf16.mxu0 0
      %3955 = vmatmul.mubr.bf16.gmra.mrb[0].mxu0 %v3801
      %v3956 = vpop.f32.mrb[0].mxu0
      %v3957 = vadd.f32 0.0, %v3956
      %v3958 = vpop.f32.mrb[0].mxu0
      %v3959 = vpop.f32.mrb[0].mxu0
      %v3960 = vadd.f32 0.0, %v3959
      %v3961 = vpop.f32.mrb[0].mxu0
      %3962 = vmatprep.mubr.bf16.mxu0 0
      %3963 = vmatmul.mubr.bf16.gmra.mrb[0].mxu0 %v3804
      %v3964 = vpop.f32.mrb[0].mxu0
      %v3965 = vadd.f32 0.0, %v3964
      %v3966 = vpop.f32.mrb[0].mxu0
      %v3967 = vpop.f32.mrb[0].mxu0
      %v3968 = vadd.f32 0.0, %v3967
      %v3969 = vpop.f32.mrb[0].mxu0
      %3970 = vdwg.mxu0
      %v3971 = vpack.c.bf16 %v3848, %v3845
      %v3972 = vpack.c.bf16 %v3856, %v3853
      %v3973 = vpack.c.bf16 %v3864, %v3861
      %v3974 = vpack.c.bf16 %v3872, %v3869
      %v3975 = vpack.c.bf16 %v3880, %v3877
      %v3976 = vpack.c.bf16 %v3888, %v3885
      %v3977 = vpack.c.bf16 %v3896, %v3893
      %v3978 = vpack.c.bf16 %v3904, %v3901
      %v3979 = vpack.c.bf16 %v3912, %v3909
      %v3980 = vpack.c.bf16 %v3920, %v3917
      %v3981 = vpack.c.bf16 %v3928, %v3925
      %v3982 = vpack.c.bf16 %v3936, %v3933
      %v3983 = vpack.c.bf16 %v3944, %v3941
      %v3984 = vpack.c.bf16 %v3952, %v3949
      %v3985 = vpack.c.bf16 %v3960, %v3957
      %v3986 = vpack.c.bf16 %v3968, %v3965
      %v4003 = vunpack.c.l.b16 %v3971
      %v4004 = vunpack.c.h.b16 %v3971
      %v4005 = vunpack.c.l.b16 %v3972
      %v4006 = vunpack.c.h.b16 %v3972
      %v4007 = vunpack.c.l.b16 %v3973
      %v4008 = vunpack.c.h.b16 %v3973
      %v4009 = vunpack.c.l.b16 %v3974
      %v4010 = vunpack.c.h.b16 %v3974
      %v4011 = vunpack.c.l.b16 %v3975
      %v4012 = vunpack.c.h.b16 %v3975
      %v4013 = vunpack.c.l.b16 %v3976
      %v4014 = vunpack.c.h.b16 %v3976
      %v4015 = vunpack.c.l.b16 %v3977
      %v4016 = vunpack.c.h.b16 %v3977
      %v4017 = vunpack.c.l.b16 %v3978
      %v4018 = vunpack.c.h.b16 %v3978
      %v4019 = vunpack.c.l.b16 %v3979
      %v4020 = vunpack.c.h.b16 %v3979
      %v4021 = vunpack.c.l.b16 %v3980
      %v4022 = vunpack.c.h.b16 %v3980
      %v4023 = vunpack.c.l.b16 %v3981
      %v4024 = vunpack.c.h.b16 %v3981
      %v4025 = vunpack.c.l.b16 %v3982
      %v4026 = vunpack.c.h.b16 %v3982
      %v4027 = vunpack.c.l.b16 %v3983
      %v4028 = vunpack.c.h.b16 %v3983
      %v4029 = vunpack.c.l.b16 %v3984
      %v4030 = vunpack.c.h.b16 %v3984
      %v4031 = vunpack.c.l.b16 %v3985
      %v4032 = vunpack.c.h.b16 %v3985
      %v4033 = vunpack.c.l.b16 %v3986
      %v4034 = vunpack.c.h.b16 %v3986
      %v4035 = vpack.c.b16 %v4003, %v4003
      %v4036 = vpack.c.b16 %v4004, %v4004
      %v4037 = vpack.c.b16 %v4005, %v4005
      %v4038 = vpack.c.b16 %v4006, %v4006
      %v4039 = vpack.c.b16 %v4007, %v4007
      %v4040 = vpack.c.b16 %v4008, %v4008
      %v4041 = vpack.c.b16 %v4009, %v4009
      %v4042 = vpack.c.b16 %v4010, %v4010
      %v4043 = vpack.c.b16 %v4011, %v4011
      %v4044 = vpack.c.b16 %v4012, %v4012
      %v4045 = vpack.c.b16 %v4013, %v4013
      %v4046 = vpack.c.b16 %v4014, %v4014
      %v4047 = vpack.c.b16 %v4015, %v4015
      %v4048 = vpack.c.b16 %v4016, %v4016
      %v4049 = vpack.c.b16 %v4017, %v4017
      %v4050 = vpack.c.b16 %v4018, %v4018
      %v4051 = vpack.c.b16 %v4019, %v4019
      %v4052 = vpack.c.b16 %v4020, %v4020
      %v4053 = vpack.c.b16 %v4021, %v4021
      %v4054 = vpack.c.b16 %v4022, %v4022
      %v4055 = vpack.c.b16 %v4023, %v4023
      %v4056 = vpack.c.b16 %v4024, %v4024
      %v4057 = vpack.c.b16 %v4025, %v4025
      %v4058 = vpack.c.b16 %v4026, %v4026
      %v4059 = vpack.c.b16 %v4027, %v4027
      %v4060 = vpack.c.b16 %v4028, %v4028
      %v4061 = vpack.c.b16 %v4029, %v4029
      %v4062 = vpack.c.b16 %v4030, %v4030
      %v4063 = vpack.c.b16 %v4031, %v4031
      %v4064 = vpack.c.b16 %v4032, %v4032
      %v4065 = vpack.c.b16 %v4033, %v4033
      %v4066 = vpack.c.b16 %v4034, %v4034
      %4099 = vst.msk [vmem:[%s262] sm:$0xf] %vm460, %v4035
      %4100 = vst.msk [vmem:[%s262 + $0x4] sm:$0xf] %vm460, %v4036
      %4101 = vst.msk [vmem:[%s262 + $0x8] sm:$0xf] %vm460, %v4037
      %4102 = vst.msk [vmem:[%s262 + $0xc] sm:$0xf] %vm460, %v4038
      %4103 = vst.msk [vmem:[%s262 + $0x10] sm:$0xf] %vm460, %v4039
      %4104 = vst.msk [vmem:[%s262 + $0x14] sm:$0xf] %vm460, %v4040
      %4105 = vst.msk [vmem:[%s262 + $0x18] sm:$0xf] %vm460, %v4041
      %4106 = vst.msk [vmem:[%s262 + $0x1c] sm:$0xf] %vm460, %v4042
      %4107 = vst.msk [vmem:[%s262 + $0x20] sm:$0xf] %vm460, %v4043
      %4108 = vst.msk [vmem:[%s262 + $0x24] sm:$0xf] %vm460, %v4044
      %4109 = vst.msk [vmem:[%s262 + $0x28] sm:$0xf] %vm460, %v4045
      %4110 = vst.msk [vmem:[%s262 + $0x2c] sm:$0xf] %vm460, %v4046
      %4111 = vst.msk [vmem:[%s262 + $0x30] sm:$0xf] %vm460, %v4047
      %4112 = vst.msk [vmem:[%s262 + $0x34] sm:$0xf] %vm460, %v4048
      %4113 = vst.msk [vmem:[%s262 + $0x38] sm:$0xf] %vm460, %v4049
      %4114 = vst.msk [vmem:[%s262 + $0x3c] sm:$0xf] %vm460, %v4050
      %4115 = vst.msk [vmem:[%s262 + $0x40] sm:$0xf] %vm460, %v4051
      %4116 = vst.msk [vmem:[%s262 + $0x44] sm:$0xf] %vm460, %v4052
      %4117 = vst.msk [vmem:[%s262 + $0x48] sm:$0xf] %vm460, %v4053
      %4118 = vst.msk [vmem:[%s262 + $0x4c] sm:$0xf] %vm460, %v4054
      %4119 = vst.msk [vmem:[%s262 + $0x50] sm:$0xf] %vm460, %v4055
      %4120 = vst.msk [vmem:[%s262 + $0x54] sm:$0xf] %vm460, %v4056
      %4121 = vst.msk [vmem:[%s262 + $0x58] sm:$0xf] %vm460, %v4057
      %4122 = vst.msk [vmem:[%s262 + $0x5c] sm:$0xf] %vm460, %v4058
      %4123 = vst.msk [vmem:[%s262 + $0x60] sm:$0xf] %vm460, %v4059
      %4124 = vst.msk [vmem:[%s262 + $0x64] sm:$0xf] %vm460, %v4060
      %4125 = vst.msk [vmem:[%s262 + $0x68] sm:$0xf] %vm460, %v4061
      %4126 = vst.msk [vmem:[%s262 + $0x6c] sm:$0xf] %vm460, %v4062
      %4127 = vst.msk [vmem:[%s262 + $0x70] sm:$0xf] %vm460, %v4063
      %4128 = vst.msk [vmem:[%s262 + $0x74] sm:$0xf] %vm460, %v4064
      %4129 = vst.msk [vmem:[%s262 + $0x78] sm:$0xf] %vm460, %v4065
      %4130 = vst.msk [vmem:[%s262 + $0x7c] sm:$0xf] %vm460, %v4066
      %v4131 = vsel %vm1165, %v3845, 0.0
      %v4132 = vsel %vm1165, %v3848, 0.0
      %v4133 = vadd.f32 %v4131, %v4132
      %v4134 = vsel %vm1165, %v3853, 0.0
      %v4135 = vadd.f32 %v4133, %v4134
      %v4136 = vsel %vm1165, %v3856, 0.0
      %v4137 = vadd.f32 %v4135, %v4136
      %v4138 = vsel %vm1165, %v3861, 0.0
      %v4139 = vadd.f32 %v4137, %v4138
      %v4140 = vsel %vm1165, %v3864, 0.0
      %v4141 = vadd.f32 %v4139, %v4140
      %v4142 = vsel %vm1165, %v3869, 0.0
      %v4143 = vadd.f32 %v4141, %v4142
      %v4144 = vsel %vm1165, %v3872, 0.0
      %v4145 = vadd.f32 %v4143, %v4144
      %v4146 = vsel %vm1165, %v3877, 0.0
      %v4147 = vadd.f32 %v4145, %v4146
      %v4148 = vsel %vm1165, %v3880, 0.0
      %v4149 = vadd.f32 %v4147, %v4148
      %v4150 = vsel %vm1165, %v3885, 0.0
      %v4151 = vadd.f32 %v4149, %v4150
      %v4152 = vsel %vm1165, %v3888, 0.0
      %v4153 = vadd.f32 %v4151, %v4152
      %v4154 = vsel %vm1165, %v3893, 0.0
      %v4155 = vadd.f32 %v4153, %v4154
      %v4156 = vsel %vm1165, %v3896, 0.0
      %v4157 = vadd.f32 %v4155, %v4156
      %v4158 = vsel %vm1165, %v3901, 0.0
      %v4159 = vadd.f32 %v4157, %v4158
      %v4160 = vsel %vm1165, %v3904, 0.0
      %v4161 = vadd.f32 %v4159, %v4160
      %v4162 = vsel %vm1165, %v3909, 0.0
      %v4163 = vadd.f32 %v4161, %v4162
      %v4164 = vsel %vm1165, %v3912, 0.0
      %v4165 = vadd.f32 %v4163, %v4164
      %v4166 = vsel %vm1165, %v3917, 0.0
      %v4167 = vadd.f32 %v4165, %v4166
      %v4168 = vsel %vm1165, %v3920, 0.0
      %v4169 = vadd.f32 %v4167, %v4168
      %v4170 = vsel %vm1165, %v3925, 0.0
      %v4171 = vadd.f32 %v4169, %v4170
      %v4172 = vsel %vm1165, %v3928, 0.0
      %v4173 = vadd.f32 %v4171, %v4172
      %v4174 = vsel %vm1165, %v3933, 0.0
      %v4175 = vadd.f32 %v4173, %v4174
      %v4176 = vsel %vm1165, %v3936, 0.0
      %v4177 = vadd.f32 %v4175, %v4176
      %v4178 = vsel %vm1165, %v3941, 0.0
      %v4179 = vadd.f32 %v4177, %v4178
      %v4180 = vsel %vm1165, %v3944, 0.0
      %v4181 = vadd.f32 %v4179, %v4180
      %v4182 = vsel %vm1165, %v3949, 0.0
      %v4183 = vadd.f32 %v4181, %v4182
      %v4184 = vsel %vm1165, %v3952, 0.0
      %v4185 = vadd.f32 %v4183, %v4184
      %v4186 = vsel %vm1165, %v3957, 0.0
      %v4187 = vadd.f32 %v4185, %v4186
      %v4188 = vsel %vm1165, %v3960, 0.0
      %v4189 = vadd.f32 %v4187, %v4188
      %v4190 = vsel %vm1165, %v3965, 0.0
      %v4191 = vadd.f32 %v4189, %v4190
      %v4192 = vsel %vm1165, %v3968, 0.0
      %v4193 = vadd.f32 %v4191, %v4192
      %v4194 = vrot.slane %v4193, 4
      %v4195 = vadd.f32 %v4193, %v4194
      %v4196 = vrot.slane %v4195, 2
      %v4197 = vadd.f32 %v4195, %v4196
      %v4198 = vrot.slane %v4197, 1
      %v4199 = vadd.f32 %v4197, %v4198
      %4200 = vst.msk [vmem:[%s265] sm:$0x1] %vm463, %v4199
      %v4201 = vmul.f32 %v3845, %v3845
      %v4202 = vmul.f32 %v3848, %v3848
      %v4203 = vmul.f32 %v3853, %v3853
      %v4204 = vmul.f32 %v3856, %v3856
      %v4205 = vmul.f32 %v3861, %v3861
      %v4206 = vmul.f32 %v3864, %v3864
      %v4207 = vmul.f32 %v3869, %v3869
      %v4208 = vmul.f32 %v3872, %v3872
      %v4209 = vmul.f32 %v3877, %v3877
      %v4210 = vmul.f32 %v3880, %v3880
      %v4211 = vmul.f32 %v3885, %v3885
      %v4212 = vmul.f32 %v3888, %v3888
      %v4213 = vmul.f32 %v3893, %v3893
      %v4214 = vmul.f32 %v3896, %v3896
      %v4215 = vmul.f32 %v3901, %v3901
      %v4216 = vmul.f32 %v3904, %v3904
      %v4217 = vmul.f32 %v3909, %v3909
      %v4218 = vmul.f32 %v3912, %v3912
      %v4219 = vmul.f32 %v3917, %v3917
      %v4220 = vmul.f32 %v3920, %v3920
      %v4221 = vmul.f32 %v3925, %v3925
      %v4222 = vmul.f32 %v3928, %v3928
      %v4223 = vmul.f32 %v3933, %v3933
      %v4224 = vmul.f32 %v3936, %v3936
      %v4225 = vmul.f32 %v3941, %v3941
      %v4226 = vmul.f32 %v3944, %v3944
      %v4227 = vmul.f32 %v3949, %v3949
      %v4228 = vmul.f32 %v3952, %v3952
      %v4229 = vmul.f32 %v3957, %v3957
      %v4230 = vmul.f32 %v3960, %v3960
      %v4231 = vmul.f32 %v3965, %v3965
      %v4232 = vmul.f32 %v3968, %v3968
      %v4233 = vsel %vm1165, %v4201, 0.0
      %v4234 = vsel %vm1165, %v4202, 0.0
      %v4235 = vadd.f32 %v4233, %v4234
      %v4236 = vsel %vm1165, %v4203, 0.0
      %v4237 = vadd.f32 %v4235, %v4236
      %v4238 = vsel %vm1165, %v4204, 0.0
      %v4239 = vadd.f32 %v4237, %v4238
      %v4240 = vsel %vm1165, %v4205, 0.0
      %v4241 = vadd.f32 %v4239, %v4240
      %v4242 = vsel %vm1165, %v4206, 0.0
      %v4243 = vadd.f32 %v4241, %v4242
      %v4244 = vsel %vm1165, %v4207, 0.0
      %v4245 = vadd.f32 %v4243, %v4244
      %v4246 = vsel %vm1165, %v4208, 0.0
      %v4247 = vadd.f32 %v4245, %v4246
      %v4248 = vsel %vm1165, %v4209, 0.0
      %v4249 = vadd.f32 %v4247, %v4248
      %v4250 = vsel %vm1165, %v4210, 0.0
      %v4251 = vadd.f32 %v4249, %v4250
      %v4252 = vsel %vm1165, %v4211, 0.0
      %v4253 = vadd.f32 %v4251, %v4252
      %v4254 = vsel %vm1165, %v4212, 0.0
      %v4255 = vadd.f32 %v4253, %v4254
      %v4256 = vsel %vm1165, %v4213, 0.0
      %v4257 = vadd.f32 %v4255, %v4256
      %v4258 = vsel %vm1165, %v4214, 0.0
      %v4259 = vadd.f32 %v4257, %v4258
      %v4260 = vsel %vm1165, %v4215, 0.0
      %v4261 = vadd.f32 %v4259, %v4260
      %v4262 = vsel %vm1165, %v4216, 0.0
      %v4263 = vadd.f32 %v4261, %v4262
      %v4264 = vsel %vm1165, %v4217, 0.0
      %v4265 = vadd.f32 %v4263, %v4264
      %v4266 = vsel %vm1165, %v4218, 0.0
      %v4267 = vadd.f32 %v4265, %v4266
      %v4268 = vsel %vm1165, %v4219, 0.0
      %v4269 = vadd.f32 %v4267, %v4268
      %v4270 = vsel %vm1165, %v4220, 0.0
      %v4271 = vadd.f32 %v4269, %v4270
      %v4272 = vsel %vm1165, %v4221, 0.0
      %v4273 = vadd.f32 %v4271, %v4272
      %v4274 = vsel %vm1165, %v4222, 0.0
      %v4275 = vadd.f32 %v4273, %v4274
      %v4276 = vsel %vm1165, %v4223, 0.0
      %v4277 = vadd.f32 %v4275, %v4276
      %v4278 = vsel %vm1165, %v4224, 0.0
      %v4279 = vadd.f32 %v4277, %v4278
      %v4280 = vsel %vm1165, %v4225, 0.0
      %v4281 = vadd.f32 %v4279, %v4280
      %v4282 = vsel %vm1165, %v4226, 0.0
      %v4283 = vadd.f32 %v4281, %v4282
      %v4284 = vsel %vm1165, %v4227, 0.0
      %v4285 = vadd.f32 %v4283, %v4284
      %v4286 = vsel %vm1165, %v4228, 0.0
      %v4287 = vadd.f32 %v4285, %v4286
      %v4288 = vsel %vm1165, %v4229, 0.0
      %v4289 = vadd.f32 %v4287, %v4288
      %v4290 = vsel %vm1165, %v4230, 0.0
      %v4291 = vadd.f32 %v4289, %v4290
      %v4292 = vsel %vm1165, %v4231, 0.0
      %v4293 = vadd.f32 %v4291, %v4292
      %v4294 = vsel %vm1165, %v4232, 0.0
      %v4295 = vadd.f32 %v4293, %v4294
      %v4296 = vrot.slane %v4295, 4
      %v4297 = vadd.f32 %v4295, %v4296
      %v4298 = vrot.slane %v4297, 2
      %v4299 = vadd.f32 %v4297, %v4298
      %v4300 = vrot.slane %v4299, 1
      %v4301 = vadd.f32 %v4299, %v4300
      %4302 = vst.msk [vmem:[%s268] sm:$0x1] %vm463, %v4301
      %p4303 = scmp.lt.s32.totalorder %s18, 1
      %s4304 = scalar_select %p4303, %s18, 1
      %s4305 = smul.addr %s4304, 32
      %s4306 = smul.addr %s4305, 4
      %s4307 = scalar_lea.vmem %s4, %s4306
      %p4308 = scmp.lt.s32.totalorder %s18, 1
      %s4309 = scalar_select %p4308, %s18, 1
      %s4310 = scalar_lea.vmem %s5, %s4309
      %p4311 = scmp.lt.s32.totalorder %s18, 1
      %s4312 = scalar_select %p4311, %s18, 1
      %s4313 = scalar_lea.vmem %s6, %s4312
      // Predicated region
      $region37: #{encoder_block_forward.4} parent=35 // pred_check
        %p4314 = pneg %p125
      $region38: #{encoder_block_forward.4} parent=35 // pred_check_branch
        %4316 = sbr.rel (%p4314) target = $region40
      $region39: #{encoder_block_forward.4} parent=35 // pred_region
        _
      $region40: #{encoder_block_forward.4} parent=35 // pred_fallthru
        _
      // Predicated region
      $region41: #{encoder_block_forward.4} parent=35 // pred_check
        %p4317 = pneg %p151
      $region42: #{encoder_block_forward.4} parent=35 // pred_check_branch
        %4319 = sbr.rel (%p4317) target = $region44
      $region43: #{encoder_block_forward.4} parent=35 // pred_region
        _
      $region44: #{encoder_block_forward.4} parent=35 // pred_fallthru
        _
      // Predicated region
      $region45: #{encoder_block_forward.4} parent=35 // pred_check
        %p4320 = pneg %p177
      $region46: #{encoder_block_forward.4} parent=35 // pred_check_branch
        %4322 = sbr.rel (%p4320) target = $region48
      $region47: #{encoder_block_forward.4} parent=35 // pred_region
        _
      $region48: #{encoder_block_forward.4} parent=35 // pred_fallthru
        _
    $region36: #{encoder_block_forward.4} parent=5 // pred_fallthru
      _
    %p4323 = scmp.le.s32.totalorder 2, %s13
    // Predicated region
    $region49: #{encoder_block_forward.4} parent=5 // pred_check
      %p4324 = pneg %p4323
    $region50: #{encoder_block_forward.4} parent=5 // pred_check_branch
      %4326 = sbr.rel (%p4324) target = $region52
    $region51: #{encoder_block_forward.4} parent=5 // pred_region
      %s4327 = ssub.s32 %s13, 2
      // Predicated region
      $region53: #{encoder_block_forward.4} parent=51 // pred_check
        %p4328 = pneg %p131
      $region54: #{encoder_block_forward.4} parent=51 // pred_check_branch
        %4330 = sbr.rel (%p4328) target = $region56
      $region55: #{encoder_block_forward.4} parent=51 // pred_region
        %p4331 = scmp.lt.s32.totalorder %s19, 1
        %s4332 = scalar_select %p4331, %s19, 1
        %s4333 = smul.addr %s4332, 32
        %s4334 = smul.addr %s4333, 4
        %s4335 = scalar_lea.vmem %s4, %s4334
      $region56: #{encoder_block_forward.4} parent=51 // pred_fallthru
        _
      // Predicated region
      $region57: #{encoder_block_forward.4} parent=51 // pred_check
        %p4336 = pneg %p157
      $region58: #{encoder_block_forward.4} parent=51 // pred_check_branch
        %4338 = sbr.rel (%p4336) target = $region60
      $region59: #{encoder_block_forward.4} parent=51 // pred_region
        %p4339 = scmp.lt.s32.totalorder %s19, 1
        %s4340 = scalar_select %p4339, %s19, 1
        %s4341 = scalar_lea.vmem %s5, %s4340
      $region60: #{encoder_block_forward.4} parent=51 // pred_fallthru
        _
      // Predicated region
      $region61: #{encoder_block_forward.4} parent=51 // pred_check
        %p4342 = pneg %p183
      $region62: #{encoder_block_forward.4} parent=51 // pred_check_branch
        %4344 = sbr.rel (%p4342) target = $region64
      $region63: #{encoder_block_forward.4} parent=51 // pred_region
        %p4345 = scmp.lt.s32.totalorder %s19, 1
        %s4346 = scalar_select %p4345, %s19, 1
        %s4347 = scalar_lea.vmem %s6, %s4346
      $region64: #{encoder_block_forward.4} parent=51 // pred_fallthru
        _
    $region52: #{encoder_block_forward.4} parent=5 // pred_fallthru
      _
  $region6: #{encoder_block_forward.4} parent=0 // loop_footer
    %s17 = sadd.s32 1, %s13
  $region7: #{encoder_block_forward.4} parent=0 // loop_footer_branch
    %12 = sbr.rel target = $region3
  $region8: #{encoder_block_forward.4} parent=0 // loop_exit
    _

// kernel: encoder_block_forward.3
$region0: #{encoder_block_forward.3}
  #allocation0 [shape = 'u32[]', space=smem, size = 0x4, offset = 0x4, fixed_abs, tag = 'smem constant byte address 0x4 - core index']
  #allocation1 [shape = 'u32[144,128]{1,0:T(1,128)}', space=vmem, size = 0x12000, scoped, tag = 'internal scratch']
  #allocation2 [shape = 'bf16[18,18,4]{2,1,0:T(8,128)(2,1)}', space=vmem, size = 0x1b000, scoped, tag = 'scratch operand']
  #allocation3 [shape = 'bf16[16,16,36]{2,1,0:T(16,128)(2,1)}', space=vmem, size = 0x10000, scoped, tag = 'scratch operand']
  %s0 = inlined_call_operand.vmem [shape: bf16[2,16,16,4], index: 0, kind: input, shape index: {}]
  %s1 = inlined_call_operand.vmem [shape: bf16[36,8], index: 1, kind: input, shape index: {}]
  %s2 = inlined_call_operand.vmem [shape: bf16[2,256,8], index: 2, kind: output, shape index: {0}]
  %s3 = inlined_call_operand.vmem [shape: f32[2,1,8], index: 3, kind: output, shape index: {1}]
  %s4 = inlined_call_operand.vmem [shape: f32[2,1,8], index: 4, kind: output, shape index: {2}]
  %5 = xla_tuple %s2, %s3, %s4
  %s6 = sld [smem:[#allocation0]]
  $region57: #{encoder_block_forward.3} parent=0
    _
  %s8 = ssub.s32 1, %s6
  %s9 = scalar_select 0, %s8, %s6
  loop: start=0, step=1, limit=4
  $region2: #{encoder_block_forward.3} parent=0 // loop_pre_header
    _
  $region3: #{encoder_block_forward.3} parent=0 // loop_header
    %s11 = sphi 0, %s15
    %p12 = scmp.ge.s32.totalorder %s11, 4
    %s21 = sphi 0, %s23
    %s24 = sphi 0, %s21
    %s25 = sphi 0, %s24
    %s41 = sphi 0, %s25
    %s45 = sphi 0, %s45
    %s47 = sphi 0, %s45
    %s48 = sphi 0, %s47
    %s62 = sphi 0, %s48
    %s68 = sphi 0, %s70
    %s71 = sphi 0, %s68
    %s72 = sphi 0, %s71
    %s88 = sphi 0, %s72
    %s94 = sphi 0, %s96
    %s97 = sphi 0, %s94
    %s98 = sphi 0, %s97
    %s114 = sphi 0, %s98
    %s120 = sphi 0, %s122
    %s123 = sphi 0, %s120
    %s124 = sphi 0, %s123
    %s140 = sphi 0, %s124
  $region4: #{encoder_block_forward.3} parent=0 // loop_header_branch
    %14 = sbr.rel (%p12) target = $region8
  $region5: #{encoder_block_forward.3} parent=0 // loop_body
    %s16 = ssub.s32 %s11, 1
    %s17 = ssub.s32 %s11, 2
    %s18 = sadd.s32 %s11, 1
    %s19 = ssub.s32 %s11, %s18
    %p20 = scmp.eq.s32.totalorder %s19, 0
    %s22 = sadd.s32 %s21, 1
    %s23 = scalar_select %p20, %s21, %s22
    %p26 = pneg %p20
    %p27 = scmp.eq.s32.totalorder %s11, 1
    %p28 = por %p26, %p27
    %p29 = scmp.ne.s32.totalorder %s21, %s24
    %p30 = scmp.eq.s32.totalorder %s11, 0
    %p31 = por %p29, %p30
    %p32 = scmp.ne.s32.totalorder %s21, %s24
    %p33 = scmp.eq.s32.totalorder %s16, 1
    %p34 = por %p32, %p33
    %p35 = scmp.ne.s32.totalorder %s24, %s25
    %p36 = scmp.eq.s32.totalorder %s16, 0
    %p37 = por %p35, %p36
    %p38 = scmp.ne.s32.totalorder %s24, %s25
    %p39 = scmp.eq.s32.totalorder %s17, 1
    %p40 = por %p38, %p39
    %p42 = scmp.ne.s32.totalorder %s25, %s41
    %p43 = scmp.eq.s32.totalorder %s17, 0
    %p44 = por %p42, %p43
    %s46 = sadd.s32 %s45, 1
    %p49 = scmp.eq.s32.totalorder %s11, 1
    %p50 = scmp.ne.s32.totalorder %s45, %s47
    %p51 = scmp.eq.s32.totalorder %s11, 0
    %p52 = por %p50, %p51
    %p53 = scmp.ne.s32.totalorder %s45, %s47
    %p54 = scmp.eq.s32.totalorder %s16, 1
    %p55 = por %p53, %p54
    %p56 = scmp.ne.s32.totalorder %s47, %s48
    %p57 = scmp.eq.s32.totalorder %s16, 0
    %p58 = por %p56, %p57
    %p59 = scmp.ne.s32.totalorder %s47, %s48
    %p60 = scmp.eq.s32.totalorder %s17, 1
    %p61 = por %p59, %p60
    %p63 = scmp.ne.s32.totalorder %s48, %s62
    %p64 = scmp.eq.s32.totalorder %s17, 0
    %p65 = por %p63, %p64
    %s66 = ssub.s32 %s11, %s18
    %p67 = scmp.eq.s32.totalorder %s66, 0
    %s69 = sadd.s32 %s68, 1
    %s70 = scalar_select %p67, %s68, %s69
    %p73 = pneg %p67
    %p74 = scmp.eq.s32.totalorder %s11, 1
    %p75 = por %p73, %p74
    %p76 = scmp.ne.s32.totalorder %s68, %s71
    %p77 = scmp.eq.s32.totalorder %s11, 0
    %p78 = por %p76, %p77
    %p79 = scmp.ne.s32.totalorder %s68, %s71
    %p80 = scmp.eq.s32.totalorder %s16, 1
    %p81 = por %p79, %p80
    %p82 = scmp.ne.s32.totalorder %s71, %s72
    %p83 = scmp.eq.s32.totalorder %s16, 0
    %p84 = por %p82, %p83
    %p85 = scmp.ne.s32.totalorder %s71, %s72
    %p86 = scmp.eq.s32.totalorder %s17, 1
    %p87 = por %p85, %p86
    %p89 = scmp.ne.s32.totalorder %s72, %s88
    %p90 = scmp.eq.s32.totalorder %s17, 0
    %p91 = por %p89, %p90
    %s92 = ssub.s32 %s11, %s18
    %p93 = scmp.eq.s32.totalorder %s92, 0
    %s95 = sadd.s32 %s94, 1
    %s96 = scalar_select %p93, %s94, %s95
    %p99 = pneg %p93
    %p100 = scmp.eq.s32.totalorder %s11, 1
    %p101 = por %p99, %p100
    %p102 = scmp.ne.s32.totalorder %s94, %s97
    %p103 = scmp.eq.s32.totalorder %s11, 0
    %p104 = por %p102, %p103
    %p105 = scmp.ne.s32.totalorder %s94, %s97
    %p106 = scmp.eq.s32.totalorder %s16, 1
    %p107 = por %p105, %p106
    %p108 = scmp.ne.s32.totalorder %s97, %s98
    %p109 = scmp.eq.s32.totalorder %s16, 0
    %p110 = por %p108, %p109
    %p111 = scmp.ne.s32.totalorder %s97, %s98
    %p112 = scmp.eq.s32.totalorder %s17, 1
    %p113 = por %p111, %p112
    %p115 = scmp.ne.s32.totalorder %s98, %s114
    %p116 = scmp.eq.s32.totalorder %s17, 0
    %p117 = por %p115, %p116
    %s118 = ssub.s32 %s11, %s18
    %p119 = scmp.eq.s32.totalorder %s118, 0
    %s121 = sadd.s32 %s120, 1
    %s122 = scalar_select %p119, %s120, %s121
    %p125 = pneg %p119
    %p126 = scmp.eq.s32.totalorder %s11, 1
    %p127 = por %p125, %p126
    %p128 = scmp.ne.s32.totalorder %s120, %s123
    %p129 = scmp.eq.s32.totalorder %s11, 0
    %p130 = por %p128, %p129
    %p131 = scmp.ne.s32.totalorder %s120, %s123
    %p132 = scmp.eq.s32.totalorder %s16, 1
    %p133 = por %p131, %p132
    %p134 = scmp.ne.s32.totalorder %s123, %s124
    %p135 = scmp.eq.s32.totalorder %s16, 0
    %p136 = por %p134, %p135
    %p137 = scmp.ne.s32.totalorder %s123, %s124
    %p138 = scmp.eq.s32.totalorder %s17, 1
    %p139 = por %p137, %p138
    %p141 = scmp.ne.s32.totalorder %s124, %s140
    %p142 = scmp.eq.s32.totalorder %s17, 0
    %p143 = por %p141, %p142
    %p144 = scmp.le.s32.totalorder 1, %s11
    %p145 = scmp.lt.s32.totalorder %s11, 3
    %p146 = pnand %p144, %p145
    %p147 = pneg %p146
    // Predicated region
    $region9: #{encoder_block_forward.3} parent=5 // pred_check
      _
    $region10: #{encoder_block_forward.3} parent=5 // pred_check_branch
      %149 = sbr.rel (%p146) target = $region12
    $region11: #{encoder_block_forward.3} parent=5 // pred_region
      %s150 = ssub.s32 %s11, 1
      // Predicated region
      $region13: #{encoder_block_forward.3} parent=11 // pred_check
        %p151 = pneg %p58
      $region14: #{encoder_block_forward.3} parent=11 // pred_check_branch
        %153 = sbr.rel (%p151) target = $region16
      $region15: #{encoder_block_forward.3} parent=11 // pred_region
        _
      $region16: #{encoder_block_forward.3} parent=11 // pred_fallthru
        _
    $region12: #{encoder_block_forward.3} parent=5 // pred_fallthru
      _
    %p154 = scmp.lt.s32.totalorder %s11, 2
    // Predicated region
    $region17: #{encoder_block_forward.3} parent=5 // pred_check
      %p155 = pneg %p154
    $region18: #{encoder_block_forward.3} parent=5 // pred_check_branch
      %157 = sbr.rel (%p155) target = $region20
    $region19: #{encoder_block_forward.3} parent=5 // pred_region
      // Predicated region
      $region21: #{encoder_block_forward.3} parent=19 // pred_check
        %p158 = pneg %p31
      $region22: #{encoder_block_forward.3} parent=19 // pred_check_branch
        %160 = sbr.rel (%p158) target = $region24
      $region23: #{encoder_block_forward.3} parent=19 // pred_region
        %p161 = scmp.lt.s32.totalorder %s11, 1
        %s162 = scalar_select %p161, %s11, 1
        %s163 = smul.addr %s162, 32
        %s164 = smul.addr %s163, 4
        %s165 = scalar_lea.vmem %s0, %s164
      $region24: #{encoder_block_forward.3} parent=19 // pred_fallthru
        _
    $region20: #{encoder_block_forward.3} parent=5 // pred_fallthru
      _
    %p166 = scmp.le.s32.totalorder 1, %s11
    %p167 = scmp.lt.s32.totalorder %s11, 3
    %p168 = pnand %p166, %p167
    %p169 = pneg %p168
    // Predicated region
    $region25: #{encoder_block_forward.3} parent=5 // pred_check
      _
    $region26: #{encoder_block_forward.3} parent=5 // pred_check_branch
      %171 = sbr.rel (%p168) target = $region28
    $region27: #{encoder_block_forward.3} parent=5 // pred_region
      %s172 = ssub.s32 %s11, 1
      %p173 = scmp.lt.s32.totalorder %s16, 1
      %s174 = scalar_select %p173, %s16, 1
      %s175 = smul.addr %s174, 32
      %s176 = smul.addr %s175, 4
      %s177 = scalar_lea.vmem %s0, %s176
      %p178 = pneg %p37
      %p179 = pneg %p34
      %p180 = pneg %p58
      %p181 = pneg %p55
      %p182 = pneg %p84
      %p183 = pneg %p81
      %p184 = scmp.lt.s32.totalorder %s16, 1
      %s185 = scalar_select %p184, %s16, 1
      %s186 = smul.addr %s185, 32
      %s187 = smul.addr %s186, 4
      %s188 = scalar_lea.vmem %s2, %s187
      %p189 = pneg %p110
      %p190 = pneg %p107
      %p191 = scmp.lt.s32.totalorder %s16, 1
      %s192 = scalar_select %p191, %s16, 1
      %s193 = scalar_lea.vmem %s3, %s192
      %p194 = pneg %p136
      %p195 = pneg %p133
      %p196 = scmp.lt.s32.totalorder %s16, 1
      %s197 = scalar_select %p196, %s16, 1
      %s198 = scalar_lea.vmem %s4, %s197
      %p199 = scmp.lt.s32.totalorder %s16, 1
      %s200 = scalar_select %p199, %s16, 1
      %s201 = smul.addr %s200, 32
      %s202 = smul.addr %s201, 4
      %s203 = scalar_lea.vmem %s0, %s202
      %p204 = scmp.lt.s32.totalorder %s16, 1
      %s205 = scalar_select %p204, %s16, 1
      %s206 = smul.addr %s205, 32
      %s207 = smul.addr %s206, 4
      %s208 = scalar_lea.vmem %s2, %s207
      %p209 = scmp.lt.s32.totalorder %s16, 1
      %s210 = scalar_select %p209, %s16, 1
      %s211 = scalar_lea.vmem %s3, %s210
      %p212 = scmp.lt.s32.totalorder %s16, 1
      %s213 = scalar_select %p212, %s16, 1
      %s214 = scalar_lea.vmem %s4, %s213
      %v216 = vld [vmem:[%s203] sm:$0xf]
      %v217 = vld [vmem:[%s203 + $0x4] sm:$0xf]
      %v218 = vld [vmem:[%s203 + $0x8] sm:$0xf]
      %v219 = vld [vmem:[%s203 + $0xc] sm:$0xf]
      %v220 = vld [vmem:[%s203 + $0x10] sm:$0xf]
      %v221 = vld [vmem:[%s203 + $0x14] sm:$0xf]
      %v222 = vld [vmem:[%s203 + $0x18] sm:$0xf]
      %v223 = vld [vmem:[%s203 + $0x1c] sm:$0xf]
      %v224 = vld [vmem:[%s203 + $0x20] sm:$0xf]
      %v225 = vld [vmem:[%s203 + $0x24] sm:$0xf]
      %v226 = vld [vmem:[%s203 + $0x28] sm:$0xf]
      %v227 = vld [vmem:[%s203 + $0x2c] sm:$0xf]
      %v228 = vld [vmem:[%s203 + $0x30] sm:$0xf]
      %v229 = vld [vmem:[%s203 + $0x34] sm:$0xf]
      %v230 = vld [vmem:[%s203 + $0x38] sm:$0xf]
      %v231 = vld [vmem:[%s203 + $0x3c] sm:$0xf]
      %v232 = vld [vmem:[%s203 + $0x40] sm:$0xf]
      %v233 = vld [vmem:[%s203 + $0x44] sm:$0xf]
      %v234 = vld [vmem:[%s203 + $0x48] sm:$0xf]
      %v235 = vld [vmem:[%s203 + $0x4c] sm:$0xf]
      %v236 = vld [vmem:[%s203 + $0x50] sm:$0xf]
      %v237 = vld [vmem:[%s203 + $0x54] sm:$0xf]
      %v238 = vld [vmem:[%s203 + $0x58] sm:$0xf]
      %v239 = vld [vmem:[%s203 + $0x5c] sm:$0xf]
      %v240 = vld [vmem:[%s203 + $0x60] sm:$0xf]
      %v241 = vld [vmem:[%s203 + $0x64] sm:$0xf]
      %v242 = vld [vmem:[%s203 + $0x68] sm:$0xf]
      %v243 = vld [vmem:[%s203 + $0x6c] sm:$0xf]
      %v244 = vld [vmem:[%s203 + $0x70] sm:$0xf]
      %v245 = vld [vmem:[%s203 + $0x74] sm:$0xf]
      %v246 = vld [vmem:[%s203 + $0x78] sm:$0xf]
      %v247 = vld [vmem:[%s203 + $0x7c] sm:$0xf]
      %vm248 = vcmask 27648
      %249 = vst.msk [vmem:[#allocation2] sm:$0xf] %vm248, 0
      %250 = vst.msk [vmem:[#allocation2 + $0x4] sm:$0xf] %vm248, 0
      %vm251 = vcmask 24576
      %252 = vst.msk [vmem:[#allocation2 + $0x8] sm:$0x1] %vm251, 0
      %253 = vst.msk [vmem:[#allocation2 + $0xc] sm:$0xf] %vm248, 0
      %254 = vst.msk [vmem:[#allocation2 + $0x10] sm:$0xf] %vm248, 0
      %255 = vst.msk [vmem:[#allocation2 + $0x14] sm:$0x1] %vm251, 0
      %256 = vst.msk [vmem:[#allocation2 + $0x18] sm:$0xf] %vm248, 0
      %257 = vst.msk [vmem:[#allocation2 + $0x1c] sm:$0xf] %vm248, 0
      %258 = vst.msk [vmem:[#allocation2 + $0x20] sm:$0x1] %vm251, 0
      %259 = vst.msk [vmem:[#allocation2 + $0x24] sm:$0xf] %vm248, 0
      %260 = vst.msk [vmem:[#allocation2 + $0x28] sm:$0xf] %vm248, 0
      %261 = vst.msk [vmem:[#allocation2 + $0x2c] sm:$0x1] %vm251, 0
      %262 = vst.msk [vmem:[#allocation2 + $0x30] sm:$0xf] %vm248, 0
      %263 = vst.msk [vmem:[#allocation2 + $0x34] sm:$0xf] %vm248, 0
      %264 = vst.msk [vmem:[#allocation2 + $0x38] sm:$0x1] %vm251, 0
      %265 = vst.msk [vmem:[#allocation2 + $0x3c] sm:$0xf] %vm248, 0
      %266 = vst.msk [vmem:[#allocation2 + $0x40] sm:$0xf] %vm248, 0
      %267 = vst.msk [vmem:[#allocation2 + $0x44] sm:$0x1] %vm251, 0
      %268 = vst.msk [vmem:[#allocation2 + $0x48] sm:$0xf] %vm248, 0
      %269 = vst.msk [vmem:[#allocation2 + $0x4c] sm:$0xf] %vm248, 0
      %270 = vst.msk [vmem:[#allocation2 + $0x50] sm:$0x1] %vm251, 0
      %271 = vst.msk [vmem:[#allocation2 + $0x54] sm:$0xf] %vm248, 0
      %272 = vst.msk [vmem:[#allocation2 + $0x58] sm:$0xf] %vm248, 0
      %273 = vst.msk [vmem:[#allocation2 + $0x5c] sm:$0x1] %vm251, 0
      %274 = vst.msk [vmem:[#allocation2 + $0x60] sm:$0xf] %vm248, 0
      %275 = vst.msk [vmem:[#allocation2 + $0x64] sm:$0xf] %vm248, 0
      %276 = vst.msk [vmem:[#allocation2 + $0x68] sm:$0x1] %vm251, 0
      %277 = vst.msk [vmem:[#allocation2 + $0x6c] sm:$0xf] %vm248, 0
      %278 = vst.msk [vmem:[#allocation2 + $0x70] sm:$0xf] %vm248, 0
      %279 = vst.msk [vmem:[#allocation2 + $0x74] sm:$0x1] %vm251, 0
      %280 = vst.msk [vmem:[#allocation2 + $0x78] sm:$0xf] %vm248, 0
      %281 = vst.msk [vmem:[#allocation2 + $0x7c] sm:$0xf] %vm248, 0
      %282 = vst.msk [vmem:[#allocation2 + $0x80] sm:$0x1] %vm251, 0
      %283 = vst.msk [vmem:[#allocation2 + $0x84] sm:$0xf] %vm248, 0
      %284 = vst.msk [vmem:[#allocation2 + $0x88] sm:$0xf] %vm248, 0
      %285 = vst.msk [vmem:[#allocation2 + $0x8c] sm:$0x1] %vm251, 0
      %286 = vst.msk [vmem:[#allocation2 + $0x90] sm:$0xf] %vm248, 0
      %287 = vst.msk [vmem:[#allocation2 + $0x94] sm:$0xf] %vm248, 0
      %288 = vst.msk [vmem:[#allocation2 + $0x98] sm:$0x1] %vm251, 0
      %289 = vst.msk [vmem:[#allocation2 + $0x9c] sm:$0xf] %vm248, 0
      %290 = vst.msk [vmem:[#allocation2 + $0xa0] sm:$0xf] %vm248, 0
      %291 = vst.msk [vmem:[#allocation2 + $0xa4] sm:$0x1] %vm251, 0
      %292 = vst.msk [vmem:[#allocation2 + $0xa8] sm:$0xf] %vm248, 0
      %293 = vst.msk [vmem:[#allocation2 + $0xac] sm:$0xf] %vm248, 0
      %294 = vst.msk [vmem:[#allocation2 + $0xb0] sm:$0x1] %vm251, 0
      %295 = vst.msk [vmem:[#allocation2 + $0xb4] sm:$0xf] %vm248, 0
      %296 = vst.msk [vmem:[#allocation2 + $0xb8] sm:$0xf] %vm248, 0
      %297 = vst.msk [vmem:[#allocation2 + $0xbc] sm:$0x1] %vm251, 0
      %298 = vst.msk [vmem:[#allocation2 + $0xc0] sm:$0xf] %vm248, 0
      %299 = vst.msk [vmem:[#allocation2 + $0xc4] sm:$0xf] %vm248, 0
      %300 = vst.msk [vmem:[#allocation2 + $0xc8] sm:$0x1] %vm251, 0
      %301 = vst.msk [vmem:[#allocation2 + $0xcc] sm:$0xf] %vm248, 0
      %302 = vst.msk [vmem:[#allocation2 + $0xd0] sm:$0xf] %vm248, 0
      %303 = vst.msk [vmem:[#allocation2 + $0xd4] sm:$0x1] %vm251, 0
      %vm304 = vsmask.f32 256
      %vm305 = vsmask.f32 4368
      %vm306 = vmor %vm304, %vm305
      %v308 = vshrl.u32 %v216, 16
      %v310 = vrot.slane %v308, 7
      %v311 = vshll.u32 %v216, 16
      %v313 = vor.u32 %v310, %v311
      %v314 = vrot.slane %v310, 4
      %v316 = vshrl.u32 %v217, 16
      %v318 = vrot.slane %v316, 7
      %v319 = vshll.u32 %v217, 16
      %v321 = vor.u32 %v318, %v319
      %v322 = vsel %vm306, %v314, %v321
      %v323 = vrot.slane %v318, 4
      %v325 = vshrl.u32 %v218, 16
      %v327 = vrot.slane %v325, 7
      %v328 = vshll.u32 %v218, 16
      %v330 = vor.u32 %v327, %v328
      %v331 = vrot.slane %v327, 4
      %v333 = vshrl.u32 %v219, 16
      %v335 = vrot.slane %v333, 7
      %v336 = vshll.u32 %v219, 16
      %v338 = vor.u32 %v335, %v336
      %v339 = vsel %vm306, %v331, %v338
      %v340 = vrot.slane %v335, 4
      %v342 = vshrl.u32 %v220, 16
      %v344 = vrot.slane %v342, 7
      %v345 = vshll.u32 %v220, 16
      %v347 = vor.u32 %v344, %v345
      %v348 = vrot.slane %v344, 4
      %v350 = vshrl.u32 %v221, 16
      %v352 = vrot.slane %v350, 7
      %v353 = vshll.u32 %v221, 16
      %v355 = vor.u32 %v352, %v353
      %v356 = vsel %vm306, %v348, %v355
      %v357 = vrot.slane %v352, 4
      %v359 = vshrl.u32 %v222, 16
      %v361 = vrot.slane %v359, 7
      %v362 = vshll.u32 %v222, 16
      %v364 = vor.u32 %v361, %v362
      %v365 = vrot.slane %v361, 4
      %v367 = vshrl.u32 %v223, 16
      %v369 = vrot.slane %v367, 7
      %v370 = vshll.u32 %v223, 16
      %v372 = vor.u32 %v369, %v370
      %v373 = vsel %vm306, %v365, %v372
      %v374 = vrot.slane %v369, 4
      %v376 = vshrl.u32 %v224, 16
      %v378 = vrot.slane %v376, 7
      %v379 = vshll.u32 %v224, 16
      %v381 = vor.u32 %v378, %v379
      %v382 = vrot.slane %v378, 4
      %v384 = vshrl.u32 %v225, 16
      %v386 = vrot.slane %v384, 7
      %v387 = vshll.u32 %v225, 16
      %v389 = vor.u32 %v386, %v387
      %v390 = vsel %vm306, %v382, %v389
      %v391 = vrot.slane %v386, 4
      %v393 = vshrl.u32 %v226, 16
      %v395 = vrot.slane %v393, 7
      %v396 = vshll.u32 %v226, 16
      %v398 = vor.u32 %v395, %v396
      %v399 = vrot.slane %v395, 4
      %v401 = vshrl.u32 %v227, 16
      %v403 = vrot.slane %v401, 7
      %v404 = vshll.u32 %v227, 16
      %v406 = vor.u32 %v403, %v404
      %v407 = vsel %vm306, %v399, %v406
      %v408 = vrot.slane %v403, 4
      %v410 = vshrl.u32 %v228, 16
      %v412 = vrot.slane %v410, 7
      %v413 = vshll.u32 %v228, 16
      %v415 = vor.u32 %v412, %v413
      %v416 = vrot.slane %v412, 4
      %v418 = vshrl.u32 %v229, 16
      %v420 = vrot.slane %v418, 7
      %v421 = vshll.u32 %v229, 16
      %v423 = vor.u32 %v420, %v421
      %v424 = vsel %vm306, %v416, %v423
      %v425 = vrot.slane %v420, 4
      %v427 = vshrl.u32 %v230, 16
      %v429 = vrot.slane %v427, 7
      %v430 = vshll.u32 %v230, 16
      %v432 = vor.u32 %v429, %v430
      %v433 = vrot.slane %v429, 4
      %v435 = vshrl.u32 %v231, 16
      %v437 = vrot.slane %v435, 7
      %v438 = vshll.u32 %v231, 16
      %v440 = vor.u32 %v437, %v438
      %v441 = vsel %vm306, %v433, %v440
      %v442 = vrot.slane %v437, 4
      %v444 = vshrl.u32 %v232, 16
      %v446 = vrot.slane %v444, 7
      %v447 = vshll.u32 %v232, 16
      %v449 = vor.u32 %v446, %v447
      %v450 = vrot.slane %v446, 4
      %v452 = vshrl.u32 %v233, 16
      %v454 = vrot.slane %v452, 7
      %v455 = vshll.u32 %v233, 16
      %v457 = vor.u32 %v454, %v455
      %v458 = vsel %vm306, %v450, %v457
      %v459 = vrot.slane %v454, 4
      %v461 = vshrl.u32 %v234, 16
      %v463 = vrot.slane %v461, 7
      %v464 = vshll.u32 %v234, 16
      %v466 = vor.u32 %v463, %v464
      %v467 = vrot.slane %v463, 4
      %v469 = vshrl.u32 %v235, 16
      %v471 = vrot.slane %v469, 7
      %v472 = vshll.u32 %v235, 16
      %v474 = vor.u32 %v471, %v472
      %v475 = vsel %vm306, %v467, %v474
      %v476 = vrot.slane %v471, 4
      %v478 = vshrl.u32 %v236, 16
      %v480 = vrot.slane %v478, 7
      %v481 = vshll.u32 %v236, 16
      %v483 = vor.u32 %v480, %v481
      %v484 = vrot.slane %v480, 4
      %v486 = vshrl.u32 %v237, 16
      %v488 = vrot.slane %v486, 7
      %v489 = vshll.u32 %v237, 16
      %v491 = vor.u32 %v488, %v489
      %v492 = vsel %vm306, %v484, %v491
      %v493 = vrot.slane %v488, 4
      %v495 = vshrl.u32 %v238, 16
      %v497 = vrot.slane %v495, 7
      %v498 = vshll.u32 %v238, 16
      %v500 = vor.u32 %v497, %v498
      %v501 = vrot.slane %v497, 4
      %v503 = vshrl.u32 %v239, 16
      %v505 = vrot.slane %v503, 7
      %v506 = vshll.u32 %v239, 16
      %v508 = vor.u32 %v505, %v506
      %v509 = vsel %vm306, %v501, %v508
      %v510 = vrot.slane %v505, 4
      %v512 = vshrl.u32 %v240, 16
      %v514 = vrot.slane %v512, 7
      %v515 = vshll.u32 %v240, 16
      %v517 = vor.u32 %v514, %v515
      %v518 = vrot.slane %v514, 4
      %v520 = vshrl.u32 %v241, 16
      %v522 = vrot.slane %v520, 7
      %v523 = vshll.u32 %v241, 16
      %v525 = vor.u32 %v522, %v523
      %v526 = vsel %vm306, %v518, %v525
      %v527 = vrot.slane %v522, 4
      %v529 = vshrl.u32 %v242, 16
      %v531 = vrot.slane %v529, 7
      %v532 = vshll.u32 %v242, 16
      %v534 = vor.u32 %v531, %v532
      %v535 = vrot.slane %v531, 4
      %v537 = vshrl.u32 %v243, 16
      %v539 = vrot.slane %v537, 7
      %v540 = vshll.u32 %v243, 16
      %v542 = vor.u32 %v539, %v540
      %v543 = vsel %vm306, %v535, %v542
      %v544 = vrot.slane %v539, 4
      %v546 = vshrl.u32 %v244, 16
      %v548 = vrot.slane %v546, 7
      %v549 = vshll.u32 %v244, 16
      %v551 = vor.u32 %v548, %v549
      %v552 = vrot.slane %v548, 4
      %v554 = vshrl.u32 %v245, 16
      %v556 = vrot.slane %v554, 7
      %v557 = vshll.u32 %v245, 16
      %v559 = vor.u32 %v556, %v557
      %v560 = vsel %vm306, %v552, %v559
      %v561 = vrot.slane %v556, 4
      %v563 = vshrl.u32 %v246, 16
      %v565 = vrot.slane %v563, 7
      %v566 = vshll.u32 %v246, 16
      %v568 = vor.u32 %v565, %v566
      %v569 = vrot.slane %v565, 4
      %v571 = vshrl.u32 %v247, 16
      %v573 = vrot.slane %v571, 7
      %v574 = vshll.u32 %v247, 16
      %v576 = vor.u32 %v573, %v574
      %v577 = vsel %vm306, %v569, %v576
      %v578 = vrot.slane %v573, 4
      %s627 = scalar_lea.vmem [#allocation2], 12
      %vm628 = vcmask 27648
      %vm629 = vsmask.f32 7938
      %vm630 = vmand %vm628, %vm629
      %v631 = vld [vmem:[%s627] sm:$0xf]
      %v632 = vsel %vm630, %v313, %v631
      %633 = vst [vmem:[%s627] sm:$0xf] %v632
      %634 = vst.msk [vmem:[%s627 + $0x4] sm:$0xf] %vm248, %v322
      %vm635 = vcmask 24576
      %vm636 = vmand %vm635, %vm304
      %v637 = vld [vmem:[%s627 + $0x8] sm:$0x1]
      %v638 = vsel %vm636, %v323, %v637
      %639 = vst [vmem:[%s627 + $0x8] sm:$0x1] %v638
      %v640 = vld [vmem:[%s627 + $0xc] sm:$0xf]
      %v641 = vsel %vm630, %v330, %v640
      %642 = vst [vmem:[%s627 + $0xc] sm:$0xf] %v641
      %643 = vst.msk [vmem:[%s627 + $0x10] sm:$0xf] %vm248, %v339
      %v644 = vld [vmem:[%s627 + $0x14] sm:$0x1]
      %v645 = vsel %vm636, %v340, %v644
      %646 = vst [vmem:[%s627 + $0x14] sm:$0x1] %v645
      %v647 = vld [vmem:[%s627 + $0x18] sm:$0xf]
      %v648 = vsel %vm630, %v347, %v647
      %649 = vst [vmem:[%s627 + $0x18] sm:$0xf] %v648
      %650 = vst.msk [vmem:[%s627 + $0x1c] sm:$0xf] %vm248, %v356
      %v651 = vld [vmem:[%s627 + $0x20] sm:$0x1]
      %v652 = vsel %vm636, %v357, %v651
      %653 = vst [vmem:[%s627 + $0x20] sm:$0x1] %v652
      %v654 = vld [vmem:[%s627 + $0x24] sm:$0xf]
      %v655 = vsel %vm630, %v364, %v654
      %656 = vst [vmem:[%s627 + $0x24] sm:$0xf] %v655
      %657 = vst.msk [vmem:[%s627 + $0x28] sm:$0xf] %vm248, %v373
      %v658 = vld [vmem:[%s627 + $0x2c] sm:$0x1]
      %v659 = vsel %vm636, %v374, %v658
      %660 = vst [vmem:[%s627 + $0x2c] sm:$0x1] %v659
      %v661 = vld [vmem:[%s627 + $0x30] sm:$0xf]
      %v662 = vsel %vm630, %v381, %v661
      %663 = vst [vmem:[%s627 + $0x30] sm:$0xf] %v662
      %664 = vst.msk [vmem:[%s627 + $0x34] sm:$0xf] %vm248, %v390
      %v665 = vld [vmem:[%s627 + $0x38] sm:$0x1]
      %v666 = vsel %vm636, %v391, %v665
      %667 = vst [vmem:[%s627 + $0x38] sm:$0x1] %v666
      %v668 = vld [vmem:[%s627 + $0x3c] sm:$0xf]
      %v669 = vsel %vm630, %v398, %v668
      %670 = vst [vmem:[%s627 + $0x3c] sm:$0xf] %v669
      %671 = vst.msk [vmem:[%s627 + $0x40] sm:$0xf] %vm248, %v407
      %v672 = vld [vmem:[%s627 + $0x44] sm:$0x1]
      %v673 = vsel %vm636, %v408, %v672
      %674 = vst [vmem:[%s627 + $0x44] sm:$0x1] %v673
      %v675 = vld [vmem:[%s627 + $0x48] sm:$0xf]
      %v676 = vsel %vm630, %v415, %v675
      %677 = vst [vmem:[%s627 + $0x48] sm:$0xf] %v676
      %678 = vst.msk [vmem:[%s627 + $0x4c] sm:$0xf] %vm248, %v424
      %v679 = vld [vmem:[%s627 + $0x50] sm:$0x1]
      %v680 = vsel %vm636, %v425, %v679
      %681 = vst [vmem:[%s627 + $0x50] sm:$0x1] %v680
      %v682 = vld [vmem:[%s627 + $0x54] sm:$0xf]
      %v683 = vsel %vm630, %v432, %v682
      %684 = vst [vmem:[%s627 + $0x54] sm:$0xf] %v683
      %685 = vst.msk [vmem:[%s627 + $0x58] sm:$0xf] %vm248, %v441
      %v686 = vld [vmem:[%s627 + $0x5c] sm:$0x1]
      %v687 = vsel %vm636, %v442, %v686
      %688 = vst [vmem:[%s627 + $0x5c] sm:$0x1] %v687
      %v689 = vld [vmem:[%s627 + $0x60] sm:$0xf]
      %v690 = vsel %vm630, %v449, %v689
      %691 = vst [vmem:[%s627 + $0x60] sm:$0xf] %v690
      %692 = vst.msk [vmem:[%s627 + $0x64] sm:$0xf] %vm248, %v458
      %v693 = vld [vmem:[%s627 + $0x68] sm:$0x1]
      %v694 = vsel %vm636, %v459, %v693
      %695 = vst [vmem:[%s627 + $0x68] sm:$0x1] %v694
      %v696 = vld [vmem:[%s627 + $0x6c] sm:$0xf]
      %v697 = vsel %vm630, %v466, %v696
      %698 = vst [vmem:[%s627 + $0x6c] sm:$0xf] %v697
      %699 = vst.msk [vmem:[%s627 + $0x70] sm:$0xf] %vm248, %v475
      %v700 = vld [vmem:[%s627 + $0x74] sm:$0x1]
      %v701 = vsel %vm636, %v476, %v700
      %702 = vst [vmem:[%s627 + $0x74] sm:$0x1] %v701
      %v703 = vld [vmem:[%s627 + $0x78] sm:$0xf]
      %v704 = vsel %vm630, %v483, %v703
      %705 = vst [vmem:[%s627 + $0x78] sm:$0xf] %v704
      %706 = vst.msk [vmem:[%s627 + $0x7c] sm:$0xf] %vm248, %v492
      %v707 = vld [vmem:[%s627 + $0x80] sm:$0x1]
      %v708 = vsel %vm636, %v493, %v707
      %709 = vst [vmem:[%s627 + $0x80] sm:$0x1] %v708
      %v710 = vld [vmem:[%s627 + $0x84] sm:$0xf]
      %v711 = vsel %vm630, %v500, %v710
      %712 = vst [vmem:[%s627 + $0x84] sm:$0xf] %v711
      %713 = vst.msk [vmem:[%s627 + $0x88] sm:$0xf] %vm248, %v509
      %v714 = vld [vmem:[%s627 + $0x8c] sm:$0x1]
      %v715 = vsel %vm636, %v510, %v714
      %716 = vst [vmem:[%s627 + $0x8c] sm:$0x1] %v715
      %v717 = vld [vmem:[%s627 + $0x90] sm:$0xf]
      %v718 = vsel %vm630, %v517, %v717
      %719 = vst [vmem:[%s627 + $0x90] sm:$0xf] %v718
      %720 = vst.msk [vmem:[%s627 + $0x94] sm:$0xf] %vm248, %v526
      %v721 = vld [vmem:[%s627 + $0x98] sm:$0x1]
      %v722 = vsel %vm636, %v527, %v721
      %723 = vst [vmem:[%s627 + $0x98] sm:$0x1] %v722
      %v724 = vld [vmem:[%s627 + $0x9c] sm:$0xf]
      %v725 = vsel %vm630, %v534, %v724
      %726 = vst [vmem:[%s627 + $0x9c] sm:$0xf] %v725
      %727 = vst.msk [vmem:[%s627 + $0xa0] sm:$0xf] %vm248, %v543
      %v728 = vld [vmem:[%s627 + $0xa4] sm:$0x1]
      %v729 = vsel %vm636, %v544, %v728
      %730 = vst [vmem:[%s627 + $0xa4] sm:$0x1] %v729
      %v731 = vld [vmem:[%s627 + $0xa8] sm:$0xf]
      %v732 = vsel %vm630, %v551, %v731
      %733 = vst [vmem:[%s627 + $0xa8] sm:$0xf] %v732
      %734 = vst.msk [vmem:[%s627 + $0xac] sm:$0xf] %vm248, %v560
      %v735 = vld [vmem:[%s627 + $0xb0] sm:$0x1]
      %v736 = vsel %vm636, %v561, %v735
      %737 = vst [vmem:[%s627 + $0xb0] sm:$0x1] %v736
      %v738 = vld [vmem:[%s627 + $0xb4] sm:$0xf]
      %v739 = vsel %vm630, %v568, %v738
      %740 = vst [vmem:[%s627 + $0xb4] sm:$0xf] %v739
      %741 = vst.msk [vmem:[%s627 + $0xb8] sm:$0xf] %vm248, %v577
      %v742 = vld [vmem:[%s627 + $0xbc] sm:$0x1]
      %v743 = vsel %vm636, %v578, %v742
      %744 = vst [vmem:[%s627 + $0xbc] sm:$0x1] %v743
      %v745 = vld [vmem:[#allocation2] sm:$0xf]
      %v746 = vld [vmem:[#allocation2 + $0x4] sm:$0xf]
      %v747 = vld [vmem:[#allocation2 + $0xc] sm:$0xf]
      %v748 = vld [vmem:[#allocation2 + $0x10] sm:$0xf]
      %v749 = vld [vmem:[#allocation2 + $0x18] sm:$0xf]
      %v750 = vld [vmem:[#allocation2 + $0x1c] sm:$0xf]
      %v751 = vld [vmem:[#allocation2 + $0x24] sm:$0xf]
      %v752 = vld [vmem:[#allocation2 + $0x28] sm:$0xf]
      %v753 = vld [vmem:[#allocation2 + $0x30] sm:$0xf]
      %v754 = vld [vmem:[#allocation2 + $0x34] sm:$0xf]
      %v755 = vld [vmem:[#allocation2 + $0x3c] sm:$0xf]
      %v756 = vld [vmem:[#allocation2 + $0x40] sm:$0xf]
      %v757 = vld [vmem:[#allocation2 + $0x48] sm:$0xf]
      %v758 = vld [vmem:[#allocation2 + $0x4c] sm:$0xf]
      %v759 = vld [vmem:[#allocation2 + $0x54] sm:$0xf]
      %v760 = vld [vmem:[#allocation2 + $0x58] sm:$0xf]
      %v761 = vld [vmem:[#allocation2 + $0x60] sm:$0xf]
      %v762 = vld [vmem:[#allocation2 + $0x64] sm:$0xf]
      %v763 = vld [vmem:[#allocation2 + $0x6c] sm:$0xf]
      %v764 = vld [vmem:[#allocation2 + $0x70] sm:$0xf]
      %v765 = vld [vmem:[#allocation2 + $0x78] sm:$0xf]
      %v766 = vld [vmem:[#allocation2 + $0x7c] sm:$0xf]
      %v767 = vld [vmem:[#allocation2 + $0x84] sm:$0xf]
      %v768 = vld [vmem:[#allocation2 + $0x88] sm:$0xf]
      %v769 = vld [vmem:[#allocation2 + $0x90] sm:$0xf]
      %v770 = vld [vmem:[#allocation2 + $0x94] sm:$0xf]
      %v771 = vld [vmem:[#allocation2 + $0x9c] sm:$0xf]
      %v772 = vld [vmem:[#allocation2 + $0xa0] sm:$0xf]
      %v773 = vld [vmem:[#allocation2 + $0xa8] sm:$0xf]
      %v774 = vld [vmem:[#allocation2 + $0xac] sm:$0xf]
      %v775 = vld [vmem:[#allocation2 + $0xb4] sm:$0xf]
      %v776 = vld [vmem:[#allocation2 + $0xb8] sm:$0xf]
      %v809 = vunpack.c.l.b16 %v745
      %v810 = vunpack.c.l.b16 %v746
      %v811 = vunpack.c.l.b16 %v747
      %v812 = vunpack.c.l.b16 %v748
      %v813 = vunpack.c.l.b16 %v749
      %v814 = vunpack.c.l.b16 %v750
      %v815 = vunpack.c.l.b16 %v751
      %v816 = vunpack.c.l.b16 %v752
      %v817 = vunpack.c.l.b16 %v753
      %v818 = vunpack.c.l.b16 %v754
      %v819 = vunpack.c.l.b16 %v755
      %v820 = vunpack.c.l.b16 %v756
      %v821 = vunpack.c.l.b16 %v757
      %v822 = vunpack.c.l.b16 %v758
      %v823 = vunpack.c.l.b16 %v759
      %v824 = vunpack.c.l.b16 %v760
      %v825 = vunpack.c.l.b16 %v761
      %v826 = vunpack.c.l.b16 %v762
      %v827 = vunpack.c.l.b16 %v763
      %v828 = vunpack.c.l.b16 %v764
      %v829 = vunpack.c.l.b16 %v765
      %v830 = vunpack.c.l.b16 %v766
      %v831 = vunpack.c.l.b16 %v767
      %v832 = vunpack.c.l.b16 %v768
      %v833 = vunpack.c.l.b16 %v769
      %v834 = vunpack.c.l.b16 %v770
      %v835 = vunpack.c.l.b16 %v771
      %v836 = vunpack.c.l.b16 %v772
      %v837 = vunpack.c.l.b16 %v773
      %v838 = vunpack.c.l.b16 %v774
      %v839 = vunpack.c.l.b16 %v775
      %v840 = vunpack.c.l.b16 %v776
      %v841 = vpack.c.b16 %v810, %v809
      %v842 = vpack.c.b16 %v812, %v811
      %v843 = vpack.c.b16 %v814, %v813
      %v844 = vpack.c.b16 %v816, %v815
      %v845 = vpack.c.b16 %v818, %v817
      %v846 = vpack.c.b16 %v820, %v819
      %v847 = vpack.c.b16 %v822, %v821
      %v848 = vpack.c.b16 %v824, %v823
      %v849 = vpack.c.b16 %v826, %v825
      %v850 = vpack.c.b16 %v828, %v827
      %v851 = vpack.c.b16 %v830, %v829
      %v852 = vpack.c.b16 %v832, %v831
      %v853 = vpack.c.b16 %v834, %v833
      %v854 = vpack.c.b16 %v836, %v835
      %v855 = vpack.c.b16 %v838, %v837
      %v856 = vpack.c.b16 %v840, %v839
      %vm873 = vcmask 31744
      %874 = vst.msk [vmem:[#allocation3] sm:$0xff] %vm873, %v841
      %875 = vst.msk [vmem:[#allocation3 + $0x8] sm:$0xff] %vm873, %v842
      %876 = vst.msk [vmem:[#allocation3 + $0x10] sm:$0xff] %vm873, %v843
      %877 = vst.msk [vmem:[#allocation3 + $0x18] sm:$0xff] %vm873, %v844
      %878 = vst.msk [vmem:[#allocation3 + $0x20] sm:$0xff] %vm873, %v845
      %879 = vst.msk [vmem:[#allocation3 + $0x28] sm:$0xff] %vm873, %v846
      %880 = vst.msk [vmem:[#allocation3 + $0x30] sm:$0xff] %vm873, %v847
      %881 = vst.msk [vmem:[#allocation3 + $0x38] sm:$0xff] %vm873, %v848
      %882 = vst.msk [vmem:[#allocation3 + $0x40] sm:$0xff] %vm873, %v849
      %883 = vst.msk [vmem:[#allocation3 + $0x48] sm:$0xff] %vm873, %v850
      %884 = vst.msk [vmem:[#allocation3 + $0x50] sm:$0xff] %vm873, %v851
      %885 = vst.msk [vmem:[#allocation3 + $0x58] sm:$0xff] %vm873, %v852
      %886 = vst.msk [vmem:[#allocation3 + $0x60] sm:$0xff] %vm873, %v853
      %887 = vst.msk [vmem:[#allocation3 + $0x68] sm:$0xff] %vm873, %v854
      %888 = vst.msk [vmem:[#allocation3 + $0x70] sm:$0xff] %vm873, %v855
      %889 = vst.msk [vmem:[#allocation3 + $0x78] sm:$0xff] %vm873, %v856
      %v890 = vld [vmem:[#allocation2] sm:$0xf]
      %v891 = vld [vmem:[#allocation2 + $0x4] sm:$0xf]
      %v892 = vld [vmem:[#allocation2 + $0x8] sm:$0x1]
      %v893 = vld [vmem:[#allocation2 + $0xc] sm:$0xf]
      %v894 = vld [vmem:[#allocation2 + $0x10] sm:$0xf]
      %v895 = vld [vmem:[#allocation2 + $0x14] sm:$0x1]
      %v896 = vld [vmem:[#allocation2 + $0x18] sm:$0xf]
      %v897 = vld [vmem:[#allocation2 + $0x1c] sm:$0xf]
      %v898 = vld [vmem:[#allocation2 + $0x20] sm:$0x1]
      %v899 = vld [vmem:[#allocation2 + $0x24] sm:$0xf]
      %v900 = vld [vmem:[#allocation2 + $0x28] sm:$0xf]
      %v901 = vld [vmem:[#allocation2 + $0x2c] sm:$0x1]
      %v902 = vld [vmem:[#allocation2 + $0x30] sm:$0xf]
      %v903 = vld [vmem:[#allocation2 + $0x34] sm:$0xf]
      %v904 = vld [vmem:[#allocation2 + $0x38] sm:$0x1]
      %v905 = vld [vmem:[#allocation2 + $0x3c] sm:$0xf]
      %v906 = vld [vmem:[#allocation2 + $0x40] sm:$0xf]
      %v907 = vld [vmem:[#allocation2 + $0x44] sm:$0x1]
      %v908 = vld [vmem:[#allocation2 + $0x48] sm:$0xf]
      %v909 = vld [vmem:[#allocation2 + $0x4c] sm:$0xf]
      %v910 = vld [vmem:[#allocation2 + $0x50] sm:$0x1]
      %v911 = vld [vmem:[#allocation2 + $0x54] sm:$0xf]
      %v912 = vld [vmem:[#allocation2 + $0x58] sm:$0xf]
      %v913 = vld [vmem:[#allocation2 + $0x5c] sm:$0x1]
      %v914 = vld [vmem:[#allocation2 + $0x60] sm:$0xf]
      %v915 = vld [vmem:[#allocation2 + $0x64] sm:$0xf]
      %v916 = vld [vmem:[#allocation2 + $0x68] sm:$0x1]
      %v917 = vld [vmem:[#allocation2 + $0x6c] sm:$0xf]
      %v918 = vld [vmem:[#allocation2 + $0x70] sm:$0xf]
      %v919 = vld [vmem:[#allocation2 + $0x74] sm:$0x1]
      %v920 = vld [vmem:[#allocation2 + $0x78] sm:$0xf]
      %v921 = vld [vmem:[#allocation2 + $0x7c] sm:$0xf]
      %v922 = vld [vmem:[#allocation2 + $0x80] sm:$0x1]
      %v923 = vld [vmem:[#allocation2 + $0x84] sm:$0xf]
      %v924 = vld [vmem:[#allocation2 + $0x88] sm:$0xf]
      %v925 = vld [vmem:[#allocation2 + $0x8c] sm:$0x1]
      %v926 = vld [vmem:[#allocation2 + $0x90] sm:$0xf]
      %v927 = vld [vmem:[#allocation2 + $0x94] sm:$0xf]
      %v928 = vld [vmem:[#allocation2 + $0x98] sm:$0x1]
      %v929 = vld [vmem:[#allocation2 + $0x9c] sm:$0xf]
      %v930 = vld [vmem:[#allocation2 + $0xa0] sm:$0xf]
      %v931 = vld [vmem:[#allocation2 + $0xa4] sm:$0x1]
      %v932 = vld [vmem:[#allocation2 + $0xa8] sm:$0xf]
      %v933 = vld [vmem:[#allocation2 + $0xac] sm:$0xf]
      %v934 = vld [vmem:[#allocation2 + $0xb0] sm:$0x1]
      %v935 = vld [vmem:[#allocation2 + $0xb4] sm:$0xf]
      %v936 = vld [vmem:[#allocation2 + $0xb8] sm:$0xf]
      %v937 = vld [vmem:[#allocation2 + $0xbc] sm:$0x1]
      %v986 = vunpack.c.l.b16 %v890
      %v987 = vunpack.c.l.b16 %v891
      %v988 = vunpack.c.l.b16 %v892
      %v989 = vunpack.c.l.b16 %v893
      %v990 = vunpack.c.l.b16 %v894
      %v991 = vunpack.c.l.b16 %v895
      %v992 = vunpack.c.l.b16 %v896
      %v993 = vunpack.c.l.b16 %v897
      %v994 = vunpack.c.l.b16 %v898
      %v995 = vunpack.c.l.b16 %v899
      %v996 = vunpack.c.l.b16 %v900
      %v997 = vunpack.c.l.b16 %v901
      %v998 = vunpack.c.l.b16 %v902
      %v999 = vunpack.c.l.b16 %v903
      %v1000 = vunpack.c.l.b16 %v904
      %v1001 = vunpack.c.l.b16 %v905
      %v1002 = vunpack.c.l.b16 %v906
      %v1003 = vunpack.c.l.b16 %v907
      %v1004 = vunpack.c.l.b16 %v908
      %v1005 = vunpack.c.l.b16 %v909
      %v1006 = vunpack.c.l.b16 %v910
      %v1007 = vunpack.c.l.b16 %v911
      %v1008 = vunpack.c.l.b16 %v912
      %v1009 = vunpack.c.l.b16 %v913
      %v1010 = vunpack.c.l.b16 %v914
      %v1011 = vunpack.c.l.b16 %v915
      %v1012 = vunpack.c.l.b16 %v916
      %v1013 = vunpack.c.l.b16 %v917
      %v1014 = vunpack.c.l.b16 %v918
      %v1015 = vunpack.c.l.b16 %v919
      %v1016 = vunpack.c.l.b16 %v920
      %v1017 = vunpack.c.l.b16 %v921
      %v1018 = vunpack.c.l.b16 %v922
      %v1019 = vunpack.c.l.b16 %v923
      %v1020 = vunpack.c.l.b16 %v924
      %v1021 = vunpack.c.l.b16 %v925
      %v1022 = vunpack.c.l.b16 %v926
      %v1023 = vunpack.c.l.b16 %v927
      %v1024 = vunpack.c.l.b16 %v928
      %v1025 = vunpack.c.l.b16 %v929
      %v1026 = vunpack.c.l.b16 %v930
      %v1027 = vunpack.c.l.b16 %v931
      %v1028 = vunpack.c.l.b16 %v932
      %v1029 = vunpack.c.l.b16 %v933
      %v1030 = vunpack.c.l.b16 %v934
      %v1031 = vunpack.c.l.b16 %v935
      %v1032 = vunpack.c.l.b16 %v936
      %v1033 = vunpack.c.l.b16 %v937
      %v1034 = vpack.c.b16 %v987, %v986
      %v1035 = vpack.c.b16 %v988, %v988
      %v1036 = vpack.c.b16 %v990, %v989
      %v1037 = vpack.c.b16 %v991, %v991
      %v1038 = vpack.c.b16 %v993, %v992
      %v1039 = vpack.c.b16 %v994, %v994
      %v1040 = vpack.c.b16 %v996, %v995
      %v1041 = vpack.c.b16 %v997, %v997
      %v1042 = vpack.c.b16 %v999, %v998
      %v1043 = vpack.c.b16 %v1000, %v1000
      %v1044 = vpack.c.b16 %v1002, %v1001
      %v1045 = vpack.c.b16 %v1003, %v1003
      %v1046 = vpack.c.b16 %v1005, %v1004
      %v1047 = vpack.c.b16 %v1006, %v1006
      %v1048 = vpack.c.b16 %v1008, %v1007
      %v1049 = vpack.c.b16 %v1009, %v1009
      %v1050 = vpack.c.b16 %v1011, %v1010
      %v1051 = vpack.c.b16 %v1012, %v1012
      %v1052 = vpack.c.b16 %v1014, %v1013
      %v1053 = vpack.c.b16 %v1015, %v1015
      %v1054 = vpack.c.b16 %v1017, %v1016
      %v1055 = vpack.c.b16 %v1018, %v1018
      %v1056 = vpack.c.b16 %v1020, %v1019
      %v1057 = vpack.c.b16 %v1021, %v1021
      %v1058 = vpack.c.b16 %v1023, %v1022
      %v1059 = vpack.c.b16 %v1024, %v1024
      %v1060 = vpack.c.b16 %v1026, %v1025
      %v1061 = vpack.c.b16 %v1027, %v1027
      %v1062 = vpack.c.b16 %v1029, %v1028
      %v1063 = vpack.c.b16 %v1030, %v1030
      %v1064 = vpack.c.b16 %v1032, %v1031
      %v1065 = vpack.c.b16 %v1033, %v1033
      %vm1066 = vsmask.f32 7424
      %v1068 = vshrl.u32 %v1034, 16
      %v1070 = vshll.u32 %v1034, 16
      %v1072 = vrot.slane %v1070, 1
      %v1073 = vor.u32 %v1068, %v1072
      %v1075 = vshll.u32 %v1035, 16
      %v1077 = vrot.slane %v1075, 1
      %v1078 = vsel %vm1066, %v1073, %v1077
      %v1080 = vshrl.u32 %v1036, 16
      %v1082 = vshll.u32 %v1036, 16
      %v1084 = vrot.slane %v1082, 1
      %v1085 = vor.u32 %v1080, %v1084
      %v1087 = vshll.u32 %v1037, 16
      %v1089 = vrot.slane %v1087, 1
      %v1090 = vsel %vm1066, %v1085, %v1089
      %v1092 = vshrl.u32 %v1038, 16
      %v1094 = vshll.u32 %v1038, 16
      %v1096 = vrot.slane %v1094, 1
      %v1097 = vor.u32 %v1092, %v1096
      %v1099 = vshll.u32 %v1039, 16
      %v1101 = vrot.slane %v1099, 1
      %v1102 = vsel %vm1066, %v1097, %v1101
      %v1104 = vshrl.u32 %v1040, 16
      %v1106 = vshll.u32 %v1040, 16
      %v1108 = vrot.slane %v1106, 1
      %v1109 = vor.u32 %v1104, %v1108
      %v1111 = vshll.u32 %v1041, 16
      %v1113 = vrot.slane %v1111, 1
      %v1114 = vsel %vm1066, %v1109, %v1113
      %v1116 = vshrl.u32 %v1042, 16
      %v1118 = vshll.u32 %v1042, 16
      %v1120 = vrot.slane %v1118, 1
      %v1121 = vor.u32 %v1116, %v1120
      %v1123 = vshll.u32 %v1043, 16
      %v1125 = vrot.slane %v1123, 1
      %v1126 = vsel %vm1066, %v1121, %v1125
      %v1128 = vshrl.u32 %v1044, 16
      %v1130 = vshll.u32 %v1044, 16
      %v1132 = vrot.slane %v1130, 1
      %v1133 = vor.u32 %v1128, %v1132
      %v1135 = vshll.u32 %v1045, 16
      %v1137 = vrot.slane %v1135, 1
      %v1138 = vsel %vm1066, %v1133, %v1137
      %v1140 = vshrl.u32 %v1046, 16
      %v1142 = vshll.u32 %v1046, 16
      %v1144 = vrot.slane %v1142, 1
      %v1145 = vor.u32 %v1140, %v1144
      %v1147 = vshll.u32 %v1047, 16
      %v1149 = vrot.slane %v1147, 1
      %v1150 = vsel %vm1066, %v1145, %v1149
      %v1152 = vshrl.u32 %v1048, 16
      %v1154 = vshll.u32 %v1048, 16
      %v1156 = vrot.slane %v1154, 1
      %v1157 = vor.u32 %v1152, %v1156
      %v1159 = vshll.u32 %v1049, 16
      %v1161 = vrot.slane %v1159, 1
      %v1162 = vsel %vm1066, %v1157, %v1161
      %v1164 = vshrl.u32 %v1050, 16
      %v1166 = vshll.u32 %v1050, 16
      %v1168 = vrot.slane %v1166, 1
      %v1169 = vor.u32 %v1164, %v1168
      %v1171 = vshll.u32 %v1051, 16
      %v1173 = vrot.slane %v1171, 1
      %v1174 = vsel %vm1066, %v1169, %v1173
      %v1176 = vshrl.u32 %v1052, 16
      %v1178 = vshll.u32 %v1052, 16
      %v1180 = vrot.slane %v1178, 1
      %v1181 = vor.u32 %v1176, %v1180
      %v1183 = vshll.u32 %v1053, 16
      %v1185 = vrot.slane %v1183, 1
      %v1186 = vsel %vm1066, %v1181, %v1185
      %v1188 = vshrl.u32 %v1054, 16
      %v1190 = vshll.u32 %v1054, 16
      %v1192 = vrot.slane %v1190, 1
      %v1193 = vor.u32 %v1188, %v1192
      %v1195 = vshll.u32 %v1055, 16
      %v1197 = vrot.slane %v1195, 1
      %v1198 = vsel %vm1066, %v1193, %v1197
      %v1200 = vshrl.u32 %v1056, 16
      %v1202 = vshll.u32 %v1056, 16
      %v1204 = vrot.slane %v1202, 1
      %v1205 = vor.u32 %v1200, %v1204
      %v1207 = vshll.u32 %v1057, 16
      %v1209 = vrot.slane %v1207, 1
      %v1210 = vsel %vm1066, %v1205, %v1209
      %v1212 = vshrl.u32 %v1058, 16
      %v1214 = vshll.u32 %v1058, 16
      %v1216 = vrot.slane %v1214, 1
      %v1217 = vor.u32 %v1212, %v1216
      %v1219 = vshll.u32 %v1059, 16
      %v1221 = vrot.slane %v1219, 1
      %v1222 = vsel %vm1066, %v1217, %v1221
      %v1224 = vshrl.u32 %v1060, 16
      %v1226 = vshll.u32 %v1060, 16
      %v1228 = vrot.slane %v1226, 1
      %v1229 = vor.u32 %v1224, %v1228
      %v1231 = vshll.u32 %v1061, 16
      %v1233 = vrot.slane %v1231, 1
      %v1234 = vsel %vm1066, %v1229, %v1233
      %v1236 = vshrl.u32 %v1062, 16
      %v1238 = vshll.u32 %v1062, 16
      %v1240 = vrot.slane %v1238, 1
      %v1241 = vor.u32 %v1236, %v1240
      %v1243 = vshll.u32 %v1063, 16
      %v1245 = vrot.slane %v1243, 1
      %v1246 = vsel %vm1066, %v1241, %v1245
      %v1248 = vshrl.u32 %v1064, 16
      %v1250 = vshll.u32 %v1064, 16
      %v1252 = vrot.slane %v1250, 1
      %v1253 = vor.u32 %v1248, %v1252
      %v1255 = vshll.u32 %v1065, 16
      %v1257 = vrot.slane %v1255, 1
      %v1258 = vsel %vm1066, %v1253, %v1257
      %1259 = vrot.lane.b32.xlu0 %v1078, 4
      %v1260 = vpop.permute.xlu0 %1259
      %1261 = vrot.lane.b32.xlu0 %v1090, 4
      %v1262 = vpop.permute.xlu0 %1261
      %1263 = vrot.lane.b32.xlu0 %v1102, 4
      %v1264 = vpop.permute.xlu0 %1263
      %1265 = vrot.lane.b32.xlu0 %v1114, 4
      %v1266 = vpop.permute.xlu0 %1265
      %1267 = vrot.lane.b32.xlu0 %v1126, 4
      %v1268 = vpop.permute.xlu0 %1267
      %1269 = vrot.lane.b32.xlu0 %v1138, 4
      %v1270 = vpop.permute.xlu0 %1269
      %1271 = vrot.lane.b32.xlu0 %v1150, 4
      %v1272 = vpop.permute.xlu0 %1271
      %1273 = vrot.lane.b32.xlu0 %v1162, 4
      %v1274 = vpop.permute.xlu0 %1273
      %1275 = vrot.lane.b32.xlu0 %v1174, 4
      %v1276 = vpop.permute.xlu0 %1275
      %1277 = vrot.lane.b32.xlu0 %v1186, 4
      %v1278 = vpop.permute.xlu0 %1277
      %1279 = vrot.lane.b32.xlu0 %v1198, 4
      %v1280 = vpop.permute.xlu0 %1279
      %1281 = vrot.lane.b32.xlu0 %v1210, 4
      %v1282 = vpop.permute.xlu0 %1281
      %1283 = vrot.lane.b32.xlu0 %v1222, 4
      %v1284 = vpop.permute.xlu0 %1283
      %1285 = vrot.lane.b32.xlu0 %v1234, 4
      %v1286 = vpop.permute.xlu0 %1285
      %1287 = vrot.lane.b32.xlu0 %v1246, 4
      %v1288 = vpop.permute.xlu0 %1287
      %1289 = vrot.lane.b32.xlu0 %v1258, 4
      %v1290 = vpop.permute.xlu0 %1289
      %vm1307 = vcmask 64544
      %1308 = vst.msk [vmem:[#allocation3] sm:$0xff] %vm1307, %v1260
      %1309 = vst.msk [vmem:[#allocation3 + $0x8] sm:$0xff] %vm1307, %v1262
      %1310 = vst.msk [vmem:[#allocation3 + $0x10] sm:$0xff] %vm1307, %v1264
      %1311 = vst.msk [vmem:[#allocation3 + $0x18] sm:$0xff] %vm1307, %v1266
      %1312 = vst.msk [vmem:[#allocation3 + $0x20] sm:$0xff] %vm1307, %v1268
      %1313 = vst.msk [vmem:[#allocation3 + $0x28] sm:$0xff] %vm1307, %v1270
      %1314 = vst.msk [vmem:[#allocation3 + $0x30] sm:$0xff] %vm1307, %v1272
      %1315 = vst.msk [vmem:[#allocation3 + $0x38] sm:$0xff] %vm1307, %v1274
      %1316 = vst.msk [vmem:[#allocation3 + $0x40] sm:$0xff] %vm1307, %v1276
      %1317 = vst.msk [vmem:[#allocation3 + $0x48] sm:$0xff] %vm1307, %v1278
      %1318 = vst.msk [vmem:[#allocation3 + $0x50] sm:$0xff] %vm1307, %v1280
      %1319 = vst.msk [vmem:[#allocation3 + $0x58] sm:$0xff] %vm1307, %v1282
      %1320 = vst.msk [vmem:[#allocation3 + $0x60] sm:$0xff] %vm1307, %v1284
      %1321 = vst.msk [vmem:[#allocation3 + $0x68] sm:$0xff] %vm1307, %v1286
      %1322 = vst.msk [vmem:[#allocation3 + $0x70] sm:$0xff] %vm1307, %v1288
      %1323 = vst.msk [vmem:[#allocation3 + $0x78] sm:$0xff] %vm1307, %v1290
      %v1324 = vld [vmem:[#allocation2] sm:$0xe]
      %v1325 = vld [vmem:[#allocation2 + $0x4] sm:$0xf]
      %v1326 = vld [vmem:[#allocation2 + $0x8] sm:$0x1]
      %v1327 = vld [vmem:[#allocation2 + $0xc] sm:$0xe]
      %v1328 = vld [vmem:[#allocation2 + $0x10] sm:$0xf]
      %v1329 = vld [vmem:[#allocation2 + $0x14] sm:$0x1]
      %v1330 = vld [vmem:[#allocation2 + $0x18] sm:$0xe]
      %v1331 = vld [vmem:[#allocation2 + $0x1c] sm:$0xf]
      %v1332 = vld [vmem:[#allocation2 + $0x20] sm:$0x1]
      %v1333 = vld [vmem:[#allocation2 + $0x24] sm:$0xe]
      %v1334 = vld [vmem:[#allocation2 + $0x28] sm:$0xf]
      %v1335 = vld [vmem:[#allocation2 + $0x2c] sm:$0x1]
      %v1336 = vld [vmem:[#allocation2 + $0x30] sm:$0xe]
      %v1337 = vld [vmem:[#allocation2 + $0x34] sm:$0xf]
      %v1338 = vld [vmem:[#allocation2 + $0x38] sm:$0x1]
      %v1339 = vld [vmem:[#allocation2 + $0x3c] sm:$0xe]
      %v1340 = vld [vmem:[#allocation2 + $0x40] sm:$0xf]
      %v1341 = vld [vmem:[#allocation2 + $0x44] sm:$0x1]
      %v1342 = vld [vmem:[#allocation2 + $0x48] sm:$0xe]
      %v1343 = vld [vmem:[#allocation2 + $0x4c] sm:$0xf]
      %v1344 = vld [vmem:[#allocation2 + $0x50] sm:$0x1]
      %v1345 = vld [vmem:[#allocation2 + $0x54] sm:$0xe]
      %v1346 = vld [vmem:[#allocation2 + $0x58] sm:$0xf]
      %v1347 = vld [vmem:[#allocation2 + $0x5c] sm:$0x1]
      %v1348 = vld [vmem:[#allocation2 + $0x60] sm:$0xe]
      %v1349 = vld [vmem:[#allocation2 + $0x64] sm:$0xf]
      %v1350 = vld [vmem:[#allocation2 + $0x68] sm:$0x1]
      %v1351 = vld [vmem:[#allocation2 + $0x6c] sm:$0xe]
      %v1352 = vld [vmem:[#allocation2 + $0x70] sm:$0xf]
      %v1353 = vld [vmem:[#allocation2 + $0x74] sm:$0x1]
      %v1354 = vld [vmem:[#allocation2 + $0x78] sm:$0xe]
      %v1355 = vld [vmem:[#allocation2 + $0x7c] sm:$0xf]
      %v1356 = vld [vmem:[#allocation2 + $0x80] sm:$0x1]
      %v1357 = vld [vmem:[#allocation2 + $0x84] sm:$0xe]
      %v1358 = vld [vmem:[#allocation2 + $0x88] sm:$0xf]
      %v1359 = vld [vmem:[#allocation2 + $0x8c] sm:$0x1]
      %v1360 = vld [vmem:[#allocation2 + $0x90] sm:$0xe]
      %v1361 = vld [vmem:[#allocation2 + $0x94] sm:$0xf]
      %v1362 = vld [vmem:[#allocation2 + $0x98] sm:$0x1]
      %v1363 = vld [vmem:[#allocation2 + $0x9c] sm:$0xe]
      %v1364 = vld [vmem:[#allocation2 + $0xa0] sm:$0xf]
      %v1365 = vld [vmem:[#allocation2 + $0xa4] sm:$0x1]
      %v1366 = vld [vmem:[#allocation2 + $0xa8] sm:$0xe]
      %v1367 = vld [vmem:[#allocation2 + $0xac] sm:$0xf]
      %v1368 = vld [vmem:[#allocation2 + $0xb0] sm:$0x1]
      %v1369 = vld [vmem:[#allocation2 + $0xb4] sm:$0xe]
      %v1370 = vld [vmem:[#allocation2 + $0xb8] sm:$0xf]
      %v1371 = vld [vmem:[#allocation2 + $0xbc] sm:$0x1]
      %v1420 = vunpack.c.l.b16 %v1324
      %v1421 = vunpack.c.l.b16 %v1325
      %v1422 = vunpack.c.l.b16 %v1326
      %v1423 = vunpack.c.l.b16 %v1327
      %v1424 = vunpack.c.l.b16 %v1328
      %v1425 = vunpack.c.l.b16 %v1329
      %v1426 = vunpack.c.l.b16 %v1330
      %v1427 = vunpack.c.l.b16 %v1331
      %v1428 = vunpack.c.l.b16 %v1332
      %v1429 = vunpack.c.l.b16 %v1333
      %v1430 = vunpack.c.l.b16 %v1334
      %v1431 = vunpack.c.l.b16 %v1335
      %v1432 = vunpack.c.l.b16 %v1336
      %v1433 = vunpack.c.l.b16 %v1337
      %v1434 = vunpack.c.l.b16 %v1338
      %v1435 = vunpack.c.l.b16 %v1339
      %v1436 = vunpack.c.l.b16 %v1340
      %v1437 = vunpack.c.l.b16 %v1341
      %v1438 = vunpack.c.l.b16 %v1342
      %v1439 = vunpack.c.l.b16 %v1343
      %v1440 = vunpack.c.l.b16 %v1344
      %v1441 = vunpack.c.l.b16 %v1345
      %v1442 = vunpack.c.l.b16 %v1346
      %v1443 = vunpack.c.l.b16 %v1347
      %v1444 = vunpack.c.l.b16 %v1348
      %v1445 = vunpack.c.l.b16 %v1349
      %v1446 = vunpack.c.l.b16 %v1350
      %v1447 = vunpack.c.l.b16 %v1351
      %v1448 = vunpack.c.l.b16 %v1352
      %v1449 = vunpack.c.l.b16 %v1353
      %v1450 = vunpack.c.l.b16 %v1354
      %v1451 = vunpack.c.l.b16 %v1355
      %v1452 = vunpack.c.l.b16 %v1356
      %v1453 = vunpack.c.l.b16 %v1357
      %v1454 = vunpack.c.l.b16 %v1358
      %v1455 = vunpack.c.l.b16 %v1359
      %v1456 = vunpack.c.l.b16 %v1360
      %v1457 = vunpack.c.l.b16 %v1361
      %v1458 = vunpack.c.l.b16 %v1362
      %v1459 = vunpack.c.l.b16 %v1363
      %v1460 = vunpack.c.l.b16 %v1364
      %v1461 = vunpack.c.l.b16 %v1365
      %v1462 = vunpack.c.l.b16 %v1366
      %v1463 = vunpack.c.l.b16 %v1367
      %v1464 = vunpack.c.l.b16 %v1368
      %v1465 = vunpack.c.l.b16 %v1369
      %v1466 = vunpack.c.l.b16 %v1370
      %v1467 = vunpack.c.l.b16 %v1371
      %v1468 = vpack.c.b16 %v1421, %v1420
      %v1469 = vpack.c.b16 %v1422, %v1422
      %v1470 = vpack.c.b16 %v1424, %v1423
      %v1471 = vpack.c.b16 %v1425, %v1425
      %v1472 = vpack.c.b16 %v1427, %v1426
      %v1473 = vpack.c.b16 %v1428, %v1428
      %v1474 = vpack.c.b16 %v1430, %v1429
      %v1475 = vpack.c.b16 %v1431, %v1431
      %v1476 = vpack.c.b16 %v1433, %v1432
      %v1477 = vpack.c.b16 %v1434, %v1434
      %v1478 = vpack.c.b16 %v1436, %v1435
      %v1479 = vpack.c.b16 %v1437, %v1437
      %v1480 = vpack.c.b16 %v1439, %v1438
      %v1481 = vpack.c.b16 %v1440, %v1440
      %v1482 = vpack.c.b16 %v1442, %v1441
      %v1483 = vpack.c.b16 %v1443, %v1443
      %v1484 = vpack.c.b16 %v1445, %v1444
      %v1485 = vpack.c.b16 %v1446, %v1446
      %v1486 = vpack.c.b16 %v1448, %v1447
      %v1487 = vpack.c.b16 %v1449, %v1449
      %v1488 = vpack.c.b16 %v1451, %v1450
      %v1489 = vpack.c.b16 %v1452, %v1452
      %v1490 = vpack.c.b16 %v1454, %v1453
      %v1491 = vpack.c.b16 %v1455, %v1455
      %v1492 = vpack.c.b16 %v1457, %v1456
      %v1493 = vpack.c.b16 %v1458, %v1458
      %v1494 = vpack.c.b16 %v1460, %v1459
      %v1495 = vpack.c.b16 %v1461, %v1461
      %v1496 = vpack.c.b16 %v1463, %v1462
      %v1497 = vpack.c.b16 %v1464, %v1464
      %v1498 = vpack.c.b16 %v1466, %v1465
      %v1499 = vpack.c.b16 %v1467, %v1467
      %vm1500 = vcmask 1046528
      %v1501 = vrot.slane %v1468, 1
      %v1502 = vrot.slane %v1469, 1
      %v1503 = vsel %vm1500, %v1501, %v1502
      %v1504 = vrot.slane %v1470, 1
      %v1505 = vrot.slane %v1471, 1
      %v1506 = vsel %vm1500, %v1504, %v1505
      %v1507 = vrot.slane %v1472, 1
      %v1508 = vrot.slane %v1473, 1
      %v1509 = vsel %vm1500, %v1507, %v1508
      %v1510 = vrot.slane %v1474, 1
      %v1511 = vrot.slane %v1475, 1
      %v1512 = vsel %vm1500, %v1510, %v1511
      %v1513 = vrot.slane %v1476, 1
      %v1514 = vrot.slane %v1477, 1
      %v1515 = vsel %vm1500, %v1513, %v1514
      %v1516 = vrot.slane %v1478, 1
      %v1517 = vrot.slane %v1479, 1
      %v1518 = vsel %vm1500, %v1516, %v1517
      %v1519 = vrot.slane %v1480, 1
      %v1520 = vrot.slane %v1481, 1
      %v1521 = vsel %vm1500, %v1519, %v1520
      %v1522 = vrot.slane %v1482, 1
      %v1523 = vrot.slane %v1483, 1
      %v1524 = vsel %vm1500, %v1522, %v1523
      %v1525 = vrot.slane %v1484, 1
      %v1526 = vrot.slane %v1485, 1
      %v1527 = vsel %vm1500, %v1525, %v1526
      %v1528 = vrot.slane %v1486, 1
      %v1529 = vrot.slane %v1487, 1
      %v1530 = vsel %vm1500, %v1528, %v1529
      %v1531 = vrot.slane %v1488, 1
      %v1532 = vrot.slane %v1489, 1
      %v1533 = vsel %vm1500, %v1531, %v1532
      %v1534 = vrot.slane %v1490, 1
      %v1535 = vrot.slane %v1491, 1
      %v1536 = vsel %vm1500, %v1534, %v1535
      %v1537 = vrot.slane %v1492, 1
      %v1538 = vrot.slane %v1493, 1
      %v1539 = vsel %vm1500, %v1537, %v1538
      %v1540 = vrot.slane %v1494, 1
      %v1541 = vrot.slane %v1495, 1
      %v1542 = vsel %vm1500, %v1540, %v1541
      %v1543 = vrot.slane %v1496, 1
      %v1544 = vrot.slane %v1497, 1
      %v1545 = vsel %vm1500, %v1543, %v1544
      %v1546 = vrot.slane %v1498, 1
      %v1547 = vrot.slane %v1499, 1
      %v1548 = vsel %vm1500, %v1546, %v1547
      %1549 = vrot.lane.b32.xlu0 %v1503, 8
      %v1550 = vpop.permute.xlu0 %1549
      %1551 = vrot.lane.b32.xlu0 %v1506, 8
      %v1552 = vpop.permute.xlu0 %1551
      %1553 = vrot.lane.b32.xlu0 %v1509, 8
      %v1554 = vpop.permute.xlu0 %1553
      %1555 = vrot.lane.b32.xlu0 %v1512, 8
      %v1556 = vpop.permute.xlu0 %1555
      %1557 = vrot.lane.b32.xlu0 %v1515, 8
      %v1558 = vpop.permute.xlu0 %1557
      %1559 = vrot.lane.b32.xlu0 %v1518, 8
      %v1560 = vpop.permute.xlu0 %1559
      %1561 = vrot.lane.b32.xlu0 %v1521, 8
      %v1562 = vpop.permute.xlu0 %1561
      %1563 = vrot.lane.b32.xlu0 %v1524, 8
      %v1564 = vpop.permute.xlu0 %1563
      %1565 = vrot.lane.b32.xlu0 %v1527, 8
      %v1566 = vpop.permute.xlu0 %1565
      %1567 = vrot.lane.b32.xlu0 %v1530, 8
      %v1568 = vpop.permute.xlu0 %1567
      %1569 = vrot.lane.b32.xlu0 %v1533, 8
      %v1570 = vpop.permute.xlu0 %1569
      %1571 = vrot.lane.b32.xlu0 %v1536, 8
      %v1572 = vpop.permute.xlu0 %1571
      %1573 = vrot.lane.b32.xlu0 %v1539, 8
      %v1574 = vpop.permute.xlu0 %1573
      %1575 = vrot.lane.b32.xlu0 %v1542, 8
      %v1576 = vpop.permute.xlu0 %1575
      %1577 = vrot.lane.b32.xlu0 %v1545, 8
      %v1578 = vpop.permute.xlu0 %1577
      %1579 = vrot.lane.b32.xlu0 %v1548, 8
      %v1580 = vpop.permute.xlu0 %1579
      %vm1597 = vcmask 97344
      %1598 = vst.msk [vmem:[#allocation3] sm:$0xff] %vm1597, %v1550
      %1599 = vst.msk [vmem:[#allocation3 + $0x8] sm:$0xff] %vm1597, %v1552
      %1600 = vst.msk [vmem:[#allocation3 + $0x10] sm:$0xff] %vm1597, %v1554
      %1601 = vst.msk [vmem:[#allocation3 + $0x18] sm:$0xff] %vm1597, %v1556
      %1602 = vst.msk [vmem:[#allocation3 + $0x20] sm:$0xff] %vm1597, %v1558
      %1603 = vst.msk [vmem:[#allocation3 + $0x28] sm:$0xff] %vm1597, %v1560
      %1604 = vst.msk [vmem:[#allocation3 + $0x30] sm:$0xff] %vm1597, %v1562
      %1605 = vst.msk [vmem:[#allocation3 + $0x38] sm:$0xff] %vm1597, %v1564
      %1606 = vst.msk [vmem:[#allocation3 + $0x40] sm:$0xff] %vm1597, %v1566
      %1607 = vst.msk [vmem:[#allocation3 + $0x48] sm:$0xff] %vm1597, %v1568
      %1608 = vst.msk [vmem:[#allocation3 + $0x50] sm:$0xff] %vm1597, %v1570
      %1609 = vst.msk [vmem:[#allocation3 + $0x58] sm:$0xff] %vm1597, %v1572
      %1610 = vst.msk [vmem:[#allocation3 + $0x60] sm:$0xff] %vm1597, %v1574
      %1611 = vst.msk [vmem:[#allocation3 + $0x68] sm:$0xff] %vm1597, %v1576
      %1612 = vst.msk [vmem:[#allocation3 + $0x70] sm:$0xff] %vm1597, %v1578
      %1613 = vst.msk [vmem:[#allocation3 + $0x78] sm:$0xff] %vm1597, %v1580
      %v1614 = vld [vmem:[%s627] sm:$0xf]
      %v1615 = vld [vmem:[%s627 + $0x4] sm:$0xf]
      %v1616 = vld [vmem:[%s627 + $0xc] sm:$0xf]
      %v1617 = vld [vmem:[%s627 + $0x10] sm:$0xf]
      %v1618 = vld [vmem:[%s627 + $0x18] sm:$0xf]
      %v1619 = vld [vmem:[%s627 + $0x1c] sm:$0xf]
      %v1620 = vld [vmem:[%s627 + $0x24] sm:$0xf]
      %v1621 = vld [vmem:[%s627 + $0x28] sm:$0xf]
      %v1622 = vld [vmem:[%s627 + $0x30] sm:$0xf]
      %v1623 = vld [vmem:[%s627 + $0x34] sm:$0xf]
      %v1624 = vld [vmem:[%s627 + $0x3c] sm:$0xf]
      %v1625 = vld [vmem:[%s627 + $0x40] sm:$0xf]
      %v1626 = vld [vmem:[%s627 + $0x48] sm:$0xf]
      %v1627 = vld [vmem:[%s627 + $0x4c] sm:$0xf]
      %v1628 = vld [vmem:[%s627 + $0x54] sm:$0xf]
      %v1629 = vld [vmem:[%s627 + $0x58] sm:$0xf]
      %v1630 = vld [vmem:[%s627 + $0x60] sm:$0xf]
      %v1631 = vld [vmem:[%s627 + $0x64] sm:$0xf]
      %v1632 = vld [vmem:[%s627 + $0x6c] sm:$0xf]
      %v1633 = vld [vmem:[%s627 + $0x70] sm:$0xf]
      %v1634 = vld [vmem:[%s627 + $0x78] sm:$0xf]
      %v1635 = vld [vmem:[%s627 + $0x7c] sm:$0xf]
      %v1636 = vld [vmem:[%s627 + $0x84] sm:$0xf]
      %v1637 = vld [vmem:[%s627 + $0x88] sm:$0xf]
      %v1638 = vld [vmem:[%s627 + $0x90] sm:$0xf]
      %v1639 = vld [vmem:[%s627 + $0x94] sm:$0xf]
      %v1640 = vld [vmem:[%s627 + $0x9c] sm:$0xf]
      %v1641 = vld [vmem:[%s627 + $0xa0] sm:$0xf]
      %v1642 = vld [vmem:[%s627 + $0xa8] sm:$0xf]
      %v1643 = vld [vmem:[%s627 + $0xac] sm:$0xf]
      %v1644 = vld [vmem:[%s627 + $0xb4] sm:$0xf]
      %v1645 = vld [vmem:[%s627 + $0xb8] sm:$0xf]
      %v1678 = vunpack.c.l.b16 %v1614
      %v1679 = vunpack.c.l.b16 %v1615
      %v1680 = vunpack.c.l.b16 %v1616
      %v1681 = vunpack.c.l.b16 %v1617
      %v1682 = vunpack.c.l.b16 %v1618
      %v1683 = vunpack.c.l.b16 %v1619
      %v1684 = vunpack.c.l.b16 %v1620
      %v1685 = vunpack.c.l.b16 %v1621
      %v1686 = vunpack.c.l.b16 %v1622
      %v1687 = vunpack.c.l.b16 %v1623
      %v1688 = vunpack.c.l.b16 %v1624
      %v1689 = vunpack.c.l.b16 %v1625
      %v1690 = vunpack.c.l.b16 %v1626
      %v1691 = vunpack.c.l.b16 %v1627
      %v1692 = vunpack.c.l.b16 %v1628
      %v1693 = vunpack.c.l.b16 %v1629
      %v1694 = vunpack.c.l.b16 %v1630
      %v1695 = vunpack.c.l.b16 %v1631
      %v1696 = vunpack.c.l.b16 %v1632
      %v1697 = vunpack.c.l.b16 %v1633
      %v1698 = vunpack.c.l.b16 %v1634
      %v1699 = vunpack.c.l.b16 %v1635
      %v1700 = vunpack.c.l.b16 %v1636
      %v1701 = vunpack.c.l.b16 %v1637
      %v1702 = vunpack.c.l.b16 %v1638
      %v1703 = vunpack.c.l.b16 %v1639
      %v1704 = vunpack.c.l.b16 %v1640
      %v1705 = vunpack.c.l.b16 %v1641
      %v1706 = vunpack.c.l.b16 %v1642
      %v1707 = vunpack.c.l.b16 %v1643
      %v1708 = vunpack.c.l.b16 %v1644
      %v1709 = vunpack.c.l.b16 %v1645
      %v1710 = vpack.c.b16 %v1679, %v1678
      %v1711 = vpack.c.b16 %v1681, %v1680
      %v1712 = vpack.c.b16 %v1683, %v1682
      %v1713 = vpack.c.b16 %v1685, %v1684
      %v1714 = vpack.c.b16 %v1687, %v1686
      %v1715 = vpack.c.b16 %v1689, %v1688
      %v1716 = vpack.c.b16 %v1691, %v1690
      %v1717 = vpack.c.b16 %v1693, %v1692
      %v1718 = vpack.c.b16 %v1695, %v1694
      %v1719 = vpack.c.b16 %v1697, %v1696
      %v1720 = vpack.c.b16 %v1699, %v1698
      %v1721 = vpack.c.b16 %v1701, %v1700
      %v1722 = vpack.c.b16 %v1703, %v1702
      %v1723 = vpack.c.b16 %v1705, %v1704
      %v1724 = vpack.c.b16 %v1707, %v1706
      %v1725 = vpack.c.b16 %v1709, %v1708
      %1726 = vrot.lane.b32.xlu0 %v1710, 12
      %v1727 = vpop.permute.xlu0 %1726
      %1728 = vrot.lane.b32.xlu0 %v1711, 12
      %v1729 = vpop.permute.xlu0 %1728
      %1730 = vrot.lane.b32.xlu0 %v1712, 12
      %v1731 = vpop.permute.xlu0 %1730
      %1732 = vrot.lane.b32.xlu0 %v1713, 12
      %v1733 = vpop.permute.xlu0 %1732
      %1734 = vrot.lane.b32.xlu0 %v1714, 12
      %v1735 = vpop.permute.xlu0 %1734
      %1736 = vrot.lane.b32.xlu0 %v1715, 12
      %v1737 = vpop.permute.xlu0 %1736
      %1738 = vrot.lane.b32.xlu0 %v1716, 12
      %v1739 = vpop.permute.xlu0 %1738
      %1740 = vrot.lane.b32.xlu0 %v1717, 12
      %v1741 = vpop.permute.xlu0 %1740
      %1742 = vrot.lane.b32.xlu0 %v1718, 12
      %v1743 = vpop.permute.xlu0 %1742
      %1744 = vrot.lane.b32.xlu0 %v1719, 12
      %v1745 = vpop.permute.xlu0 %1744
      %1746 = vrot.lane.b32.xlu0 %v1720, 12
      %v1747 = vpop.permute.xlu0 %1746
      %1748 = vrot.lane.b32.xlu0 %v1721, 12
      %v1749 = vpop.permute.xlu0 %1748
      %1750 = vrot.lane.b32.xlu0 %v1722, 12
      %v1751 = vpop.permute.xlu0 %1750
      %1752 = vrot.lane.b32.xlu0 %v1723, 12
      %v1753 = vpop.permute.xlu0 %1752
      %1754 = vrot.lane.b32.xlu0 %v1724, 12
      %v1755 = vpop.permute.xlu0 %1754
      %1756 = vrot.lane.b32.xlu0 %v1725, 12
      %v1757 = vpop.permute.xlu0 %1756
      %vm1774 = vcmask 130144
      %1775 = vst.msk [vmem:[#allocation3] sm:$0xff] %vm1774, %v1727
      %1776 = vst.msk [vmem:[#allocation3 + $0x8] sm:$0xff] %vm1774, %v1729
      %1777 = vst.msk [vmem:[#allocation3 + $0x10] sm:$0xff] %vm1774, %v1731
      %1778 = vst.msk [vmem:[#allocation3 + $0x18] sm:$0xff] %vm1774, %v1733
      %1779 = vst.msk [vmem:[#allocation3 + $0x20] sm:$0xff] %vm1774, %v1735
      %1780 = vst.msk [vmem:[#allocation3 + $0x28] sm:$0xff] %vm1774, %v1737
      %1781 = vst.msk [vmem:[#allocation3 + $0x30] sm:$0xff] %vm1774, %v1739
      %1782 = vst.msk [vmem:[#allocation3 + $0x38] sm:$0xff] %vm1774, %v1741
      %1783 = vst.msk [vmem:[#allocation3 + $0x40] sm:$0xff] %vm1774, %v1743
      %1784 = vst.msk [vmem:[#allocation3 + $0x48] sm:$0xff] %vm1774, %v1745
      %1785 = vst.msk [vmem:[#allocation3 + $0x50] sm:$0xff] %vm1774, %v1747
      %1786 = vst.msk [vmem:[#allocation3 + $0x58] sm:$0xff] %vm1774, %v1749
      %1787 = vst.msk [vmem:[#allocation3 + $0x60] sm:$0xff] %vm1774, %v1751
      %1788 = vst.msk [vmem:[#allocation3 + $0x68] sm:$0xff] %vm1774, %v1753
      %1789 = vst.msk [vmem:[#allocation3 + $0x70] sm:$0xff] %vm1774, %v1755
      %1790 = vst.msk [vmem:[#allocation3 + $0x78] sm:$0xff] %vm1774, %v1757
      %v1791 = vld [vmem:[%s627] sm:$0xf]
      %v1792 = vld [vmem:[%s627 + $0x4] sm:$0xf]
      %v1793 = vld [vmem:[%s627 + $0x8] sm:$0x1]
      %v1794 = vld [vmem:[%s627 + $0xc] sm:$0xf]
      %v1795 = vld [vmem:[%s627 + $0x10] sm:$0xf]
      %v1796 = vld [vmem:[%s627 + $0x14] sm:$0x1]
      %v1797 = vld [vmem:[%s627 + $0x18] sm:$0xf]
      %v1798 = vld [vmem:[%s627 + $0x1c] sm:$0xf]
      %v1799 = vld [vmem:[%s627 + $0x20] sm:$0x1]
      %v1800 = vld [vmem:[%s627 + $0x24] sm:$0xf]
      %v1801 = vld [vmem:[%s627 + $0x28] sm:$0xf]
      %v1802 = vld [vmem:[%s627 + $0x2c] sm:$0x1]
      %v1803 = vld [vmem:[%s627 + $0x30] sm:$0xf]
      %v1804 = vld [vmem:[%s627 + $0x34] sm:$0xf]
      %v1805 = vld [vmem:[%s627 + $0x38] sm:$0x1]
      %v1806 = vld [vmem:[%s627 + $0x3c] sm:$0xf]
      %v1807 = vld [vmem:[%s627 + $0x40] sm:$0xf]
      %v1808 = vld [vmem:[%s627 + $0x44] sm:$0x1]
      %v1809 = vld [vmem:[%s627 + $0x48] sm:$0xf]
      %v1810 = vld [vmem:[%s627 + $0x4c] sm:$0xf]
      %v1811 = vld [vmem:[%s627 + $0x50] sm:$0x1]
      %v1812 = vld [vmem:[%s627 + $0x54] sm:$0xf]
      %v1813 = vld [vmem:[%s627 + $0x58] sm:$0xf]
      %v1814 = vld [vmem:[%s627 + $0x5c] sm:$0x1]
      %v1815 = vld [vmem:[%s627 + $0x60] sm:$0xf]
      %v1816 = vld [vmem:[%s627 + $0x64] sm:$0xf]
      %v1817 = vld [vmem:[%s627 + $0x68] sm:$0x1]
      %v1818 = vld [vmem:[%s627 + $0x6c] sm:$0xf]
      %v1819 = vld [vmem:[%s627 + $0x70] sm:$0xf]
      %v1820 = vld [vmem:[%s627 + $0x74] sm:$0x1]
      %v1821 = vld [vmem:[%s627 + $0x78] sm:$0xf]
      %v1822 = vld [vmem:[%s627 + $0x7c] sm:$0xf]
      %v1823 = vld [vmem:[%s627 + $0x80] sm:$0x1]
      %v1824 = vld [vmem:[%s627 + $0x84] sm:$0xf]
      %v1825 = vld [vmem:[%s627 + $0x88] sm:$0xf]
      %v1826 = vld [vmem:[%s627 + $0x8c] sm:$0x1]
      %v1827 = vld [vmem:[%s627 + $0x90] sm:$0xf]
      %v1828 = vld [vmem:[%s627 + $0x94] sm:$0xf]
      %v1829 = vld [vmem:[%s627 + $0x98] sm:$0x1]
      %v1830 = vld [vmem:[%s627 + $0x9c] sm:$0xf]
      %v1831 = vld [vmem:[%s627 + $0xa0] sm:$0xf]
      %v1832 = vld [vmem:[%s627 + $0xa4] sm:$0x1]
      %v1833 = vld [vmem:[%s627 + $0xa8] sm:$0xf]
      %v1834 = vld [vmem:[%s627 + $0xac] sm:$0xf]
      %v1835 = vld [vmem:[%s627 + $0xb0] sm:$0x1]
      %v1836 = vld [vmem:[%s627 + $0xb4] sm:$0xf]
      %v1837 = vld [vmem:[%s627 + $0xb8] sm:$0xf]
      %v1838 = vld [vmem:[%s627 + $0xbc] sm:$0x1]
      %v1887 = vunpack.c.l.b16 %v1791
      %v1888 = vunpack.c.l.b16 %v1792
      %v1889 = vunpack.c.l.b16 %v1793
      %v1890 = vunpack.c.l.b16 %v1794
      %v1891 = vunpack.c.l.b16 %v1795
      %v1892 = vunpack.c.l.b16 %v1796
      %v1893 = vunpack.c.l.b16 %v1797
      %v1894 = vunpack.c.l.b16 %v1798
      %v1895 = vunpack.c.l.b16 %v1799
      %v1896 = vunpack.c.l.b16 %v1800
      %v1897 = vunpack.c.l.b16 %v1801
      %v1898 = vunpack.c.l.b16 %v1802
      %v1899 = vunpack.c.l.b16 %v1803
      %v1900 = vunpack.c.l.b16 %v1804
      %v1901 = vunpack.c.l.b16 %v1805
      %v1902 = vunpack.c.l.b16 %v1806
      %v1903 = vunpack.c.l.b16 %v1807
      %v1904 = vunpack.c.l.b16 %v1808
      %v1905 = vunpack.c.l.b16 %v1809
      %v1906 = vunpack.c.l.b16 %v1810
      %v1907 = vunpack.c.l.b16 %v1811
      %v1908 = vunpack.c.l.b16 %v1812
      %v1909 = vunpack.c.l.b16 %v1813
      %v1910 = vunpack.c.l.b16 %v1814
      %v1911 = vunpack.c.l.b16 %v1815
      %v1912 = vunpack.c.l.b16 %v1816
      %v1913 = vunpack.c.l.b16 %v1817
      %v1914 = vunpack.c.l.b16 %v1818
      %v1915 = vunpack.c.l.b16 %v1819
      %v1916 = vunpack.c.l.b16 %v1820
      %v1917 = vunpack.c.l.b16 %v1821
      %v1918 = vunpack.c.l.b16 %v1822
      %v1919 = vunpack.c.l.b16 %v1823
      %v1920 = vunpack.c.l.b16 %v1824
      %v1921 = vunpack.c.l.b16 %v1825
      %v1922 = vunpack.c.l.b16 %v1826
      %v1923 = vunpack.c.l.b16 %v1827
      %v1924 = vunpack.c.l.b16 %v1828
      %v1925 = vunpack.c.l.b16 %v1829
      %v1926 = vunpack.c.l.b16 %v1830
      %v1927 = vunpack.c.l.b16 %v1831
      %v1928 = vunpack.c.l.b16 %v1832
      %v1929 = vunpack.c.l.b16 %v1833
      %v1930 = vunpack.c.l.b16 %v1834
      %v1931 = vunpack.c.l.b16 %v1835
      %v1932 = vunpack.c.l.b16 %v1836
      %v1933 = vunpack.c.l.b16 %v1837
      %v1934 = vunpack.c.l.b16 %v1838
      %v1935 = vpack.c.b16 %v1888, %v1887
      %v1936 = vpack.c.b16 %v1889, %v1889
      %v1937 = vpack.c.b16 %v1891, %v1890
      %v1938 = vpack.c.b16 %v1892, %v1892
      %v1939 = vpack.c.b16 %v1894, %v1893
      %v1940 = vpack.c.b16 %v1895, %v1895
      %v1941 = vpack.c.b16 %v1897, %v1896
      %v1942 = vpack.c.b16 %v1898, %v1898
      %v1943 = vpack.c.b16 %v1900, %v1899
      %v1944 = vpack.c.b16 %v1901, %v1901
      %v1945 = vpack.c.b16 %v1903, %v1902
      %v1946 = vpack.c.b16 %v1904, %v1904
      %v1947 = vpack.c.b16 %v1906, %v1905
      %v1948 = vpack.c.b16 %v1907, %v1907
      %v1949 = vpack.c.b16 %v1909, %v1908
      %v1950 = vpack.c.b16 %v1910, %v1910
      %v1951 = vpack.c.b16 %v1912, %v1911
      %v1952 = vpack.c.b16 %v1913, %v1913
      %v1953 = vpack.c.b16 %v1915, %v1914
      %v1954 = vpack.c.b16 %v1916, %v1916
      %v1955 = vpack.c.b16 %v1918, %v1917
      %v1956 = vpack.c.b16 %v1919, %v1919
      %v1957 = vpack.c.b16 %v1921, %v1920
      %v1958 = vpack.c.b16 %v1922, %v1922
      %v1959 = vpack.c.b16 %v1924, %v1923
      %v1960 = vpack.c.b16 %v1925, %v1925
      %v1961 = vpack.c.b16 %v1927, %v1926
      %v1962 = vpack.c.b16 %v1928, %v1928
      %v1963 = vpack.c.b16 %v1930, %v1929
      %v1964 = vpack.c.b16 %v1931, %v1931
      %v1965 = vpack.c.b16 %v1933, %v1932
      %v1966 = vpack.c.b16 %v1934, %v1934
      %v1968 = vshrl.u32 %v1935, 16
      %v1970 = vshll.u32 %v1935, 16
      %v1972 = vrot.slane %v1970, 1
      %v1973 = vor.u32 %v1968, %v1972
      %v1975 = vshll.u32 %v1936, 16
      %v1977 = vrot.slane %v1975, 1
      %v1978 = vsel %vm1066, %v1973, %v1977
      %v1980 = vshrl.u32 %v1937, 16
      %v1982 = vshll.u32 %v1937, 16
      %v1984 = vrot.slane %v1982, 1
      %v1985 = vor.u32 %v1980, %v1984
      %v1987 = vshll.u32 %v1938, 16
      %v1989 = vrot.slane %v1987, 1
      %v1990 = vsel %vm1066, %v1985, %v1989
      %v1992 = vshrl.u32 %v1939, 16
      %v1994 = vshll.u32 %v1939, 16
      %v1996 = vrot.slane %v1994, 1
      %v1997 = vor.u32 %v1992, %v1996
      %v1999 = vshll.u32 %v1940, 16
      %v2001 = vrot.slane %v1999, 1
      %v2002 = vsel %vm1066, %v1997, %v2001
      %v2004 = vshrl.u32 %v1941, 16
      %v2006 = vshll.u32 %v1941, 16
      %v2008 = vrot.slane %v2006, 1
      %v2009 = vor.u32 %v2004, %v2008
      %v2011 = vshll.u32 %v1942, 16
      %v2013 = vrot.slane %v2011, 1
      %v2014 = vsel %vm1066, %v2009, %v2013
      %v2016 = vshrl.u32 %v1943, 16
      %v2018 = vshll.u32 %v1943, 16
      %v2020 = vrot.slane %v2018, 1
      %v2021 = vor.u32 %v2016, %v2020
      %v2023 = vshll.u32 %v1944, 16
      %v2025 = vrot.slane %v2023, 1
      %v2026 = vsel %vm1066, %v2021, %v2025
      %v2028 = vshrl.u32 %v1945, 16
      %v2030 = vshll.u32 %v1945, 16
      %v2032 = vrot.slane %v2030, 1
      %v2033 = vor.u32 %v2028, %v2032
      %v2035 = vshll.u32 %v1946, 16
      %v2037 = vrot.slane %v2035, 1
      %v2038 = vsel %vm1066, %v2033, %v2037
      %v2040 = vshrl.u32 %v1947, 16
      %v2042 = vshll.u32 %v1947, 16
      %v2044 = vrot.slane %v2042, 1
      %v2045 = vor.u32 %v2040, %v2044
      %v2047 = vshll.u32 %v1948, 16
      %v2049 = vrot.slane %v2047, 1
      %v2050 = vsel %vm1066, %v2045, %v2049
      %v2052 = vshrl.u32 %v1949, 16
      %v2054 = vshll.u32 %v1949, 16
      %v2056 = vrot.slane %v2054, 1
      %v2057 = vor.u32 %v2052, %v2056
      %v2059 = vshll.u32 %v1950, 16
      %v2061 = vrot.slane %v2059, 1
      %v2062 = vsel %vm1066, %v2057, %v2061
      %v2064 = vshrl.u32 %v1951, 16
      %v2066 = vshll.u32 %v1951, 16
      %v2068 = vrot.slane %v2066, 1
      %v2069 = vor.u32 %v2064, %v2068
      %v2071 = vshll.u32 %v1952, 16
      %v2073 = vrot.slane %v2071, 1
      %v2074 = vsel %vm1066, %v2069, %v2073
      %v2076 = vshrl.u32 %v1953, 16
      %v2078 = vshll.u32 %v1953, 16
      %v2080 = vrot.slane %v2078, 1
      %v2081 = vor.u32 %v2076, %v2080
      %v2083 = vshll.u32 %v1954, 16
      %v2085 = vrot.slane %v2083, 1
      %v2086 = vsel %vm1066, %v2081, %v2085
      %v2088 = vshrl.u32 %v1955, 16
      %v2090 = vshll.u32 %v1955, 16
      %v2092 = vrot.slane %v2090, 1
      %v2093 = vor.u32 %v2088, %v2092
      %v2095 = vshll.u32 %v1956, 16
      %v2097 = vrot.slane %v2095, 1
      %v2098 = vsel %vm1066, %v2093, %v2097
      %v2100 = vshrl.u32 %v1957, 16
      %v2102 = vshll.u32 %v1957, 16
      %v2104 = vrot.slane %v2102, 1
      %v2105 = vor.u32 %v2100, %v2104
      %v2107 = vshll.u32 %v1958, 16
      %v2109 = vrot.slane %v2107, 1
      %v2110 = vsel %vm1066, %v2105, %v2109
      %v2112 = vshrl.u32 %v1959, 16
      %v2114 = vshll.u32 %v1959, 16
      %v2116 = vrot.slane %v2114, 1
      %v2117 = vor.u32 %v2112, %v2116
      %v2119 = vshll.u32 %v1960, 16
      %v2121 = vrot.slane %v2119, 1
      %v2122 = vsel %vm1066, %v2117, %v2121
      %v2124 = vshrl.u32 %v1961, 16
      %v2126 = vshll.u32 %v1961, 16
      %v2128 = vrot.slane %v2126, 1
      %v2129 = vor.u32 %v2124, %v2128
      %v2131 = vshll.u32 %v1962, 16
      %v2133 = vrot.slane %v2131, 1
      %v2134 = vsel %vm1066, %v2129, %v2133
      %v2136 = vshrl.u32 %v1963, 16
      %v2138 = vshll.u32 %v1963, 16
      %v2140 = vrot.slane %v2138, 1
      %v2141 = vor.u32 %v2136, %v2140
      %v2143 = vshll.u32 %v1964, 16
      %v2145 = vrot.slane %v2143, 1
      %v2146 = vsel %vm1066, %v2141, %v2145
      %v2148 = vshrl.u32 %v1965, 16
      %v2150 = vshll.u32 %v1965, 16
      %v2152 = vrot.slane %v2150, 1
      %v2153 = vor.u32 %v2148, %v2152
      %v2155 = vshll.u32 %v1966, 16
      %v2157 = vrot.slane %v2155, 1
      %v2158 = vsel %vm1066, %v2153, %v2157
      %2159 = vrot.lane.b32.xlu0 %v1978, 16
      %v2160 = vpop.permute.xlu0 %2159
      %2161 = vrot.lane.b32.xlu0 %v1990, 16
      %v2162 = vpop.permute.xlu0 %2161
      %2163 = vrot.lane.b32.xlu0 %v2002, 16
      %v2164 = vpop.permute.xlu0 %2163
      %2165 = vrot.lane.b32.xlu0 %v2014, 16
      %v2166 = vpop.permute.xlu0 %2165
      %2167 = vrot.lane.b32.xlu0 %v2026, 16
      %v2168 = vpop.permute.xlu0 %2167
      %2169 = vrot.lane.b32.xlu0 %v2038, 16
      %v2170 = vpop.permute.xlu0 %2169
      %2171 = vrot.lane.b32.xlu0 %v2050, 16
      %v2172 = vpop.permute.xlu0 %2171
      %2173 = vrot.lane.b32.xlu0 %v2062, 16
      %v2174 = vpop.permute.xlu0 %2173
      %2175 = vrot.lane.b32.xlu0 %v2074, 16
      %v2176 = vpop.permute.xlu0 %2175
      %2177 = vrot.lane.b32.xlu0 %v2086, 16
      %v2178 = vpop.permute.xlu0 %2177
      %2179 = vrot.lane.b32.xlu0 %v2098, 16
      %v2180 = vpop.permute.xlu0 %2179
      %2181 = vrot.lane.b32.xlu0 %v2110, 16
      %v2182 = vpop.permute.xlu0 %2181
      %2183 = vrot.lane.b32.xlu0 %v2122, 16
      %v2184 = vpop.permute.xlu0 %2183
      %2185 = vrot.lane.b32.xlu0 %v2134, 16
      %v2186 = vpop.permute.xlu0 %2185
      %2187 = vrot.lane.b32.xlu0 %v2146, 16
      %v2188 = vpop.permute.xlu0 %2187
      %2189 = vrot.lane.b32.xlu0 %v2158, 16
      %v2190 = vpop.permute.xlu0 %2189
      %vm2207 = vcmask 162944
      %2208 = vst.msk [vmem:[#allocation3] sm:$0xff] %vm2207, %v2160
      %2209 = vst.msk [vmem:[#allocation3 + $0x8] sm:$0xff] %vm2207, %v2162
      %2210 = vst.msk [vmem:[#allocation3 + $0x10] sm:$0xff] %vm2207, %v2164
      %2211 = vst.msk [vmem:[#allocation3 + $0x18] sm:$0xff] %vm2207, %v2166
      %2212 = vst.msk [vmem:[#allocation3 + $0x20] sm:$0xff] %vm2207, %v2168
      %2213 = vst.msk [vmem:[#allocation3 + $0x28] sm:$0xff] %vm2207, %v2170
      %2214 = vst.msk [vmem:[#allocation3 + $0x30] sm:$0xff] %vm2207, %v2172
      %2215 = vst.msk [vmem:[#allocation3 + $0x38] sm:$0xff] %vm2207, %v2174
      %2216 = vst.msk [vmem:[#allocation3 + $0x40] sm:$0xff] %vm2207, %v2176
      %2217 = vst.msk [vmem:[#allocation3 + $0x48] sm:$0xff] %vm2207, %v2178
      %2218 = vst.msk [vmem:[#allocation3 + $0x50] sm:$0xff] %vm2207, %v2180
      %2219 = vst.msk [vmem:[#allocation3 + $0x58] sm:$0xff] %vm2207, %v2182
      %2220 = vst.msk [vmem:[#allocation3 + $0x60] sm:$0xff] %vm2207, %v2184
      %2221 = vst.msk [vmem:[#allocation3 + $0x68] sm:$0xff] %vm2207, %v2186
      %2222 = vst.msk [vmem:[#allocation3 + $0x70] sm:$0xff] %vm2207, %v2188
      %2223 = vst.msk [vmem:[#allocation3 + $0x78] sm:$0xff] %vm2207, %v2190
      %v2224 = vld [vmem:[%s627] sm:$0xe]
      %v2225 = vld [vmem:[%s627 + $0x4] sm:$0xf]
      %v2226 = vld [vmem:[%s627 + $0x8] sm:$0x1]
      %v2227 = vld [vmem:[%s627 + $0xc] sm:$0xe]
      %v2228 = vld [vmem:[%s627 + $0x10] sm:$0xf]
      %v2229 = vld [vmem:[%s627 + $0x14] sm:$0x1]
      %v2230 = vld [vmem:[%s627 + $0x18] sm:$0xe]
      %v2231 = vld [vmem:[%s627 + $0x1c] sm:$0xf]
      %v2232 = vld [vmem:[%s627 + $0x20] sm:$0x1]
      %v2233 = vld [vmem:[%s627 + $0x24] sm:$0xe]
      %v2234 = vld [vmem:[%s627 + $0x28] sm:$0xf]
      %v2235 = vld [vmem:[%s627 + $0x2c] sm:$0x1]
      %v2236 = vld [vmem:[%s627 + $0x30] sm:$0xe]
      %v2237 = vld [vmem:[%s627 + $0x34] sm:$0xf]
      %v2238 = vld [vmem:[%s627 + $0x38] sm:$0x1]
      %v2239 = vld [vmem:[%s627 + $0x3c] sm:$0xe]
      %v2240 = vld [vmem:[%s627 + $0x40] sm:$0xf]
      %v2241 = vld [vmem:[%s627 + $0x44] sm:$0x1]
      %v2242 = vld [vmem:[%s627 + $0x48] sm:$0xe]
      %v2243 = vld [vmem:[%s627 + $0x4c] sm:$0xf]
      %v2244 = vld [vmem:[%s627 + $0x50] sm:$0x1]
      %v2245 = vld [vmem:[%s627 + $0x54] sm:$0xe]
      %v2246 = vld [vmem:[%s627 + $0x58] sm:$0xf]
      %v2247 = vld [vmem:[%s627 + $0x5c] sm:$0x1]
      %v2248 = vld [vmem:[%s627 + $0x60] sm:$0xe]
      %v2249 = vld [vmem:[%s627 + $0x64] sm:$0xf]
      %v2250 = vld [vmem:[%s627 + $0x68] sm:$0x1]
      %v2251 = vld [vmem:[%s627 + $0x6c] sm:$0xe]
      %v2252 = vld [vmem:[%s627 + $0x70] sm:$0xf]
      %v2253 = vld [vmem:[%s627 + $0x74] sm:$0x1]
      %v2254 = vld [vmem:[%s627 + $0x78] sm:$0xe]
      %v2255 = vld [vmem:[%s627 + $0x7c] sm:$0xf]
      %v2256 = vld [vmem:[%s627 + $0x80] sm:$0x1]
      %v2257 = vld [vmem:[%s627 + $0x84] sm:$0xe]
      %v2258 = vld [vmem:[%s627 + $0x88] sm:$0xf]
      %v2259 = vld [vmem:[%s627 + $0x8c] sm:$0x1]
      %v2260 = vld [vmem:[%s627 + $0x90] sm:$0xe]
      %v2261 = vld [vmem:[%s627 + $0x94] sm:$0xf]
      %v2262 = vld [vmem:[%s627 + $0x98] sm:$0x1]
      %v2263 = vld [vmem:[%s627 + $0x9c] sm:$0xe]
      %v2264 = vld [vmem:[%s627 + $0xa0] sm:$0xf]
      %v2265 = vld [vmem:[%s627 + $0xa4] sm:$0x1]
      %v2266 = vld [vmem:[%s627 + $0xa8] sm:$0xe]
      %v2267 = vld [vmem:[%s627 + $0xac] sm:$0xf]
      %v2268 = vld [vmem:[%s627 + $0xb0] sm:$0x1]
      %v2269 = vld [vmem:[%s627 + $0xb4] sm:$0xe]
      %v2270 = vld [vmem:[%s627 + $0xb8] sm:$0xf]
      %v2271 = vld [vmem:[%s627 + $0xbc] sm:$0x1]
      %v2320 = vunpack.c.l.b16 %v2224
      %v2321 = vunpack.c.l.b16 %v2225
      %v2322 = vunpack.c.l.b16 %v2226
      %v2323 = vunpack.c.l.b16 %v2227
      %v2324 = vunpack.c.l.b16 %v2228
      %v2325 = vunpack.c.l.b16 %v2229
      %v2326 = vunpack.c.l.b16 %v2230
      %v2327 = vunpack.c.l.b16 %v2231
      %v2328 = vunpack.c.l.b16 %v2232
      %v2329 = vunpack.c.l.b16 %v2233
      %v2330 = vunpack.c.l.b16 %v2234
      %v2331 = vunpack.c.l.b16 %v2235
      %v2332 = vunpack.c.l.b16 %v2236
      %v2333 = vunpack.c.l.b16 %v2237
      %v2334 = vunpack.c.l.b16 %v2238
      %v2335 = vunpack.c.l.b16 %v2239
      %v2336 = vunpack.c.l.b16 %v2240
      %v2337 = vunpack.c.l.b16 %v2241
      %v2338 = vunpack.c.l.b16 %v2242
      %v2339 = vunpack.c.l.b16 %v2243
      %v2340 = vunpack.c.l.b16 %v2244
      %v2341 = vunpack.c.l.b16 %v2245
      %v2342 = vunpack.c.l.b16 %v2246
      %v2343 = vunpack.c.l.b16 %v2247
      %v2344 = vunpack.c.l.b16 %v2248
      %v2345 = vunpack.c.l.b16 %v2249
      %v2346 = vunpack.c.l.b16 %v2250
      %v2347 = vunpack.c.l.b16 %v2251
      %v2348 = vunpack.c.l.b16 %v2252
      %v2349 = vunpack.c.l.b16 %v2253
      %v2350 = vunpack.c.l.b16 %v2254
      %v2351 = vunpack.c.l.b16 %v2255
      %v2352 = vunpack.c.l.b16 %v2256
      %v2353 = vunpack.c.l.b16 %v2257
      %v2354 = vunpack.c.l.b16 %v2258
      %v2355 = vunpack.c.l.b16 %v2259
      %v2356 = vunpack.c.l.b16 %v2260
      %v2357 = vunpack.c.l.b16 %v2261
      %v2358 = vunpack.c.l.b16 %v2262
      %v2359 = vunpack.c.l.b16 %v2263
      %v2360 = vunpack.c.l.b16 %v2264
      %v2361 = vunpack.c.l.b16 %v2265
      %v2362 = vunpack.c.l.b16 %v2266
      %v2363 = vunpack.c.l.b16 %v2267
      %v2364 = vunpack.c.l.b16 %v2268
      %v2365 = vunpack.c.l.b16 %v2269
      %v2366 = vunpack.c.l.b16 %v2270
      %v2367 = vunpack.c.l.b16 %v2271
      %v2368 = vpack.c.b16 %v2321, %v2320
      %v2369 = vpack.c.b16 %v2322, %v2322
      %v2370 = vpack.c.b16 %v2324, %v2323
      %v2371 = vpack.c.b16 %v2325, %v2325
      %v2372 = vpack.c.b16 %v2327, %v2326
      %v2373 = vpack.c.b16 %v2328, %v2328
      %v2374 = vpack.c.b16 %v2330, %v2329
      %v2375 = vpack.c.b16 %v2331, %v2331
      %v2376 = vpack.c.b16 %v2333, %v2332
      %v2377 = vpack.c.b16 %v2334, %v2334
      %v2378 = vpack.c.b16 %v2336, %v2335
      %v2379 = vpack.c.b16 %v2337, %v2337
      %v2380 = vpack.c.b16 %v2339, %v2338
      %v2381 = vpack.c.b16 %v2340, %v2340
      %v2382 = vpack.c.b16 %v2342, %v2341
      %v2383 = vpack.c.b16 %v2343, %v2343
      %v2384 = vpack.c.b16 %v2345, %v2344
      %v2385 = vpack.c.b16 %v2346, %v2346
      %v2386 = vpack.c.b16 %v2348, %v2347
      %v2387 = vpack.c.b16 %v2349, %v2349
      %v2388 = vpack.c.b16 %v2351, %v2350
      %v2389 = vpack.c.b16 %v2352, %v2352
      %v2390 = vpack.c.b16 %v2354, %v2353
      %v2391 = vpack.c.b16 %v2355, %v2355
      %v2392 = vpack.c.b16 %v2357, %v2356
      %v2393 = vpack.c.b16 %v2358, %v2358
      %v2394 = vpack.c.b16 %v2360, %v2359
      %v2395 = vpack.c.b16 %v2361, %v2361
      %v2396 = vpack.c.b16 %v2363, %v2362
      %v2397 = vpack.c.b16 %v2364, %v2364
      %v2398 = vpack.c.b16 %v2366, %v2365
      %v2399 = vpack.c.b16 %v2367, %v2367
      %v2400 = vrot.slane %v2368, 1
      %v2401 = vrot.slane %v2369, 1
      %v2402 = vsel %vm1500, %v2400, %v2401
      %v2403 = vrot.slane %v2370, 1
      %v2404 = vrot.slane %v2371, 1
      %v2405 = vsel %vm1500, %v2403, %v2404
      %v2406 = vrot.slane %v2372, 1
      %v2407 = vrot.slane %v2373, 1
      %v2408 = vsel %vm1500, %v2406, %v2407
      %v2409 = vrot.slane %v2374, 1
      %v2410 = vrot.slane %v2375, 1
      %v2411 = vsel %vm1500, %v2409, %v2410
      %v2412 = vrot.slane %v2376, 1
      %v2413 = vrot.slane %v2377, 1
      %v2414 = vsel %vm1500, %v2412, %v2413
      %v2415 = vrot.slane %v2378, 1
      %v2416 = vrot.slane %v2379, 1
      %v2417 = vsel %vm1500, %v2415, %v2416
      %v2418 = vrot.slane %v2380, 1
      %v2419 = vrot.slane %v2381, 1
      %v2420 = vsel %vm1500, %v2418, %v2419
      %v2421 = vrot.slane %v2382, 1
      %v2422 = vrot.slane %v2383, 1
      %v2423 = vsel %vm1500, %v2421, %v2422
      %v2424 = vrot.slane %v2384, 1
      %v2425 = vrot.slane %v2385, 1
      %v2426 = vsel %vm1500, %v2424, %v2425
      %v2427 = vrot.slane %v2386, 1
      %v2428 = vrot.slane %v2387, 1
      %v2429 = vsel %vm1500, %v2427, %v2428
      %v2430 = vrot.slane %v2388, 1
      %v2431 = vrot.slane %v2389, 1
      %v2432 = vsel %vm1500, %v2430, %v2431
      %v2433 = vrot.slane %v2390, 1
      %v2434 = vrot.slane %v2391, 1
      %v2435 = vsel %vm1500, %v2433, %v2434
      %v2436 = vrot.slane %v2392, 1
      %v2437 = vrot.slane %v2393, 1
      %v2438 = vsel %vm1500, %v2436, %v2437
      %v2439 = vrot.slane %v2394, 1
      %v2440 = vrot.slane %v2395, 1
      %v2441 = vsel %vm1500, %v2439, %v2440
      %v2442 = vrot.slane %v2396, 1
      %v2443 = vrot.slane %v2397, 1
      %v2444 = vsel %vm1500, %v2442, %v2443
      %v2445 = vrot.slane %v2398, 1
      %v2446 = vrot.slane %v2399, 1
      %v2447 = vsel %vm1500, %v2445, %v2446
      %2448 = vrot.lane.b32.xlu0 %v2402, 20
      %v2449 = vpop.permute.xlu0 %2448
      %2450 = vrot.lane.b32.xlu0 %v2405, 20
      %v2451 = vpop.permute.xlu0 %2450
      %2452 = vrot.lane.b32.xlu0 %v2408, 20
      %v2453 = vpop.permute.xlu0 %2452
      %2454 = vrot.lane.b32.xlu0 %v2411, 20
      %v2455 = vpop.permute.xlu0 %2454
      %2456 = vrot.lane.b32.xlu0 %v2414, 20
      %v2457 = vpop.permute.xlu0 %2456
      %2458 = vrot.lane.b32.xlu0 %v2417, 20
      %v2459 = vpop.permute.xlu0 %2458
      %2460 = vrot.lane.b32.xlu0 %v2420, 20
      %v2461 = vpop.permute.xlu0 %2460
      %2462 = vrot.lane.b32.xlu0 %v2423, 20
      %v2463 = vpop.permute.xlu0 %2462
      %2464 = vrot.lane.b32.xlu0 %v2426, 20
      %v2465 = vpop.permute.xlu0 %2464
      %2466 = vrot.lane.b32.xlu0 %v2429, 20
      %v2467 = vpop.permute.xlu0 %2466
      %2468 = vrot.lane.b32.xlu0 %v2432, 20
      %v2469 = vpop.permute.xlu0 %2468
      %2470 = vrot.lane.b32.xlu0 %v2435, 20
      %v2471 = vpop.permute.xlu0 %2470
      %2472 = vrot.lane.b32.xlu0 %v2438, 20
      %v2473 = vpop.permute.xlu0 %2472
      %2474 = vrot.lane.b32.xlu0 %v2441, 20
      %v2475 = vpop.permute.xlu0 %2474
      %2476 = vrot.lane.b32.xlu0 %v2444, 20
      %v2477 = vpop.permute.xlu0 %2476
      %2478 = vrot.lane.b32.xlu0 %v2447, 20
      %v2479 = vpop.permute.xlu0 %2478
      %vm2496 = vcmask 195744
      %2497 = vst.msk [vmem:[#allocation3] sm:$0xff] %vm2496, %v2449
      %2498 = vst.msk [vmem:[#allocation3 + $0x8] sm:$0xff] %vm2496, %v2451
      %2499 = vst.msk [vmem:[#allocation3 + $0x10] sm:$0xff] %vm2496, %v2453
      %2500 = vst.msk [vmem:[#allocation3 + $0x18] sm:$0xff] %vm2496, %v2455
      %2501 = vst.msk [vmem:[#allocation3 + $0x20] sm:$0xff] %vm2496, %v2457
      %2502 = vst.msk [vmem:[#allocation3 + $0x28] sm:$0xff] %vm2496, %v2459
      %2503 = vst.msk [vmem:[#allocation3 + $0x30] sm:$0xff] %vm2496, %v2461
      %2504 = vst.msk [vmem:[#allocation3 + $0x38] sm:$0xff] %vm2496, %v2463
      %2505 = vst.msk [vmem:[#allocation3 + $0x40] sm:$0xff] %vm2496, %v2465
      %2506 = vst.msk [vmem:[#allocation3 + $0x48] sm:$0xff] %vm2496, %v2467
      %2507 = vst.msk [vmem:[#allocation3 + $0x50] sm:$0xff] %vm2496, %v2469
      %2508 = vst.msk [vmem:[#allocation3 + $0x58] sm:$0xff] %vm2496, %v2471
      %2509 = vst.msk [vmem:[#allocation3 + $0x60] sm:$0xff] %vm2496, %v2473
      %2510 = vst.msk [vmem:[#allocation3 + $0x68] sm:$0xff] %vm2496, %v2475
      %2511 = vst.msk [vmem:[#allocation3 + $0x70] sm:$0xff] %vm2496, %v2477
      %2512 = vst.msk [vmem:[#allocation3 + $0x78] sm:$0xff] %vm2496, %v2479
      %s2513 = scalar_lea.vmem [#allocation2], 24
      %v2514 = vld [vmem:[%s2513] sm:$0xf]
      %v2515 = vld [vmem:[%s2513 + $0x4] sm:$0xf]
      %v2516 = vld [vmem:[%s2513 + $0xc] sm:$0xf]
      %v2517 = vld [vmem:[%s2513 + $0x10] sm:$0xf]
      %v2518 = vld [vmem:[%s2513 + $0x18] sm:$0xf]
      %v2519 = vld [vmem:[%s2513 + $0x1c] sm:$0xf]
      %v2520 = vld [vmem:[%s2513 + $0x24] sm:$0xf]
      %v2521 = vld [vmem:[%s2513 + $0x28] sm:$0xf]
      %v2522 = vld [vmem:[%s2513 + $0x30] sm:$0xf]
      %v2523 = vld [vmem:[%s2513 + $0x34] sm:$0xf]
      %v2524 = vld [vmem:[%s2513 + $0x3c] sm:$0xf]
      %v2525 = vld [vmem:[%s2513 + $0x40] sm:$0xf]
      %v2526 = vld [vmem:[%s2513 + $0x48] sm:$0xf]
      %v2527 = vld [vmem:[%s2513 + $0x4c] sm:$0xf]
      %v2528 = vld [vmem:[%s2513 + $0x54] sm:$0xf]
      %v2529 = vld [vmem:[%s2513 + $0x58] sm:$0xf]
      %v2530 = vld [vmem:[%s2513 + $0x60] sm:$0xf]
      %v2531 = vld [vmem:[%s2513 + $0x64] sm:$0xf]
      %v2532 = vld [vmem:[%s2513 + $0x6c] sm:$0xf]
      %v2533 = vld [vmem:[%s2513 + $0x70] sm:$0xf]
      %v2534 = vld [vmem:[%s2513 + $0x78] sm:$0xf]
      %v2535 = vld [vmem:[%s2513 + $0x7c] sm:$0xf]
      %v2536 = vld [vmem:[%s2513 + $0x84] sm:$0xf]
      %v2537 = vld [vmem:[%s2513 + $0x88] sm:$0xf]
      %v2538 = vld [vmem:[%s2513 + $0x90] sm:$0xf]
      %v2539 = vld [vmem:[%s2513 + $0x94] sm:$0xf]
      %v2540 = vld [vmem:[%s2513 + $0x9c] sm:$0xf]
      %v2541 = vld [vmem:[%s2513 + $0xa0] sm:$0xf]
      %v2542 = vld [vmem:[%s2513 + $0xa8] sm:$0xf]
      %v2543 = vld [vmem:[%s2513 + $0xac] sm:$0xf]
      %v2544 = vld [vmem:[%s2513 + $0xb4] sm:$0xf]
      %v2545 = vld [vmem:[%s2513 + $0xb8] sm:$0xf]
      %v2578 = vunpack.c.l.b16 %v2514
      %v2579 = vunpack.c.l.b16 %v2515
      %v2580 = vunpack.c.l.b16 %v2516
      %v2581 = vunpack.c.l.b16 %v2517
      %v2582 = vunpack.c.l.b16 %v2518
      %v2583 = vunpack.c.l.b16 %v2519
      %v2584 = vunpack.c.l.b16 %v2520
      %v2585 = vunpack.c.l.b16 %v2521
      %v2586 = vunpack.c.l.b16 %v2522
      %v2587 = vunpack.c.l.b16 %v2523
      %v2588 = vunpack.c.l.b16 %v2524
      %v2589 = vunpack.c.l.b16 %v2525
      %v2590 = vunpack.c.l.b16 %v2526
      %v2591 = vunpack.c.l.b16 %v2527
      %v2592 = vunpack.c.l.b16 %v2528
      %v2593 = vunpack.c.l.b16 %v2529
      %v2594 = vunpack.c.l.b16 %v2530
      %v2595 = vunpack.c.l.b16 %v2531
      %v2596 = vunpack.c.l.b16 %v2532
      %v2597 = vunpack.c.l.b16 %v2533
      %v2598 = vunpack.c.l.b16 %v2534
      %v2599 = vunpack.c.l.b16 %v2535
      %v2600 = vunpack.c.l.b16 %v2536
      %v2601 = vunpack.c.l.b16 %v2537
      %v2602 = vunpack.c.l.b16 %v2538
      %v2603 = vunpack.c.l.b16 %v2539
      %v2604 = vunpack.c.l.b16 %v2540
      %v2605 = vunpack.c.l.b16 %v2541
      %v2606 = vunpack.c.l.b16 %v2542
      %v2607 = vunpack.c.l.b16 %v2543
      %v2608 = vunpack.c.l.b16 %v2544
      %v2609 = vunpack.c.l.b16 %v2545
      %v2610 = vpack.c.b16 %v2579, %v2578
      %v2611 = vpack.c.b16 %v2581, %v2580
      %v2612 = vpack.c.b16 %v2583, %v2582
      %v2613 = vpack.c.b16 %v2585, %v2584
      %v2614 = vpack.c.b16 %v2587, %v2586
      %v2615 = vpack.c.b16 %v2589, %v2588
      %v2616 = vpack.c.b16 %v2591, %v2590
      %v2617 = vpack.c.b16 %v2593, %v2592
      %v2618 = vpack.c.b16 %v2595, %v2594
      %v2619 = vpack.c.b16 %v2597, %v2596
      %v2620 = vpack.c.b16 %v2599, %v2598
      %v2621 = vpack.c.b16 %v2601, %v2600
      %v2622 = vpack.c.b16 %v2603, %v2602
      %v2623 = vpack.c.b16 %v2605, %v2604
      %v2624 = vpack.c.b16 %v2607, %v2606
      %v2625 = vpack.c.b16 %v2609, %v2608
      %2626 = vrot.lane.b32.xlu0 %v2610, 24
      %v2627 = vpop.permute.xlu0 %2626
      %2628 = vrot.lane.b32.xlu0 %v2611, 24
      %v2629 = vpop.permute.xlu0 %2628
      %2630 = vrot.lane.b32.xlu0 %v2612, 24
      %v2631 = vpop.permute.xlu0 %2630
      %2632 = vrot.lane.b32.xlu0 %v2613, 24
      %v2633 = vpop.permute.xlu0 %2632
      %2634 = vrot.lane.b32.xlu0 %v2614, 24
      %v2635 = vpop.permute.xlu0 %2634
      %2636 = vrot.lane.b32.xlu0 %v2615, 24
      %v2637 = vpop.permute.xlu0 %2636
      %2638 = vrot.lane.b32.xlu0 %v2616, 24
      %v2639 = vpop.permute.xlu0 %2638
      %2640 = vrot.lane.b32.xlu0 %v2617, 24
      %v2641 = vpop.permute.xlu0 %2640
      %2642 = vrot.lane.b32.xlu0 %v2618, 24
      %v2643 = vpop.permute.xlu0 %2642
      %2644 = vrot.lane.b32.xlu0 %v2619, 24
      %v2645 = vpop.permute.xlu0 %2644
      %2646 = vrot.lane.b32.xlu0 %v2620, 24
      %v2647 = vpop.permute.xlu0 %2646
      %2648 = vrot.lane.b32.xlu0 %v2621, 24
      %v2649 = vpop.permute.xlu0 %2648
      %2650 = vrot.lane.b32.xlu0 %v2622, 24
      %v2651 = vpop.permute.xlu0 %2650
      %2652 = vrot.lane.b32.xlu0 %v2623, 24
      %v2653 = vpop.permute.xlu0 %2652
      %2654 = vrot.lane.b32.xlu0 %v2624, 24
      %v2655 = vpop.permute.xlu0 %2654
      %2656 = vrot.lane.b32.xlu0 %v2625, 24
      %v2657 = vpop.permute.xlu0 %2656
      %vm2674 = vcmask 228544
      %2675 = vst.msk [vmem:[#allocation3] sm:$0xff] %vm2674, %v2627
      %2676 = vst.msk [vmem:[#allocation3 + $0x8] sm:$0xff] %vm2674, %v2629
      %2677 = vst.msk [vmem:[#allocation3 + $0x10] sm:$0xff] %vm2674, %v2631
      %2678 = vst.msk [vmem:[#allocation3 + $0x18] sm:$0xff] %vm2674, %v2633
      %2679 = vst.msk [vmem:[#allocation3 + $0x20] sm:$0xff] %vm2674, %v2635
      %2680 = vst.msk [vmem:[#allocation3 + $0x28] sm:$0xff] %vm2674, %v2637
      %2681 = vst.msk [vmem:[#allocation3 + $0x30] sm:$0xff] %vm2674, %v2639
      %2682 = vst.msk [vmem:[#allocation3 + $0x38] sm:$0xff] %vm2674, %v2641
      %2683 = vst.msk [vmem:[#allocation3 + $0x40] sm:$0xff] %vm2674, %v2643
      %2684 = vst.msk [vmem:[#allocation3 + $0x48] sm:$0xff] %vm2674, %v2645
      %2685 = vst.msk [vmem:[#allocation3 + $0x50] sm:$0xff] %vm2674, %v2647
      %2686 = vst.msk [vmem:[#allocation3 + $0x58] sm:$0xff] %vm2674, %v2649
      %2687 = vst.msk [vmem:[#allocation3 + $0x60] sm:$0xff] %vm2674, %v2651
      %2688 = vst.msk [vmem:[#allocation3 + $0x68] sm:$0xff] %vm2674, %v2653
      %2689 = vst.msk [vmem:[#allocation3 + $0x70] sm:$0xff] %vm2674, %v2655
      %2690 = vst.msk [vmem:[#allocation3 + $0x78] sm:$0xff] %vm2674, %v2657
      %v2691 = vld [vmem:[%s2513] sm:$0xf]
      %v2692 = vld [vmem:[%s2513 + $0x4] sm:$0xf]
      %v2693 = vld [vmem:[%s2513 + $0x8] sm:$0x1]
      %v2694 = vld [vmem:[%s2513 + $0xc] sm:$0xf]
      %v2695 = vld [vmem:[%s2513 + $0x10] sm:$0xf]
      %v2696 = vld [vmem:[%s2513 + $0x14] sm:$0x1]
      %v2697 = vld [vmem:[%s2513 + $0x18] sm:$0xf]
      %v2698 = vld [vmem:[%s2513 + $0x1c] sm:$0xf]
      %v2699 = vld [vmem:[%s2513 + $0x20] sm:$0x1]
      %v2700 = vld [vmem:[%s2513 + $0x24] sm:$0xf]
      %v2701 = vld [vmem:[%s2513 + $0x28] sm:$0xf]
      %v2702 = vld [vmem:[%s2513 + $0x2c] sm:$0x1]
      %v2703 = vld [vmem:[%s2513 + $0x30] sm:$0xf]
      %v2704 = vld [vmem:[%s2513 + $0x34] sm:$0xf]
      %v2705 = vld [vmem:[%s2513 + $0x38] sm:$0x1]
      %v2706 = vld [vmem:[%s2513 + $0x3c] sm:$0xf]
      %v2707 = vld [vmem:[%s2513 + $0x40] sm:$0xf]
      %v2708 = vld [vmem:[%s2513 + $0x44] sm:$0x1]
      %v2709 = vld [vmem:[%s2513 + $0x48] sm:$0xf]
      %v2710 = vld [vmem:[%s2513 + $0x4c] sm:$0xf]
      %v2711 = vld [vmem:[%s2513 + $0x50] sm:$0x1]
      %v2712 = vld [vmem:[%s2513 + $0x54] sm:$0xf]
      %v2713 = vld [vmem:[%s2513 + $0x58] sm:$0xf]
      %v2714 = vld [vmem:[%s2513 + $0x5c] sm:$0x1]
      %v2715 = vld [vmem:[%s2513 + $0x60] sm:$0xf]
      %v2716 = vld [vmem:[%s2513 + $0x64] sm:$0xf]
      %v2717 = vld [vmem:[%s2513 + $0x68] sm:$0x1]
      %v2718 = vld [vmem:[%s2513 + $0x6c] sm:$0xf]
      %v2719 = vld [vmem:[%s2513 + $0x70] sm:$0xf]
      %v2720 = vld [vmem:[%s2513 + $0x74] sm:$0x1]
      %v2721 = vld [vmem:[%s2513 + $0x78] sm:$0xf]
      %v2722 = vld [vmem:[%s2513 + $0x7c] sm:$0xf]
      %v2723 = vld [vmem:[%s2513 + $0x80] sm:$0x1]
      %v2724 = vld [vmem:[%s2513 + $0x84] sm:$0xf]
      %v2725 = vld [vmem:[%s2513 + $0x88] sm:$0xf]
      %v2726 = vld [vmem:[%s2513 + $0x8c] sm:$0x1]
      %v2727 = vld [vmem:[%s2513 + $0x90] sm:$0xf]
      %v2728 = vld [vmem:[%s2513 + $0x94] sm:$0xf]
      %v2729 = vld [vmem:[%s2513 + $0x98] sm:$0x1]
      %v2730 = vld [vmem:[%s2513 + $0x9c] sm:$0xf]
      %v2731 = vld [vmem:[%s2513 + $0xa0] sm:$0xf]
      %v2732 = vld [vmem:[%s2513 + $0xa4] sm:$0x1]
      %v2733 = vld [vmem:[%s2513 + $0xa8] sm:$0xf]
      %v2734 = vld [vmem:[%s2513 + $0xac] sm:$0xf]
      %v2735 = vld [vmem:[%s2513 + $0xb0] sm:$0x1]
      %v2736 = vld [vmem:[%s2513 + $0xb4] sm:$0xf]
      %v2737 = vld [vmem:[%s2513 + $0xb8] sm:$0xf]
      %v2738 = vld [vmem:[%s2513 + $0xbc] sm:$0x1]
      %v2787 = vunpack.c.l.b16 %v2691
      %v2788 = vunpack.c.l.b16 %v2692
      %v2789 = vunpack.c.l.b16 %v2693
      %v2790 = vunpack.c.l.b16 %v2694
      %v2791 = vunpack.c.l.b16 %v2695
      %v2792 = vunpack.c.l.b16 %v2696
      %v2793 = vunpack.c.l.b16 %v2697
      %v2794 = vunpack.c.l.b16 %v2698
      %v2795 = vunpack.c.l.b16 %v2699
      %v2796 = vunpack.c.l.b16 %v2700
      %v2797 = vunpack.c.l.b16 %v2701
      %v2798 = vunpack.c.l.b16 %v2702
      %v2799 = vunpack.c.l.b16 %v2703
      %v2800 = vunpack.c.l.b16 %v2704
      %v2801 = vunpack.c.l.b16 %v2705
      %v2802 = vunpack.c.l.b16 %v2706
      %v2803 = vunpack.c.l.b16 %v2707
      %v2804 = vunpack.c.l.b16 %v2708
      %v2805 = vunpack.c.l.b16 %v2709
      %v2806 = vunpack.c.l.b16 %v2710
      %v2807 = vunpack.c.l.b16 %v2711
      %v2808 = vunpack.c.l.b16 %v2712
      %v2809 = vunpack.c.l.b16 %v2713
      %v2810 = vunpack.c.l.b16 %v2714
      %v2811 = vunpack.c.l.b16 %v2715
      %v2812 = vunpack.c.l.b16 %v2716
      %v2813 = vunpack.c.l.b16 %v2717
      %v2814 = vunpack.c.l.b16 %v2718
      %v2815 = vunpack.c.l.b16 %v2719
      %v2816 = vunpack.c.l.b16 %v2720
      %v2817 = vunpack.c.l.b16 %v2721
      %v2818 = vunpack.c.l.b16 %v2722
      %v2819 = vunpack.c.l.b16 %v2723
      %v2820 = vunpack.c.l.b16 %v2724
      %v2821 = vunpack.c.l.b16 %v2725
      %v2822 = vunpack.c.l.b16 %v2726
      %v2823 = vunpack.c.l.b16 %v2727
      %v2824 = vunpack.c.l.b16 %v2728
      %v2825 = vunpack.c.l.b16 %v2729
      %v2826 = vunpack.c.l.b16 %v2730
      %v2827 = vunpack.c.l.b16 %v2731
      %v2828 = vunpack.c.l.b16 %v2732
      %v2829 = vunpack.c.l.b16 %v2733
      %v2830 = vunpack.c.l.b16 %v2734
      %v2831 = vunpack.c.l.b16 %v2735
      %v2832 = vunpack.c.l.b16 %v2736
      %v2833 = vunpack.c.l.b16 %v2737
      %v2834 = vunpack.c.l.b16 %v2738
      %v2835 = vpack.c.b16 %v2788, %v2787
      %v2836 = vpack.c.b16 %v2789, %v2789
      %v2837 = vpack.c.b16 %v2791, %v2790
      %v2838 = vpack.c.b16 %v2792, %v2792
      %v2839 = vpack.c.b16 %v2794, %v2793
      %v2840 = vpack.c.b16 %v2795, %v2795
      %v2841 = vpack.c.b16 %v2797, %v2796
      %v2842 = vpack.c.b16 %v2798, %v2798
      %v2843 = vpack.c.b16 %v2800, %v2799
      %v2844 = vpack.c.b16 %v2801, %v2801
      %v2845 = vpack.c.b16 %v2803, %v2802
      %v2846 = vpack.c.b16 %v2804, %v2804
      %v2847 = vpack.c.b16 %v2806, %v2805
      %v2848 = vpack.c.b16 %v2807, %v2807
      %v2849 = vpack.c.b16 %v2809, %v2808
      %v2850 = vpack.c.b16 %v2810, %v2810
      %v2851 = vpack.c.b16 %v2812, %v2811
      %v2852 = vpack.c.b16 %v2813, %v2813
      %v2853 = vpack.c.b16 %v2815, %v2814
      %v2854 = vpack.c.b16 %v2816, %v2816
      %v2855 = vpack.c.b16 %v2818, %v2817
      %v2856 = vpack.c.b16 %v2819, %v2819
      %v2857 = vpack.c.b16 %v2821, %v2820
      %v2858 = vpack.c.b16 %v2822, %v2822
      %v2859 = vpack.c.b16 %v2824, %v2823
      %v2860 = vpack.c.b16 %v2825, %v2825
      %v2861 = vpack.c.b16 %v2827, %v2826
      %v2862 = vpack.c.b16 %v2828, %v2828
      %v2863 = vpack.c.b16 %v2830, %v2829
      %v2864 = vpack.c.b16 %v2831, %v2831
      %v2865 = vpack.c.b16 %v2833, %v2832
      %v2866 = vpack.c.b16 %v2834, %v2834
      %v2868 = vshrl.u32 %v2835, 16
      %v2870 = vshll.u32 %v2835, 16
      %v2872 = vrot.slane %v2870, 1
      %v2873 = vor.u32 %v2868, %v2872
      %v2875 = vshll.u32 %v2836, 16
      %v2877 = vrot.slane %v2875, 1
      %v2878 = vsel %vm1066, %v2873, %v2877
      %v2880 = vshrl.u32 %v2837, 16
      %v2882 = vshll.u32 %v2837, 16
      %v2884 = vrot.slane %v2882, 1
      %v2885 = vor.u32 %v2880, %v2884
      %v2887 = vshll.u32 %v2838, 16
      %v2889 = vrot.slane %v2887, 1
      %v2890 = vsel %vm1066, %v2885, %v2889
      %v2892 = vshrl.u32 %v2839, 16
      %v2894 = vshll.u32 %v2839, 16
      %v2896 = vrot.slane %v2894, 1
      %v2897 = vor.u32 %v2892, %v2896
      %v2899 = vshll.u32 %v2840, 16
      %v2901 = vrot.slane %v2899, 1
      %v2902 = vsel %vm1066, %v2897, %v2901
      %v2904 = vshrl.u32 %v2841, 16
      %v2906 = vshll.u32 %v2841, 16
      %v2908 = vrot.slane %v2906, 1
      %v2909 = vor.u32 %v2904, %v2908
      %v2911 = vshll.u32 %v2842, 16
      %v2913 = vrot.slane %v2911, 1
      %v2914 = vsel %vm1066, %v2909, %v2913
      %v2916 = vshrl.u32 %v2843, 16
      %v2918 = vshll.u32 %v2843, 16
      %v2920 = vrot.slane %v2918, 1
      %v2921 = vor.u32 %v2916, %v2920
      %v2923 = vshll.u32 %v2844, 16
      %v2925 = vrot.slane %v2923, 1
      %v2926 = vsel %vm1066, %v2921, %v2925
      %v2928 = vshrl.u32 %v2845, 16
      %v2930 = vshll.u32 %v2845, 16
      %v2932 = vrot.slane %v2930, 1
      %v2933 = vor.u32 %v2928, %v2932
      %v2935 = vshll.u32 %v2846, 16
      %v2937 = vrot.slane %v2935, 1
      %v2938 = vsel %vm1066, %v2933, %v2937
      %v2940 = vshrl.u32 %v2847, 16
      %v2942 = vshll.u32 %v2847, 16
      %v2944 = vrot.slane %v2942, 1
      %v2945 = vor.u32 %v2940, %v2944
      %v2947 = vshll.u32 %v2848, 16
      %v2949 = vrot.slane %v2947, 1
      %v2950 = vsel %vm1066, %v2945, %v2949
      %v2952 = vshrl.u32 %v2849, 16
      %v2954 = vshll.u32 %v2849, 16
      %v2956 = vrot.slane %v2954, 1
      %v2957 = vor.u32 %v2952, %v2956
      %v2959 = vshll.u32 %v2850, 16
      %v2961 = vrot.slane %v2959, 1
      %v2962 = vsel %vm1066, %v2957, %v2961
      %v2964 = vshrl.u32 %v2851, 16
      %v2966 = vshll.u32 %v2851, 16
      %v2968 = vrot.slane %v2966, 1
      %v2969 = vor.u32 %v2964, %v2968
      %v2971 = vshll.u32 %v2852, 16
      %v2973 = vrot.slane %v2971, 1
      %v2974 = vsel %vm1066, %v2969, %v2973
      %v2976 = vshrl.u32 %v2853, 16
      %v2978 = vshll.u32 %v2853, 16
      %v2980 = vrot.slane %v2978, 1
      %v2981 = vor.u32 %v2976, %v2980
      %v2983 = vshll.u32 %v2854, 16
      %v2985 = vrot.slane %v2983, 1
      %v2986 = vsel %vm1066, %v2981, %v2985
      %v2988 = vshrl.u32 %v2855, 16
      %v2990 = vshll.u32 %v2855, 16
      %v2992 = vrot.slane %v2990, 1
      %v2993 = vor.u32 %v2988, %v2992
      %v2995 = vshll.u32 %v2856, 16
      %v2997 = vrot.slane %v2995, 1
      %v2998 = vsel %vm1066, %v2993, %v2997
      %v3000 = vshrl.u32 %v2857, 16
      %v3002 = vshll.u32 %v2857, 16
      %v3004 = vrot.slane %v3002, 1
      %v3005 = vor.u32 %v3000, %v3004
      %v3007 = vshll.u32 %v2858, 16
      %v3009 = vrot.slane %v3007, 1
      %v3010 = vsel %vm1066, %v3005, %v3009
      %v3012 = vshrl.u32 %v2859, 16
      %v3014 = vshll.u32 %v2859, 16
      %v3016 = vrot.slane %v3014, 1
      %v3017 = vor.u32 %v3012, %v3016
      %v3019 = vshll.u32 %v2860, 16
      %v3021 = vrot.slane %v3019, 1
      %v3022 = vsel %vm1066, %v3017, %v3021
      %v3024 = vshrl.u32 %v2861, 16
      %v3026 = vshll.u32 %v2861, 16
      %v3028 = vrot.slane %v3026, 1
      %v3029 = vor.u32 %v3024, %v3028
      %v3031 = vshll.u32 %v2862, 16
      %v3033 = vrot.slane %v3031, 1
      %v3034 = vsel %vm1066, %v3029, %v3033
      %v3036 = vshrl.u32 %v2863, 16
      %v3038 = vshll.u32 %v2863, 16
      %v3040 = vrot.slane %v3038, 1
      %v3041 = vor.u32 %v3036, %v3040
      %v3043 = vshll.u32 %v2864, 16
      %v3045 = vrot.slane %v3043, 1
      %v3046 = vsel %vm1066, %v3041, %v3045
      %v3048 = vshrl.u32 %v2865, 16
      %v3050 = vshll.u32 %v2865, 16
      %v3052 = vrot.slane %v3050, 1
      %v3053 = vor.u32 %v3048, %v3052
      %v3055 = vshll.u32 %v2866, 16
      %v3057 = vrot.slane %v3055, 1
      %v3058 = vsel %vm1066, %v3053, %v3057
      %3059 = vrot.lane.b32.xlu0 %v2878, 28
      %v3060 = vpop.permute.xlu0 %3059
      %3061 = vrot.lane.b32.xlu0 %v2890, 28
      %v3062 = vpop.permute.xlu0 %3061
      %3063 = vrot.lane.b32.xlu0 %v2902, 28
      %v3064 = vpop.permute.xlu0 %3063
      %3065 = vrot.lane.b32.xlu0 %v2914, 28
      %v3066 = vpop.permute.xlu0 %3065
      %3067 = vrot.lane.b32.xlu0 %v2926, 28
      %v3068 = vpop.permute.xlu0 %3067
      %3069 = vrot.lane.b32.xlu0 %v2938, 28
      %v3070 = vpop.permute.xlu0 %3069
      %3071 = vrot.lane.b32.xlu0 %v2950, 28
      %v3072 = vpop.permute.xlu0 %3071
      %3073 = vrot.lane.b32.xlu0 %v2962, 28
      %v3074 = vpop.permute.xlu0 %3073
      %3075 = vrot.lane.b32.xlu0 %v2974, 28
      %v3076 = vpop.permute.xlu0 %3075
      %3077 = vrot.lane.b32.xlu0 %v2986, 28
      %v3078 = vpop.permute.xlu0 %3077
      %3079 = vrot.lane.b32.xlu0 %v2998, 28
      %v3080 = vpop.permute.xlu0 %3079
      %3081 = vrot.lane.b32.xlu0 %v3010, 28
      %v3082 = vpop.permute.xlu0 %3081
      %3083 = vrot.lane.b32.xlu0 %v3022, 28
      %v3084 = vpop.permute.xlu0 %3083
      %3085 = vrot.lane.b32.xlu0 %v3034, 28
      %v3086 = vpop.permute.xlu0 %3085
      %3087 = vrot.lane.b32.xlu0 %v3046, 28
      %v3088 = vpop.permute.xlu0 %3087
      %3089 = vrot.lane.b32.xlu0 %v3058, 28
      %v3090 = vpop.permute.xlu0 %3089
      %vm3107 = vcmask 261344
      %3108 = vst.msk [vmem:[#allocation3] sm:$0xff] %vm3107, %v3060
      %3109 = vst.msk [vmem:[#allocation3 + $0x8] sm:$0xff] %vm3107, %v3062
      %3110 = vst.msk [vmem:[#allocation3 + $0x10] sm:$0xff] %vm3107, %v3064
      %3111 = vst.msk [vmem:[#allocation3 + $0x18] sm:$0xff] %vm3107, %v3066
      %3112 = vst.msk [vmem:[#allocation3 + $0x20] sm:$0xff] %vm3107, %v3068
      %3113 = vst.msk [vmem:[#allocation3 + $0x28] sm:$0xff] %vm3107, %v3070
      %3114 = vst.msk [vmem:[#allocation3 + $0x30] sm:$0xff] %vm3107, %v3072
      %3115 = vst.msk [vmem:[#allocation3 + $0x38] sm:$0xff] %vm3107, %v3074
      %3116 = vst.msk [vmem:[#allocation3 + $0x40] sm:$0xff] %vm3107, %v3076
      %3117 = vst.msk [vmem:[#allocation3 + $0x48] sm:$0xff] %vm3107, %v3078
      %3118 = vst.msk [vmem:[#allocation3 + $0x50] sm:$0xff] %vm3107, %v3080
      %3119 = vst.msk [vmem:[#allocation3 + $0x58] sm:$0xff] %vm3107, %v3082
      %3120 = vst.msk [vmem:[#allocation3 + $0x60] sm:$0xff] %vm3107, %v3084
      %3121 = vst.msk [vmem:[#allocation3 + $0x68] sm:$0xff] %vm3107, %v3086
      %3122 = vst.msk [vmem:[#allocation3 + $0x70] sm:$0xff] %vm3107, %v3088
      %3123 = vst.msk [vmem:[#allocation3 + $0x78] sm:$0xff] %vm3107, %v3090
      %v3124 = vld [vmem:[%s2513] sm:$0xe]
      %v3125 = vld [vmem:[%s2513 + $0x4] sm:$0xf]
      %v3126 = vld [vmem:[%s2513 + $0x8] sm:$0x1]
      %v3127 = vld [vmem:[%s2513 + $0xc] sm:$0xe]
      %v3128 = vld [vmem:[%s2513 + $0x10] sm:$0xf]
      %v3129 = vld [vmem:[%s2513 + $0x14] sm:$0x1]
      %v3130 = vld [vmem:[%s2513 + $0x18] sm:$0xe]
      %v3131 = vld [vmem:[%s2513 + $0x1c] sm:$0xf]
      %v3132 = vld [vmem:[%s2513 + $0x20] sm:$0x1]
      %v3133 = vld [vmem:[%s2513 + $0x24] sm:$0xe]
      %v3134 = vld [vmem:[%s2513 + $0x28] sm:$0xf]
      %v3135 = vld [vmem:[%s2513 + $0x2c] sm:$0x1]
      %v3136 = vld [vmem:[%s2513 + $0x30] sm:$0xe]
      %v3137 = vld [vmem:[%s2513 + $0x34] sm:$0xf]
      %v3138 = vld [vmem:[%s2513 + $0x38] sm:$0x1]
      %v3139 = vld [vmem:[%s2513 + $0x3c] sm:$0xe]
      %v3140 = vld [vmem:[%s2513 + $0x40] sm:$0xf]
      %v3141 = vld [vmem:[%s2513 + $0x44] sm:$0x1]
      %v3142 = vld [vmem:[%s2513 + $0x48] sm:$0xe]
      %v3143 = vld [vmem:[%s2513 + $0x4c] sm:$0xf]
      %v3144 = vld [vmem:[%s2513 + $0x50] sm:$0x1]
      %v3145 = vld [vmem:[%s2513 + $0x54] sm:$0xe]
      %v3146 = vld [vmem:[%s2513 + $0x58] sm:$0xf]
      %v3147 = vld [vmem:[%s2513 + $0x5c] sm:$0x1]
      %v3148 = vld [vmem:[%s2513 + $0x60] sm:$0xe]
      %v3149 = vld [vmem:[%s2513 + $0x64] sm:$0xf]
      %v3150 = vld [vmem:[%s2513 + $0x68] sm:$0x1]
      %v3151 = vld [vmem:[%s2513 + $0x6c] sm:$0xe]
      %v3152 = vld [vmem:[%s2513 + $0x70] sm:$0xf]
      %v3153 = vld [vmem:[%s2513 + $0x74] sm:$0x1]
      %v3154 = vld [vmem:[%s2513 + $0x78] sm:$0xe]
      %v3155 = vld [vmem:[%s2513 + $0x7c] sm:$0xf]
      %v3156 = vld [vmem:[%s2513 + $0x80] sm:$0x1]
      %v3157 = vld [vmem:[%s2513 + $0x84] sm:$0xe]
      %v3158 = vld [vmem:[%s2513 + $0x88] sm:$0xf]
      %v3159 = vld [vmem:[%s2513 + $0x8c] sm:$0x1]
      %v3160 = vld [vmem:[%s2513 + $0x90] sm:$0xe]
      %v3161 = vld [vmem:[%s2513 + $0x94] sm:$0xf]
      %v3162 = vld [vmem:[%s2513 + $0x98] sm:$0x1]
      %v3163 = vld [vmem:[%s2513 + $0x9c] sm:$0xe]
      %v3164 = vld [vmem:[%s2513 + $0xa0] sm:$0xf]
      %v3165 = vld [vmem:[%s2513 + $0xa4] sm:$0x1]
      %v3166 = vld [vmem:[%s2513 + $0xa8] sm:$0xe]
      %v3167 = vld [vmem:[%s2513 + $0xac] sm:$0xf]
      %v3168 = vld [vmem:[%s2513 + $0xb0] sm:$0x1]
      %v3169 = vld [vmem:[%s2513 + $0xb4] sm:$0xe]
      %v3170 = vld [vmem:[%s2513 + $0xb8] sm:$0xf]
      %v3171 = vld [vmem:[%s2513 + $0xbc] sm:$0x1]
      %v3220 = vunpack.c.l.b16 %v3124
      %v3221 = vunpack.c.l.b16 %v3125
      %v3222 = vunpack.c.l.b16 %v3126
      %v3223 = vunpack.c.l.b16 %v3127
      %v3224 = vunpack.c.l.b16 %v3128
      %v3225 = vunpack.c.l.b16 %v3129
      %v3226 = vunpack.c.l.b16 %v3130
      %v3227 = vunpack.c.l.b16 %v3131
      %v3228 = vunpack.c.l.b16 %v3132
      %v3229 = vunpack.c.l.b16 %v3133
      %v3230 = vunpack.c.l.b16 %v3134
      %v3231 = vunpack.c.l.b16 %v3135
      %v3232 = vunpack.c.l.b16 %v3136
      %v3233 = vunpack.c.l.b16 %v3137
      %v3234 = vunpack.c.l.b16 %v3138
      %v3235 = vunpack.c.l.b16 %v3139
      %v3236 = vunpack.c.l.b16 %v3140
      %v3237 = vunpack.c.l.b16 %v3141
      %v3238 = vunpack.c.l.b16 %v3142
      %v3239 = vunpack.c.l.b16 %v3143
      %v3240 = vunpack.c.l.b16 %v3144
      %v3241 = vunpack.c.l.b16 %v3145
      %v3242 = vunpack.c.l.b16 %v3146
      %v3243 = vunpack.c.l.b16 %v3147
      %v3244 = vunpack.c.l.b16 %v3148
      %v3245 = vunpack.c.l.b16 %v3149
      %v3246 = vunpack.c.l.b16 %v3150
      %v3247 = vunpack.c.l.b16 %v3151
      %v3248 = vunpack.c.l.b16 %v3152
      %v3249 = vunpack.c.l.b16 %v3153
      %v3250 = vunpack.c.l.b16 %v3154
      %v3251 = vunpack.c.l.b16 %v3155
      %v3252 = vunpack.c.l.b16 %v3156
      %v3253 = vunpack.c.l.b16 %v3157
      %v3254 = vunpack.c.l.b16 %v3158
      %v3255 = vunpack.c.l.b16 %v3159
      %v3256 = vunpack.c.l.b16 %v3160
      %v3257 = vunpack.c.l.b16 %v3161
      %v3258 = vunpack.c.l.b16 %v3162
      %v3259 = vunpack.c.l.b16 %v3163
      %v3260 = vunpack.c.l.b16 %v3164
      %v3261 = vunpack.c.l.b16 %v3165
      %v3262 = vunpack.c.l.b16 %v3166
      %v3263 = vunpack.c.l.b16 %v3167
      %v3264 = vunpack.c.l.b16 %v3168
      %v3265 = vunpack.c.l.b16 %v3169
      %v3266 = vunpack.c.l.b16 %v3170
      %v3267 = vunpack.c.l.b16 %v3171
      %v3268 = vpack.c.b16 %v3221, %v3220
      %v3269 = vpack.c.b16 %v3222, %v3222
      %v3270 = vpack.c.b16 %v3224, %v3223
      %v3271 = vpack.c.b16 %v3225, %v3225
      %v3272 = vpack.c.b16 %v3227, %v3226
      %v3273 = vpack.c.b16 %v3228, %v3228
      %v3274 = vpack.c.b16 %v3230, %v3229
      %v3275 = vpack.c.b16 %v3231, %v3231
      %v3276 = vpack.c.b16 %v3233, %v3232
      %v3277 = vpack.c.b16 %v3234, %v3234
      %v3278 = vpack.c.b16 %v3236, %v3235
      %v3279 = vpack.c.b16 %v3237, %v3237
      %v3280 = vpack.c.b16 %v3239, %v3238
      %v3281 = vpack.c.b16 %v3240, %v3240
      %v3282 = vpack.c.b16 %v3242, %v3241
      %v3283 = vpack.c.b16 %v3243, %v3243
      %v3284 = vpack.c.b16 %v3245, %v3244
      %v3285 = vpack.c.b16 %v3246, %v3246
      %v3286 = vpack.c.b16 %v3248, %v3247
      %v3287 = vpack.c.b16 %v3249, %v3249
      %v3288 = vpack.c.b16 %v3251, %v3250
      %v3289 = vpack.c.b16 %v3252, %v3252
      %v3290 = vpack.c.b16 %v3254, %v3253
      %v3291 = vpack.c.b16 %v3255, %v3255
      %v3292 = vpack.c.b16 %v3257, %v3256
      %v3293 = vpack.c.b16 %v3258, %v3258
      %v3294 = vpack.c.b16 %v3260, %v3259
      %v3295 = vpack.c.b16 %v3261, %v3261
      %v3296 = vpack.c.b16 %v3263, %v3262
      %v3297 = vpack.c.b16 %v3264, %v3264
      %v3298 = vpack.c.b16 %v3266, %v3265
      %v3299 = vpack.c.b16 %v3267, %v3267
      %v3300 = vrot.slane %v3268, 1
      %v3301 = vrot.slane %v3269, 1
      %v3302 = vsel %vm1500, %v3300, %v3301
      %v3303 = vrot.slane %v3270, 1
      %v3304 = vrot.slane %v3271, 1
      %v3305 = vsel %vm1500, %v3303, %v3304
      %v3306 = vrot.slane %v3272, 1
      %v3307 = vrot.slane %v3273, 1
      %v3308 = vsel %vm1500, %v3306, %v3307
      %v3309 = vrot.slane %v3274, 1
      %v3310 = vrot.slane %v3275, 1
      %v3311 = vsel %vm1500, %v3309, %v3310
      %v3312 = vrot.slane %v3276, 1
      %v3313 = vrot.slane %v3277, 1
      %v3314 = vsel %vm1500, %v3312, %v3313
      %v3315 = vrot.slane %v3278, 1
      %v3316 = vrot.slane %v3279, 1
      %v3317 = vsel %vm1500, %v3315, %v3316
      %v3318 = vrot.slane %v3280, 1
      %v3319 = vrot.slane %v3281, 1
      %v3320 = vsel %vm1500, %v3318, %v3319
      %v3321 = vrot.slane %v3282, 1
      %v3322 = vrot.slane %v3283, 1
      %v3323 = vsel %vm1500, %v3321, %v3322
      %v3324 = vrot.slane %v3284, 1
      %v3325 = vrot.slane %v3285, 1
      %v3326 = vsel %vm1500, %v3324, %v3325
      %v3327 = vrot.slane %v3286, 1
      %v3328 = vrot.slane %v3287, 1
      %v3329 = vsel %vm1500, %v3327, %v3328
      %v3330 = vrot.slane %v3288, 1
      %v3331 = vrot.slane %v3289, 1
      %v3332 = vsel %vm1500, %v3330, %v3331
      %v3333 = vrot.slane %v3290, 1
      %v3334 = vrot.slane %v3291, 1
      %v3335 = vsel %vm1500, %v3333, %v3334
      %v3336 = vrot.slane %v3292, 1
      %v3337 = vrot.slane %v3293, 1
      %v3338 = vsel %vm1500, %v3336, %v3337
      %v3339 = vrot.slane %v3294, 1
      %v3340 = vrot.slane %v3295, 1
      %v3341 = vsel %vm1500, %v3339, %v3340
      %v3342 = vrot.slane %v3296, 1
      %v3343 = vrot.slane %v3297, 1
      %v3344 = vsel %vm1500, %v3342, %v3343
      %v3345 = vrot.slane %v3298, 1
      %v3346 = vrot.slane %v3299, 1
      %v3347 = vsel %vm1500, %v3345, %v3346
      %3348 = vrot.lane.b32.xlu0 %v3302, 32
      %v3349 = vpop.permute.xlu0 %3348
      %3350 = vrot.lane.b32.xlu0 %v3305, 32
      %v3351 = vpop.permute.xlu0 %3350
      %3352 = vrot.lane.b32.xlu0 %v3308, 32
      %v3353 = vpop.permute.xlu0 %3352
      %3354 = vrot.lane.b32.xlu0 %v3311, 32
      %v3355 = vpop.permute.xlu0 %3354
      %3356 = vrot.lane.b32.xlu0 %v3314, 32
      %v3357 = vpop.permute.xlu0 %3356
      %3358 = vrot.lane.b32.xlu0 %v3317, 32
      %v3359 = vpop.permute.xlu0 %3358
      %3360 = vrot.lane.b32.xlu0 %v3320, 32
      %v3361 = vpop.permute.xlu0 %3360
      %3362 = vrot.lane.b32.xlu0 %v3323, 32
      %v3363 = vpop.permute.xlu0 %3362
      %3364 = vrot.lane.b32.xlu0 %v3326, 32
      %v3365 = vpop.permute.xlu0 %3364
      %3366 = vrot.lane.b32.xlu0 %v3329, 32
      %v3367 = vpop.permute.xlu0 %3366
      %3368 = vrot.lane.b32.xlu0 %v3332, 32
      %v3369 = vpop.permute.xlu0 %3368
      %3370 = vrot.lane.b32.xlu0 %v3335, 32
      %v3371 = vpop.permute.xlu0 %3370
      %3372 = vrot.lane.b32.xlu0 %v3338, 32
      %v3373 = vpop.permute.xlu0 %3372
      %3374 = vrot.lane.b32.xlu0 %v3341, 32
      %v3375 = vpop.permute.xlu0 %3374
      %3376 = vrot.lane.b32.xlu0 %v3344, 32
      %v3377 = vpop.permute.xlu0 %3376
      %3378 = vrot.lane.b32.xlu0 %v3347, 32
      %v3379 = vpop.permute.xlu0 %3378
      %vm3396 = vcmask 294144
      %3397 = vst.msk [vmem:[#allocation3] sm:$0xff] %vm3396, %v3349
      %3398 = vst.msk [vmem:[#allocation3 + $0x8] sm:$0xff] %vm3396, %v3351
      %3399 = vst.msk [vmem:[#allocation3 + $0x10] sm:$0xff] %vm3396, %v3353
      %3400 = vst.msk [vmem:[#allocation3 + $0x18] sm:$0xff] %vm3396, %v3355
      %3401 = vst.msk [vmem:[#allocation3 + $0x20] sm:$0xff] %vm3396, %v3357
      %3402 = vst.msk [vmem:[#allocation3 + $0x28] sm:$0xff] %vm3396, %v3359
      %3403 = vst.msk [vmem:[#allocation3 + $0x30] sm:$0xff] %vm3396, %v3361
      %3404 = vst.msk [vmem:[#allocation3 + $0x38] sm:$0xff] %vm3396, %v3363
      %3405 = vst.msk [vmem:[#allocation3 + $0x40] sm:$0xff] %vm3396, %v3365
      %3406 = vst.msk [vmem:[#allocation3 + $0x48] sm:$0xff] %vm3396, %v3367
      %3407 = vst.msk [vmem:[#allocation3 + $0x50] sm:$0xff] %vm3396, %v3369
      %3408 = vst.msk [vmem:[#allocation3 + $0x58] sm:$0xff] %vm3396, %v3371
      %3409 = vst.msk [vmem:[#allocation3 + $0x60] sm:$0xff] %vm3396, %v3373
      %3410 = vst.msk [vmem:[#allocation3 + $0x68] sm:$0xff] %vm3396, %v3375
      %3411 = vst.msk [vmem:[#allocation3 + $0x70] sm:$0xff] %vm3396, %v3377
      %3412 = vst.msk [vmem:[#allocation3 + $0x78] sm:$0xff] %vm3396, %v3379
      %v3413 = vld [vmem:[#allocation3] sm:$0xff]
      %v3414 = vld [vmem:[#allocation3 + $0x8] sm:$0xff]
      %v3415 = vld [vmem:[#allocation3 + $0x10] sm:$0xff]
      %v3416 = vld [vmem:[#allocation3 + $0x18] sm:$0xff]
      %v3417 = vld [vmem:[#allocation3 + $0x20] sm:$0xff]
      %v3418 = vld [vmem:[#allocation3 + $0x28] sm:$0xff]
      %v3419 = vld [vmem:[#allocation3 + $0x30] sm:$0xff]
      %v3420 = vld [vmem:[#allocation3 + $0x38] sm:$0xff]
      %v3421 = vld [vmem:[#allocation3 + $0x40] sm:$0xff]
      %v3422 = vld [vmem:[#allocation3 + $0x48] sm:$0xff]
      %v3423 = vld [vmem:[#allocation3 + $0x50] sm:$0xff]
      %v3424 = vld [vmem:[#allocation3 + $0x58] sm:$0xff]
      %v3425 = vld [vmem:[#allocation3 + $0x60] sm:$0xff]
      %v3426 = vld [vmem:[#allocation3 + $0x68] sm:$0xff]
      %v3427 = vld [vmem:[#allocation3 + $0x70] sm:$0xff]
      %v3428 = vld [vmem:[#allocation3 + $0x78] sm:$0xff]
      %v3429 = vld [vmem:[%s1] sm:$0xf]
      %v3430 = vld [vmem:[%s1 + $0x4] sm:$0xf]
      %v3431 = vld [vmem:[%s1 + $0x8] sm:$0xf]
      %v3432 = vld [vmem:[%s1 + $0xc] sm:$0xf]
      %v3433 = vld [vmem:[%s1 + $0x10] sm:$0x3]
      %v3439 = vunpack.c.l.b16 %v3429
      %v3440 = vunpack.c.l.b16 %v3430
      %v3441 = vunpack.c.l.b16 %v3431
      %v3442 = vunpack.c.l.b16 %v3432
      %v3443 = vunpack.c.l.b16 %v3433
      %v3444 = vpack.c.b16 %v3440, %v3439
      %v3445 = vpack.c.b16 %v3442, %v3441
      %v3446 = vpack.c.b16 %v3443, %v3443
      %vm3449 = vcmask 293888
      %v3451 = vsel %vm3449, %v3413, 0
      %v3454 = vsel %vm3449, %v3414, 0
      %v3457 = vsel %vm3449, %v3415, 0
      %v3460 = vsel %vm3449, %v3416, 0
      %v3463 = vsel %vm3449, %v3417, 0
      %v3466 = vsel %vm3449, %v3418, 0
      %v3469 = vsel %vm3449, %v3419, 0
      %v3472 = vsel %vm3449, %v3420, 0
      %v3475 = vsel %vm3449, %v3421, 0
      %v3478 = vsel %vm3449, %v3422, 0
      %v3481 = vsel %vm3449, %v3423, 0
      %v3484 = vsel %vm3449, %v3424, 0
      %v3487 = vsel %vm3449, %v3425, 0
      %v3490 = vsel %vm3449, %v3426, 0
      %v3493 = vsel %vm3449, %v3427, 0
      %v3496 = vsel %vm3449, %v3428, 0
      %vm3498 = vcmask 1041408
      %v3500 = vsel %vm3498, %v3446, 0
      %3502 = vmatprep.subr.bf16.mxu0 0
      %3503 = vmatpush1.bf16.msra.mxu0 %v3444
      %3504 = vmatprep.subr.bf16.mxu0 0
      %3505 = vmatpush1.bf16.msra.mxu0 %v3445
      %3506 = vmatprep.subr.bf16.mxu0 0
      %3507 = vmatpush1.bf16.msra.mxu0 %v3500
      %3508 = vmatprep.subr.bf16.mxu0 0
      %3509 = vmatpush1.bf16.msra.mxu0 0
      %3510 = vmatprep.subr.bf16.mxu0 0
      %3511 = vmatpush1.bf16.msra.mxu0 0
      %3512 = vmatprep.subr.bf16.mxu0 0
      %3513 = vmatpush1.bf16.msra.mxu0 0
      %3514 = vmatprep.subr.bf16.mxu0 0
      %3515 = vmatpush1.bf16.msra.mxu0 0
      %3516 = vmatprep.subr.bf16.mxu0 0
      %3517 = vmatpush1.bf16.msra.mxu0 0
      %3518 = vmatprep.subr.bf16.mxu0 0
      %3519 = vmatpush1.bf16.msra.mxu0 0
      %3520 = vmatprep.subr.bf16.mxu0 0
      %3521 = vmatpush1.bf16.msra.mxu0 0
      %3522 = vmatprep.subr.bf16.mxu0 0
      %3523 = vmatpush1.bf16.msra.mxu0 0
      %3524 = vmatprep.subr.bf16.mxu0 0
      %3525 = vmatpush1.bf16.msra.mxu0 0
      %3526 = vmatprep.subr.bf16.mxu0 0
      %3527 = vmatpush1.bf16.msra.mxu0 0
      %3528 = vmatprep.subr.bf16.mxu0 0
      %3529 = vmatpush1.bf16.msra.mxu0 0
      %3530 = vmatprep.subr.bf16.mxu0 0
      %3531 = vmatpush1.bf16.msra.mxu0 0
      %3532 = vmatprep.subr.bf16.mxu0 0
      %3533 = vmatpush1.bf16.msra.mxu0 0
      %3534 = vmatprep.mubr.bf16.mxu0 0
      %3535 = vmatmul.mubr.bf16.gmra.mrb[0].mxu0 %v3451
      %v3536 = vpop.f32.mrb[0].mxu0
      %v3537 = vadd.f32 0.0, %v3536
      %v3538 = vpop.f32.mrb[0].mxu0
      %v3539 = vpop.f32.mrb[0].mxu0
      %v3540 = vadd.f32 0.0, %v3539
      %v3541 = vpop.f32.mrb[0].mxu0
      %3542 = vmatprep.mubr.bf16.mxu0 0
      %3543 = vmatmul.mubr.bf16.gmra.mrb[0].mxu0 %v3454
      %v3544 = vpop.f32.mrb[0].mxu0
      %v3545 = vadd.f32 0.0, %v3544
      %v3546 = vpop.f32.mrb[0].mxu0
      %v3547 = vpop.f32.mrb[0].mxu0
      %v3548 = vadd.f32 0.0, %v3547
      %v3549 = vpop.f32.mrb[0].mxu0
      %3550 = vmatprep.mubr.bf16.mxu0 0
      %3551 = vmatmul.mubr.bf16.gmra.mrb[0].mxu0 %v3457
      %v3552 = vpop.f32.mrb[0].mxu0
      %v3553 = vadd.f32 0.0, %v3552
      %v3554 = vpop.f32.mrb[0].mxu0
      %v3555 = vpop.f32.mrb[0].mxu0
      %v3556 = vadd.f32 0.0, %v3555
      %v3557 = vpop.f32.mrb[0].mxu0
      %3558 = vmatprep.mubr.bf16.mxu0 0
      %3559 = vmatmul.mubr.bf16.gmra.mrb[0].mxu0 %v3460
      %v3560 = vpop.f32.mrb[0].mxu0
      %v3561 = vadd.f32 0.0, %v3560
      %v3562 = vpop.f32.mrb[0].mxu0
      %v3563 = vpop.f32.mrb[0].mxu0
      %v3564 = vadd.f32 0.0, %v3563
      %v3565 = vpop.f32.mrb[0].mxu0
      %3566 = vmatprep.mubr.bf16.mxu0 0
      %3567 = vmatmul.mubr.bf16.gmra.mrb[0].mxu0 %v3463
      %v3568 = vpop.f32.mrb[0].mxu0
      %v3569 = vadd.f32 0.0, %v3568
      %v3570 = vpop.f32.mrb[0].mxu0
      %v3571 = vpop.f32.mrb[0].mxu0
      %v3572 = vadd.f32 0.0, %v3571
      %v3573 = vpop.f32.mrb[0].mxu0
      %3574 = vmatprep.mubr.bf16.mxu0 0
      %3575 = vmatmul.mubr.bf16.gmra.mrb[0].mxu0 %v3466
      %v3576 = vpop.f32.mrb[0].mxu0
      %v3577 = vadd.f32 0.0, %v3576
      %v3578 = vpop.f32.mrb[0].mxu0
      %v3579 = vpop.f32.mrb[0].mxu0
      %v3580 = vadd.f32 0.0, %v3579
      %v3581 = vpop.f32.mrb[0].mxu0
      %3582 = vmatprep.mubr.bf16.mxu0 0
      %3583 = vmatmul.mubr.bf16.gmra.mrb[0].mxu0 %v3469
      %v3584 = vpop.f32.mrb[0].mxu0
      %v3585 = vadd.f32 0.0, %v3584
      %v3586 = vpop.f32.mrb[0].mxu0
      %v3587 = vpop.f32.mrb[0].mxu0
      %v3588 = vadd.f32 0.0, %v3587
      %v3589 = vpop.f32.mrb[0].mxu0
      %3590 = vmatprep.mubr.bf16.mxu0 0
      %3591 = vmatmul.mubr.bf16.gmra.mrb[0].mxu0 %v3472
      %v3592 = vpop.f32.mrb[0].mxu0
      %v3593 = vadd.f32 0.0, %v3592
      %v3594 = vpop.f32.mrb[0].mxu0
      %v3595 = vpop.f32.mrb[0].mxu0
      %v3596 = vadd.f32 0.0, %v3595
      %v3597 = vpop.f32.mrb[0].mxu0
      %3598 = vmatprep.mubr.bf16.mxu0 0
      %3599 = vmatmul.mubr.bf16.gmra.mrb[0].mxu0 %v3475
      %v3600 = vpop.f32.mrb[0].mxu0
      %v3601 = vadd.f32 0.0, %v3600
      %v3602 = vpop.f32.mrb[0].mxu0
      %v3603 = vpop.f32.mrb[0].mxu0
      %v3604 = vadd.f32 0.0, %v3603
      %v3605 = vpop.f32.mrb[0].mxu0
      %3606 = vmatprep.mubr.bf16.mxu0 0
      %3607 = vmatmul.mubr.bf16.gmra.mrb[0].mxu0 %v3478
      %v3608 = vpop.f32.mrb[0].mxu0
      %v3609 = vadd.f32 0.0, %v3608
      %v3610 = vpop.f32.mrb[0].mxu0
      %v3611 = vpop.f32.mrb[0].mxu0
      %v3612 = vadd.f32 0.0, %v3611
      %v3613 = vpop.f32.mrb[0].mxu0
      %3614 = vmatprep.mubr.bf16.mxu0 0
      %3615 = vmatmul.mubr.bf16.gmra.mrb[0].mxu0 %v3481
      %v3616 = vpop.f32.mrb[0].mxu0
      %v3617 = vadd.f32 0.0, %v3616
      %v3618 = vpop.f32.mrb[0].mxu0
      %v3619 = vpop.f32.mrb[0].mxu0
      %v3620 = vadd.f32 0.0, %v3619
      %v3621 = vpop.f32.mrb[0].mxu0
      %3622 = vmatprep.mubr.bf16.mxu0 0
      %3623 = vmatmul.mubr.bf16.gmra.mrb[0].mxu0 %v3484
      %v3624 = vpop.f32.mrb[0].mxu0
      %v3625 = vadd.f32 0.0, %v3624
      %v3626 = vpop.f32.mrb[0].mxu0
      %v3627 = vpop.f32.mrb[0].mxu0
      %v3628 = vadd.f32 0.0, %v3627
      %v3629 = vpop.f32.mrb[0].mxu0
      %3630 = vmatprep.mubr.bf16.mxu0 0
      %3631 = vmatmul.mubr.bf16.gmra.mrb[0].mxu0 %v3487
      %v3632 = vpop.f32.mrb[0].mxu0
      %v3633 = vadd.f32 0.0, %v3632
      %v3634 = vpop.f32.mrb[0].mxu0
      %v3635 = vpop.f32.mrb[0].mxu0
      %v3636 = vadd.f32 0.0, %v3635
      %v3637 = vpop.f32.mrb[0].mxu0
      %3638 = vmatprep.mubr.bf16.mxu0 0
      %3639 = vmatmul.mubr.bf16.gmra.mrb[0].mxu0 %v3490
      %v3640 = vpop.f32.mrb[0].mxu0
      %v3641 = vadd.f32 0.0, %v3640
      %v3642 = vpop.f32.mrb[0].mxu0
      %v3643 = vpop.f32.mrb[0].mxu0
      %v3644 = vadd.f32 0.0, %v3643
      %v3645 = vpop.f32.mrb[0].mxu0
      %3646 = vmatprep.mubr.bf16.mxu0 0
      %3647 = vmatmul.mubr.bf16.gmra.mrb[0].mxu0 %v3493
      %v3648 = vpop.f32.mrb[0].mxu0
      %v3649 = vadd.f32 0.0, %v3648
      %v3650 = vpop.f32.mrb[0].mxu0
      %v3651 = vpop.f32.mrb[0].mxu0
      %v3652 = vadd.f32 0.0, %v3651
      %v3653 = vpop.f32.mrb[0].mxu0
      %3654 = vmatprep.mubr.bf16.mxu0 0
      %3655 = vmatmul.mubr.bf16.gmra.mrb[0].mxu0 %v3496
      %v3656 = vpop.f32.mrb[0].mxu0
      %v3657 = vadd.f32 0.0, %v3656
      %v3658 = vpop.f32.mrb[0].mxu0
      %v3659 = vpop.f32.mrb[0].mxu0
      %v3660 = vadd.f32 0.0, %v3659
      %v3661 = vpop.f32.mrb[0].mxu0
      %3662 = vdwg.mxu0
      %v3663 = vpack.c.bf16 %v3540, %v3537
      %v3664 = vpack.c.bf16 %v3548, %v3545
      %v3665 = vpack.c.bf16 %v3556, %v3553
      %v3666 = vpack.c.bf16 %v3564, %v3561
      %v3667 = vpack.c.bf16 %v3572, %v3569
      %v3668 = vpack.c.bf16 %v3580, %v3577
      %v3669 = vpack.c.bf16 %v3588, %v3585
      %v3670 = vpack.c.bf16 %v3596, %v3593
      %v3671 = vpack.c.bf16 %v3604, %v3601
      %v3672 = vpack.c.bf16 %v3612, %v3609
      %v3673 = vpack.c.bf16 %v3620, %v3617
      %v3674 = vpack.c.bf16 %v3628, %v3625
      %v3675 = vpack.c.bf16 %v3636, %v3633
      %v3676 = vpack.c.bf16 %v3644, %v3641
      %v3677 = vpack.c.bf16 %v3652, %v3649
      %v3678 = vpack.c.bf16 %v3660, %v3657
      %v3695 = vunpack.c.l.b16 %v3663
      %v3696 = vunpack.c.h.b16 %v3663
      %v3697 = vunpack.c.l.b16 %v3664
      %v3698 = vunpack.c.h.b16 %v3664
      %v3699 = vunpack.c.l.b16 %v3665
      %v3700 = vunpack.c.h.b16 %v3665
      %v3701 = vunpack.c.l.b16 %v3666
      %v3702 = vunpack.c.h.b16 %v3666
      %v3703 = vunpack.c.l.b16 %v3667
      %v3704 = vunpack.c.h.b16 %v3667
      %v3705 = vunpack.c.l.b16 %v3668
      %v3706 = vunpack.c.h.b16 %v3668
      %v3707 = vunpack.c.l.b16 %v3669
      %v3708 = vunpack.c.h.b16 %v3669
      %v3709 = vunpack.c.l.b16 %v3670
      %v3710 = vunpack.c.h.b16 %v3670
      %v3711 = vunpack.c.l.b16 %v3671
      %v3712 = vunpack.c.h.b16 %v3671
      %v3713 = vunpack.c.l.b16 %v3672
      %v3714 = vunpack.c.h.b16 %v3672
      %v3715 = vunpack.c.l.b16 %v3673
      %v3716 = vunpack.c.h.b16 %v3673
      %v3717 = vunpack.c.l.b16 %v3674
      %v3718 = vunpack.c.h.b16 %v3674
      %v3719 = vunpack.c.l.b16 %v3675
      %v3720 = vunpack.c.h.b16 %v3675
      %v3721 = vunpack.c.l.b16 %v3676
      %v3722 = vunpack.c.h.b16 %v3676
      %v3723 = vunpack.c.l.b16 %v3677
      %v3724 = vunpack.c.h.b16 %v3677
      %v3725 = vunpack.c.l.b16 %v3678
      %v3726 = vunpack.c.h.b16 %v3678
      %v3727 = vpack.c.b16 %v3695, %v3695
      %v3728 = vpack.c.b16 %v3696, %v3696
      %v3729 = vpack.c.b16 %v3697, %v3697
      %v3730 = vpack.c.b16 %v3698, %v3698
      %v3731 = vpack.c.b16 %v3699, %v3699
      %v3732 = vpack.c.b16 %v3700, %v3700
      %v3733 = vpack.c.b16 %v3701, %v3701
      %v3734 = vpack.c.b16 %v3702, %v3702
      %v3735 = vpack.c.b16 %v3703, %v3703
      %v3736 = vpack.c.b16 %v3704, %v3704
      %v3737 = vpack.c.b16 %v3705, %v3705
      %v3738 = vpack.c.b16 %v3706, %v3706
      %v3739 = vpack.c.b16 %v3707, %v3707
      %v3740 = vpack.c.b16 %v3708, %v3708
      %v3741 = vpack.c.b16 %v3709, %v3709
      %v3742 = vpack.c.b16 %v3710, %v3710
      %v3743 = vpack.c.b16 %v3711, %v3711
      %v3744 = vpack.c.b16 %v3712, %v3712
      %v3745 = vpack.c.b16 %v3713, %v3713
      %v3746 = vpack.c.b16 %v3714, %v3714
      %v3747 = vpack.c.b16 %v3715, %v3715
      %v3748 = vpack.c.b16 %v3716, %v3716
      %v3749 = vpack.c.b16 %v3717, %v3717
      %v3750 = vpack.c.b16 %v3718, %v3718
      %v3751 = vpack.c.b16 %v3719, %v3719
      %v3752 = vpack.c.b16 %v3720, %v3720
      %v3753 = vpack.c.b16 %v3721, %v3721
      %v3754 = vpack.c.b16 %v3722, %v3722
      %v3755 = vpack.c.b16 %v3723, %v3723
      %v3756 = vpack.c.b16 %v3724, %v3724
      %v3757 = vpack.c.b16 %v3725, %v3725
      %v3758 = vpack.c.b16 %v3726, %v3726
      %vm3791 = vcmask 60416
      %3792 = vst.msk [vmem:[%s208] sm:$0xf] %vm3791, %v3727
      %3793 = vst.msk [vmem:[%s208 + $0x4] sm:$0xf] %vm3791, %v3728
      %3794 = vst.msk [vmem:[%s208 + $0x8] sm:$0xf] %vm3791, %v3729
      %3795 = vst.msk [vmem:[%s208 + $0xc] sm:$0xf] %vm3791, %v3730
      %3796 = vst.msk [vmem:[%s208 + $0x10] sm:$0xf] %vm3791, %v3731
      %3797 = vst.msk [vmem:[%s208 + $0x14] sm:$0xf] %vm3791, %v3732
      %3798 = vst.msk [vmem:[%s208 + $0x18] sm:$0xf] %vm3791, %v3733
      %3799 = vst.msk [vmem:[%s208 + $0x1c] sm:$0xf] %vm3791, %v3734
      %3800 = vst.msk [vmem:[%s208 + $0x20] sm:$0xf] %vm3791, %v3735
      %3801 = vst.msk [vmem:[%s208 + $0x24] sm:$0xf] %vm3791, %v3736
      %3802 = vst.msk [vmem:[%s208 + $0x28] sm:$0xf] %vm3791, %v3737
      %3803 = vst.msk [vmem:[%s208 + $0x2c] sm:$0xf] %vm3791, %v3738
      %3804 = vst.msk [vmem:[%s208 + $0x30] sm:$0xf] %vm3791, %v3739
      %3805 = vst.msk [vmem:[%s208 + $0x34] sm:$0xf] %vm3791, %v3740
      %3806 = vst.msk [vmem:[%s208 + $0x38] sm:$0xf] %vm3791, %v3741
      %3807 = vst.msk [vmem:[%s208 + $0x3c] sm:$0xf] %vm3791, %v3742
      %3808 = vst.msk [vmem:[%s208 + $0x40] sm:$0xf] %vm3791, %v3743
      %3809 = vst.msk [vmem:[%s208 + $0x44] sm:$0xf] %vm3791, %v3744
      %3810 = vst.msk [vmem:[%s208 + $0x48] sm:$0xf] %vm3791, %v3745
      %3811 = vst.msk [vmem:[%s208 + $0x4c] sm:$0xf] %vm3791, %v3746
      %3812 = vst.msk [vmem:[%s208 + $0x50] sm:$0xf] %vm3791, %v3747
      %3813 = vst.msk [vmem:[%s208 + $0x54] sm:$0xf] %vm3791, %v3748
      %3814 = vst.msk [vmem:[%s208 + $0x58] sm:$0xf] %vm3791, %v3749
      %3815 = vst.msk [vmem:[%s208 + $0x5c] sm:$0xf] %vm3791, %v3750
      %3816 = vst.msk [vmem:[%s208 + $0x60] sm:$0xf] %vm3791, %v3751
      %3817 = vst.msk [vmem:[%s208 + $0x64] sm:$0xf] %vm3791, %v3752
      %3818 = vst.msk [vmem:[%s208 + $0x68] sm:$0xf] %vm3791, %v3753
      %3819 = vst.msk [vmem:[%s208 + $0x6c] sm:$0xf] %vm3791, %v3754
      %3820 = vst.msk [vmem:[%s208 + $0x70] sm:$0xf] %vm3791, %v3755
      %3821 = vst.msk [vmem:[%s208 + $0x74] sm:$0xf] %vm3791, %v3756
      %3822 = vst.msk [vmem:[%s208 + $0x78] sm:$0xf] %vm3791, %v3757
      %3823 = vst.msk [vmem:[%s208 + $0x7c] sm:$0xf] %vm3791, %v3758
      %vm3824 = vcmask 64512
      %v3825 = vsel %vm3824, %v3537, 0.0
      %v3826 = vsel %vm3824, %v3540, 0.0
      %v3827 = vadd.f32 %v3825, %v3826
      %v3828 = vsel %vm3824, %v3545, 0.0
      %v3829 = vadd.f32 %v3827, %v3828
      %v3830 = vsel %vm3824, %v3548, 0.0
      %v3831 = vadd.f32 %v3829, %v3830
      %v3832 = vsel %vm3824, %v3553, 0.0
      %v3833 = vadd.f32 %v3831, %v3832
      %v3834 = vsel %vm3824, %v3556, 0.0
      %v3835 = vadd.f32 %v3833, %v3834
      %v3836 = vsel %vm3824, %v3561, 0.0
      %v3837 = vadd.f32 %v3835, %v3836
      %v3838 = vsel %vm3824, %v3564, 0.0
      %v3839 = vadd.f32 %v3837, %v3838
      %v3840 = vsel %vm3824, %v3569, 0.0
      %v3841 = vadd.f32 %v3839, %v3840
      %v3842 = vsel %vm3824, %v3572, 0.0
      %v3843 = vadd.f32 %v3841, %v3842
      %v3844 = vsel %vm3824, %v3577, 0.0
      %v3845 = vadd.f32 %v3843, %v3844
      %v3846 = vsel %vm3824, %v3580, 0.0
      %v3847 = vadd.f32 %v3845, %v3846
      %v3848 = vsel %vm3824, %v3585, 0.0
      %v3849 = vadd.f32 %v3847, %v3848
      %v3850 = vsel %vm3824, %v3588, 0.0
      %v3851 = vadd.f32 %v3849, %v3850
      %v3852 = vsel %vm3824, %v3593, 0.0
      %v3853 = vadd.f32 %v3851, %v3852
      %v3854 = vsel %vm3824, %v3596, 0.0
      %v3855 = vadd.f32 %v3853, %v3854
      %v3856 = vsel %vm3824, %v3601, 0.0
      %v3857 = vadd.f32 %v3855, %v3856
      %v3858 = vsel %vm3824, %v3604, 0.0
      %v3859 = vadd.f32 %v3857, %v3858
      %v3860 = vsel %vm3824, %v3609, 0.0
      %v3861 = vadd.f32 %v3859, %v3860
      %v3862 = vsel %vm3824, %v3612, 0.0
      %v3863 = vadd.f32 %v3861, %v3862
      %v3864 = vsel %vm3824, %v3617, 0.0
      %v3865 = vadd.f32 %v3863, %v3864
      %v3866 = vsel %vm3824, %v3620, 0.0
      %v3867 = vadd.f32 %v3865, %v3866
      %v3868 = vsel %vm3824, %v3625, 0.0
      %v3869 = vadd.f32 %v3867, %v3868
      %v3870 = vsel %vm3824, %v3628, 0.0
      %v3871 = vadd.f32 %v3869, %v3870
      %v3872 = vsel %vm3824, %v3633, 0.0
      %v3873 = vadd.f32 %v3871, %v3872
      %v3874 = vsel %vm3824, %v3636, 0.0
      %v3875 = vadd.f32 %v3873, %v3874
      %v3876 = vsel %vm3824, %v3641, 0.0
      %v3877 = vadd.f32 %v3875, %v3876
      %v3878 = vsel %vm3824, %v3644, 0.0
      %v3879 = vadd.f32 %v3877, %v3878
      %v3880 = vsel %vm3824, %v3649, 0.0
      %v3881 = vadd.f32 %v3879, %v3880
      %v3882 = vsel %vm3824, %v3652, 0.0
      %v3883 = vadd.f32 %v3881, %v3882
      %v3884 = vsel %vm3824, %v3657, 0.0
      %v3885 = vadd.f32 %v3883, %v3884
      %v3886 = vsel %vm3824, %v3660, 0.0
      %v3887 = vadd.f32 %v3885, %v3886
      %v3888 = vrot.slane %v3887, 4
      %v3889 = vadd.f32 %v3887, %v3888
      %v3890 = vrot.slane %v3889, 2
      %v3891 = vadd.f32 %v3889, %v3890
      %v3892 = vrot.slane %v3891, 1
      %v3893 = vadd.f32 %v3891, %v3892
      %vm3894 = vcmask 57344
      %3895 = vst.msk [vmem:[%s211] sm:$0x1] %vm3894, %v3893
      %v3896 = vmul.f32 %v3537, %v3537
      %v3897 = vmul.f32 %v3540, %v3540
      %v3898 = vmul.f32 %v3545, %v3545
      %v3899 = vmul.f32 %v3548, %v3548
      %v3900 = vmul.f32 %v3553, %v3553
      %v3901 = vmul.f32 %v3556, %v3556
      %v3902 = vmul.f32 %v3561, %v3561
      %v3903 = vmul.f32 %v3564, %v3564
      %v3904 = vmul.f32 %v3569, %v3569
      %v3905 = vmul.f32 %v3572, %v3572
      %v3906 = vmul.f32 %v3577, %v3577
      %v3907 = vmul.f32 %v3580, %v3580
      %v3908 = vmul.f32 %v3585, %v3585
      %v3909 = vmul.f32 %v3588, %v3588
      %v3910 = vmul.f32 %v3593, %v3593
      %v3911 = vmul.f32 %v3596, %v3596
      %v3912 = vmul.f32 %v3601, %v3601
      %v3913 = vmul.f32 %v3604, %v3604
      %v3914 = vmul.f32 %v3609, %v3609
      %v3915 = vmul.f32 %v3612, %v3612
      %v3916 = vmul.f32 %v3617, %v3617
      %v3917 = vmul.f32 %v3620, %v3620
      %v3918 = vmul.f32 %v3625, %v3625
      %v3919 = vmul.f32 %v3628, %v3628
      %v3920 = vmul.f32 %v3633, %v3633
      %v3921 = vmul.f32 %v3636, %v3636
      %v3922 = vmul.f32 %v3641, %v3641
      %v3923 = vmul.f32 %v3644, %v3644
      %v3924 = vmul.f32 %v3649, %v3649
      %v3925 = vmul.f32 %v3652, %v3652
      %v3926 = vmul.f32 %v3657, %v3657
      %v3927 = vmul.f32 %v3660, %v3660
      %v3928 = vsel %vm3824, %v3896, 0.0
      %v3929 = vsel %vm3824, %v3897, 0.0
      %v3930 = vadd.f32 %v3928, %v3929
      %v3931 = vsel %vm3824, %v3898, 0.0
      %v3932 = vadd.f32 %v3930, %v3931
      %v3933 = vsel %vm3824, %v3899, 0.0
      %v3934 = vadd.f32 %v3932, %v3933
      %v3935 = vsel %vm3824, %v3900, 0.0
      %v3936 = vadd.f32 %v3934, %v3935
      %v3937 = vsel %vm3824, %v3901, 0.0
      %v3938 = vadd.f32 %v3936, %v3937
      %v3939 = vsel %vm3824, %v3902, 0.0
      %v3940 = vadd.f32 %v3938, %v3939
      %v3941 = vsel %vm3824, %v3903, 0.0
      %v3942 = vadd.f32 %v3940, %v3941
      %v3943 = vsel %vm3824, %v3904, 0.0
      %v3944 = vadd.f32 %v3942, %v3943
      %v3945 = vsel %vm3824, %v3905, 0.0
      %v3946 = vadd.f32 %v3944, %v3945
      %v3947 = vsel %vm3824, %v3906, 0.0
      %v3948 = vadd.f32 %v3946, %v3947
      %v3949 = vsel %vm3824, %v3907, 0.0
      %v3950 = vadd.f32 %v3948, %v3949
      %v3951 = vsel %vm3824, %v3908, 0.0
      %v3952 = vadd.f32 %v3950, %v3951
      %v3953 = vsel %vm3824, %v3909, 0.0
      %v3954 = vadd.f32 %v3952, %v3953
      %v3955 = vsel %vm3824, %v3910, 0.0
      %v3956 = vadd.f32 %v3954, %v3955
      %v3957 = vsel %vm3824, %v3911, 0.0
      %v3958 = vadd.f32 %v3956, %v3957
      %v3959 = vsel %vm3824, %v3912, 0.0
      %v3960 = vadd.f32 %v3958, %v3959
      %v3961 = vsel %vm3824, %v3913, 0.0
      %v3962 = vadd.f32 %v3960, %v3961
      %v3963 = vsel %vm3824, %v3914, 0.0
      %v3964 = vadd.f32 %v3962, %v3963
      %v3965 = vsel %vm3824, %v3915, 0.0
      %v3966 = vadd.f32 %v3964, %v3965
      %v3967 = vsel %vm3824, %v3916, 0.0
      %v3968 = vadd.f32 %v3966, %v3967
      %v3969 = vsel %vm3824, %v3917, 0.0
      %v3970 = vadd.f32 %v3968, %v3969
      %v3971 = vsel %vm3824, %v3918, 0.0
      %v3972 = vadd.f32 %v3970, %v3971
      %v3973 = vsel %vm3824, %v3919, 0.0
      %v3974 = vadd.f32 %v3972, %v3973
      %v3975 = vsel %vm3824, %v3920, 0.0
      %v3976 = vadd.f32 %v3974, %v3975
      %v3977 = vsel %vm3824, %v3921, 0.0
      %v3978 = vadd.f32 %v3976, %v3977
      %v3979 = vsel %vm3824, %v3922, 0.0
      %v3980 = vadd.f32 %v3978, %v3979
      %v3981 = vsel %vm3824, %v3923, 0.0
      %v3982 = vadd.f32 %v3980, %v3981
      %v3983 = vsel %vm3824, %v3924, 0.0
      %v3984 = vadd.f32 %v3982, %v3983
      %v3985 = vsel %vm3824, %v3925, 0.0
      %v3986 = vadd.f32 %v3984, %v3985
      %v3987 = vsel %vm3824, %v3926, 0.0
      %v3988 = vadd.f32 %v3986, %v3987
      %v3989 = vsel %vm3824, %v3927, 0.0
      %v3990 = vadd.f32 %v3988, %v3989
      %v3991 = vrot.slane %v3990, 4
      %v3992 = vadd.f32 %v3990, %v3991
      %v3993 = vrot.slane %v3992, 2
      %v3994 = vadd.f32 %v3992, %v3993
      %v3995 = vrot.slane %v3994, 1
      %v3996 = vadd.f32 %v3994, %v3995
      %3997 = vst.msk [vmem:[%s214] sm:$0x1] %vm3894, %v3996
      %p3998 = scmp.lt.s32.totalorder %s16, 1
      %s3999 = scalar_select %p3998, %s16, 1
      %s4000 = smul.addr %s3999, 32
      %s4001 = smul.addr %s4000, 4
      %s4002 = scalar_lea.vmem %s2, %s4001
      %p4003 = scmp.lt.s32.totalorder %s16, 1
      %s4004 = scalar_select %p4003, %s16, 1
      %s4005 = scalar_lea.vmem %s3, %s4004
      %p4006 = scmp.lt.s32.totalorder %s16, 1
      %s4007 = scalar_select %p4006, %s16, 1
      %s4008 = scalar_lea.vmem %s4, %s4007
      // Predicated region
      $region29: #{encoder_block_forward.3} parent=27 // pred_check
        %p4009 = pneg %p81
      $region30: #{encoder_block_forward.3} parent=27 // pred_check_branch
        %4011 = sbr.rel (%p4009) target = $region32
      $region31: #{encoder_block_forward.3} parent=27 // pred_region
        _
      $region32: #{encoder_block_forward.3} parent=27 // pred_fallthru
        _
      // Predicated region
      $region33: #{encoder_block_forward.3} parent=27 // pred_check
        %p4012 = pneg %p107
      $region34: #{encoder_block_forward.3} parent=27 // pred_check_branch
        %4014 = sbr.rel (%p4012) target = $region36
      $region35: #{encoder_block_forward.3} parent=27 // pred_region
        _
      $region36: #{encoder_block_forward.3} parent=27 // pred_fallthru
        _
      // Predicated region
      $region37: #{encoder_block_forward.3} parent=27 // pred_check
        %p4015 = pneg %p133
      $region38: #{encoder_block_forward.3} parent=27 // pred_check_branch
        %4017 = sbr.rel (%p4015) target = $region40
      $region39: #{encoder_block_forward.3} parent=27 // pred_region
        _
      $region40: #{encoder_block_forward.3} parent=27 // pred_fallthru
        _
    $region28: #{encoder_block_forward.3} parent=5 // pred_fallthru
      _
    %p4018 = scmp.le.s32.totalorder 2, %s11
    // Predicated region
    $region41: #{encoder_block_forward.3} parent=5 // pred_check
      %p4019 = pneg %p4018
    $region42: #{encoder_block_forward.3} parent=5 // pred_check_branch
      %4021 = sbr.rel (%p4019) target = $region44
    $region43: #{encoder_block_forward.3} parent=5 // pred_region
      %s4022 = ssub.s32 %s11, 2
      // Predicated region
      $region45: #{encoder_block_forward.3} parent=43 // pred_check
        %p4023 = pneg %p87
      $region46: #{encoder_block_forward.3} parent=43 // pred_check_branch
        %4025 = sbr.rel (%p4023) target = $region48
      $region47: #{encoder_block_forward.3} parent=43 // pred_region
        %p4026 = scmp.lt.s32.totalorder %s17, 1
        %s4027 = scalar_select %p4026, %s17, 1
        %s4028 = smul.addr %s4027, 32
        %s4029 = smul.addr %s4028, 4
        %s4030 = scalar_lea.vmem %s2, %s4029
      $region48: #{encoder_block_forward.3} parent=43 // pred_fallthru
        _
      // Predicated region
      $region49: #{encoder_block_forward.3} parent=43 // pred_check
        %p4031 = pneg %p113
      $region50: #{encoder_block_forward.3} parent=43 // pred_check_branch
        %4033 = sbr.rel (%p4031) target = $region52
      $region51: #{encoder_block_forward.3} parent=43 // pred_region
        %p4034 = scmp.lt.s32.totalorder %s17, 1
        %s4035 = scalar_select %p4034, %s17, 1
        %s4036 = scalar_lea.vmem %s3, %s4035
      $region52: #{encoder_block_forward.3} parent=43 // pred_fallthru
        _
      // Predicated region
      $region53: #{encoder_block_forward.3} parent=43 // pred_check
        %p4037 = pneg %p139
      $region54: #{encoder_block_forward.3} parent=43 // pred_check_branch
        %4039 = sbr.rel (%p4037) target = $region56
      $region55: #{encoder_block_forward.3} parent=43 // pred_region
        %p4040 = scmp.lt.s32.totalorder %s17, 1
        %s4041 = scalar_select %p4040, %s17, 1
        %s4042 = scalar_lea.vmem %s4, %s4041
      $region56: #{encoder_block_forward.3} parent=43 // pred_fallthru
        _
    $region44: #{encoder_block_forward.3} parent=5 // pred_fallthru
      _
  $region6: #{encoder_block_forward.3} parent=0 // loop_footer
    %s15 = sadd.s32 1, %s11
  $region7: #{encoder_block_forward.3} parent=0 // loop_footer_branch
    %10 = sbr.rel target = $region3
  $region8: #{encoder_block_forward.3} parent=0 // loop_exit
    _

</llo_original>
